<compile_context>
chip_gen: v7x
topology: tpu7x:2x2x1
jax: 0.10.0
libtpu: 0.0.40
codegen_flags: <defaults>
</compile_context>

<pallas_src>
import functools

import jax
import jax.numpy as jnp
from jax.experimental import pallas as pl
from jax.experimental.pallas import tpu as pltpu

# ----------------------------- model config ---------------------------------
NB_BLOCKS = [1, 1]            # number of BasicBlocks per stage
NB_CHANNELS = [64, 128]       # output channels per stage
DOWNSAMPLE = [False, True]    # stride-2 downsample at first block of stage
NUM_CLASSES = 10
BN_EPS = 1e-5
LANE = 128                    # channel padding target (TPU lane width)
VMEM_LIMIT = 48 * 1024 * 1024  # > default 32 MiB, still safe on v7x (64 MiB phys)
MAX_M_ROWS = 256              # cap B_tile*ho*wo so the f32 acc scratch <= 128 KiB
# TODO(synk): dropout branch of the original module is omitted (identity at inference).


def _round_up(x, m):
    return (x + m - 1) // m * m


def _block_configs():
    cfgs = []
    cur = 64
    for b in range(len(NB_BLOCKS)):
        for bb in range(NB_BLOCKS[b]):
            out_c = NB_CHANNELS[b]
            ds = DOWNSAMPLE[b] if bb == 0 else False
            cfgs.append({"in_c": cur, "out_c": out_c,
                         "downsample": bool(ds),
                         "has_proj": bool(ds or cur != out_c)})
            cur = out_c
    return cfgs


# Static python structure -> block topology never enters the traced pytree.
BLOCK_CONFIGS = _block_configs()


def _pick_btile(n, rows_per_img):
    """Largest divisor of n keeping per-step M = btile*rows_per_img <= MAX_M_ROWS."""
    best = 1
    for d in range(1, n + 1):
        if n % d == 0 and d * rows_per_img <= max(MAX_M_ROWS, rows_per_img):
            best = d
    return best


# ----------------------------- stem conv kernel ------------------------------
def _stem_kernel(p_ref, w_ref, b_ref, o_ref, *, ho, wo):
    """One big-K matmul: im2col patches (B, ho*wo, Kpad) x (Kpad, coutp).

    Writes the output spatially padded with a zero border (pad-on-write)."""
    bt = p_ref.shape[0]
    kpad = p_ref.shape[-1]
    coutp = o_ref.shape[-1]
    lhs = p_ref[...].reshape(bt * ho * wo, kpad)
    y = jnp.dot(lhs, w_ref[...], preferred_element_type=jnp.float32)
    y = jnp.maximum(y + b_ref[...], 0.0)                 # folded BN + ReLU
    o_ref[...] = jnp.zeros_like(o_ref)                   # zero border for next conv
    o_ref[:, 1:ho + 1, 1:wo + 1, :] = (
        y.reshape(bt, ho, wo, coutp).astype(o_ref.dtype))


def stem_conv(x_nhwc, w, b, *, k=7, stride=2, padding=3):
    """x: (N,H,W,3) f32 -> (N,ho+2,wo+2,coutp) bf16, zero spatial border."""
    n, h, wdt, cin = x_nhwc.shape
    ho = (h + 2 * padding - k) // stride + 1
    wo = (wdt + 2 * padding - k) // stride + 1
    kpad, coutp = w.shape

    # Wrapper-side im2col (cheap here: cin=3), K padded to a lane multiple.
    xp = jnp.pad(x_nhwc, ((0, 0), (padding, padding), (padding, padding), (0, 0)))
    cols = []
    for di in range(k):
        for dj in range(k):
            cols.append(xp[:, di:di + stride * ho:stride,
                           dj:dj + stride * wo:stride, :])
    patches = jnp.concatenate(cols, axis=-1).reshape(n, ho * wo, k * k * cin)
    patches = jnp.pad(patches, ((0, 0), (0, 0), (0, kpad - k * k * cin)))
    patches = patches.astype(jnp.bfloat16)

    bt = _pick_btile(n, ho * wo)
    flops = 2 * n * ho * wo * kpad * coutp
    bytes_acc = (patches.size * 2 + w.size * 2 + b.size * 4
                 + n * (ho + 2) * (wo + 2) * coutp * 2)

    return pl.pallas_call(
        functools.partial(_stem_kernel, ho=ho, wo=wo),
        grid=(n // bt,),
        out_shape=jax.ShapeDtypeStruct((n, ho + 2, wo + 2, coutp), jnp.bfloat16),
        in_specs=[
            pl.BlockSpec((bt, ho * wo, kpad), lambda i: (i, 0, 0)),
            pl.BlockSpec((kpad, coutp), lambda i: (0, 0)),
            pl.BlockSpec((1, coutp), lambda i: (0, 0)),
        ],
        out_specs=pl.BlockSpec((bt, ho + 2, wo + 2, coutp), lambda i: (i, 0, 0, 0)),
        compiler_params=pltpu.CompilerParams(
            dimension_semantics=("parallel",),
            vmem_limit_bytes=VMEM_LIMIT),
        cost_estimate=pl.CostEstimate(flops=int(flops), transcendentals=0,
                                      bytes_accessed=int(bytes_acc)),
    )(patches, w, b)


# ----------------------------- fused BasicBlock kernel -----------------------
def _block_kernel(x_ref, w1p_ref, w1l_ref, b1_ref, w2p_ref, w2l_ref, b2_ref,
                  *rest, stride, ho, wo, hph, has_proj, pad_out):
    """Fused BasicBlock: conv1(+BN,ReLU) -> VMEM scratch -> conv2(+BN) + residual
    + ReLU.  3x3 taps consumed in pairs (K = 2*cin lanes per MXU push).

    x_ref : stride 1: (B, ho+2, wo+2, cinp) spatially padded NHWC
            stride 2: (B, 4*hph, wph, cinp) phase-split padded NHWC
    w*p   : (4, 2*cinp, coutp) paired tap weights; w*l: (cinp, coutp) last tap
    """
    if has_proj:
        wr_ref, br_ref, o_ref, mid_ref, acc_ref = rest
    else:
        o_ref, mid_ref, acc_ref = rest
    bt = x_ref.shape[0]
    cinp = x_ref.shape[-1]
    coutp = o_ref.shape[-1]
    m = bt * ho * wo
    npairs = w1p_ref.shape[0]          # 4 for a 3x3 conv
    t_last = 2 * npairs                # tap index 8

    def win1(t):
        di, dj = t // 3, t % 3
        if stride == 1:
            xt = x_ref[:, di:di + ho, dj:dj + wo, :]
        else:
            ph = (di % 2) * 2 + (dj % 2)
            r0 = ph * hph + di // 2
            xt = x_ref[:, r0:r0 + ho, dj // 2:dj // 2 + wo, :]
        return xt.reshape(m, cinp)

    # ---- conv1 (+ folded BN) + ReLU -> mid scratch (pad-on-write in VMEM) ----
    acc_ref[...] = jnp.zeros_like(acc_ref)
    for p in range(npairs):
        lhs = jnp.concatenate([win1(2 * p), win1(2 * p + 1)], axis=-1)
        acc_ref[...] += jnp.dot(lhs, w1p_ref[p], preferred_element_type=jnp.float32)
    acc_ref[...] += jnp.dot(win1(t_last), w1l_ref[...],
                            preferred_element_type=jnp.float32)
    y1 = jnp.maximum(acc_ref[...] + b1_ref[...], 0.0)
    mid_ref[...] = jnp.zeros_like(mid_ref)        # zero border for conv2's padding
    mid_ref[:, 1:ho + 1, 1:wo + 1, :] = (
        y1.reshape(bt, ho, wo, coutp).astype(mid_ref.dtype))

    # ---- conv2 (+ folded BN) -----------------------------------------------
    def win2(t):
        di, dj = t // 3, t % 3
        return mid_ref[:, di:di + ho, dj:dj + wo, :].reshape(m, coutp)

    acc_ref[...] = jnp.zeros_like(acc_ref)
    for p in range(npairs):
        lhs = jnp.concatenate([win2(2 * p), win2(2 * p + 1)], axis=-1)
        acc_ref[...] += jnp.dot(lhs, w2p_ref[p], preferred_element_type=jnp.float32)
    acc_ref[...] += jnp.dot(win2(t_last), w2l_ref[...],
                            preferred_element_type=jnp.float32)

    # ---- residual (identity or 1x1 projection, read from resident x tile) ----
    if has_proj:
        if stride == 1:
            xr = x_ref[:, 1:ho + 1, 1:wo + 1, :]
        else:
            xr = x_ref[:, 3 * hph:3 * hph + ho, 0:wo, :]   # phase (1,1) of padded x
        xr = xr.reshape(m, cinp)
        res = jnp.dot(xr, wr_ref[...], preferred_element_type=jnp.float32)
        res = res + br_ref[...]
    else:
        res = x_ref[:, 1:ho + 1, 1:wo + 1, :].reshape(m, cinp).astype(jnp.float32)

    y = jnp.maximum(acc_ref[...] + b2_ref[...] + res, 0.0)

    if pad_out:   # write the zero border so the next conv needs no wrapper pad
        o_ref[...] = jnp.zeros_like(o_ref)
        o_ref[:, 1:ho + 1, 1:wo + 1, :] = (
            y.reshape(bt, ho, wo, coutp).astype(o_ref.dtype))
    else:
        o_ref[...] = y.reshape(bt, ho, wo, coutp).astype(o_ref.dtype)


def basic_block(x_padded, cfg, bp, *, pad_out):
    """x_padded: (N, H+2, W+2, cinp) bf16 with a zero spatial border."""
    n, hp, wp, cinp = x_padded.shape
    h, w = hp - 2, wp - 2
    stride = 2 if cfg["downsample"] else 1
    coutp = bp["conv1_b"].shape[-1]
    has_proj = cfg["has_proj"]

    if stride == 1:
        ho, wo = h, w
        hph = 0
        x_in = x_padded
        in_rows, in_cols = hp, wp
    else:
        # Phase split (stride handled as 4 unit-stride sub-images); only wrapper
        # pass left besides the stem im2col.
        hph, wph = -(-hp // 2), -(-wp // 2)
        xp = jnp.pad(x_padded, ((0, 0), (0, 2 * hph - hp), (0, 2 * wph - wp), (0, 0)))
        phases = [xp[:, pi::2, pj::2, :] for pi in range(2) for pj in range(2)]
        x_in = jnp.concatenate(phases, axis=1)          # (N, 4*hph, wph, cinp)
        ho = (h + 2 - 3) // 2 + 1
        wo = (w + 2 - 3) // 2 + 1
        in_rows, in_cols = 4 * hph, wph

    bt = _pick_btile(n, ho * wo)
    kernel = functools.partial(_block_kernel, stride=stride, ho=ho, wo=wo,
                               hph=hph, has_proj=has_proj, pad_out=pad_out)

    in_specs = [
        pl.BlockSpec((bt, in_rows, in_cols, cinp), lambda i: (i, 0, 0, 0)),
        pl.BlockSpec(bp["conv1_wp"].shape, lambda i: (0, 0, 0)),
        pl.BlockSpec(bp["conv1_wl"].shape, lambda i: (0, 0)),
        pl.BlockSpec(bp["conv1_b"].shape, lambda i: (0, 0)),
        pl.BlockSpec(bp["conv2_wp"].shape, lambda i: (0, 0, 0)),
        pl.BlockSpec(bp["conv2_wl"].shape, lambda i: (0, 0)),
        pl.BlockSpec(bp["conv2_b"].shape, lambda i: (0, 0)),
    ]
    args = [x_in, bp["conv1_wp"], bp["conv1_wl"], bp["conv1_b"],
            bp["conv2_wp"], bp["conv2_wl"], bp["conv2_b"]]
    if has_proj:
        in_specs += [pl.BlockSpec(bp["convr_w"].shape, lambda i: (0, 0)),
                     pl.BlockSpec(bp["convr_b"].shape, lambda i: (0, 0))]
        args += [bp["convr_w"], bp["convr_b"]]

    out_h = ho + 2 if pad_out else ho
    out_w = wo + 2 if pad_out else wo

    flops = 2 * n * ho * wo * (9 * cinp * coutp + 9 * coutp * coutp
                               + (cinp * coutp if has_proj else 0))
    bytes_acc = (x_in.size * 2
                 + sum(a.size * a.dtype.itemsize for a in args[1:])
                 + n * out_h * out_w * coutp * 2)

    return pl.pallas_call(
        kernel,
        grid=(n // bt,),
        out_shape=jax.ShapeDtypeStruct((n, out_h, out_w, coutp), jnp.bfloat16),
        in_specs=in_specs,
        out_specs=pl.BlockSpec((bt, out_h, out_w, coutp), lambda i: (i, 0, 0, 0)),
        scratch_shapes=[
            pltpu.VMEM((bt, ho + 2, wo + 2, coutp), jnp.bfloat16),   # mid (out1)
            pltpu.VMEM((bt * ho * wo, coutp), jnp.float32),          # f32 acc
        ],
        compiler_params=pltpu.CompilerParams(
            dimension_semantics=("parallel",),
            vmem_limit_bytes=VMEM_LIMIT),
        cost_estimate=pl.CostEstimate(flops=int(flops), transcendentals=0,
                                      bytes_accessed=int(bytes_acc)),
    )(*args)


# ----------------------------- pooling + classifier --------------------------
def _pool_fc_kernel(x_ref, w_ref, b_ref, o_ref):
    # fc_w is pre-scaled by 1/(H*W): pooling is a plain sum, no divide.
    x = x_ref[...].astype(jnp.float32)
    pooled = jnp.sum(x, axis=1)                                # (N, C)
    logits = jnp.dot(pooled.astype(jnp.bfloat16), w_ref[...],
                     preferred_element_type=jnp.float32)
    o_ref[...] = logits + b_ref[...]


def pool_fc(x, fc_w, fc_b):
    n, h, w, c = x.shape
    x3 = x.reshape(n, h * w, c)
    ncls_p = fc_w.shape[1]
    vmem = pl.BlockSpec(memory_space=pltpu.MemorySpace.VMEM)
    return pl.pallas_call(
        _pool_fc_kernel,
        out_shape=jax.ShapeDtypeStruct((n, ncls_p), jnp.float32),
        in_specs=[vmem, vmem, vmem],
        out_specs=vmem,
        compiler_params=pltpu.CompilerParams(vmem_limit_bytes=VMEM_LIMIT),
    )(x3, fc_w, fc_b)


# ----------------------------- forward ---------------------------------------
def resnet_forward(x_nchw, kp):
    x = jnp.transpose(x_nchw, (0, 2, 3, 1))                       # NCHW -> NHWC
    act = stem_conv(x, kp["conv1_w"], kp["conv1_b"])              # padded bf16
    nblocks = len(BLOCK_CONFIGS)
    for idx, (cfg, bp) in enumerate(zip(BLOCK_CONFIGS, kp["blocks"])):
        act = basic_block(act, cfg, bp, pad_out=(idx < nblocks - 1))
    logits = pool_fc(act, kp["fc_w"], kp["fc_b"])
    return logits[:, :NUM_CLASSES].astype(jnp.float32)


# ----------------------------- parameters ------------------------------------
def _bn_params(key, c):
    gamma = jax.random.uniform(key, (c,), jnp.float32)   # nn.init.uniform_(weight)
    beta = jnp.zeros((c,), jnp.float32)                   # constant_(bias, 0)
    mean = jnp.zeros((c,), jnp.float32)                   # running_mean init
    var = jnp.ones((c,), jnp.float32)                     # running_var init
    return (gamma, beta, mean, var)


def init_raw_params(key):
    """PyTorch-equivalent raw parameters (conv weights N(0,0.01), BN as init)."""
    keys = iter(jax.random.split(key, 64))
    params = {"conv1": {
        "w": jax.random.normal(next(keys), (64, 3, 7, 7), jnp.float32) * 0.01,
        "bn": _bn_params(next(keys), 64),
    }}
    blocks = []
    for cfg in BLOCK_CONFIGS:
        cin, cout = cfg["in_c"], cfg["out_c"]
        bp = {
            "conv1_w": jax.random.normal(next(keys), (cout, cin, 3, 3), jnp.float32) * 0.01,
            "bn1": _bn_params(next(keys), cout),
            "conv2_w": jax.random.normal(next(keys), (cout, cout, 3, 3), jnp.float32) * 0.01,
            "bn2": _bn_params(next(keys), cout),
        }
        if cfg["has_proj"]:
            bp["conv_res_w"] = jax.random.normal(next(keys), (cout, cin, 1, 1), jnp.float32) * 0.01
            bp["bn_res"] = _bn_params(next(keys), cout)
        blocks.append(bp)
    params["blocks"] = blocks
    cur = BLOCK_CONFIGS[-1]["out_c"]
    params["fc_w"] = jax.random.normal(next(keys), (NUM_CLASSES, cur), jnp.float32) * 0.02
    params["fc_b"] = jnp.zeros((NUM_CLASSES,), jnp.float32)
    return params


def _fold_conv(w, bn, cin_pad, cout_pad):
    """Fold inference BN into the conv; per-tap (k*k, Cinp, Coutp) bf16 + f32 bias."""
    gamma, beta, mean, var = bn
    cout, cin, kh, kw = w.shape
    scale = gamma / jnp.sqrt(var + BN_EPS)
    bias = beta - mean * scale
    wt = jnp.transpose(w, (2, 3, 1, 0)).reshape(kh * kw, cin, cout) * scale[None, None, :]
    wt = jnp.pad(wt, ((0, 0), (0, cin_pad - cin), (0, cout_pad - cout)))
    bias = jnp.pad(bias, (0, cout_pad - cout)).reshape(1, cout_pad)
    return wt.astype(jnp.bfloat16), bias.astype(jnp.float32)


def _pair_taps(w_taps):
    """(T,Cinp,Coutp) -> paired (T//2, 2*Cinp, Coutp) + leftover tap (Cinp,Coutp)."""
    t, cinp, coutp = w_taps.shape
    npairs = t // 2
    pairs = w_taps[:2 * npairs].reshape(npairs, 2 * cinp, coutp)
    last = w_taps[-1]
    return pairs, last


def prepare_kernel_params(raw, input_hw):
    """Raw torch-style params -> folded / padded / paired bf16 kernel params."""
    kp = {}
    # Stem: fold BN and reorder to a single (K, coutp) im2col weight matrix.
    w = raw["conv1"]["w"]
    gamma, beta, mean, var = raw["conv1"]["bn"]
    scale = gamma / jnp.sqrt(var + BN_EPS)
    bias = beta - mean * scale
    cout, cin, kh, kw = w.shape
    wmat = jnp.transpose(w, (2, 3, 1, 0)).reshape(kh * kw * cin, cout) * scale[None, :]
    kraw = kh * kw * cin
    kpad = _round_up(kraw, LANE)
    coutp = _round_up(cout, LANE)
    kp["conv1_w"] = jnp.pad(wmat, ((0, kpad - kraw), (0, coutp - cout))).astype(jnp.bfloat16)
    kp["conv1_b"] = jnp.pad(bias, (0, coutp - cout)).reshape(1, coutp).astype(jnp.float32)

    blocks = []
    for cfg, bp in zip(BLOCK_CONFIGS, raw["blocks"]):
        cinp = _round_up(cfg["in_c"], LANE)
        coutp = _round_up(cfg["out_c"], LANE)
        kbp = {}
        w1, kbp["conv1_b"] = _fold_conv(bp["conv1_w"], bp["bn1"], cinp, coutp)
        kbp["conv1_wp"], kbp["conv1_wl"] = _pair_taps(w1)
        w2, kbp["conv2_b"] = _fold_conv(bp["conv2_w"], bp["bn2"], coutp, coutp)
        kbp["conv2_wp"], kbp["conv2_wl"] = _pair_taps(w2)
        if cfg["has_proj"]:
            wr, kbp["convr_b"] = _fold_conv(bp["conv_res_w"], bp["bn_res"], cinp, coutp)
            kbp["convr_w"] = wr[0]                      # 1x1 conv: single tap
        blocks.append(kbp)
    kp["blocks"] = blocks

    # Classifier: pre-transposed, padded, pre-scaled by 1/(final H*W) so pooling
    # in-kernel is a plain sum.
    h, w_in = input_hw
    fh = (h + 2 * 3 - 7) // 2 + 1
    fw = (w_in + 2 * 3 - 7) // 2 + 1
    for cfg in BLOCK_CONFIGS:
        if cfg["downsample"]:
            fh = (fh - 1) // 2 + 1
            fw = (fw - 1) // 2 + 1
    inv_hw = 1.0 / float(fh * fw)
    c_feat = _round_up(BLOCK_CONFIGS[-1]["out_c"], LANE)
    ncls_p = _round_up(NUM_CLASSES, LANE)
    fcw = jnp.pad(raw["fc_w"].T * inv_hw,
                  ((0, c_feat - raw["fc_w"].shape[1]), (0, ncls_p - NUM_CLASSES)))
    kp["fc_w"] = fcw.astype(jnp.bfloat16)
    kp["fc_b"] = jnp.pad(raw["fc_b"], (0, ncls_p - NUM_CLASSES)).reshape(1, ncls_p)
    kp["fc_b"] = kp["fc_b"].astype(jnp.float32)
    return kp


# ----------------------------- main -------------------------------------------
if __name__ == "__main__":
    key = jax.random.PRNGKey(0)
    kx, kparam = jax.random.split(key)
    x = jax.random.normal(kx, (2, 3, 16, 16), jnp.float32)   # NCHW, like PyTorch
    raw_params = init_raw_params(kparam)
    kernel_params = prepare_kernel_params(raw_params, input_hw=(16, 16))

    logits = jax.jit(resnet_forward)(x, kernel_params)
    logits = jax.block_until_ready(logits)
    assert logits.shape == (2, NUM_CLASSES), logits.shape
    assert bool(jnp.all(jnp.isfinite(logits)))
    print("KERNEL_OK")
</pallas_src>

<mosaic_0001>
module attributes {stable_mosaic.version = 11 : i64} {
  func.func @_stem_kernel(%arg0: i32, %arg1: memref<2x64x256xbf16, #tpu.memory_space<vmem>>, %arg2: memref<256x128xbf16, #tpu.memory_space<vmem>>, %arg3: memref<1x128xf32, #tpu.memory_space<vmem>>, %arg4: memref<2x10x10x128xbf16, #tpu.memory_space<vmem>>) attributes {dimension_semantics = [#tpu.dimension_semantics<parallel>], iteration_bounds = array<i64: 1>, scalar_prefetch = 0 : i64, scratch_operands = 0 : i64, tpu.core_type = #tpu.core_type<tc>, window_params = [{transform_indices = @transform_0, window_bounds = array<i64: 2, 64, 256>}, {pipeline_mode = #tpu.pipeline_mode<synchronous>, transform_indices = @transform_1, window_bounds = array<i64: 256, 128>}, {pipeline_mode = #tpu.pipeline_mode<synchronous>, transform_indices = @transform_2, window_bounds = array<i64: 1, 128>}, {transform_indices = @transform_3, window_bounds = array<i64: 2, 10, 10, 128>}]} {
    %c0 = arith.constant 0 : index
    %c0_0 = arith.constant 0 : index
    %c0_1 = arith.constant 0 : index
    %0 = vector.load %arg1[%c0, %c0_0, %c0_1] : memref<2x64x256xbf16, #tpu.memory_space<vmem>>, vector<2x64x256xbf16>
    %1 = vector.shape_cast %0 : vector<2x64x256xbf16> to vector<128x256xbf16>
    %c0_2 = arith.constant 0 : index
    %c0_3 = arith.constant 0 : index
    %2 = vector.load %arg2[%c0_2, %c0_3] : memref<256x128xbf16, #tpu.memory_space<vmem>>, vector<256x128xbf16>
    %cst = arith.constant dense<0.000000e+00> : vector<128x128xf32>
    %3 = tpu.matmul %1, %2, %cst {dimension_numbers = #tpu.dot_dimension_numbers<[1], [0], [0], [1], [0, 0, 1, 1], [], []>} : vector<128x256xbf16>, vector<256x128xbf16>, vector<128x128xf32> -> vector<128x128xf32>
    %c0_4 = arith.constant 0 : index
    %c0_5 = arith.constant 0 : index
    %4 = vector.load %arg3[%c0_4, %c0_5] : memref<1x128xf32, #tpu.memory_space<vmem>>, vector<1x128xf32>
    %5 = vector.broadcast %4 : vector<1x128xf32> to vector<128x128xf32>
    %6 = arith.addf %3, %5 : vector<128x128xf32>
    %cst_6 = arith.constant 0.000000e+00 : f32
    %7 = vector.broadcast %cst_6 : f32 to vector<128x128xf32>
    %8 = arith.maximumf %6, %7 : vector<128x128xf32>
    %cst_7 = arith.constant 0.000000e+00 : bf16
    %9 = vector.broadcast %cst_7 : bf16 to vector<2x10x10x128xbf16>
    %c0_8 = arith.constant 0 : index
    %c0_9 = arith.constant 0 : index
    %c0_10 = arith.constant 0 : index
    %c0_11 = arith.constant 0 : index
    %10 = vector.load %arg4[%c0_8, %c0_9, %c0_10, %c0_11] : memref<2x10x10x128xbf16, #tpu.memory_space<vmem>>, vector<2x10x10x128xbf16>
    tpu.vector_store %arg4[%c0_8, %c0_9, %c0_10, %c0_11], %9 {strides = array<i32>} : memref<2x10x10x128xbf16, #tpu.memory_space<vmem>>, vector<2x10x10x128xbf16>,
    %11 = vector.shape_cast %8 : vector<128x128xf32> to vector<2x8x8x128xf32>
    %12 = arith.truncf %11 : vector<2x8x8x128xf32> to vector<2x8x8x128xbf16>
    %c0_12 = arith.constant 0 : index
    %c1 = arith.constant 1 : index
    %c1_13 = arith.constant 1 : index
    %c0_14 = arith.constant 0 : index
    %13 = vector.load %arg4[%c0_12, %c1, %c1_13, %c0_14] : memref<2x10x10x128xbf16, #tpu.memory_space<vmem>>, vector<2x8x8x128xbf16>
    tpu.vector_store %arg4[%c0_12, %c1, %c1_13, %c0_14], %12 {strides = array<i32>} : memref<2x10x10x128xbf16, #tpu.memory_space<vmem>>, vector<2x8x8x128xbf16>,
    return
  }
  func.func @transform_0(%arg0: i32) -> (i32, i32, i32) {
    %c0_i32 = arith.constant 0 : i32
    %c0_i32_0 = arith.constant 0 : i32
    %c0_i32_1 = arith.constant 0 : i32
    return %arg0, %c0_i32, %c0_i32_0 : i32, i32, i32
  }
  func.func @transform_1(%arg0: i32) -> (i32, i32) {
    %c0_i32 = arith.constant 0 : i32
    %c0_i32_0 = arith.constant 0 : i32
    %c0_i32_1 = arith.constant 0 : i32
    return %c0_i32, %c0_i32_0 : i32, i32
  }
  func.func @transform_2(%arg0: i32) -> (i32, i32) {
    %c0_i32 = arith.constant 0 : i32
    %c0_i32_0 = arith.constant 0 : i32
    %c0_i32_1 = arith.constant 0 : i32
    return %c0_i32, %c0_i32_0 : i32, i32
  }
  func.func @transform_3(%arg0: i32) -> (i32, i32, i32, i32) {
    %c0_i32 = arith.constant 0 : i32
    %c0_i32_0 = arith.constant 0 : i32
    %c0_i32_1 = arith.constant 0 : i32
    %c0_i32_2 = arith.constant 0 : i32
    return %arg0, %c0_i32, %c0_i32_0, %c0_i32_1 : i32, i32, i32, i32
  }
}

module attributes {stable_mosaic.version = 11 : i64} {
  func.func @_block_kernel(%arg0: i32, %arg1: memref<2x10x10x128xbf16, #tpu.memory_space<vmem>>, %arg2: memref<4x256x128xbf16, #tpu.memory_space<vmem>>, %arg3: memref<128x128xbf16, #tpu.memory_space<vmem>>, %arg4: memref<1x128xf32, #tpu.memory_space<vmem>>, %arg5: memref<4x256x128xbf16, #tpu.memory_space<vmem>>, %arg6: memref<128x128xbf16, #tpu.memory_space<vmem>>, %arg7: memref<1x128xf32, #tpu.memory_space<vmem>>, %arg8: memref<2x10x10x128xbf16, #tpu.memory_space<vmem>>, %arg9: memref<2x10x10x128xbf16, #tpu.memory_space<vmem>>, %arg10: memref<128x128xf32, #tpu.memory_space<vmem>>) attributes {dimension_semantics = [#tpu.dimension_semantics<parallel>], iteration_bounds = array<i64: 1>, scalar_prefetch = 0 : i64, scratch_operands = 2 : i64, tpu.core_type = #tpu.core_type<tc>, window_params = [{transform_indices = @transform_0, window_bounds = array<i64: 2, 10, 10, 128>}, {pipeline_mode = #tpu.pipeline_mode<synchronous>, transform_indices = @transform_1, window_bounds = array<i64: 4, 256, 128>}, {pipeline_mode = #tpu.pipeline_mode<synchronous>, transform_indices = @transform_2, window_bounds = array<i64: 128, 128>}, {pipeline_mode = #tpu.pipeline_mode<synchronous>, transform_indices = @transform_3, window_bounds = array<i64: 1, 128>}, {pipeline_mode = #tpu.pipeline_mode<synchronous>, transform_indices = @transform_4, window_bounds = array<i64: 4, 256, 128>}, {pipeline_mode = #tpu.pipeline_mode<synchronous>, transform_indices = @transform_5, window_bounds = array<i64: 128, 128>}, {pipeline_mode = #tpu.pipeline_mode<synchronous>, transform_indices = @transform_6, window_bounds = array<i64: 1, 128>}, {transform_indices = @transform_7, window_bounds = array<i64: 2, 10, 10, 128>}]} {
    %cst = arith.constant 0.000000e+00 : f32
    %0 = vector.broadcast %cst : f32 to vector<128x128xf32>
    %c0 = arith.constant 0 : index
    %c0_0 = arith.constant 0 : index
    %1 = vector.load %arg10[%c0, %c0_0] : memref<128x128xf32, #tpu.memory_space<vmem>>, vector<128x128xf32>
    tpu.vector_store %arg10[%c0, %c0_0], %0 {strides = array<i32>} : memref<128x128xf32, #tpu.memory_space<vmem>>, vector<128x128xf32>,
    %c0_1 = arith.constant 0 : index
    %c0_2 = arith.constant 0 : index
    %c0_3 = arith.constant 0 : index
    %c0_4 = arith.constant 0 : index
    %2 = vector.load %arg1[%c0_1, %c0_2, %c0_3, %c0_4] : memref<2x10x10x128xbf16, #tpu.memory_space<vmem>>, vector<2x8x8x128xbf16>
    %3 = vector.shape_cast %2 : vector<2x8x8x128xbf16> to vector<128x128xbf16>
    %c0_5 = arith.constant 0 : index
    %c0_6 = arith.constant 0 : index
    %c1 = arith.constant 1 : index
    %c0_7 = arith.constant 0 : index
    %4 = vector.load %arg1[%c0_5, %c0_6, %c1, %c0_7] : memref<2x10x10x128xbf16, #tpu.memory_space<vmem>>, vector<2x8x8x128xbf16>
    %5 = vector.shape_cast %4 : vector<2x8x8x128xbf16> to vector<128x128xbf16>
    %6 = tpu.concatenate %3, %5 in 1 : vector<128x128xbf16>, vector<128x128xbf16> -> vector<128x256xbf16>
    %c0_8 = arith.constant 0 : index
    %c0_9 = arith.constant 0 : index
    %7 = vector.load %arg10[%c0_8, %c0_9] : memref<128x128xf32, #tpu.memory_space<vmem>>, vector<128x128xf32>
    %c0_10 = arith.constant 0 : index
    %c0_11 = arith.constant 0 : index
    %c0_12 = arith.constant 0 : index
    %8 = vector.load %arg2[%c0_10, %c0_11, %c0_12] : memref<4x256x128xbf16, #tpu.memory_space<vmem>>, vector<1x256x128xbf16>
    %9 = vector.shape_cast %8 : vector<1x256x128xbf16> to vector<256x128xbf16>
    %cst_13 = arith.constant dense<0.000000e+00> : vector<128x128xf32>
    %10 = tpu.matmul %6, %9, %cst_13 {dimension_numbers = #tpu.dot_dimension_numbers<[1], [0], [0], [1], [0, 0, 1, 1], [], []>} : vector<128x256xbf16>, vector<256x128xbf16>, vector<128x128xf32> -> vector<128x128xf32>
    %11 = arith.addf %7, %10 : vector<128x128xf32>
    %c0_14 = arith.constant 0 : index
    %c0_15 = arith.constant 0 : index
    %12 = vector.load %arg10[%c0_14, %c0_15] : memref<128x128xf32, #tpu.memory_space<vmem>>, vector<128x128xf32>
    tpu.vector_store %arg10[%c0_14, %c0_15], %11 {strides = array<i32>} : memref<128x128xf32, #tpu.memory_space<vmem>>, vector<128x128xf32>,
    %c0_16 = arith.constant 0 : index
    %c0_17 = arith.constant 0 : index
    %c2 = arith.constant 2 : index
    %c0_18 = arith.constant 0 : index
    %13 = vector.load %arg1[%c0_16, %c0_17, %c2, %c0_18] : memref<2x10x10x128xbf16, #tpu.memory_space<vmem>>, vector<2x8x8x128xbf16>
    %14 = vector.shape_cast %13 : vector<2x8x8x128xbf16> to vector<128x128xbf16>
    %c0_19 = arith.constant 0 : index
    %c1_20 = arith.constant 1 : index
    %c0_21 = arith.constant 0 : index
    %c0_22 = arith.constant 0 : index
    %15 = vector.load %arg1[%c0_19, %c1_20, %c0_21, %c0_22] : memref<2x10x10x128xbf16, #tpu.memory_space<vmem>>, vector<2x8x8x128xbf16>
    %16 = vector.shape_cast %15 : vector<2x8x8x128xbf16> to vector<128x128xbf16>
    %17 = tpu.concatenate %14, %16 in 1 : vector<128x128xbf16>, vector<128x128xbf16> -> vector<128x256xbf16>
    %c0_23 = arith.constant 0 : index
    %c0_24 = arith.constant 0 : index
    %18 = vector.load %arg10[%c0_23, %c0_24] : memref<128x128xf32, #tpu.memory_space<vmem>>, vector<128x128xf32>
    %c1_25 = arith.constant 1 : index
    %c0_26 = arith.constant 0 : index
    %c0_27 = arith.constant 0 : index
    %19 = vector.load %arg2[%c1_25, %c0_26, %c0_27] : memref<4x256x128xbf16, #tpu.memory_space<vmem>>, vector<1x256x128xbf16>
    %20 = vector.shape_cast %19 : vector<1x256x128xbf16> to vector<256x128xbf16>
    %cst_28 = arith.constant dense<0.000000e+00> : vector<128x128xf32>
    %21 = tpu.matmul %17, %20, %cst_28 {dimension_numbers = #tpu.dot_dimension_numbers<[1], [0], [0], [1], [0, 0, 1, 1], [], []>} : vector<128x256xbf16>, vector<256x128xbf16>, vector<128x128xf32> -> vector<128x128xf32>
    %22 = arith.addf %18, %21 : vector<128x128xf32>
    %c0_29 = arith.constant 0 : index
    %c0_30 = arith.constant 0 : index
    %23 = vector.load %arg10[%c0_29, %c0_30] : memref<128x128xf32, #tpu.memory_space<vmem>>, vector<128x128xf32>
    tpu.vector_store %arg10[%c0_29, %c0_30], %22 {strides = array<i32>} : memref<128x128xf32, #tpu.memory_space<vmem>>, vector<128x128xf32>,
    %c0_31 = arith.constant 0 : index
    %c1_32 = arith.constant 1 : index
    %c1_33 = arith.constant 1 : index
    %c0_34 = arith.constant 0 : index
    %24 = vector.load %arg1[%c0_31, %c1_32, %c1_33, %c0_34] : memref<2x10x10x128xbf16, #tpu.memory_space<vmem>>, vector<2x8x8x128xbf16>
    %25 = vector.shape_cast %24 : vector<2x8x8x128xbf16> to vector<128x128xbf16>
    %c0_35 = arith.constant 0 : index
    %c1_36 = arith.constant 1 : index
    %c2_37 = arith.constant 2 : index
    %c0_38 = arith.constant 0 : index
    %26 = vector.load %arg1[%c0_35, %c1_36, %c2_37, %c0_38] : memref<2x10x10x128xbf16, #tpu.memory_space<vmem>>, vector<2x8x8x128xbf16>
    %27 = vector.shape_cast %26 : vector<2x8x8x128xbf16> to vector<128x128xbf16>
    %28 = tpu.concatenate %25, %27 in 1 : vector<128x128xbf16>, vector<128x128xbf16> -> vector<128x256xbf16>
    %c0_39 = arith.constant 0 : index
    %c0_40 = arith.constant 0 : index
    %29 = vector.load %arg10[%c0_39, %c0_40] : memref<128x128xf32, #tpu.memory_space<vmem>>, vector<128x128xf32>
    %c2_41 = arith.constant 2 : index
    %c0_42 = arith.constant 0 : index
    %c0_43 = arith.constant 0 : index
    %30 = vector.load %arg2[%c2_41, %c0_42, %c0_43] : memref<4x256x128xbf16, #tpu.memory_space<vmem>>, vector<1x256x128xbf16>
    %31 = vector.shape_cast %30 : vector<1x256x128xbf16> to vector<256x128xbf16>
    %cst_44 = arith.constant dense<0.000000e+00> : vector<128x128xf32>
    %32 = tpu.matmul %28, %31, %cst_44 {dimension_numbers = #tpu.dot_dimension_numbers<[1], [0], [0], [1], [0, 0, 1, 1], [], []>} : vector<128x256xbf16>, vector<256x128xbf16>, vector<128x128xf32> -> vector<128x128xf32>
    %33 = arith.addf %29, %32 : vector<128x128xf32>
    %c0_45 = arith.constant 0 : index
    %c0_46 = arith.constant 0 : index
    %34 = vector.load %arg10[%c0_45, %c0_46] : memref<128x128xf32, #tpu.memory_space<vmem>>, vector<128x128xf32>
    tpu.vector_store %arg10[%c0_45, %c0_46], %33 {strides = array<i32>} : memref<128x128xf32, #tpu.memory_space<vmem>>, vector<128x128xf32>,
    %c0_47 = arith.constant 0 : index
    %c2_48 = arith.constant 2 : index
    %c0_49 = arith.constant 0 : index
    %c0_50 = arith.constant 0 : index
    %35 = vector.load %arg1[%c0_47, %c2_48, %c0_49, %c0_50] : memref<2x10x10x128xbf16, #tpu.memory_space<vmem>>, vector<2x8x8x128xbf16>
    %36 = vector.shape_cast %35 : vector<2x8x8x128xbf16> to vector<128x128xbf16>
    %c0_51 = arith.constant 0 : index
    %c2_52 = arith.constant 2 : index
    %c1_53 = arith.constant 1 : index
    %c0_54 = arith.constant 0 : index
    %37 = vector.load %arg1[%c0_51, %c2_52, %c1_53, %c0_54] : memref<2x10x10x128xbf16, #tpu.memory_space<vmem>>, vector<2x8x8x128xbf16>
    %38 = vector.shape_cast %37 : vector<2x8x8x128xbf16> to vector<128x128xbf16>
    %39 = tpu.concatenate %36, %38 in 1 : vector<128x128xbf16>, vector<128x128xbf16> -> vector<128x256xbf16>
    %c0_55 = arith.constant 0 : index
    %c0_56 = arith.constant 0 : index
    %40 = vector.load %arg10[%c0_55, %c0_56] : memref<128x128xf32, #tpu.memory_space<vmem>>, vector<128x128xf32>
    %c3 = arith.constant 3 : index
    %c0_57 = arith.constant 0 : index
    %c0_58 = arith.constant 0 : index
    %41 = vector.load %arg2[%c3, %c0_57, %c0_58] : memref<4x256x128xbf16, #tpu.memory_space<vmem>>, vector<1x256x128xbf16>
    %42 = vector.shape_cast %41 : vector<1x256x128xbf16> to vector<256x128xbf16>
    %cst_59 = arith.constant dense<0.000000e+00> : vector<128x128xf32>
    %43 = tpu.matmul %39, %42, %cst_59 {dimension_numbers = #tpu.dot_dimension_numbers<[1], [0], [0], [1], [0, 0, 1, 1], [], []>} : vector<128x256xbf16>, vector<256x128xbf16>, vector<128x128xf32> -> vector<128x128xf32>
    %44 = arith.addf %40, %43 : vector<128x128xf32>
    %c0_60 = arith.constant 0 : index
    %c0_61 = arith.constant 0 : index
    %45 = vector.load %arg10[%c0_60, %c0_61] : memref<128x128xf32, #tpu.memory_space<vmem>>, vector<128x128xf32>
    tpu.vector_store %arg10[%c0_60, %c0_61], %44 {strides = array<i32>} : memref<128x128xf32, #tpu.memory_space<vmem>>, vector<128x128xf32>,
    %c0_62 = arith.constant 0 : index
    %c0_63 = arith.constant 0 : index
    %46 = vector.load %arg10[%c0_62, %c0_63] : memref<128x128xf32, #tpu.memory_space<vmem>>, vector<128x128xf32>
    %c0_64 = arith.constant 0 : index
    %c2_65 = arith.constant 2 : index
    %c2_66 = arith.constant 2 : index
    %c0_67 = arith.constant 0 : index
    %47 = vector.load %arg1[%c0_64, %c2_65, %c2_66, %c0_67] : memref<2x10x10x128xbf16, #tpu.memory_space<vmem>>, vector<2x8x8x128xbf16>
    %48 = vector.shape_cast %47 : vector<2x8x8x128xbf16> to vector<128x128xbf16>
    %c0_68 = arith.constant 0 : index
    %c0_69 = arith.constant 0 : index
    %49 = vector.load %arg3[%c0_68, %c0_69] : memref<128x128xbf16, #tpu.memory_space<vmem>>, vector<128x128xbf16>
    %cst_70 = arith.constant dense<0.000000e+00> : vector<128x128xf32>
    %50 = tpu.matmul %48, %49, %cst_70 {dimension_numbers = #tpu.dot_dimension_numbers<[1], [0], [0], [1], [0, 0, 1, 1], [], []>} : vector<128x128xbf16>, vector<128x128xbf16>, vector<128x128xf32> -> vector<128x128xf32>
    %51 = arith.addf %46, %50 : vector<128x128xf32>
    %c0_71 = arith.constant 0 : index
    %c0_72 = arith.constant 0 : index
    %52 = vector.load %arg10[%c0_71, %c0_72] : memref<128x128xf32, #tpu.memory_space<vmem>>, vector<128x128xf32>
    tpu.vector_store %arg10[%c0_71, %c0_72], %51 {strides = array<i32>} : memref<128x128xf32, #tpu.memory_space<vmem>>, vector<128x128xf32>,
    %c0_73 = arith.constant 0 : index
    %c0_74 = arith.constant 0 : index
    %53 = vector.load %arg10[%c0_73, %c0_74] : memref<128x128xf32, #tpu.memory_space<vmem>>, vector<128x128xf32>
    %c0_75 = arith.constant 0 : index
    %c0_76 = arith.constant 0 : index
    %54 = vector.load %arg4[%c0_75, %c0_76] : memref<1x128xf32, #tpu.memory_space<vmem>>, vector<1x128xf32>
    %55 = vector.broadcast %54 : vector<1x128xf32> to vector<128x128xf32>
    %56 = arith.addf %53, %55 : vector<128x128xf32>
    %cst_77 = arith.constant 0.000000e+00 : f32
    %57 = vector.broadcast %cst_77 : f32 to vector<128x128xf32>
    %58 = arith.maximumf %56, %57 : vector<128x128xf32>
    %cst_78 = arith.constant 0.000000e+00 : bf16
    %59 = vector.broadcast %cst_78 : bf16 to vector<2x10x10x128xbf16>
    %c0_79 = arith.constant 0 : index
    %c0_80 = arith.constant 0 : index
    %c0_81 = arith.constant 0 : index
    %c0_82 = arith.constant 0 : index
    %60 = vector.load %arg9[%c0_79, %c0_80, %c0_81, %c0_82] : memref<2x10x10x128xbf16, #tpu.memory_space<vmem>>, vector<2x10x10x128xbf16>
    tpu.vector_store %arg9[%c0_79, %c0_80, %c0_81, %c0_82], %59 {strides = array<i32>} : memref<2x10x10x128xbf16, #tpu.memory_space<vmem>>, vector<2x10x10x128xbf16>,
    %61 = vector.shape_cast %58 : vector<128x128xf32> to vector<2x8x8x128xf32>
    %62 = arith.truncf %61 : vector<2x8x8x128xf32> to vector<2x8x8x128xbf16>
    %c0_83 = arith.constant 0 : index
    %c1_84 = arith.constant 1 : index
    %c1_85 = arith.constant 1 : index
    %c0_86 = arith.constant 0 : index
    %63 = vector.load %arg9[%c0_83, %c1_84, %c1_85, %c0_86] : memref<2x10x10x128xbf16, #tpu.memory_space<vmem>>, vector<2x8x8x128xbf16>
    tpu.vector_store %arg9[%c0_83, %c1_84, %c1_85, %c0_86], %62 {strides = array<i32>} : memref<2x10x10x128xbf16, #tpu.memory_space<vmem>>, vector<2x8x8x128xbf16>,
    %cst_87 = arith.constant 0.000000e+00 : f32
    %64 = vector.broadcast %cst_87 : f32 to vector<128x128xf32>
    %c0_88 = arith.constant 0 : index
    %c0_89 = arith.constant 0 : index
    %65 = vector.load %arg10[%c0_88, %c0_89] : memref<128x128xf32, #tpu.memory_space<vmem>>, vector<128x128xf32>
    tpu.vector_store %arg10[%c0_88, %c0_89], %64 {strides = array<i32>} : memref<128x128xf32, #tpu.memory_space<vmem>>, vector<128x128xf32>,
    %c0_90 = arith.constant 0 : index
    %c0_91 = arith.constant 0 : index
    %c0_92 = arith.constant 0 : index
    %c0_93 = arith.constant 0 : index
    %66 = vector.load %arg9[%c0_90, %c0_91, %c0_92, %c0_93] : memref<2x10x10x128xbf16, #tpu.memory_space<vmem>>, vector<2x8x8x128xbf16>
    %67 = vector.shape_cast %66 : vector<2x8x8x128xbf16> to vector<128x128xbf16>
    %c0_94 = arith.constant 0 : index
    %c0_95 = arith.constant 0 : index
    %c1_96 = arith.constant 1 : index
    %c0_97 = arith.constant 0 : index
    %68 = vector.load %arg9[%c0_94, %c0_95, %c1_96, %c0_97] : memref<2x10x10x128xbf16, #tpu.memory_space<vmem>>, vector<2x8x8x128xbf16>
    %69 = vector.shape_cast %68 : vector<2x8x8x128xbf16> to vector<128x128xbf16>
    %70 = tpu.concatenate %67, %69 in 1 : vector<128x128xbf16>, vector<128x128xbf16> -> vector<128x256xbf16>
    %c0_98 = arith.constant 0 : index
    %c0_99 = arith.constant 0 : index
    %71 = vector.load %arg10[%c0_98, %c0_99] : memref<128x128xf32, #tpu.memory_space<vmem>>, vector<128x128xf32>
    %c0_100 = arith.constant 0 : index
    %c0_101 = arith.constant 0 : index
    %c0_102 = arith.constant 0 : index
    %72 = vector.load %arg5[%c0_100, %c0_101, %c0_102] : memref<4x256x128xbf16, #tpu.memory_space<vmem>>, vector<1x256x128xbf16>
    %73 = vector.shape_cast %72 : vector<1x256x128xbf16> to vector<256x128xbf16>
    %cst_103 = arith.constant dense<0.000000e+00> : vector<128x128xf32>
    %74 = tpu.matmul %70, %73, %cst_103 {dimension_numbers = #tpu.dot_dimension_numbers<[1], [0], [0], [1], [0, 0, 1, 1], [], []>} : vector<128x256xbf16>, vector<256x128xbf16>, vector<128x128xf32> -> vector<128x128xf32>
    %75 = arith.addf %71, %74 : vector<128x128xf32>
    %c0_104 = arith.constant 0 : index
    %c0_105 = arith.constant 0 : index
    %76 = vector.load %arg10[%c0_104, %c0_105] : memref<128x128xf32, #tpu.memory_space<vmem>>, vector<128x128xf32>
    tpu.vector_store %arg10[%c0_104, %c0_105], %75 {strides = array<i32>} : memref<128x128xf32, #tpu.memory_space<vmem>>, vector<128x128xf32>,
    %c0_106 = arith.constant 0 : index
    %c0_107 = arith.constant 0 : index
    %c2_108 = arith.constant 2 : index
    %c0_109 = arith.constant 0 : index
    %77 = vector.load %arg9[%c0_106, %c0_107, %c2_108, %c0_109] : memref<2x10x10x128xbf16, #tpu.memory_space<vmem>>, vector<2x8x8x128xbf16>
    %78 = vector.shape_cast %77 : vector<2x8x8x128xbf16> to vector<128x128xbf16>
    %c0_110 = arith.constant 0 : index
    %c1_111 = arith.constant 1 : index
    %c0_112 = arith.constant 0 : index
    %c0_113 = arith.constant 0 : index
    %79 = vector.load %arg9[%c0_110, %c1_111, %c0_112, %c0_113] : memref<2x10x10x128xbf16, #tpu.memory_space<vmem>>, vector<2x8x8x128xbf16>
    %80 = vector.shape_cast %79 : vector<2x8x8x128xbf16> to vector<128x128xbf16>
    %81 = tpu.concatenate %78, %80 in 1 : vector<128x128xbf16>, vector<128x128xbf16> -> vector<128x256xbf16>
    %c0_114 = arith.constant 0 : index
    %c0_115 = arith.constant 0 : index
    %82 = vector.load %arg10[%c0_114, %c0_115] : memref<128x128xf32, #tpu.memory_space<vmem>>, vector<128x128xf32>
    %c1_116 = arith.constant 1 : index
    %c0_117 = arith.constant 0 : index
    %c0_118 = arith.constant 0 : index
    %83 = vector.load %arg5[%c1_116, %c0_117, %c0_118] : memref<4x256x128xbf16, #tpu.memory_space<vmem>>, vector<1x256x128xbf16>
    %84 = vector.shape_cast %83 : vector<1x256x128xbf16> to vector<256x128xbf16>
    %cst_119 = arith.constant dense<0.000000e+00> : vector<128x128xf32>
    %85 = tpu.matmul %81, %84, %cst_119 {dimension_numbers = #tpu.dot_dimension_numbers<[1], [0], [0], [1], [0, 0, 1, 1], [], []>} : vector<128x256xbf16>, vector<256x128xbf16>, vector<128x128xf32> -> vector<128x128xf32>
    %86 = arith.addf %82, %85 : vector<128x128xf32>
    %c0_120 = arith.constant 0 : index
    %c0_121 = arith.constant 0 : index
    %87 = vector.load %arg10[%c0_120, %c0_121] : memref<128x128xf32, #tpu.memory_space<vmem>>, vector<128x128xf32>
    tpu.vector_store %arg10[%c0_120, %c0_121], %86 {strides = array<i32>} : memref<128x128xf32, #tpu.memory_space<vmem>>, vector<128x128xf32>,
    %c0_122 = arith.constant 0 : index
    %c1_123 = arith.constant 1 : index
    %c1_124 = arith.constant 1 : index
    %c0_125 = arith.constant 0 : index
    %88 = vector.load %arg9[%c0_122, %c1_123, %c1_124, %c0_125] : memref<2x10x10x128xbf16, #tpu.memory_space<vmem>>, vector<2x8x8x128xbf16>
    %89 = vector.shape_cast %88 : vector<2x8x8x128xbf16> to vector<128x128xbf16>
    %c0_126 = arith.constant 0 : index
    %c1_127 = arith.constant 1 : index
    %c2_128 = arith.constant 2 : index
    %c0_129 = arith.constant 0 : index
    %90 = vector.load %arg9[%c0_126, %c1_127, %c2_128, %c0_129] : memref<2x10x10x128xbf16, #tpu.memory_space<vmem>>, vector<2x8x8x128xbf16>
    %91 = vector.shape_cast %90 : vector<2x8x8x128xbf16> to vector<128x128xbf16>
    %92 = tpu.concatenate %89, %91 in 1 : vector<128x128xbf16>, vector<128x128xbf16> -> vector<128x256xbf16>
    %c0_130 = arith.constant 0 : index
    %c0_131 = arith.constant 0 : index
    %93 = vector.load %arg10[%c0_130, %c0_131] : memref<128x128xf32, #tpu.memory_space<vmem>>, vector<128x128xf32>
    %c2_132 = arith.constant 2 : index
    %c0_133 = arith.constant 0 : index
    %c0_134 = arith.constant 0 : index
    %94 = vector.load %arg5[%c2_132, %c0_133, %c0_134] : memref<4x256x128xbf16, #tpu.memory_space<vmem>>, vector<1x256x128xbf16>
    %95 = vector.shape_cast %94 : vector<1x256x128xbf16> to vector<256x128xbf16>
    %cst_135 = arith.constant dense<0.000000e+00> : vector<128x128xf32>
    %96 = tpu.matmul %92, %95, %cst_135 {dimension_numbers = #tpu.dot_dimension_numbers<[1], [0], [0], [1], [0, 0, 1, 1], [], []>} : vector<128x256xbf16>, vector<256x128xbf16>, vector<128x128xf32> -> vector<128x128xf32>
    %97 = arith.addf %93, %96 : vector<128x128xf32>
    %c0_136 = arith.constant 0 : index
    %c0_137 = arith.constant 0 : index
    %98 = vector.load %arg10[%c0_136, %c0_137] : memref<128x128xf32, #tpu.memory_space<vmem>>, vector<128x128xf32>
    tpu.vector_store %arg10[%c0_136, %c0_137], %97 {strides = array<i32>} : memref<128x128xf32, #tpu.memory_space<vmem>>, vector<128x128xf32>,
    %c0_138 = arith.constant 0 : index
    %c2_139 = arith.constant 2 : index
    %c0_140 = arith.constant 0 : index
    %c0_141 = arith.constant 0 : index
    %99 = vector.load %arg9[%c0_138, %c2_139, %c0_140, %c0_141] : memref<2x10x10x128xbf16, #tpu.memory_space<vmem>>, vector<2x8x8x128xbf16>
    %100 = vector.shape_cast %99 : vector<2x8x8x128xbf16> to vector<128x128xbf16>
    %c0_142 = arith.constant 0 : index
    %c2_143 = arith.constant 2 : index
    %c1_144 = arith.constant 1 : index
    %c0_145 = arith.constant 0 : index
    %101 = vector.load %arg9[%c0_142, %c2_143, %c1_144, %c0_145] : memref<2x10x10x128xbf16, #tpu.memory_space<vmem>>, vector<2x8x8x128xbf16>
    %102 = vector.shape_cast %101 : vector<2x8x8x128xbf16> to vector<128x128xbf16>
    %103 = tpu.concatenate %100, %102 in 1 : vector<128x128xbf16>, vector<128x128xbf16> -> vector<128x256xbf16>
    %c0_146 = arith.constant 0 : index
    %c0_147 = arith.constant 0 : index
    %104 = vector.load %arg10[%c0_146, %c0_147] : memref<128x128xf32, #tpu.memory_space<vmem>>, vector<128x128xf32>
    %c3_148 = arith.constant 3 : index
    %c0_149 = arith.constant 0 : index
    %c0_150 = arith.constant 0 : index
    %105 = vector.load %arg5[%c3_148, %c0_149, %c0_150] : memref<4x256x128xbf16, #tpu.memory_space<vmem>>, vector<1x256x128xbf16>
    %106 = vector.shape_cast %105 : vector<1x256x128xbf16> to vector<256x128xbf16>
    %cst_151 = arith.constant dense<0.000000e+00> : vector<128x128xf32>
    %107 = tpu.matmul %103, %106, %cst_151 {dimension_numbers = #tpu.dot_dimension_numbers<[1], [0], [0], [1], [0, 0, 1, 1], [], []>} : vector<128x256xbf16>, vector<256x128xbf16>, vector<128x128xf32> -> vector<128x128xf32>
    %108 = arith.addf %104, %107 : vector<128x128xf32>
    %c0_152 = arith.constant 0 : index
    %c0_153 = arith.constant 0 : index
    %109 = vector.load %arg10[%c0_152, %c0_153] : memref<128x128xf32, #tpu.memory_space<vmem>>, vector<128x128xf32>
    tpu.vector_store %arg10[%c0_152, %c0_153], %108 {strides = array<i32>} : memref<128x128xf32, #tpu.memory_space<vmem>>, vector<128x128xf32>,
    %c0_154 = arith.constant 0 : index
    %c0_155 = arith.constant 0 : index
    %110 = vector.load %arg10[%c0_154, %c0_155] : memref<128x128xf32, #tpu.memory_space<vmem>>, vector<128x128xf32>
    %c0_156 = arith.constant 0 : index
    %c2_157 = arith.constant 2 : index
    %c2_158 = arith.constant 2 : index
    %c0_159 = arith.constant 0 : index
    %111 = vector.load %arg9[%c0_156, %c2_157, %c2_158, %c0_159] : memref<2x10x10x128xbf16, #tpu.memory_space<vmem>>, vector<2x8x8x128xbf16>
    %112 = vector.shape_cast %111 : vector<2x8x8x128xbf16> to vector<128x128xbf16>
    %c0_160 = arith.constant 0 : index
    %c0_161 = arith.constant 0 : index
    %113 = vector.load %arg6[%c0_160, %c0_161] : memref<128x128xbf16, #tpu.memory_space<vmem>>, vector<128x128xbf16>
    %cst_162 = arith.constant dense<0.000000e+00> : vector<128x128xf32>
    %114 = tpu.matmul %112, %113, %cst_162 {dimension_numbers = #tpu.dot_dimension_numbers<[1], [0], [0], [1], [0, 0, 1, 1], [], []>} : vector<128x128xbf16>, vector<128x128xbf16>, vector<128x128xf32> -> vector<128x128xf32>
    %115 = arith.addf %110, %114 : vector<128x128xf32>
    %c0_163 = arith.constant 0 : index
    %c0_164 = arith.constant 0 : index
    %116 = vector.load %arg10[%c0_163, %c0_164] : memref<128x128xf32, #tpu.memory_space<vmem>>, vector<128x128xf32>
    tpu.vector_store %arg10[%c0_163, %c0_164], %115 {strides = array<i32>} : memref<128x128xf32, #tpu.memory_space<vmem>>, vector<128x128xf32>,
    %c0_165 = arith.constant 0 : index
    %c1_166 = arith.constant 1 : index
    %c1_167 = arith.constant 1 : index
    %c0_168 = arith.constant 0 : index
    %117 = vector.load %arg1[%c0_165, %c1_166, %c1_167, %c0_168] : memref<2x10x10x128xbf16, #tpu.memory_space<vmem>>, vector<2x8x8x128xbf16>
    %118 = vector.shape_cast %117 : vector<2x8x8x128xbf16> to vector<128x128xbf16>
    %119 = arith.extf %118 : vector<128x128xbf16> to vector<128x128xf32>
    %c0_169 = arith.constant 0 : index
    %c0_170 = arith.constant 0 : index
    %120 = vector.load %arg10[%c0_169, %c0_170] : memref<128x128xf32, #tpu.memory_space<vmem>>, vector<128x128xf32>
    %c0_171 = arith.constant 0 : index
    %c0_172 = arith.constant 0 : index
    %121 = vector.load %arg7[%c0_171, %c0_172] : memref<1x128xf32, #tpu.memory_space<vmem>>, vector<1x128xf32>
    %122 = vector.broadcast %121 : vector<1x128xf32> to vector<128x128xf32>
    %123 = arith.addf %120, %122 : vector<128x128xf32>
    %124 = arith.addf %123, %119 : vector<128x128xf32>
    %cst_173 = arith.constant 0.000000e+00 : f32
    %125 = vector.broadcast %cst_173 : f32 to vector<128x128xf32>
    %126 = arith.maximumf %124, %125 : vector<128x128xf32>
    %cst_174 = arith.constant 0.000000e+00 : bf16
    %127 = vector.broadcast %cst_174 : bf16 to vector<2x10x10x128xbf16>
    %c0_175 = arith.constant 0 : index
    %c0_176 = arith.constant 0 : index
    %c0_177 = arith.constant 0 : index
    %c0_178 = arith.constant 0 : index
    %128 = vector.load %arg8[%c0_175, %c0_176, %c0_177, %c0_178] : memref<2x10x10x128xbf16, #tpu.memory_space<vmem>>, vector<2x10x10x128xbf16>
    tpu.vector_store %arg8[%c0_175, %c0_176, %c0_177, %c0_178], %127 {strides = array<i32>} : memref<2x10x10x128xbf16, #tpu.memory_space<vmem>>, vector<2x10x10x128xbf16>,
    %129 = vector.shape_cast %126 : vector<128x128xf32> to vector<2x8x8x128xf32>
    %130 = arith.truncf %129 : vector<2x8x8x128xf32> to vector<2x8x8x128xbf16>
    %c0_179 = arith.constant 0 : index
    %c1_180 = arith.constant 1 : index
    %c1_181 = arith.constant 1 : index
    %c0_182 = arith.constant 0 : index
    %131 = vector.load %arg8[%c0_179, %c1_180, %c1_181, %c0_182] : memref<2x10x10x128xbf16, #tpu.memory_space<vmem>>, vector<2x8x8x128xbf16>
    tpu.vector_store %arg8[%c0_179, %c1_180, %c1_181, %c0_182], %130 {strides = array<i32>} : memref<2x10x10x128xbf16, #tpu.memory_space<vmem>>, vector<2x8x8x128xbf16>,
    return
  }
  func.func @transform_0(%arg0: i32) -> (i32, i32, i32, i32) {
    %c0_i32 = arith.constant 0 : i32
    %c0_i32_0 = arith.constant 0 : i32
    %c0_i32_1 = arith.constant 0 : i32
    %c0_i32_2 = arith.constant 0 : i32
    return %arg0, %c0_i32, %c0_i32_0, %c0_i32_1 : i32, i32, i32, i32
  }
  func.func @transform_1(%arg0: i32) -> (i32, i32, i32) {
    %c0_i32 = arith.constant 0 : i32
    %c0_i32_0 = arith.constant 0 : i32
    %c0_i32_1 = arith.constant 0 : i32
    %c0_i32_2 = arith.constant 0 : i32
    return %c0_i32, %c0_i32_0, %c0_i32_1 : i32, i32, i32
  }
  func.func @transform_2(%arg0: i32) -> (i32, i32) {
    %c0_i32 = arith.constant 0 : i32
    %c0_i32_0 = arith.constant 0 : i32
    %c0_i32_1 = arith.constant 0 : i32
    return %c0_i32, %c0_i32_0 : i32, i32
  }
  func.func @transform_3(%arg0: i32) -> (i32, i32) {
    %c0_i32 = arith.constant 0 : i32
    %c0_i32_0 = arith.constant 0 : i32
    %c0_i32_1 = arith.constant 0 : i32
    return %c0_i32, %c0_i32_0 : i32, i32
  }
  func.func @transform_4(%arg0: i32) -> (i32, i32, i32) {
    %c0_i32 = arith.constant 0 : i32
    %c0_i32_0 = arith.constant 0 : i32
    %c0_i32_1 = arith.constant 0 : i32
    %c0_i32_2 = arith.constant 0 : i32
    return %c0_i32, %c0_i32_0, %c0_i32_1 : i32, i32, i32
  }
  func.func @transform_5(%arg0: i32) -> (i32, i32) {
    %c0_i32 = arith.constant 0 : i32
    %c0_i32_0 = arith.constant 0 : i32
    %c0_i32_1 = arith.constant 0 : i32
    return %c0_i32, %c0_i32_0 : i32, i32
  }
  func.func @transform_6(%arg0: i32) -> (i32, i32) {
    %c0_i32 = arith.constant 0 : i32
    %c0_i32_0 = arith.constant 0 : i32
    %c0_i32_1 = arith.constant 0 : i32
    return %c0_i32, %c0_i32_0 : i32, i32
  }
  func.func @transform_7(%arg0: i32) -> (i32, i32, i32, i32) {
    %c0_i32 = arith.constant 0 : i32
    %c0_i32_0 = arith.constant 0 : i32
    %c0_i32_1 = arith.constant 0 : i32
    %c0_i32_2 = arith.constant 0 : i32
    return %arg0, %c0_i32, %c0_i32_0, %c0_i32_1 : i32, i32, i32, i32
  }
}

module attributes {stable_mosaic.version = 11 : i64} {
  func.func @_block_kernel(%arg0: i32, %arg1: memref<2x20x5x128xbf16, #tpu.memory_space<vmem>>, %arg2: memref<4x256x128xbf16, #tpu.memory_space<vmem>>, %arg3: memref<128x128xbf16, #tpu.memory_space<vmem>>, %arg4: memref<1x128xf32, #tpu.memory_space<vmem>>, %arg5: memref<4x256x128xbf16, #tpu.memory_space<vmem>>, %arg6: memref<128x128xbf16, #tpu.memory_space<vmem>>, %arg7: memref<1x128xf32, #tpu.memory_space<vmem>>, %arg8: memref<128x128xbf16, #tpu.memory_space<vmem>>, %arg9: memref<1x128xf32, #tpu.memory_space<vmem>>, %arg10: memref<2x4x4x128xbf16, #tpu.memory_space<vmem>>, %arg11: memref<2x6x6x128xbf16, #tpu.memory_space<vmem>>, %arg12: memref<32x128xf32, #tpu.memory_space<vmem>>) attributes {dimension_semantics = [#tpu.dimension_semantics<parallel>], iteration_bounds = array<i64: 1>, scalar_prefetch = 0 : i64, scratch_operands = 2 : i64, tpu.core_type = #tpu.core_type<tc>, window_params = [{transform_indices = @transform_0, window_bounds = array<i64: 2, 20, 5, 128>}, {pipeline_mode = #tpu.pipeline_mode<synchronous>, transform_indices = @transform_1, window_bounds = array<i64: 4, 256, 128>}, {pipeline_mode = #tpu.pipeline_mode<synchronous>, transform_indices = @transform_2, window_bounds = array<i64: 128, 128>}, {pipeline_mode = #tpu.pipeline_mode<synchronous>, transform_indices = @transform_3, window_bounds = array<i64: 1, 128>}, {pipeline_mode = #tpu.pipeline_mode<synchronous>, transform_indices = @transform_4, window_bounds = array<i64: 4, 256, 128>}, {pipeline_mode = #tpu.pipeline_mode<synchronous>, transform_indices = @transform_5, window_bounds = array<i64: 128, 128>}, {pipeline_mode = #tpu.pipeline_mode<synchronous>, transform_indices = @transform_6, window_bounds = array<i64: 1, 128>}, {pipeline_mode = #tpu.pipeline_mode<synchronous>, transform_indices = @transform_7, window_bounds = array<i64: 128, 128>}, {pipeline_mode = #tpu.pipeline_mode<synchronous>, transform_indices = @transform_8, window_bounds = array<i64: 1, 128>}, {transform_indices = @transform_9, window_bounds = array<i64: 2, 4, 4, 128>}]} {
    %cst = arith.constant 0.000000e+00 : f32
    %0 = vector.broadcast %cst : f32 to vector<32x128xf32>
    %c0 = arith.constant 0 : index
    %c0_0 = arith.constant 0 : index
    %1 = vector.load %arg12[%c0, %c0_0] : memref<32x128xf32, #tpu.memory_space<vmem>>, vector<32x128xf32>
    tpu.vector_store %arg12[%c0, %c0_0], %0 {strides = array<i32>} : memref<32x128xf32, #tpu.memory_space<vmem>>, vector<32x128xf32>,
    %c0_1 = arith.constant 0 : index
    %c0_2 = arith.constant 0 : index
    %c0_3 = arith.constant 0 : index
    %c0_4 = arith.constant 0 : index
    %2 = vector.load %arg1[%c0_1, %c0_2, %c0_3, %c0_4] : memref<2x20x5x128xbf16, #tpu.memory_space<vmem>>, vector<2x4x4x128xbf16>
    %3 = vector.shape_cast %2 : vector<2x4x4x128xbf16> to vector<32x128xbf16>
    %c0_5 = arith.constant 0 : index
    %c5 = arith.constant 5 : index
    %c0_6 = arith.constant 0 : index
    %c0_7 = arith.constant 0 : index
    %4 = vector.load %arg1[%c0_5, %c5, %c0_6, %c0_7] : memref<2x20x5x128xbf16, #tpu.memory_space<vmem>>, vector<2x4x4x128xbf16>
    %5 = vector.shape_cast %4 : vector<2x4x4x128xbf16> to vector<32x128xbf16>
    %6 = tpu.concatenate %3, %5 in 1 : vector<32x128xbf16>, vector<32x128xbf16> -> vector<32x256xbf16>
    %c0_8 = arith.constant 0 : index
    %c0_9 = arith.constant 0 : index
    %7 = vector.load %arg12[%c0_8, %c0_9] : memref<32x128xf32, #tpu.memory_space<vmem>>, vector<32x128xf32>
    %c0_10 = arith.constant 0 : index
    %c0_11 = arith.constant 0 : index
    %c0_12 = arith.constant 0 : index
    %8 = vector.load %arg2[%c0_10, %c0_11, %c0_12] : memref<4x256x128xbf16, #tpu.memory_space<vmem>>, vector<1x256x128xbf16>
    %9 = vector.shape_cast %8 : vector<1x256x128xbf16> to vector<256x128xbf16>
    %cst_13 = arith.constant dense<0.000000e+00> : vector<32x128xf32>
    %10 = tpu.matmul %6, %9, %cst_13 {dimension_numbers = #tpu.dot_dimension_numbers<[1], [0], [0], [1], [0, 0, 1, 1], [], []>} : vector<32x256xbf16>, vector<256x128xbf16>, vector<32x128xf32> -> vector<32x128xf32>
    %11 = arith.addf %7, %10 : vector<32x128xf32>
    %c0_14 = arith.constant 0 : index
    %c0_15 = arith.constant 0 : index
    %12 = vector.load %arg12[%c0_14, %c0_15] : memref<32x128xf32, #tpu.memory_space<vmem>>, vector<32x128xf32>
    tpu.vector_store %arg12[%c0_14, %c0_15], %11 {strides = array<i32>} : memref<32x128xf32, #tpu.memory_space<vmem>>, vector<32x128xf32>,
    %c0_16 = arith.constant 0 : index
    %c0_17 = arith.constant 0 : index
    %c1 = arith.constant 1 : index
    %c0_18 = arith.constant 0 : index
    %13 = vector.load %arg1[%c0_16, %c0_17, %c1, %c0_18] : memref<2x20x5x128xbf16, #tpu.memory_space<vmem>>, vector<2x4x4x128xbf16>
    %14 = vector.shape_cast %13 : vector<2x4x4x128xbf16> to vector<32x128xbf16>
    %c0_19 = arith.constant 0 : index
    %c10 = arith.constant 10 : index
    %c0_20 = arith.constant 0 : index
    %c0_21 = arith.constant 0 : index
    %15 = vector.load %arg1[%c0_19, %c10, %c0_20, %c0_21] : memref<2x20x5x128xbf16, #tpu.memory_space<vmem>>, vector<2x4x4x128xbf16>
    %16 = vector.shape_cast %15 : vector<2x4x4x128xbf16> to vector<32x128xbf16>
    %17 = tpu.concatenate %14, %16 in 1 : vector<32x128xbf16>, vector<32x128xbf16> -> vector<32x256xbf16>
    %c0_22 = arith.constant 0 : index
    %c0_23 = arith.constant 0 : index
    %18 = vector.load %arg12[%c0_22, %c0_23] : memref<32x128xf32, #tpu.memory_space<vmem>>, vector<32x128xf32>
    %c1_24 = arith.constant 1 : index
    %c0_25 = arith.constant 0 : index
    %c0_26 = arith.constant 0 : index
    %19 = vector.load %arg2[%c1_24, %c0_25, %c0_26] : memref<4x256x128xbf16, #tpu.memory_space<vmem>>, vector<1x256x128xbf16>
    %20 = vector.shape_cast %19 : vector<1x256x128xbf16> to vector<256x128xbf16>
    %cst_27 = arith.constant dense<0.000000e+00> : vector<32x128xf32>
    %21 = tpu.matmul %17, %20, %cst_27 {dimension_numbers = #tpu.dot_dimension_numbers<[1], [0], [0], [1], [0, 0, 1, 1], [], []>} : vector<32x256xbf16>, vector<256x128xbf16>, vector<32x128xf32> -> vector<32x128xf32>
    %22 = arith.addf %18, %21 : vector<32x128xf32>
    %c0_28 = arith.constant 0 : index
    %c0_29 = arith.constant 0 : index
    %23 = vector.load %arg12[%c0_28, %c0_29] : memref<32x128xf32, #tpu.memory_space<vmem>>, vector<32x128xf32>
    tpu.vector_store %arg12[%c0_28, %c0_29], %22 {strides = array<i32>} : memref<32x128xf32, #tpu.memory_space<vmem>>, vector<32x128xf32>,
    %c0_30 = arith.constant 0 : index
    %c15 = arith.constant 15 : index
    %c0_31 = arith.constant 0 : index
    %c0_32 = arith.constant 0 : index
    %24 = vector.load %arg1[%c0_30, %c15, %c0_31, %c0_32] : memref<2x20x5x128xbf16, #tpu.memory_space<vmem>>, vector<2x4x4x128xbf16>
    %25 = vector.shape_cast %24 : vector<2x4x4x128xbf16> to vector<32x128xbf16>
    %c0_33 = arith.constant 0 : index
    %c10_34 = arith.constant 10 : index
    %c1_35 = arith.constant 1 : index
    %c0_36 = arith.constant 0 : index
    %26 = vector.load %arg1[%c0_33, %c10_34, %c1_35, %c0_36] : memref<2x20x5x128xbf16, #tpu.memory_space<vmem>>, vector<2x4x4x128xbf16>
    %27 = vector.shape_cast %26 : vector<2x4x4x128xbf16> to vector<32x128xbf16>
    %28 = tpu.concatenate %25, %27 in 1 : vector<32x128xbf16>, vector<32x128xbf16> -> vector<32x256xbf16>
    %c0_37 = arith.constant 0 : index
    %c0_38 = arith.constant 0 : index
    %29 = vector.load %arg12[%c0_37, %c0_38] : memref<32x128xf32, #tpu.memory_space<vmem>>, vector<32x128xf32>
    %c2 = arith.constant 2 : index
    %c0_39 = arith.constant 0 : index
    %c0_40 = arith.constant 0 : index
    %30 = vector.load %arg2[%c2, %c0_39, %c0_40] : memref<4x256x128xbf16, #tpu.memory_space<vmem>>, vector<1x256x128xbf16>
    %31 = vector.shape_cast %30 : vector<1x256x128xbf16> to vector<256x128xbf16>
    %cst_41 = arith.constant dense<0.000000e+00> : vector<32x128xf32>
    %32 = tpu.matmul %28, %31, %cst_41 {dimension_numbers = #tpu.dot_dimension_numbers<[1], [0], [0], [1], [0, 0, 1, 1], [], []>} : vector<32x256xbf16>, vector<256x128xbf16>, vector<32x128xf32> -> vector<32x128xf32>
    %33 = arith.addf %29, %32 : vector<32x128xf32>
    %c0_42 = arith.constant 0 : index
    %c0_43 = arith.constant 0 : index
    %34 = vector.load %arg12[%c0_42, %c0_43] : memref<32x128xf32, #tpu.memory_space<vmem>>, vector<32x128xf32>
    tpu.vector_store %arg12[%c0_42, %c0_43], %33 {strides = array<i32>} : memref<32x128xf32, #tpu.memory_space<vmem>>, vector<32x128xf32>,
    %c0_44 = arith.constant 0 : index
    %c1_45 = arith.constant 1 : index
    %c0_46 = arith.constant 0 : index
    %c0_47 = arith.constant 0 : index
    %35 = vector.load %arg1[%c0_44, %c1_45, %c0_46, %c0_47] : memref<2x20x5x128xbf16, #tpu.memory_space<vmem>>, vector<2x4x4x128xbf16>
    %36 = vector.shape_cast %35 : vector<2x4x4x128xbf16> to vector<32x128xbf16>
    %c0_48 = arith.constant 0 : index
    %c6 = arith.constant 6 : index
    %c0_49 = arith.constant 0 : index
    %c0_50 = arith.constant 0 : index
    %37 = vector.load %arg1[%c0_48, %c6, %c0_49, %c0_50] : memref<2x20x5x128xbf16, #tpu.memory_space<vmem>>, vector<2x4x4x128xbf16>
    %38 = vector.shape_cast %37 : vector<2x4x4x128xbf16> to vector<32x128xbf16>
    %39 = tpu.concatenate %36, %38 in 1 : vector<32x128xbf16>, vector<32x128xbf16> -> vector<32x256xbf16>
    %c0_51 = arith.constant 0 : index
    %c0_52 = arith.constant 0 : index
    %40 = vector.load %arg12[%c0_51, %c0_52] : memref<32x128xf32, #tpu.memory_space<vmem>>, vector<32x128xf32>
    %c3 = arith.constant 3 : index
    %c0_53 = arith.constant 0 : index
    %c0_54 = arith.constant 0 : index
    %41 = vector.load %arg2[%c3, %c0_53, %c0_54] : memref<4x256x128xbf16, #tpu.memory_space<vmem>>, vector<1x256x128xbf16>
    %42 = vector.shape_cast %41 : vector<1x256x128xbf16> to vector<256x128xbf16>
    %cst_55 = arith.constant dense<0.000000e+00> : vector<32x128xf32>
    %43 = tpu.matmul %39, %42, %cst_55 {dimension_numbers = #tpu.dot_dimension_numbers<[1], [0], [0], [1], [0, 0, 1, 1], [], []>} : vector<32x256xbf16>, vector<256x128xbf16>, vector<32x128xf32> -> vector<32x128xf32>
    %44 = arith.addf %40, %43 : vector<32x128xf32>
    %c0_56 = arith.constant 0 : index
    %c0_57 = arith.constant 0 : index
    %45 = vector.load %arg12[%c0_56, %c0_57] : memref<32x128xf32, #tpu.memory_space<vmem>>, vector<32x128xf32>
    tpu.vector_store %arg12[%c0_56, %c0_57], %44 {strides = array<i32>} : memref<32x128xf32, #tpu.memory_space<vmem>>, vector<32x128xf32>,
    %c0_58 = arith.constant 0 : index
    %c0_59 = arith.constant 0 : index
    %46 = vector.load %arg12[%c0_58, %c0_59] : memref<32x128xf32, #tpu.memory_space<vmem>>, vector<32x128xf32>
    %c0_60 = arith.constant 0 : index
    %c1_61 = arith.constant 1 : index
    %c1_62 = arith.constant 1 : index
    %c0_63 = arith.constant 0 : index
    %47 = vector.load %arg1[%c0_60, %c1_61, %c1_62, %c0_63] : memref<2x20x5x128xbf16, #tpu.memory_space<vmem>>, vector<2x4x4x128xbf16>
    %48 = vector.shape_cast %47 : vector<2x4x4x128xbf16> to vector<32x128xbf16>
    %c0_64 = arith.constant 0 : index
    %c0_65 = arith.constant 0 : index
    %49 = vector.load %arg3[%c0_64, %c0_65] : memref<128x128xbf16, #tpu.memory_space<vmem>>, vector<128x128xbf16>
    %cst_66 = arith.constant dense<0.000000e+00> : vector<32x128xf32>
    %50 = tpu.matmul %48, %49, %cst_66 {dimension_numbers = #tpu.dot_dimension_numbers<[1], [0], [0], [1], [0, 0, 1, 1], [], []>} : vector<32x128xbf16>, vector<128x128xbf16>, vector<32x128xf32> -> vector<32x128xf32>
    %51 = arith.addf %46, %50 : vector<32x128xf32>
    %c0_67 = arith.constant 0 : index
    %c0_68 = arith.constant 0 : index
    %52 = vector.load %arg12[%c0_67, %c0_68] : memref<32x128xf32, #tpu.memory_space<vmem>>, vector<32x128xf32>
    tpu.vector_store %arg12[%c0_67, %c0_68], %51 {strides = array<i32>} : memref<32x128xf32, #tpu.memory_space<vmem>>, vector<32x128xf32>,
    %c0_69 = arith.constant 0 : index
    %c0_70 = arith.constant 0 : index
    %53 = vector.load %arg12[%c0_69, %c0_70] : memref<32x128xf32, #tpu.memory_space<vmem>>, vector<32x128xf32>
    %c0_71 = arith.constant 0 : index
    %c0_72 = arith.constant 0 : index
    %54 = vector.load %arg4[%c0_71, %c0_72] : memref<1x128xf32, #tpu.memory_space<vmem>>, vector<1x128xf32>
    %55 = vector.broadcast %54 : vector<1x128xf32> to vector<32x128xf32>
    %56 = arith.addf %53, %55 : vector<32x128xf32>
    %cst_73 = arith.constant 0.000000e+00 : f32
    %57 = vector.broadcast %cst_73 : f32 to vector<32x128xf32>
    %58 = arith.maximumf %56, %57 : vector<32x128xf32>
    %cst_74 = arith.constant 0.000000e+00 : bf16
    %59 = vector.broadcast %cst_74 : bf16 to vector<2x6x6x128xbf16>
    %c0_75 = arith.constant 0 : index
    %c0_76 = arith.constant 0 : index
    %c0_77 = arith.constant 0 : index
    %c0_78 = arith.constant 0 : index
    %60 = vector.load %arg11[%c0_75, %c0_76, %c0_77, %c0_78] : memref<2x6x6x128xbf16, #tpu.memory_space<vmem>>, vector<2x6x6x128xbf16>
    tpu.vector_store %arg11[%c0_75, %c0_76, %c0_77, %c0_78], %59 {strides = array<i32>} : memref<2x6x6x128xbf16, #tpu.memory_space<vmem>>, vector<2x6x6x128xbf16>,
    %61 = vector.shape_cast %58 : vector<32x128xf32> to vector<2x4x4x128xf32>
    %62 = arith.truncf %61 : vector<2x4x4x128xf32> to vector<2x4x4x128xbf16>
    %c0_79 = arith.constant 0 : index
    %c1_80 = arith.constant 1 : index
    %c1_81 = arith.constant 1 : index
    %c0_82 = arith.constant 0 : index
    %63 = vector.load %arg11[%c0_79, %c1_80, %c1_81, %c0_82] : memref<2x6x6x128xbf16, #tpu.memory_space<vmem>>, vector<2x4x4x128xbf16>
    tpu.vector_store %arg11[%c0_79, %c1_80, %c1_81, %c0_82], %62 {strides = array<i32>} : memref<2x6x6x128xbf16, #tpu.memory_space<vmem>>, vector<2x4x4x128xbf16>,
    %cst_83 = arith.constant 0.000000e+00 : f32
    %64 = vector.broadcast %cst_83 : f32 to vector<32x128xf32>
    %c0_84 = arith.constant 0 : index
    %c0_85 = arith.constant 0 : index
    %65 = vector.load %arg12[%c0_84, %c0_85] : memref<32x128xf32, #tpu.memory_space<vmem>>, vector<32x128xf32>
    tpu.vector_store %arg12[%c0_84, %c0_85], %64 {strides = array<i32>} : memref<32x128xf32, #tpu.memory_space<vmem>>, vector<32x128xf32>,
    %c0_86 = arith.constant 0 : index
    %c0_87 = arith.constant 0 : index
    %c0_88 = arith.constant 0 : index
    %c0_89 = arith.constant 0 : index
    %66 = vector.load %arg11[%c0_86, %c0_87, %c0_88, %c0_89] : memref<2x6x6x128xbf16, #tpu.memory_space<vmem>>, vector<2x4x4x128xbf16>
    %67 = vector.shape_cast %66 : vector<2x4x4x128xbf16> to vector<32x128xbf16>
    %c0_90 = arith.constant 0 : index
    %c0_91 = arith.constant 0 : index
    %c1_92 = arith.constant 1 : index
    %c0_93 = arith.constant 0 : index
    %68 = vector.load %arg11[%c0_90, %c0_91, %c1_92, %c0_93] : memref<2x6x6x128xbf16, #tpu.memory_space<vmem>>, vector<2x4x4x128xbf16>
    %69 = vector.shape_cast %68 : vector<2x4x4x128xbf16> to vector<32x128xbf16>
    %70 = tpu.concatenate %67, %69 in 1 : vector<32x128xbf16>, vector<32x128xbf16> -> vector<32x256xbf16>
    %c0_94 = arith.constant 0 : index
    %c0_95 = arith.constant 0 : index
    %71 = vector.load %arg12[%c0_94, %c0_95] : memref<32x128xf32, #tpu.memory_space<vmem>>, vector<32x128xf32>
    %c0_96 = arith.constant 0 : index
    %c0_97 = arith.constant 0 : index
    %c0_98 = arith.constant 0 : index
    %72 = vector.load %arg5[%c0_96, %c0_97, %c0_98] : memref<4x256x128xbf16, #tpu.memory_space<vmem>>, vector<1x256x128xbf16>
    %73 = vector.shape_cast %72 : vector<1x256x128xbf16> to vector<256x128xbf16>
    %cst_99 = arith.constant dense<0.000000e+00> : vector<32x128xf32>
    %74 = tpu.matmul %70, %73, %cst_99 {dimension_numbers = #tpu.dot_dimension_numbers<[1], [0], [0], [1], [0, 0, 1, 1], [], []>} : vector<32x256xbf16>, vector<256x128xbf16>, vector<32x128xf32> -> vector<32x128xf32>
    %75 = arith.addf %71, %74 : vector<32x128xf32>
    %c0_100 = arith.constant 0 : index
    %c0_101 = arith.constant 0 : index
    %76 = vector.load %arg12[%c0_100, %c0_101] : memref<32x128xf32, #tpu.memory_space<vmem>>, vector<32x128xf32>
    tpu.vector_store %arg12[%c0_100, %c0_101], %75 {strides = array<i32>} : memref<32x128xf32, #tpu.memory_space<vmem>>, vector<32x128xf32>,
    %c0_102 = arith.constant 0 : index
    %c0_103 = arith.constant 0 : index
    %c2_104 = arith.constant 2 : index
    %c0_105 = arith.constant 0 : index
    %77 = vector.load %arg11[%c0_102, %c0_103, %c2_104, %c0_105] : memref<2x6x6x128xbf16, #tpu.memory_space<vmem>>, vector<2x4x4x128xbf16>
    %78 = vector.shape_cast %77 : vector<2x4x4x128xbf16> to vector<32x128xbf16>
    %c0_106 = arith.constant 0 : index
    %c1_107 = arith.constant 1 : index
    %c0_108 = arith.constant 0 : index
    %c0_109 = arith.constant 0 : index
    %79 = vector.load %arg11[%c0_106, %c1_107, %c0_108, %c0_109] : memref<2x6x6x128xbf16, #tpu.memory_space<vmem>>, vector<2x4x4x128xbf16>
    %80 = vector.shape_cast %79 : vector<2x4x4x128xbf16> to vector<32x128xbf16>
    %81 = tpu.concatenate %78, %80 in 1 : vector<32x128xbf16>, vector<32x128xbf16> -> vector<32x256xbf16>
    %c0_110 = arith.constant 0 : index
    %c0_111 = arith.constant 0 : index
    %82 = vector.load %arg12[%c0_110, %c0_111] : memref<32x128xf32, #tpu.memory_space<vmem>>, vector<32x128xf32>
    %c1_112 = arith.constant 1 : index
    %c0_113 = arith.constant 0 : index
    %c0_114 = arith.constant 0 : index
    %83 = vector.load %arg5[%c1_112, %c0_113, %c0_114] : memref<4x256x128xbf16, #tpu.memory_space<vmem>>, vector<1x256x128xbf16>
    %84 = vector.shape_cast %83 : vector<1x256x128xbf16> to vector<256x128xbf16>
    %cst_115 = arith.constant dense<0.000000e+00> : vector<32x128xf32>
    %85 = tpu.matmul %81, %84, %cst_115 {dimension_numbers = #tpu.dot_dimension_numbers<[1], [0], [0], [1], [0, 0, 1, 1], [], []>} : vector<32x256xbf16>, vector<256x128xbf16>, vector<32x128xf32> -> vector<32x128xf32>
    %86 = arith.addf %82, %85 : vector<32x128xf32>
    %c0_116 = arith.constant 0 : index
    %c0_117 = arith.constant 0 : index
    %87 = vector.load %arg12[%c0_116, %c0_117] : memref<32x128xf32, #tpu.memory_space<vmem>>, vector<32x128xf32>
    tpu.vector_store %arg12[%c0_116, %c0_117], %86 {strides = array<i32>} : memref<32x128xf32, #tpu.memory_space<vmem>>, vector<32x128xf32>,
    %c0_118 = arith.constant 0 : index
    %c1_119 = arith.constant 1 : index
    %c1_120 = arith.constant 1 : index
    %c0_121 = arith.constant 0 : index
    %88 = vector.load %arg11[%c0_118, %c1_119, %c1_120, %c0_121] : memref<2x6x6x128xbf16, #tpu.memory_space<vmem>>, vector<2x4x4x128xbf16>
    %89 = vector.shape_cast %88 : vector<2x4x4x128xbf16> to vector<32x128xbf16>
    %c0_122 = arith.constant 0 : index
    %c1_123 = arith.constant 1 : index
    %c2_124 = arith.constant 2 : index
    %c0_125 = arith.constant 0 : index
    %90 = vector.load %arg11[%c0_122, %c1_123, %c2_124, %c0_125] : memref<2x6x6x128xbf16, #tpu.memory_space<vmem>>, vector<2x4x4x128xbf16>
    %91 = vector.shape_cast %90 : vector<2x4x4x128xbf16> to vector<32x128xbf16>
    %92 = tpu.concatenate %89, %91 in 1 : vector<32x128xbf16>, vector<32x128xbf16> -> vector<32x256xbf16>
    %c0_126 = arith.constant 0 : index
    %c0_127 = arith.constant 0 : index
    %93 = vector.load %arg12[%c0_126, %c0_127] : memref<32x128xf32, #tpu.memory_space<vmem>>, vector<32x128xf32>
    %c2_128 = arith.constant 2 : index
    %c0_129 = arith.constant 0 : index
    %c0_130 = arith.constant 0 : index
    %94 = vector.load %arg5[%c2_128, %c0_129, %c0_130] : memref<4x256x128xbf16, #tpu.memory_space<vmem>>, vector<1x256x128xbf16>
    %95 = vector.shape_cast %94 : vector<1x256x128xbf16> to vector<256x128xbf16>
    %cst_131 = arith.constant dense<0.000000e+00> : vector<32x128xf32>
    %96 = tpu.matmul %92, %95, %cst_131 {dimension_numbers = #tpu.dot_dimension_numbers<[1], [0], [0], [1], [0, 0, 1, 1], [], []>} : vector<32x256xbf16>, vector<256x128xbf16>, vector<32x128xf32> -> vector<32x128xf32>
    %97 = arith.addf %93, %96 : vector<32x128xf32>
    %c0_132 = arith.constant 0 : index
    %c0_133 = arith.constant 0 : index
    %98 = vector.load %arg12[%c0_132, %c0_133] : memref<32x128xf32, #tpu.memory_space<vmem>>, vector<32x128xf32>
    tpu.vector_store %arg12[%c0_132, %c0_133], %97 {strides = array<i32>} : memref<32x128xf32, #tpu.memory_space<vmem>>, vector<32x128xf32>,
    %c0_134 = arith.constant 0 : index
    %c2_135 = arith.constant 2 : index
    %c0_136 = arith.constant 0 : index
    %c0_137 = arith.constant 0 : index
    %99 = vector.load %arg11[%c0_134, %c2_135, %c0_136, %c0_137] : memref<2x6x6x128xbf16, #tpu.memory_space<vmem>>, vector<2x4x4x128xbf16>
    %100 = vector.shape_cast %99 : vector<2x4x4x128xbf16> to vector<32x128xbf16>
    %c0_138 = arith.constant 0 : index
    %c2_139 = arith.constant 2 : index
    %c1_140 = arith.constant 1 : index
    %c0_141 = arith.constant 0 : index
    %101 = vector.load %arg11[%c0_138, %c2_139, %c1_140, %c0_141] : memref<2x6x6x128xbf16, #tpu.memory_space<vmem>>, vector<2x4x4x128xbf16>
    %102 = vector.shape_cast %101 : vector<2x4x4x128xbf16> to vector<32x128xbf16>
    %103 = tpu.concatenate %100, %102 in 1 : vector<32x128xbf16>, vector<32x128xbf16> -> vector<32x256xbf16>
    %c0_142 = arith.constant 0 : index
    %c0_143 = arith.constant 0 : index
    %104 = vector.load %arg12[%c0_142, %c0_143] : memref<32x128xf32, #tpu.memory_space<vmem>>, vector<32x128xf32>
    %c3_144 = arith.constant 3 : index
    %c0_145 = arith.constant 0 : index
    %c0_146 = arith.constant 0 : index
    %105 = vector.load %arg5[%c3_144, %c0_145, %c0_146] : memref<4x256x128xbf16, #tpu.memory_space<vmem>>, vector<1x256x128xbf16>
    %106 = vector.shape_cast %105 : vector<1x256x128xbf16> to vector<256x128xbf16>
    %cst_147 = arith.constant dense<0.000000e+00> : vector<32x128xf32>
    %107 = tpu.matmul %103, %106, %cst_147 {dimension_numbers = #tpu.dot_dimension_numbers<[1], [0], [0], [1], [0, 0, 1, 1], [], []>} : vector<32x256xbf16>, vector<256x128xbf16>, vector<32x128xf32> -> vector<32x128xf32>
    %108 = arith.addf %104, %107 : vector<32x128xf32>
    %c0_148 = arith.constant 0 : index
    %c0_149 = arith.constant 0 : index
    %109 = vector.load %arg12[%c0_148, %c0_149] : memref<32x128xf32, #tpu.memory_space<vmem>>, vector<32x128xf32>
    tpu.vector_store %arg12[%c0_148, %c0_149], %108 {strides = array<i32>} : memref<32x128xf32, #tpu.memory_space<vmem>>, vector<32x128xf32>,
    %c0_150 = arith.constant 0 : index
    %c0_151 = arith.constant 0 : index
    %110 = vector.load %arg12[%c0_150, %c0_151] : memref<32x128xf32, #tpu.memory_space<vmem>>, vector<32x128xf32>
    %c0_152 = arith.constant 0 : index
    %c2_153 = arith.constant 2 : index
    %c2_154 = arith.constant 2 : index
    %c0_155 = arith.constant 0 : index
    %111 = vector.load %arg11[%c0_152, %c2_153, %c2_154, %c0_155] : memref<2x6x6x128xbf16, #tpu.memory_space<vmem>>, vector<2x4x4x128xbf16>
    %112 = vector.shape_cast %111 : vector<2x4x4x128xbf16> to vector<32x128xbf16>
    %c0_156 = arith.constant 0 : index
    %c0_157 = arith.constant 0 : index
    %113 = vector.load %arg6[%c0_156, %c0_157] : memref<128x128xbf16, #tpu.memory_space<vmem>>, vector<128x128xbf16>
    %cst_158 = arith.constant dense<0.000000e+00> : vector<32x128xf32>
    %114 = tpu.matmul %112, %113, %cst_158 {dimension_numbers = #tpu.dot_dimension_numbers<[1], [0], [0], [1], [0, 0, 1, 1], [], []>} : vector<32x128xbf16>, vector<128x128xbf16>, vector<32x128xf32> -> vector<32x128xf32>
    %115 = arith.addf %110, %114 : vector<32x128xf32>
    %c0_159 = arith.constant 0 : index
    %c0_160 = arith.constant 0 : index
    %116 = vector.load %arg12[%c0_159, %c0_160] : memref<32x128xf32, #tpu.memory_space<vmem>>, vector<32x128xf32>
    tpu.vector_store %arg12[%c0_159, %c0_160], %115 {strides = array<i32>} : memref<32x128xf32, #tpu.memory_space<vmem>>, vector<32x128xf32>,
    %c0_161 = arith.constant 0 : index
    %c15_162 = arith.constant 15 : index
    %c0_163 = arith.constant 0 : index
    %c0_164 = arith.constant 0 : index
    %117 = vector.load %arg1[%c0_161, %c15_162, %c0_163, %c0_164] : memref<2x20x5x128xbf16, #tpu.memory_space<vmem>>, vector<2x4x4x128xbf16>
    %118 = vector.shape_cast %117 : vector<2x4x4x128xbf16> to vector<32x128xbf16>
    %c0_165 = arith.constant 0 : index
    %c0_166 = arith.constant 0 : index
    %119 = vector.load %arg8[%c0_165, %c0_166] : memref<128x128xbf16, #tpu.memory_space<vmem>>, vector<128x128xbf16>
    %cst_167 = arith.constant dense<0.000000e+00> : vector<32x128xf32>
    %120 = tpu.matmul %118, %119, %cst_167 {dimension_numbers = #tpu.dot_dimension_numbers<[1], [0], [0], [1], [0, 0, 1, 1], [], []>} : vector<32x128xbf16>, vector<128x128xbf16>, vector<32x128xf32> -> vector<32x128xf32>
    %c0_168 = arith.constant 0 : index
    %c0_169 = arith.constant 0 : index
    %121 = vector.load %arg9[%c0_168, %c0_169] : memref<1x128xf32, #tpu.memory_space<vmem>>, vector<1x128xf32>
    %122 = vector.broadcast %121 : vector<1x128xf32> to vector<32x128xf32>
    %123 = arith.addf %120, %122 : vector<32x128xf32>
    %c0_170 = arith.constant 0 : index
    %c0_171 = arith.constant 0 : index
    %124 = vector.load %arg12[%c0_170, %c0_171] : memref<32x128xf32, #tpu.memory_space<vmem>>, vector<32x128xf32>
    %c0_172 = arith.constant 0 : index
    %c0_173 = arith.constant 0 : index
    %125 = vector.load %arg7[%c0_172, %c0_173] : memref<1x128xf32, #tpu.memory_space<vmem>>, vector<1x128xf32>
    %126 = vector.broadcast %125 : vector<1x128xf32> to vector<32x128xf32>
    %127 = arith.addf %124, %126 : vector<32x128xf32>
    %128 = arith.addf %127, %123 : vector<32x128xf32>
    %cst_174 = arith.constant 0.000000e+00 : f32
    %129 = vector.broadcast %cst_174 : f32 to vector<32x128xf32>
    %130 = arith.maximumf %128, %129 : vector<32x128xf32>
    %131 = vector.shape_cast %130 : vector<32x128xf32> to vector<2x4x4x128xf32>
    %132 = arith.truncf %131 : vector<2x4x4x128xf32> to vector<2x4x4x128xbf16>
    %c0_175 = arith.constant 0 : index
    %c0_176 = arith.constant 0 : index
    %c0_177 = arith.constant 0 : index
    %c0_178 = arith.constant 0 : index
    %133 = vector.load %arg10[%c0_175, %c0_176, %c0_177, %c0_178] : memref<2x4x4x128xbf16, #tpu.memory_space<vmem>>, vector<2x4x4x128xbf16>
    tpu.vector_store %arg10[%c0_175, %c0_176, %c0_177, %c0_178], %132 {strides = array<i32>} : memref<2x4x4x128xbf16, #tpu.memory_space<vmem>>, vector<2x4x4x128xbf16>,
    return
  }
  func.func @transform_0(%arg0: i32) -> (i32, i32, i32, i32) {
    %c0_i32 = arith.constant 0 : i32
    %c0_i32_0 = arith.constant 0 : i32
    %c0_i32_1 = arith.constant 0 : i32
    %c0_i32_2 = arith.constant 0 : i32
    return %arg0, %c0_i32, %c0_i32_0, %c0_i32_1 : i32, i32, i32, i32
  }
  func.func @transform_1(%arg0: i32) -> (i32, i32, i32) {
    %c0_i32 = arith.constant 0 : i32
    %c0_i32_0 = arith.constant 0 : i32
    %c0_i32_1 = arith.constant 0 : i32
    %c0_i32_2 = arith.constant 0 : i32
    return %c0_i32, %c0_i32_0, %c0_i32_1 : i32, i32, i32
  }
  func.func @transform_2(%arg0: i32) -> (i32, i32) {
    %c0_i32 = arith.constant 0 : i32
    %c0_i32_0 = arith.constant 0 : i32
    %c0_i32_1 = arith.constant 0 : i32
    return %c0_i32, %c0_i32_0 : i32, i32
  }
  func.func @transform_3(%arg0: i32) -> (i32, i32) {
    %c0_i32 = arith.constant 0 : i32
    %c0_i32_0 = arith.constant 0 : i32
    %c0_i32_1 = arith.constant 0 : i32
    return %c0_i32, %c0_i32_0 : i32, i32
  }
  func.func @transform_4(%arg0: i32) -> (i32, i32, i32) {
    %c0_i32 = arith.constant 0 : i32
    %c0_i32_0 = arith.constant 0 : i32
    %c0_i32_1 = arith.constant 0 : i32
    %c0_i32_2 = arith.constant 0 : i32
    return %c0_i32, %c0_i32_0, %c0_i32_1 : i32, i32, i32
  }
  func.func @transform_5(%arg0: i32) -> (i32, i32) {
    %c0_i32 = arith.constant 0 : i32
    %c0_i32_0 = arith.constant 0 : i32
    %c0_i32_1 = arith.constant 0 : i32
    return %c0_i32, %c0_i32_0 : i32, i32
  }
  func.func @transform_6(%arg0: i32) -> (i32, i32) {
    %c0_i32 = arith.constant 0 : i32
    %c0_i32_0 = arith.constant 0 : i32
    %c0_i32_1 = arith.constant 0 : i32
    return %c0_i32, %c0_i32_0 : i32, i32
  }
  func.func @transform_7(%arg0: i32) -> (i32, i32) {
    %c0_i32 = arith.constant 0 : i32
    %c0_i32_0 = arith.constant 0 : i32
    %c0_i32_1 = arith.constant 0 : i32
    return %c0_i32, %c0_i32_0 : i32, i32
  }
  func.func @transform_8(%arg0: i32) -> (i32, i32) {
    %c0_i32 = arith.constant 0 : i32
    %c0_i32_0 = arith.constant 0 : i32
    %c0_i32_1 = arith.constant 0 : i32
    return %c0_i32, %c0_i32_0 : i32, i32
  }
  func.func @transform_9(%arg0: i32) -> (i32, i32, i32, i32) {
    %c0_i32 = arith.constant 0 : i32
    %c0_i32_0 = arith.constant 0 : i32
    %c0_i32_1 = arith.constant 0 : i32
    %c0_i32_2 = arith.constant 0 : i32
    return %arg0, %c0_i32, %c0_i32_0, %c0_i32_1 : i32, i32, i32, i32
  }
}

module attributes {stable_mosaic.version = 11 : i64} {
  func.func @_pool_fc_kernel(%arg0: memref<2x16x128xbf16, #tpu.memory_space<vmem>>, %arg1: memref<128x128xbf16, #tpu.memory_space<vmem>>, %arg2: memref<1x128xf32, #tpu.memory_space<vmem>>, %arg3: memref<2x128xf32, #tpu.memory_space<vmem>>) attributes {dimension_semantics = [], scalar_prefetch = 0 : i64, scratch_operands = 0 : i64, tpu.core_type = #tpu.core_type<tc>} {
    %c0 = arith.constant 0 : index
    %c0_0 = arith.constant 0 : index
    %c0_1 = arith.constant 0 : index
    %0 = vector.load %arg0[%c0, %c0_0, %c0_1] : memref<2x16x128xbf16, #tpu.memory_space<vmem>>, vector<2x16x128xbf16>
    %1 = arith.extf %0 : vector<2x16x128xbf16> to vector<2x16x128xf32>
    %cst = arith.constant dense<0.000000e+00> : vector<2x128xf32>
    %2 = vector.multi_reduction <add>, %1, %cst [1] : vector<2x16x128xf32> to vector<2x128xf32>
    %3 = arith.truncf %2 : vector<2x128xf32> to vector<2x128xbf16>
    %c0_2 = arith.constant 0 : index
    %c0_3 = arith.constant 0 : index
    %4 = vector.load %arg1[%c0_2, %c0_3] : memref<128x128xbf16, #tpu.memory_space<vmem>>, vector<128x128xbf16>
    %cst_4 = arith.constant dense<0.000000e+00> : vector<2x128xf32>
    %5 = tpu.matmul %3, %4, %cst_4 {dimension_numbers = #tpu.dot_dimension_numbers<[1], [0], [0], [1], [0, 0, 1, 1], [], []>} : vector<2x128xbf16>, vector<128x128xbf16>, vector<2x128xf32> -> vector<2x128xf32>
    %c0_5 = arith.constant 0 : index
    %c0_6 = arith.constant 0 : index
    %6 = vector.load %arg2[%c0_5, %c0_6] : memref<1x128xf32, #tpu.memory_space<vmem>>, vector<1x128xf32>
    %7 = vector.broadcast %6 : vector<1x128xf32> to vector<2x128xf32>
    %8 = arith.addf %5, %7 : vector<2x128xf32>
    %c0_7 = arith.constant 0 : index
    %c0_8 = arith.constant 0 : index
    %9 = vector.load %arg3[%c0_7, %c0_8] : memref<2x128xf32, #tpu.memory_space<vmem>>, vector<2x128xf32>
    tpu.vector_store %arg3[%c0_7, %c0_8], %8 {strides = array<i32>} : memref<2x128xf32, #tpu.memory_space<vmem>>, vector<2x128xf32>,
    return
  }
}

</mosaic_0001>

<llo_original>
// kernel: resnet_forward.7
$region0: #{resnet_forward.7}
  #allocation0 [shape = 'u32[]', space=smem, size = 0x4, offset = 0x4, fixed_abs, tag = 'smem constant byte address 0x4 - core index']
  #allocation1 [shape = 'u32[144,128]{1,0:T(1,128)}', space=vmem, size = 0x12000, scoped, tag = 'internal scratch']
  %s0 = inlined_call_operand.vmem [shape: bf16[2,16,128], index: 0, kind: input, shape index: {}]
  %s1 = inlined_call_operand.vmem [shape: bf16[128,128], index: 1, kind: input, shape index: {}]
  %s2 = inlined_call_operand.vmem [shape: f32[1,128], index: 2, kind: input, shape index: {}]
  %s3 = inlined_call_operand.hbm [shape: f32[2,128], index: 3, kind: output, shape index: {}]
  %s4 = sld [smem:[#allocation0]]
  $region22: #{resnet_forward.7} parent=0
    _
  %s6 = ssub.s32 1, %s4
  %s7 = scalar_select 0, %s6, %s4
  $region1: #{resnet_forward.7} parent=0
    #allocation2 [shape = 'u8[1024]{0}', space=vmem, size = 0x400, scoped, tag = 'output window, operand 0, single buffered']
    #allocation3 [shape = 's32[1]{0}', space=sflag, size = 0x4, scoped, tag = 'scoped memory for resnet_forward.7']
    %8 = vsyncpa [#allocation3], 0
    // Predicated region
    $region2: #{resnet_forward.7} parent=1 // pred_check
      _
    $region3: #{resnet_forward.7} parent=1 // pred_check_branch
      %10 = sbr.rel (0) target = $region5
    $region4: #{resnet_forward.7} parent=1 // pred_region
      _
    $region5: #{resnet_forward.7} parent=1 // pred_fallthru
      _
    // Predicated region
    $region6: #{resnet_forward.7} parent=1 // pred_check
      _
    $region7: #{resnet_forward.7} parent=1 // pred_check_branch
      %12 = sbr.rel (0) target = $region9
    $region8: #{resnet_forward.7} parent=1 // pred_region
      _
    $region9: #{resnet_forward.7} parent=1 // pred_fallthru
      _
    // Predicated region
    $region10: #{resnet_forward.7} parent=1 // pred_check
      _
    $region11: #{resnet_forward.7} parent=1 // pred_check_branch
      %14 = sbr.rel (0) target = $region13
    $region12: #{resnet_forward.7} parent=1 // pred_region
      _
    $region13: #{resnet_forward.7} parent=1 // pred_fallthru
      _
    %v16 = vld [vmem:[%s0] sm:$0xf]
    %v17 = vld [vmem:[%s0 + $0x4] sm:$0xf]
    %v18 = vld [vmem:[%s0 + $0x8] sm:$0xf]
    %v19 = vld [vmem:[%s0 + $0xc] sm:$0xf]
    %v20 = vunpack.c.l.bf16 %v16
    %v21 = vunpack.c.l.bf16 %v17
    %v22 = vunpack.c.l.bf16 %v18
    %v23 = vunpack.c.l.bf16 %v19
    %v24 = vadd.f32 %v20, %v21
    %v25 = vrot.slane %v24, 4
    %v26 = vadd.f32 %v24, %v25
    %v27 = vrot.slane %v26, 2
    %v28 = vadd.f32 %v26, %v27
    %v29 = vrot.slane %v28, 1
    %v30 = vadd.f32 %v28, %v29
    %v31 = vadd.f32 %v22, %v23
    %v32 = vrot.slane %v31, 4
    %v33 = vadd.f32 %v31, %v32
    %v34 = vrot.slane %v33, 2
    %v35 = vadd.f32 %v33, %v34
    %v36 = vrot.slane %v35, 1
    %v37 = vadd.f32 %v35, %v36
    %v38 = vpack.c.bf16 %v30, %v30
    %v39 = vpack.c.bf16 %v37, %v37
    %v40 = vld [vmem:[%s1] sm:$0xf]
    %v41 = vld [vmem:[%s1 + $0x4] sm:$0xf]
    %v42 = vld [vmem:[%s1 + $0x8] sm:$0xf]
    %v43 = vld [vmem:[%s1 + $0xc] sm:$0xf]
    %v44 = vld [vmem:[%s1 + $0x10] sm:$0xf]
    %v45 = vld [vmem:[%s1 + $0x14] sm:$0xf]
    %v46 = vld [vmem:[%s1 + $0x18] sm:$0xf]
    %v47 = vld [vmem:[%s1 + $0x1c] sm:$0xf]
    %v48 = vld [vmem:[%s1 + $0x20] sm:$0xf]
    %v49 = vld [vmem:[%s1 + $0x24] sm:$0xf]
    %v50 = vld [vmem:[%s1 + $0x28] sm:$0xf]
    %v51 = vld [vmem:[%s1 + $0x2c] sm:$0xf]
    %v52 = vld [vmem:[%s1 + $0x30] sm:$0xf]
    %v53 = vld [vmem:[%s1 + $0x34] sm:$0xf]
    %v54 = vld [vmem:[%s1 + $0x38] sm:$0xf]
    %v55 = vld [vmem:[%s1 + $0x3c] sm:$0xf]
    %v56 = vld [vmem:[%s2] sm:$0x1]
    %v58 = vlaneseq
    %v59 = vshrl.u32 %v58, 7
    %v60 = vsub.s32 0, %v59
    %v61 = vrot.slane %v56, %v60
    %v65 = vunpack.c.l.b16 %v38
    %v66 = vunpack.c.l.b16 %v39
    %vm67 = vcmask 1041409
    %v68 = vsel %vm67, %v66, %v65
    %v69 = vpack.c.b16 %v68, %v68
    %v87 = vunpack.c.l.b16 %v40
    %v88 = vunpack.c.l.b16 %v41
    %v89 = vunpack.c.l.b16 %v42
    %v90 = vunpack.c.l.b16 %v43
    %v91 = vunpack.c.l.b16 %v44
    %v92 = vunpack.c.l.b16 %v45
    %v93 = vunpack.c.l.b16 %v46
    %v94 = vunpack.c.l.b16 %v47
    %v95 = vunpack.c.l.b16 %v48
    %v96 = vunpack.c.l.b16 %v49
    %v97 = vunpack.c.l.b16 %v50
    %v98 = vunpack.c.l.b16 %v51
    %v99 = vunpack.c.l.b16 %v52
    %v100 = vunpack.c.l.b16 %v53
    %v101 = vunpack.c.l.b16 %v54
    %v102 = vunpack.c.l.b16 %v55
    %v103 = vpack.c.b16 %v88, %v87
    %v104 = vpack.c.b16 %v90, %v89
    %v105 = vpack.c.b16 %v92, %v91
    %v106 = vpack.c.b16 %v94, %v93
    %v107 = vpack.c.b16 %v96, %v95
    %v108 = vpack.c.b16 %v98, %v97
    %v109 = vpack.c.b16 %v100, %v99
    %v110 = vpack.c.b16 %v102, %v101
    %119 = vmatprep.subr.bf16.mxu0 0
    %120 = vmatpush1.bf16.msra.mxu0 %v103
    %121 = vmatprep.subr.bf16.mxu0 0
    %122 = vmatpush1.bf16.msra.mxu0 %v104
    %123 = vmatprep.subr.bf16.mxu0 0
    %124 = vmatpush1.bf16.msra.mxu0 %v105
    %125 = vmatprep.subr.bf16.mxu0 0
    %126 = vmatpush1.bf16.msra.mxu0 %v106
    %127 = vmatprep.subr.bf16.mxu0 0
    %128 = vmatpush1.bf16.msra.mxu0 %v107
    %129 = vmatprep.subr.bf16.mxu0 0
    %130 = vmatpush1.bf16.msra.mxu0 %v108
    %131 = vmatprep.subr.bf16.mxu0 0
    %132 = vmatpush1.bf16.msra.mxu0 %v109
    %133 = vmatprep.subr.bf16.mxu0 0
    %134 = vmatpush1.bf16.msra.mxu0 %v110
    %135 = vmatprep.subr.bf16.mxu0 0
    %136 = vmatpush1.bf16.msra.mxu0 0
    %137 = vmatprep.subr.bf16.mxu0 0
    %138 = vmatpush1.bf16.msra.mxu0 0
    %139 = vmatprep.subr.bf16.mxu0 0
    %140 = vmatpush1.bf16.msra.mxu0 0
    %141 = vmatprep.subr.bf16.mxu0 0
    %142 = vmatpush1.bf16.msra.mxu0 0
    %143 = vmatprep.subr.bf16.mxu0 0
    %144 = vmatpush1.bf16.msra.mxu0 0
    %145 = vmatprep.subr.bf16.mxu0 0
    %146 = vmatpush1.bf16.msra.mxu0 0
    %147 = vmatprep.subr.bf16.mxu0 0
    %148 = vmatpush1.bf16.msra.mxu0 0
    %149 = vmatprep.subr.bf16.mxu0 0
    %150 = vmatpush1.bf16.msra.mxu0 0
    %151 = vmatprep.mubr.bf16.mxu0 0
    %152 = vmatmul.mubr.bf16.gmra.mrb[0].mxu0 %v69
    %v153 = vpop.f32.mrb[0].mxu0
    %v154 = vadd.f32 %v61, %v153
    %v155 = vpop.f32.mrb[0].mxu0
    %v156 = vpop.f32.mrb[0].mxu0
    %v157 = vpop.f32.mrb[0].mxu0
    %158 = vdwg.mxu0
    %159 = vst [vmem:[#allocation2] sm:$0x3] %v154
    // Predicated region
    $region14: #{resnet_forward.7} parent=1 // pred_check
      _
    $region15: #{resnet_forward.7} parent=1 // pred_check_branch
      %161 = sbr.rel (0) target = $region17
    $region16: #{resnet_forward.7} parent=1 // pred_region
      %s163 = ssub.s32 32, 32
      %164 = vsyncadd [#allocation3], %s163
      %s166 = sshll.u32 [#allocation2], 4
      %s167 = int_to_ptr.vmem [resolvable:$true] %s166
      %169 = dma.vmem_to_hbm [thread:$0]  %s167, 32, %s3, [#allocation3]
    $region17: #{resnet_forward.7} parent=1 // pred_fallthru
      _
    // Predicated region
    $region18: #{resnet_forward.7} parent=1 // pred_check
      _
    $region19: #{resnet_forward.7} parent=1 // pred_check_branch
      %171 = sbr.rel (0) target = $region21
    $region20: #{resnet_forward.7} parent=1 // pred_region
      %172 = dma.done [#allocation3], 32
    $region21: #{resnet_forward.7} parent=1 // pred_fallthru
      _
    %173 = vsyncpa [#allocation3], 1

// kernel: resnet_forward.4
$region0: #{resnet_forward.4}
  #allocation0 [shape = 'u32[]', space=smem, size = 0x4, offset = 0x4, fixed_abs, tag = 'smem constant byte address 0x4 - core index']
  #allocation1 [shape = 'u32[144,128]{1,0:T(1,128)}', space=vmem, size = 0x12000, scoped, tag = 'internal scratch']
  %s0 = inlined_call_operand.vmem [shape: bf16[2,64,256], index: 0, kind: input, shape index: {}]
  %s1 = inlined_call_operand.vmem [shape: bf16[256,128], index: 1, kind: input, shape index: {}]
  %s2 = inlined_call_operand.vmem [shape: f32[1,128], index: 2, kind: input, shape index: {}]
  %s3 = inlined_call_operand.vmem [shape: bf16[2,10,10,128], index: 3, kind: output, shape index: {}]
  %s4 = sld [smem:[#allocation0]]
  $region22: #{resnet_forward.4} parent=0
    _
  %s6 = ssub.s32 1, %s4
  %s7 = scalar_select 0, %s6, %s4
  // Predicated region
  $region2: #{resnet_forward.4} parent=0 // pred_check
    _
  $region3: #{resnet_forward.4} parent=0 // pred_check_branch
    %9 = sbr.rel (0) target = $region5
  $region4: #{resnet_forward.4} parent=0 // pred_region
    _
  $region5: #{resnet_forward.4} parent=0 // pred_fallthru
    _
  // Predicated region
  $region6: #{resnet_forward.4} parent=0 // pred_check
    _
  $region7: #{resnet_forward.4} parent=0 // pred_check_branch
    %11 = sbr.rel (0) target = $region9
  $region8: #{resnet_forward.4} parent=0 // pred_region
    _
  $region9: #{resnet_forward.4} parent=0 // pred_fallthru
    _
  // Predicated region
  $region10: #{resnet_forward.4} parent=0 // pred_check
    _
  $region11: #{resnet_forward.4} parent=0 // pred_check_branch
    %13 = sbr.rel (0) target = $region13
  $region12: #{resnet_forward.4} parent=0 // pred_region
    _
  $region13: #{resnet_forward.4} parent=0 // pred_fallthru
    _
  %v15 = vld [vmem:[%s0] sm:$0xff]
  %v16 = vld [vmem:[%s0 + $0x8] sm:$0xff]
  %v17 = vld [vmem:[%s0 + $0x10] sm:$0xff]
  %v18 = vld [vmem:[%s0 + $0x18] sm:$0xff]
  %v19 = vld [vmem:[%s0 + $0x20] sm:$0xff]
  %v20 = vld [vmem:[%s0 + $0x28] sm:$0xff]
  %v21 = vld [vmem:[%s0 + $0x30] sm:$0xff]
  %v22 = vld [vmem:[%s0 + $0x38] sm:$0xff]
  %v23 = vld [vmem:[%s0 + $0x40] sm:$0xff]
  %v24 = vld [vmem:[%s0 + $0x48] sm:$0xff]
  %v25 = vld [vmem:[%s0 + $0x50] sm:$0xff]
  %v26 = vld [vmem:[%s0 + $0x58] sm:$0xff]
  %v27 = vld [vmem:[%s0 + $0x60] sm:$0xff]
  %v28 = vld [vmem:[%s0 + $0x68] sm:$0xff]
  %v29 = vld [vmem:[%s0 + $0x70] sm:$0xff]
  %v30 = vld [vmem:[%s0 + $0x78] sm:$0xff]
  %v31 = vld [vmem:[%s1] sm:$0xf]
  %v32 = vld [vmem:[%s1 + $0x4] sm:$0xf]
  %v33 = vld [vmem:[%s1 + $0x8] sm:$0xf]
  %v34 = vld [vmem:[%s1 + $0xc] sm:$0xf]
  %v35 = vld [vmem:[%s1 + $0x10] sm:$0xf]
  %v36 = vld [vmem:[%s1 + $0x14] sm:$0xf]
  %v37 = vld [vmem:[%s1 + $0x18] sm:$0xf]
  %v38 = vld [vmem:[%s1 + $0x1c] sm:$0xf]
  %v39 = vld [vmem:[%s1 + $0x20] sm:$0xf]
  %v40 = vld [vmem:[%s1 + $0x24] sm:$0xf]
  %v41 = vld [vmem:[%s1 + $0x28] sm:$0xf]
  %v42 = vld [vmem:[%s1 + $0x2c] sm:$0xf]
  %v43 = vld [vmem:[%s1 + $0x30] sm:$0xf]
  %v44 = vld [vmem:[%s1 + $0x34] sm:$0xf]
  %v45 = vld [vmem:[%s1 + $0x38] sm:$0xf]
  %v46 = vld [vmem:[%s1 + $0x3c] sm:$0xf]
  %v47 = vld [vmem:[%s1 + $0x40] sm:$0xf]
  %v48 = vld [vmem:[%s1 + $0x44] sm:$0xf]
  %v49 = vld [vmem:[%s1 + $0x48] sm:$0xf]
  %v50 = vld [vmem:[%s1 + $0x4c] sm:$0xf]
  %v51 = vld [vmem:[%s1 + $0x50] sm:$0xf]
  %v52 = vld [vmem:[%s1 + $0x54] sm:$0xf]
  %v53 = vld [vmem:[%s1 + $0x58] sm:$0xf]
  %v54 = vld [vmem:[%s1 + $0x5c] sm:$0xf]
  %v55 = vld [vmem:[%s1 + $0x60] sm:$0xf]
  %v56 = vld [vmem:[%s1 + $0x64] sm:$0xf]
  %v57 = vld [vmem:[%s1 + $0x68] sm:$0xf]
  %v58 = vld [vmem:[%s1 + $0x6c] sm:$0xf]
  %v59 = vld [vmem:[%s1 + $0x70] sm:$0xf]
  %v60 = vld [vmem:[%s1 + $0x74] sm:$0xf]
  %v61 = vld [vmem:[%s1 + $0x78] sm:$0xf]
  %v62 = vld [vmem:[%s1 + $0x7c] sm:$0xf]
  %v63 = vld [vmem:[%s2] sm:$0x1]
  %v65 = vlaneseq
  %v66 = vshrl.u32 %v65, 7
  %v67 = vsub.s32 0, %v66
  %v68 = vrot.slane %v63, %v67
  %v86 = vunpack.c.l.b16 %v15
  %v87 = vunpack.c.h.b16 %v15
  %v88 = vunpack.c.l.b16 %v16
  %v89 = vunpack.c.h.b16 %v16
  %v90 = vunpack.c.l.b16 %v17
  %v91 = vunpack.c.h.b16 %v17
  %v92 = vunpack.c.l.b16 %v18
  %v93 = vunpack.c.h.b16 %v18
  %v94 = vunpack.c.l.b16 %v19
  %v95 = vunpack.c.h.b16 %v19
  %v96 = vunpack.c.l.b16 %v20
  %v97 = vunpack.c.h.b16 %v20
  %v98 = vunpack.c.l.b16 %v21
  %v99 = vunpack.c.h.b16 %v21
  %v100 = vunpack.c.l.b16 %v22
  %v101 = vunpack.c.h.b16 %v22
  %v102 = vunpack.c.l.b16 %v23
  %v103 = vunpack.c.h.b16 %v23
  %v104 = vunpack.c.l.b16 %v24
  %v105 = vunpack.c.h.b16 %v24
  %v106 = vunpack.c.l.b16 %v25
  %v107 = vunpack.c.h.b16 %v25
  %v108 = vunpack.c.l.b16 %v26
  %v109 = vunpack.c.h.b16 %v26
  %v110 = vunpack.c.l.b16 %v27
  %v111 = vunpack.c.h.b16 %v27
  %v112 = vunpack.c.l.b16 %v28
  %v113 = vunpack.c.h.b16 %v28
  %v114 = vunpack.c.l.b16 %v29
  %v115 = vunpack.c.h.b16 %v29
  %v116 = vunpack.c.l.b16 %v30
  %v117 = vunpack.c.h.b16 %v30
  %v118 = vpack.c.b16 %v88, %v86
  %v119 = vpack.c.b16 %v89, %v87
  %v120 = vpack.c.b16 %v92, %v90
  %v121 = vpack.c.b16 %v93, %v91
  %v122 = vpack.c.b16 %v96, %v94
  %v123 = vpack.c.b16 %v97, %v95
  %v124 = vpack.c.b16 %v100, %v98
  %v125 = vpack.c.b16 %v101, %v99
  %v126 = vpack.c.b16 %v104, %v102
  %v127 = vpack.c.b16 %v105, %v103
  %v128 = vpack.c.b16 %v108, %v106
  %v129 = vpack.c.b16 %v109, %v107
  %v130 = vpack.c.b16 %v112, %v110
  %v131 = vpack.c.b16 %v113, %v111
  %v132 = vpack.c.b16 %v116, %v114
  %v133 = vpack.c.b16 %v117, %v115
  %v182 = vunpack.c.l.b16 %v31
  %v183 = vunpack.c.l.b16 %v32
  %v184 = vunpack.c.l.b16 %v33
  %v185 = vunpack.c.l.b16 %v34
  %v186 = vunpack.c.l.b16 %v35
  %v187 = vunpack.c.l.b16 %v36
  %v188 = vunpack.c.l.b16 %v37
  %v189 = vunpack.c.l.b16 %v38
  %v190 = vunpack.c.l.b16 %v39
  %v191 = vunpack.c.l.b16 %v40
  %v192 = vunpack.c.l.b16 %v41
  %v193 = vunpack.c.l.b16 %v42
  %v194 = vunpack.c.l.b16 %v43
  %v195 = vunpack.c.l.b16 %v44
  %v196 = vunpack.c.l.b16 %v45
  %v197 = vunpack.c.l.b16 %v46
  %v198 = vunpack.c.l.b16 %v47
  %v199 = vunpack.c.l.b16 %v48
  %v200 = vunpack.c.l.b16 %v49
  %v201 = vunpack.c.l.b16 %v50
  %v202 = vunpack.c.l.b16 %v51
  %v203 = vunpack.c.l.b16 %v52
  %v204 = vunpack.c.l.b16 %v53
  %v205 = vunpack.c.l.b16 %v54
  %v206 = vunpack.c.l.b16 %v55
  %v207 = vunpack.c.l.b16 %v56
  %v208 = vunpack.c.l.b16 %v57
  %v209 = vunpack.c.l.b16 %v58
  %v210 = vunpack.c.l.b16 %v59
  %v211 = vunpack.c.l.b16 %v60
  %v212 = vunpack.c.l.b16 %v61
  %v213 = vunpack.c.l.b16 %v62
  %v214 = vpack.c.b16 %v183, %v182
  %v215 = vpack.c.b16 %v185, %v184
  %v216 = vpack.c.b16 %v187, %v186
  %v217 = vpack.c.b16 %v189, %v188
  %v218 = vpack.c.b16 %v191, %v190
  %v219 = vpack.c.b16 %v193, %v192
  %v220 = vpack.c.b16 %v195, %v194
  %v221 = vpack.c.b16 %v197, %v196
  %v222 = vpack.c.b16 %v199, %v198
  %v223 = vpack.c.b16 %v201, %v200
  %v224 = vpack.c.b16 %v203, %v202
  %v225 = vpack.c.b16 %v205, %v204
  %v226 = vpack.c.b16 %v207, %v206
  %v227 = vpack.c.b16 %v209, %v208
  %v228 = vpack.c.b16 %v211, %v210
  %v229 = vpack.c.b16 %v213, %v212
  %246 = vmatprep.subr.bf16.mxu0 0
  %247 = vmatpush1.bf16.msra.mxu0 %v214
  %248 = vmatprep.subr.bf16.mxu0 0
  %249 = vmatpush1.bf16.msra.mxu0 %v215
  %250 = vmatprep.subr.bf16.mxu0 0
  %251 = vmatpush1.bf16.msra.mxu0 %v216
  %252 = vmatprep.subr.bf16.mxu0 0
  %253 = vmatpush1.bf16.msra.mxu0 %v217
  %254 = vmatprep.subr.bf16.mxu0 0
  %255 = vmatpush1.bf16.msra.mxu0 %v218
  %256 = vmatprep.subr.bf16.mxu0 0
  %257 = vmatpush1.bf16.msra.mxu0 %v219
  %258 = vmatprep.subr.bf16.mxu0 0
  %259 = vmatpush1.bf16.msra.mxu0 %v220
  %260 = vmatprep.subr.bf16.mxu0 0
  %261 = vmatpush1.bf16.msra.mxu0 %v221
  %262 = vmatprep.subr.bf16.mxu0 0
  %263 = vmatpush1.bf16.msra.mxu0 %v222
  %264 = vmatprep.subr.bf16.mxu0 0
  %265 = vmatpush1.bf16.msra.mxu0 %v223
  %266 = vmatprep.subr.bf16.mxu0 0
  %267 = vmatpush1.bf16.msra.mxu0 %v224
  %268 = vmatprep.subr.bf16.mxu0 0
  %269 = vmatpush1.bf16.msra.mxu0 %v225
  %270 = vmatprep.subr.bf16.mxu0 0
  %271 = vmatpush1.bf16.msra.mxu0 %v226
  %272 = vmatprep.subr.bf16.mxu0 0
  %273 = vmatpush1.bf16.msra.mxu0 %v227
  %274 = vmatprep.subr.bf16.mxu0 0
  %275 = vmatpush1.bf16.msra.mxu0 %v228
  %276 = vmatprep.subr.bf16.mxu0 0
  %277 = vmatpush1.bf16.msra.mxu0 %v229
  %278 = vmatprep.mubr.bf16.mxu0 %v119
  %279 = vmatmul.mubr.bf16.gmra.mrb[0].mxu0 %v118
  %v280 = vpop.f32.mrb[0].mxu0
  %v281 = vadd.f32 %v68, %v280
  %v282 = vpop.f32.mrb[0].mxu0
  %v283 = vpop.f32.mrb[0].mxu0
  %v284 = vadd.f32 %v68, %v283
  %v285 = vpop.f32.mrb[0].mxu0
  %286 = vmatprep.mubr.bf16.mxu0 %v121
  %287 = vmatmul.mubr.bf16.gmra.mrb[0].mxu0 %v120
  %v288 = vpop.f32.mrb[0].mxu0
  %v289 = vadd.f32 %v68, %v288
  %v290 = vpop.f32.mrb[0].mxu0
  %v291 = vpop.f32.mrb[0].mxu0
  %v292 = vadd.f32 %v68, %v291
  %v293 = vpop.f32.mrb[0].mxu0
  %294 = vmatprep.mubr.bf16.mxu0 %v123
  %295 = vmatmul.mubr.bf16.gmra.mrb[0].mxu0 %v122
  %v296 = vpop.f32.mrb[0].mxu0
  %v297 = vadd.f32 %v68, %v296
  %v298 = vpop.f32.mrb[0].mxu0
  %v299 = vpop.f32.mrb[0].mxu0
  %v300 = vadd.f32 %v68, %v299
  %v301 = vpop.f32.mrb[0].mxu0
  %302 = vmatprep.mubr.bf16.mxu0 %v125
  %303 = vmatmul.mubr.bf16.gmra.mrb[0].mxu0 %v124
  %v304 = vpop.f32.mrb[0].mxu0
  %v305 = vadd.f32 %v68, %v304
  %v306 = vpop.f32.mrb[0].mxu0
  %v307 = vpop.f32.mrb[0].mxu0
  %v308 = vadd.f32 %v68, %v307
  %v309 = vpop.f32.mrb[0].mxu0
  %310 = vmatprep.mubr.bf16.mxu0 %v127
  %311 = vmatmul.mubr.bf16.gmra.mrb[0].mxu0 %v126
  %v312 = vpop.f32.mrb[0].mxu0
  %v313 = vadd.f32 %v68, %v312
  %v314 = vpop.f32.mrb[0].mxu0
  %v315 = vpop.f32.mrb[0].mxu0
  %v316 = vadd.f32 %v68, %v315
  %v317 = vpop.f32.mrb[0].mxu0
  %318 = vmatprep.mubr.bf16.mxu0 %v129
  %319 = vmatmul.mubr.bf16.gmra.mrb[0].mxu0 %v128
  %v320 = vpop.f32.mrb[0].mxu0
  %v321 = vadd.f32 %v68, %v320
  %v322 = vpop.f32.mrb[0].mxu0
  %v323 = vpop.f32.mrb[0].mxu0
  %v324 = vadd.f32 %v68, %v323
  %v325 = vpop.f32.mrb[0].mxu0
  %326 = vmatprep.mubr.bf16.mxu0 %v131
  %327 = vmatmul.mubr.bf16.gmra.mrb[0].mxu0 %v130
  %v328 = vpop.f32.mrb[0].mxu0
  %v329 = vadd.f32 %v68, %v328
  %v330 = vpop.f32.mrb[0].mxu0
  %v331 = vpop.f32.mrb[0].mxu0
  %v332 = vadd.f32 %v68, %v331
  %v333 = vpop.f32.mrb[0].mxu0
  %334 = vmatprep.mubr.bf16.mxu0 %v133
  %335 = vmatmul.mubr.bf16.gmra.mrb[0].mxu0 %v132
  %v336 = vpop.f32.mrb[0].mxu0
  %v337 = vadd.f32 %v68, %v336
  %v338 = vpop.f32.mrb[0].mxu0
  %v339 = vpop.f32.mrb[0].mxu0
  %v340 = vadd.f32 %v68, %v339
  %v341 = vpop.f32.mrb[0].mxu0
  %342 = vdwg.mxu0
  %v343 = vmax.f32 %v281, 0.0
  %v344 = vmax.f32 %v284, 0.0
  %v345 = vmax.f32 %v289, 0.0
  %v346 = vmax.f32 %v292, 0.0
  %v347 = vmax.f32 %v297, 0.0
  %v348 = vmax.f32 %v300, 0.0
  %v349 = vmax.f32 %v305, 0.0
  %v350 = vmax.f32 %v308, 0.0
  %v351 = vmax.f32 %v313, 0.0
  %v352 = vmax.f32 %v316, 0.0
  %v353 = vmax.f32 %v321, 0.0
  %v354 = vmax.f32 %v324, 0.0
  %v355 = vmax.f32 %v329, 0.0
  %v356 = vmax.f32 %v332, 0.0
  %v357 = vmax.f32 %v337, 0.0
  %v358 = vmax.f32 %v340, 0.0
  %359 = vst [vmem:[%s3] sm:$0xf] 0
  %360 = vst [vmem:[%s3 + $0x4] sm:$0x1] 0
  %361 = vst [vmem:[%s3 + $0x8] sm:$0xf] 0
  %362 = vst [vmem:[%s3 + $0xc] sm:$0x1] 0
  %363 = vst [vmem:[%s3 + $0x10] sm:$0xf] 0
  %364 = vst [vmem:[%s3 + $0x14] sm:$0x1] 0
  %365 = vst [vmem:[%s3 + $0x18] sm:$0xf] 0
  %366 = vst [vmem:[%s3 + $0x1c] sm:$0x1] 0
  %367 = vst [vmem:[%s3 + $0x20] sm:$0xf] 0
  %368 = vst [vmem:[%s3 + $0x24] sm:$0x1] 0
  %369 = vst [vmem:[%s3 + $0x28] sm:$0xf] 0
  %370 = vst [vmem:[%s3 + $0x2c] sm:$0x1] 0
  %371 = vst [vmem:[%s3 + $0x30] sm:$0xf] 0
  %372 = vst [vmem:[%s3 + $0x34] sm:$0x1] 0
  %373 = vst [vmem:[%s3 + $0x38] sm:$0xf] 0
  %374 = vst [vmem:[%s3 + $0x3c] sm:$0x1] 0
  %375 = vst [vmem:[%s3 + $0x40] sm:$0xf] 0
  %376 = vst [vmem:[%s3 + $0x44] sm:$0x1] 0
  %377 = vst [vmem:[%s3 + $0x48] sm:$0xf] 0
  %378 = vst [vmem:[%s3 + $0x4c] sm:$0x1] 0
  %379 = vst [vmem:[%s3 + $0x50] sm:$0xf] 0
  %380 = vst [vmem:[%s3 + $0x54] sm:$0x1] 0
  %381 = vst [vmem:[%s3 + $0x58] sm:$0xf] 0
  %382 = vst [vmem:[%s3 + $0x5c] sm:$0x1] 0
  %383 = vst [vmem:[%s3 + $0x60] sm:$0xf] 0
  %384 = vst [vmem:[%s3 + $0x64] sm:$0x1] 0
  %385 = vst [vmem:[%s3 + $0x68] sm:$0xf] 0
  %386 = vst [vmem:[%s3 + $0x6c] sm:$0x1] 0
  %387 = vst [vmem:[%s3 + $0x70] sm:$0xf] 0
  %388 = vst [vmem:[%s3 + $0x74] sm:$0x1] 0
  %389 = vst [vmem:[%s3 + $0x78] sm:$0xf] 0
  %390 = vst [vmem:[%s3 + $0x7c] sm:$0x1] 0
  %391 = vst [vmem:[%s3 + $0x80] sm:$0xf] 0
  %392 = vst [vmem:[%s3 + $0x84] sm:$0x1] 0
  %393 = vst [vmem:[%s3 + $0x88] sm:$0xf] 0
  %394 = vst [vmem:[%s3 + $0x8c] sm:$0x1] 0
  %395 = vst [vmem:[%s3 + $0x90] sm:$0xf] 0
  %396 = vst [vmem:[%s3 + $0x94] sm:$0x1] 0
  %397 = vst [vmem:[%s3 + $0x98] sm:$0xf] 0
  %398 = vst [vmem:[%s3 + $0x9c] sm:$0x1] 0
  %v399 = vpack.c.bf16 %v343, %v343
  %v400 = vpack.c.bf16 %v344, %v344
  %v401 = vpack.c.bf16 %v345, %v345
  %v402 = vpack.c.bf16 %v346, %v346
  %v403 = vpack.c.bf16 %v347, %v347
  %v404 = vpack.c.bf16 %v348, %v348
  %v405 = vpack.c.bf16 %v349, %v349
  %v406 = vpack.c.bf16 %v350, %v350
  %v407 = vpack.c.bf16 %v351, %v351
  %v408 = vpack.c.bf16 %v352, %v352
  %v409 = vpack.c.bf16 %v353, %v353
  %v410 = vpack.c.bf16 %v354, %v354
  %v411 = vpack.c.bf16 %v355, %v355
  %v412 = vpack.c.bf16 %v356, %v356
  %v413 = vpack.c.bf16 %v357, %v357
  %v414 = vpack.c.bf16 %v358, %v358
  %v431 = vunpack.c.l.b16 %v399
  %v432 = vunpack.c.l.b16 %v400
  %v433 = vunpack.c.l.b16 %v401
  %v434 = vunpack.c.l.b16 %v402
  %v435 = vunpack.c.l.b16 %v403
  %v436 = vunpack.c.l.b16 %v404
  %v437 = vunpack.c.l.b16 %v405
  %v438 = vunpack.c.l.b16 %v406
  %v439 = vunpack.c.l.b16 %v407
  %v440 = vunpack.c.l.b16 %v408
  %v441 = vunpack.c.l.b16 %v409
  %v442 = vunpack.c.l.b16 %v410
  %v443 = vunpack.c.l.b16 %v411
  %v444 = vunpack.c.l.b16 %v412
  %v445 = vunpack.c.l.b16 %v413
  %v446 = vunpack.c.l.b16 %v414
  %v447 = vpack.c.b16 %v431, %v431
  %v448 = vpack.c.b16 %v432, %v432
  %v449 = vpack.c.b16 %v433, %v433
  %v450 = vpack.c.b16 %v434, %v434
  %v451 = vpack.c.b16 %v435, %v435
  %v452 = vpack.c.b16 %v436, %v436
  %v453 = vpack.c.b16 %v437, %v437
  %v454 = vpack.c.b16 %v438, %v438
  %v455 = vpack.c.b16 %v439, %v439
  %v456 = vpack.c.b16 %v440, %v440
  %v457 = vpack.c.b16 %v441, %v441
  %v458 = vpack.c.b16 %v442, %v442
  %v459 = vpack.c.b16 %v443, %v443
  %v460 = vpack.c.b16 %v444, %v444
  %v461 = vpack.c.b16 %v445, %v445
  %v462 = vpack.c.b16 %v446, %v446
  %v464 = vshrl.u32 %v447, 16
  %v466 = vrot.slane %v464, 7
  %v467 = vshll.u32 %v447, 16
  %v469 = vor.u32 %v466, %v467
  %v470 = vrot.slane %v466, 4
  %v472 = vshrl.u32 %v448, 16
  %v474 = vrot.slane %v472, 7
  %v475 = vshll.u32 %v448, 16
  %v477 = vor.u32 %v474, %v475
  %v478 = vrot.slane %v474, 4
  %v480 = vshrl.u32 %v449, 16
  %v482 = vrot.slane %v480, 7
  %v483 = vshll.u32 %v449, 16
  %v485 = vor.u32 %v482, %v483
  %v486 = vrot.slane %v482, 4
  %v488 = vshrl.u32 %v450, 16
  %v490 = vrot.slane %v488, 7
  %v491 = vshll.u32 %v450, 16
  %v493 = vor.u32 %v490, %v491
  %v494 = vrot.slane %v490, 4
  %v496 = vshrl.u32 %v451, 16
  %v498 = vrot.slane %v496, 7
  %v499 = vshll.u32 %v451, 16
  %v501 = vor.u32 %v498, %v499
  %v502 = vrot.slane %v498, 4
  %v504 = vshrl.u32 %v452, 16
  %v506 = vrot.slane %v504, 7
  %v507 = vshll.u32 %v452, 16
  %v509 = vor.u32 %v506, %v507
  %v510 = vrot.slane %v506, 4
  %v512 = vshrl.u32 %v453, 16
  %v514 = vrot.slane %v512, 7
  %v515 = vshll.u32 %v453, 16
  %v517 = vor.u32 %v514, %v515
  %v518 = vrot.slane %v514, 4
  %v520 = vshrl.u32 %v454, 16
  %v522 = vrot.slane %v520, 7
  %v523 = vshll.u32 %v454, 16
  %v525 = vor.u32 %v522, %v523
  %v526 = vrot.slane %v522, 4
  %v528 = vshrl.u32 %v455, 16
  %v530 = vrot.slane %v528, 7
  %v531 = vshll.u32 %v455, 16
  %v533 = vor.u32 %v530, %v531
  %v534 = vrot.slane %v530, 4
  %v536 = vshrl.u32 %v456, 16
  %v538 = vrot.slane %v536, 7
  %v539 = vshll.u32 %v456, 16
  %v541 = vor.u32 %v538, %v539
  %v542 = vrot.slane %v538, 4
  %v544 = vshrl.u32 %v457, 16
  %v546 = vrot.slane %v544, 7
  %v547 = vshll.u32 %v457, 16
  %v549 = vor.u32 %v546, %v547
  %v550 = vrot.slane %v546, 4
  %v552 = vshrl.u32 %v458, 16
  %v554 = vrot.slane %v552, 7
  %v555 = vshll.u32 %v458, 16
  %v557 = vor.u32 %v554, %v555
  %v558 = vrot.slane %v554, 4
  %v560 = vshrl.u32 %v459, 16
  %v562 = vrot.slane %v560, 7
  %v563 = vshll.u32 %v459, 16
  %v565 = vor.u32 %v562, %v563
  %v566 = vrot.slane %v562, 4
  %v568 = vshrl.u32 %v460, 16
  %v570 = vrot.slane %v568, 7
  %v571 = vshll.u32 %v460, 16
  %v573 = vor.u32 %v570, %v571
  %v574 = vrot.slane %v570, 4
  %v576 = vshrl.u32 %v461, 16
  %v578 = vrot.slane %v576, 7
  %v579 = vshll.u32 %v461, 16
  %v581 = vor.u32 %v578, %v579
  %v582 = vrot.slane %v578, 4
  %v584 = vshrl.u32 %v462, 16
  %v586 = vrot.slane %v584, 7
  %v587 = vshll.u32 %v462, 16
  %v589 = vor.u32 %v586, %v587
  %v590 = vrot.slane %v586, 4
  %s623 = scalar_lea.vmem %s3, 8
  %vm624 = vcmask 1043456
  %vm625 = vsmask.f32 7938
  %vm626 = vmand %vm624, %vm625
  %v627 = vld [vmem:[%s623] sm:$0xf]
  %v628 = vsel %vm626, %v469, %v627
  %629 = vst [vmem:[%s623] sm:$0xf] %v628
  %vm630 = vcmask 1040384
  %vm631 = vsmask.f32 256
  %vm632 = vmand %vm630, %vm631
  %v633 = vld [vmem:[%s623 + $0x4] sm:$0x1]
  %v634 = vsel %vm632, %v470, %v633
  %635 = vst [vmem:[%s623 + $0x4] sm:$0x1] %v634
  %v636 = vld [vmem:[%s623 + $0x8] sm:$0xf]
  %v637 = vsel %vm626, %v477, %v636
  %638 = vst [vmem:[%s623 + $0x8] sm:$0xf] %v637
  %v639 = vld [vmem:[%s623 + $0xc] sm:$0x1]
  %v640 = vsel %vm632, %v478, %v639
  %641 = vst [vmem:[%s623 + $0xc] sm:$0x1] %v640
  %v642 = vld [vmem:[%s623 + $0x10] sm:$0xf]
  %v643 = vsel %vm626, %v485, %v642
  %644 = vst [vmem:[%s623 + $0x10] sm:$0xf] %v643
  %v645 = vld [vmem:[%s623 + $0x14] sm:$0x1]
  %v646 = vsel %vm632, %v486, %v645
  %647 = vst [vmem:[%s623 + $0x14] sm:$0x1] %v646
  %v648 = vld [vmem:[%s623 + $0x18] sm:$0xf]
  %v649 = vsel %vm626, %v493, %v648
  %650 = vst [vmem:[%s623 + $0x18] sm:$0xf] %v649
  %v651 = vld [vmem:[%s623 + $0x1c] sm:$0x1]
  %v652 = vsel %vm632, %v494, %v651
  %653 = vst [vmem:[%s623 + $0x1c] sm:$0x1] %v652
  %v654 = vld [vmem:[%s623 + $0x20] sm:$0xf]
  %v655 = vsel %vm626, %v501, %v654
  %656 = vst [vmem:[%s623 + $0x20] sm:$0xf] %v655
  %v657 = vld [vmem:[%s623 + $0x24] sm:$0x1]
  %v658 = vsel %vm632, %v502, %v657
  %659 = vst [vmem:[%s623 + $0x24] sm:$0x1] %v658
  %v660 = vld [vmem:[%s623 + $0x28] sm:$0xf]
  %v661 = vsel %vm626, %v509, %v660
  %662 = vst [vmem:[%s623 + $0x28] sm:$0xf] %v661
  %v663 = vld [vmem:[%s623 + $0x2c] sm:$0x1]
  %v664 = vsel %vm632, %v510, %v663
  %665 = vst [vmem:[%s623 + $0x2c] sm:$0x1] %v664
  %v666 = vld [vmem:[%s623 + $0x30] sm:$0xf]
  %v667 = vsel %vm626, %v517, %v666
  %668 = vst [vmem:[%s623 + $0x30] sm:$0xf] %v667
  %v669 = vld [vmem:[%s623 + $0x34] sm:$0x1]
  %v670 = vsel %vm632, %v518, %v669
  %671 = vst [vmem:[%s623 + $0x34] sm:$0x1] %v670
  %v672 = vld [vmem:[%s623 + $0x38] sm:$0xf]
  %v673 = vsel %vm626, %v525, %v672
  %674 = vst [vmem:[%s623 + $0x38] sm:$0xf] %v673
  %v675 = vld [vmem:[%s623 + $0x3c] sm:$0x1]
  %v676 = vsel %vm632, %v526, %v675
  %677 = vst [vmem:[%s623 + $0x3c] sm:$0x1] %v676
  %v678 = vld [vmem:[%s623 + $0x50] sm:$0xf]
  %v679 = vsel %vm626, %v533, %v678
  %680 = vst [vmem:[%s623 + $0x50] sm:$0xf] %v679
  %v681 = vld [vmem:[%s623 + $0x54] sm:$0x1]
  %v682 = vsel %vm632, %v534, %v681
  %683 = vst [vmem:[%s623 + $0x54] sm:$0x1] %v682
  %v684 = vld [vmem:[%s623 + $0x58] sm:$0xf]
  %v685 = vsel %vm626, %v541, %v684
  %686 = vst [vmem:[%s623 + $0x58] sm:$0xf] %v685
  %v687 = vld [vmem:[%s623 + $0x5c] sm:$0x1]
  %v688 = vsel %vm632, %v542, %v687
  %689 = vst [vmem:[%s623 + $0x5c] sm:$0x1] %v688
  %v690 = vld [vmem:[%s623 + $0x60] sm:$0xf]
  %v691 = vsel %vm626, %v549, %v690
  %692 = vst [vmem:[%s623 + $0x60] sm:$0xf] %v691
  %v693 = vld [vmem:[%s623 + $0x64] sm:$0x1]
  %v694 = vsel %vm632, %v550, %v693
  %695 = vst [vmem:[%s623 + $0x64] sm:$0x1] %v694
  %v696 = vld [vmem:[%s623 + $0x68] sm:$0xf]
  %v697 = vsel %vm626, %v557, %v696
  %698 = vst [vmem:[%s623 + $0x68] sm:$0xf] %v697
  %v699 = vld [vmem:[%s623 + $0x6c] sm:$0x1]
  %v700 = vsel %vm632, %v558, %v699
  %701 = vst [vmem:[%s623 + $0x6c] sm:$0x1] %v700
  %v702 = vld [vmem:[%s623 + $0x70] sm:$0xf]
  %v703 = vsel %vm626, %v565, %v702
  %704 = vst [vmem:[%s623 + $0x70] sm:$0xf] %v703
  %v705 = vld [vmem:[%s623 + $0x74] sm:$0x1]
  %v706 = vsel %vm632, %v566, %v705
  %707 = vst [vmem:[%s623 + $0x74] sm:$0x1] %v706
  %v708 = vld [vmem:[%s623 + $0x78] sm:$0xf]
  %v709 = vsel %vm626, %v573, %v708
  %710 = vst [vmem:[%s623 + $0x78] sm:$0xf] %v709
  %v711 = vld [vmem:[%s623 + $0x7c] sm:$0x1]
  %v712 = vsel %vm632, %v574, %v711
  %713 = vst [vmem:[%s623 + $0x7c] sm:$0x1] %v712
  %v714 = vld [vmem:[%s623 + $0x80] sm:$0xf]
  %v715 = vsel %vm626, %v581, %v714
  %716 = vst [vmem:[%s623 + $0x80] sm:$0xf] %v715
  %v717 = vld [vmem:[%s623 + $0x84] sm:$0x1]
  %v718 = vsel %vm632, %v582, %v717
  %719 = vst [vmem:[%s623 + $0x84] sm:$0x1] %v718
  %v720 = vld [vmem:[%s623 + $0x88] sm:$0xf]
  %v721 = vsel %vm626, %v589, %v720
  %722 = vst [vmem:[%s623 + $0x88] sm:$0xf] %v721
  %v723 = vld [vmem:[%s623 + $0x8c] sm:$0x1]
  %v724 = vsel %vm632, %v590, %v723
  %725 = vst [vmem:[%s623 + $0x8c] sm:$0x1] %v724
  // Predicated region
  $region14: #{resnet_forward.4} parent=0 // pred_check
    _
  $region15: #{resnet_forward.4} parent=0 // pred_check_branch
    %727 = sbr.rel (0) target = $region17
  $region16: #{resnet_forward.4} parent=0 // pred_region
    _
  $region17: #{resnet_forward.4} parent=0 // pred_fallthru
    _
  // Predicated region
  $region18: #{resnet_forward.4} parent=0 // pred_check
    _
  $region19: #{resnet_forward.4} parent=0 // pred_check_branch
    %729 = sbr.rel (0) target = $region21
  $region20: #{resnet_forward.4} parent=0 // pred_region
    _
  $region21: #{resnet_forward.4} parent=0 // pred_fallthru
    _

// kernel: resnet_forward.6
$region0: #{resnet_forward.6}
  #allocation0 [shape = 'u32[]', space=smem, size = 0x4, offset = 0x4, fixed_abs, tag = 'smem constant byte address 0x4 - core index']
  #allocation1 [shape = 'u32[144,128]{1,0:T(1,128)}', space=vmem, size = 0x12000, scoped, tag = 'internal scratch']
  #allocation2 [shape = 'bf16[2,6,6,128]{3,2,1,0:T(8,128)(2,1)}', space=vmem, size = 0x6000, scoped, tag = 'scratch operand']
  #allocation3 [shape = 'f32[32,128]{1,0:T(8,128)}', space=vmem, size = 0x4000, scoped, tag = 'scratch operand']
  %s0 = inlined_call_operand.vmem [shape: bf16[2,20,5,128], index: 0, kind: input, shape index: {}]
  %s1 = inlined_call_operand.vmem [shape: bf16[4,256,128], index: 1, kind: input, shape index: {}]
  %s2 = inlined_call_operand.vmem [shape: bf16[128,128], index: 2, kind: input, shape index: {}]
  %s3 = inlined_call_operand.vmem [shape: f32[1,128], index: 3, kind: input, shape index: {}]
  %s4 = inlined_call_operand.vmem [shape: bf16[4,256,128], index: 4, kind: input, shape index: {}]
  %s5 = inlined_call_operand.vmem [shape: bf16[128,128], index: 5, kind: input, shape index: {}]
  %s6 = inlined_call_operand.vmem [shape: f32[1,128], index: 6, kind: input, shape index: {}]
  %s7 = inlined_call_operand.vmem [shape: bf16[128,128], index: 7, kind: input, shape index: {}]
  %s8 = inlined_call_operand.vmem [shape: f32[1,128], index: 8, kind: input, shape index: {}]
  %s9 = inlined_call_operand.vmem [shape: bf16[2,4,4,128], index: 9, kind: output, shape index: {}]
  %s10 = sld [smem:[#allocation0]]
  $region46: #{resnet_forward.6} parent=0
    _
  %s12 = ssub.s32 1, %s10
  %s13 = scalar_select 0, %s12, %s10
  // Predicated region
  $region2: #{resnet_forward.6} parent=0 // pred_check
    _
  $region3: #{resnet_forward.6} parent=0 // pred_check_branch
    %15 = sbr.rel (0) target = $region5
  $region4: #{resnet_forward.6} parent=0 // pred_region
    _
  $region5: #{resnet_forward.6} parent=0 // pred_fallthru
    _
  // Predicated region
  $region6: #{resnet_forward.6} parent=0 // pred_check
    _
  $region7: #{resnet_forward.6} parent=0 // pred_check_branch
    %17 = sbr.rel (0) target = $region9
  $region8: #{resnet_forward.6} parent=0 // pred_region
    _
  $region9: #{resnet_forward.6} parent=0 // pred_fallthru
    _
  // Predicated region
  $region10: #{resnet_forward.6} parent=0 // pred_check
    _
  $region11: #{resnet_forward.6} parent=0 // pred_check_branch
    %19 = sbr.rel (0) target = $region13
  $region12: #{resnet_forward.6} parent=0 // pred_region
    _
  $region13: #{resnet_forward.6} parent=0 // pred_fallthru
    _
  // Predicated region
  $region14: #{resnet_forward.6} parent=0 // pred_check
    _
  $region15: #{resnet_forward.6} parent=0 // pred_check_branch
    %21 = sbr.rel (0) target = $region17
  $region16: #{resnet_forward.6} parent=0 // pred_region
    _
  $region17: #{resnet_forward.6} parent=0 // pred_fallthru
    _
  // Predicated region
  $region18: #{resnet_forward.6} parent=0 // pred_check
    _
  $region19: #{resnet_forward.6} parent=0 // pred_check_branch
    %23 = sbr.rel (0) target = $region21
  $region20: #{resnet_forward.6} parent=0 // pred_region
    _
  $region21: #{resnet_forward.6} parent=0 // pred_fallthru
    _
  // Predicated region
  $region22: #{resnet_forward.6} parent=0 // pred_check
    _
  $region23: #{resnet_forward.6} parent=0 // pred_check_branch
    %25 = sbr.rel (0) target = $region25
  $region24: #{resnet_forward.6} parent=0 // pred_region
    _
  $region25: #{resnet_forward.6} parent=0 // pred_fallthru
    _
  // Predicated region
  $region26: #{resnet_forward.6} parent=0 // pred_check
    _
  $region27: #{resnet_forward.6} parent=0 // pred_check_branch
    %27 = sbr.rel (0) target = $region29
  $region28: #{resnet_forward.6} parent=0 // pred_region
    _
  $region29: #{resnet_forward.6} parent=0 // pred_fallthru
    _
  // Predicated region
  $region30: #{resnet_forward.6} parent=0 // pred_check
    _
  $region31: #{resnet_forward.6} parent=0 // pred_check_branch
    %29 = sbr.rel (0) target = $region33
  $region32: #{resnet_forward.6} parent=0 // pred_region
    _
  $region33: #{resnet_forward.6} parent=0 // pred_fallthru
    _
  // Predicated region
  $region34: #{resnet_forward.6} parent=0 // pred_check
    _
  $region35: #{resnet_forward.6} parent=0 // pred_check_branch
    %31 = sbr.rel (0) target = $region37
  $region36: #{resnet_forward.6} parent=0 // pred_region
    _
  $region37: #{resnet_forward.6} parent=0 // pred_fallthru
    _
  %33 = vst [vmem:[#allocation3] sm:$0xff] 0.0
  %34 = vst [vmem:[#allocation3 + $0x8] sm:$0xff] 0.0
  %35 = vst [vmem:[#allocation3 + $0x10] sm:$0xff] 0.0
  %36 = vst [vmem:[#allocation3 + $0x18] sm:$0xff] 0.0
  %v37 = vld [vmem:[%s0] sm:$0x3]
  %v38 = vld [vmem:[%s0 + $0x4] sm:$0x3]
  %v39 = vld [vmem:[%s0 + $0x8] sm:$0x3]
  %v40 = vld [vmem:[%s0 + $0xc] sm:$0x3]
  %v41 = vld [vmem:[%s0 + $0x50] sm:$0x3]
  %v42 = vld [vmem:[%s0 + $0x54] sm:$0x3]
  %v43 = vld [vmem:[%s0 + $0x58] sm:$0x3]
  %v44 = vld [vmem:[%s0 + $0x5c] sm:$0x3]
  %s45 = scalar_lea.vmem %s0, 20
  %v46 = vld [vmem:[%s45] sm:$0x3]
  %v47 = vld [vmem:[%s45 + $0x4] sm:$0x3]
  %v48 = vld [vmem:[%s45 + $0x8] sm:$0x3]
  %v49 = vld [vmem:[%s45 + $0xc] sm:$0x3]
  %v50 = vld [vmem:[%s45 + $0x50] sm:$0x3]
  %v51 = vld [vmem:[%s45 + $0x54] sm:$0x3]
  %v52 = vld [vmem:[%s45 + $0x58] sm:$0x3]
  %v53 = vld [vmem:[%s45 + $0x5c] sm:$0x3]
  %v62 = vcombine.low %v37, %v38
  %v63 = vcombine.low %v39, %v40
  %v65 = vunpack.c.l.s4 1983009808
  %v66 = vunpack.c.0.s8 %v65
  %v67 = vlaneseq
  %v68 = vshrl.u32 %v67, 7
  %v69 = vsub.s32 %v66, %v68
  %v70 = vrot.slane %v62, %v69
  %v72 = vunpack.c.l.s4 1983009808
  %v73 = vunpack.c.0.s8 %v72
  %v74 = vlaneseq
  %v75 = vshrl.u32 %v74, 7
  %v76 = vsub.s32 %v73, %v75
  %v77 = vrot.slane %v63, %v76
  %v78 = vcombine.low %v70, %v77
  %v79 = vcombine.low %v41, %v42
  %v80 = vcombine.low %v43, %v44
  %v82 = vunpack.c.l.s4 1983009808
  %v83 = vunpack.c.0.s8 %v82
  %v84 = vlaneseq
  %v85 = vshrl.u32 %v84, 7
  %v86 = vsub.s32 %v83, %v85
  %v87 = vrot.slane %v79, %v86
  %v89 = vunpack.c.l.s4 1983009808
  %v90 = vunpack.c.0.s8 %v89
  %v91 = vlaneseq
  %v92 = vshrl.u32 %v91, 7
  %v93 = vsub.s32 %v90, %v92
  %v94 = vrot.slane %v80, %v93
  %v95 = vcombine.low %v87, %v94
  %v106 = vcombine.low %v46, %v47
  %v107 = vcombine.low %v48, %v49
  %v109 = vunpack.c.l.s4 1983009808
  %v110 = vunpack.c.0.s8 %v109
  %v111 = vlaneseq
  %v112 = vshrl.u32 %v111, 7
  %v113 = vsub.s32 %v110, %v112
  %v114 = vrot.slane %v106, %v113
  %v116 = vunpack.c.l.s4 1983009808
  %v117 = vunpack.c.0.s8 %v116
  %v118 = vlaneseq
  %v119 = vshrl.u32 %v118, 7
  %v120 = vsub.s32 %v117, %v119
  %v121 = vrot.slane %v107, %v120
  %v122 = vcombine.low %v114, %v121
  %v123 = vcombine.low %v50, %v51
  %v124 = vcombine.low %v52, %v53
  %v126 = vunpack.c.l.s4 1983009808
  %v127 = vunpack.c.0.s8 %v126
  %v128 = vlaneseq
  %v129 = vshrl.u32 %v128, 7
  %v130 = vsub.s32 %v127, %v129
  %v131 = vrot.slane %v123, %v130
  %v133 = vunpack.c.l.s4 1983009808
  %v134 = vunpack.c.0.s8 %v133
  %v135 = vlaneseq
  %v136 = vshrl.u32 %v135, 7
  %v137 = vsub.s32 %v134, %v136
  %v138 = vrot.slane %v124, %v137
  %v139 = vcombine.low %v131, %v138
  %v142 = vld [vmem:[#allocation3] sm:$0xff]
  %v143 = vld [vmem:[#allocation3 + $0x8] sm:$0xff]
  %v144 = vld [vmem:[#allocation3 + $0x10] sm:$0xff]
  %v145 = vld [vmem:[#allocation3 + $0x18] sm:$0xff]
  %v146 = vld [vmem:[%s1] sm:$0xf]
  %v147 = vld [vmem:[%s1 + $0x4] sm:$0xf]
  %v148 = vld [vmem:[%s1 + $0x8] sm:$0xf]
  %v149 = vld [vmem:[%s1 + $0xc] sm:$0xf]
  %v150 = vld [vmem:[%s1 + $0x10] sm:$0xf]
  %v151 = vld [vmem:[%s1 + $0x14] sm:$0xf]
  %v152 = vld [vmem:[%s1 + $0x18] sm:$0xf]
  %v153 = vld [vmem:[%s1 + $0x1c] sm:$0xf]
  %v154 = vld [vmem:[%s1 + $0x20] sm:$0xf]
  %v155 = vld [vmem:[%s1 + $0x24] sm:$0xf]
  %v156 = vld [vmem:[%s1 + $0x28] sm:$0xf]
  %v157 = vld [vmem:[%s1 + $0x2c] sm:$0xf]
  %v158 = vld [vmem:[%s1 + $0x30] sm:$0xf]
  %v159 = vld [vmem:[%s1 + $0x34] sm:$0xf]
  %v160 = vld [vmem:[%s1 + $0x38] sm:$0xf]
  %v161 = vld [vmem:[%s1 + $0x3c] sm:$0xf]
  %v162 = vld [vmem:[%s1 + $0x40] sm:$0xf]
  %v163 = vld [vmem:[%s1 + $0x44] sm:$0xf]
  %v164 = vld [vmem:[%s1 + $0x48] sm:$0xf]
  %v165 = vld [vmem:[%s1 + $0x4c] sm:$0xf]
  %v166 = vld [vmem:[%s1 + $0x50] sm:$0xf]
  %v167 = vld [vmem:[%s1 + $0x54] sm:$0xf]
  %v168 = vld [vmem:[%s1 + $0x58] sm:$0xf]
  %v169 = vld [vmem:[%s1 + $0x5c] sm:$0xf]
  %v170 = vld [vmem:[%s1 + $0x60] sm:$0xf]
  %v171 = vld [vmem:[%s1 + $0x64] sm:$0xf]
  %v172 = vld [vmem:[%s1 + $0x68] sm:$0xf]
  %v173 = vld [vmem:[%s1 + $0x6c] sm:$0xf]
  %v174 = vld [vmem:[%s1 + $0x70] sm:$0xf]
  %v175 = vld [vmem:[%s1 + $0x74] sm:$0xf]
  %v176 = vld [vmem:[%s1 + $0x78] sm:$0xf]
  %v177 = vld [vmem:[%s1 + $0x7c] sm:$0xf]
  %v210 = vunpack.c.l.b16 %v146
  %v211 = vunpack.c.l.b16 %v147
  %v212 = vunpack.c.l.b16 %v148
  %v213 = vunpack.c.l.b16 %v149
  %v214 = vunpack.c.l.b16 %v150
  %v215 = vunpack.c.l.b16 %v151
  %v216 = vunpack.c.l.b16 %v152
  %v217 = vunpack.c.l.b16 %v153
  %v218 = vunpack.c.l.b16 %v154
  %v219 = vunpack.c.l.b16 %v155
  %v220 = vunpack.c.l.b16 %v156
  %v221 = vunpack.c.l.b16 %v157
  %v222 = vunpack.c.l.b16 %v158
  %v223 = vunpack.c.l.b16 %v159
  %v224 = vunpack.c.l.b16 %v160
  %v225 = vunpack.c.l.b16 %v161
  %v226 = vunpack.c.l.b16 %v162
  %v227 = vunpack.c.l.b16 %v163
  %v228 = vunpack.c.l.b16 %v164
  %v229 = vunpack.c.l.b16 %v165
  %v230 = vunpack.c.l.b16 %v166
  %v231 = vunpack.c.l.b16 %v167
  %v232 = vunpack.c.l.b16 %v168
  %v233 = vunpack.c.l.b16 %v169
  %v234 = vunpack.c.l.b16 %v170
  %v235 = vunpack.c.l.b16 %v171
  %v236 = vunpack.c.l.b16 %v172
  %v237 = vunpack.c.l.b16 %v173
  %v238 = vunpack.c.l.b16 %v174
  %v239 = vunpack.c.l.b16 %v175
  %v240 = vunpack.c.l.b16 %v176
  %v241 = vunpack.c.l.b16 %v177
  %v242 = vpack.c.b16 %v211, %v210
  %v243 = vpack.c.b16 %v213, %v212
  %v244 = vpack.c.b16 %v215, %v214
  %v245 = vpack.c.b16 %v217, %v216
  %v246 = vpack.c.b16 %v219, %v218
  %v247 = vpack.c.b16 %v221, %v220
  %v248 = vpack.c.b16 %v223, %v222
  %v249 = vpack.c.b16 %v225, %v224
  %v250 = vpack.c.b16 %v227, %v226
  %v251 = vpack.c.b16 %v229, %v228
  %v252 = vpack.c.b16 %v231, %v230
  %v253 = vpack.c.b16 %v233, %v232
  %v254 = vpack.c.b16 %v235, %v234
  %v255 = vpack.c.b16 %v237, %v236
  %v256 = vpack.c.b16 %v239, %v238
  %v257 = vpack.c.b16 %v241, %v240
  %274 = vmatprep.subr.bf16.mxu0 0
  %275 = vmatpush1.bf16.msra.mxu0 %v242
  %276 = vmatprep.subr.bf16.mxu0 0
  %277 = vmatpush1.bf16.msra.mxu0 %v243
  %278 = vmatprep.subr.bf16.mxu0 0
  %279 = vmatpush1.bf16.msra.mxu0 %v244
  %280 = vmatprep.subr.bf16.mxu0 0
  %281 = vmatpush1.bf16.msra.mxu0 %v245
  %282 = vmatprep.subr.bf16.mxu0 0
  %283 = vmatpush1.bf16.msra.mxu0 %v246
  %284 = vmatprep.subr.bf16.mxu0 0
  %285 = vmatpush1.bf16.msra.mxu0 %v247
  %286 = vmatprep.subr.bf16.mxu0 0
  %287 = vmatpush1.bf16.msra.mxu0 %v248
  %288 = vmatprep.subr.bf16.mxu0 0
  %289 = vmatpush1.bf16.msra.mxu0 %v249
  %290 = vmatprep.subr.bf16.mxu0 0
  %291 = vmatpush1.bf16.msra.mxu0 %v250
  %292 = vmatprep.subr.bf16.mxu0 0
  %293 = vmatpush1.bf16.msra.mxu0 %v251
  %294 = vmatprep.subr.bf16.mxu0 0
  %295 = vmatpush1.bf16.msra.mxu0 %v252
  %296 = vmatprep.subr.bf16.mxu0 0
  %297 = vmatpush1.bf16.msra.mxu0 %v253
  %298 = vmatprep.subr.bf16.mxu0 0
  %299 = vmatpush1.bf16.msra.mxu0 %v254
  %300 = vmatprep.subr.bf16.mxu0 0
  %301 = vmatpush1.bf16.msra.mxu0 %v255
  %302 = vmatprep.subr.bf16.mxu0 0
  %303 = vmatpush1.bf16.msra.mxu0 %v256
  %304 = vmatprep.subr.bf16.mxu0 0
  %305 = vmatpush1.bf16.msra.mxu0 %v257
  %306 = vmatprep.mubr.bf16.mxu0 %v122
  %307 = vmatmul.mubr.bf16.gmra.mrb[0].mxu0 %v78
  %v308 = vpop.f32.mrb[0].mxu0
  %v309 = vadd.f32 0.0, %v308
  %v310 = vpop.f32.mrb[0].mxu0
  %v311 = vpop.f32.mrb[0].mxu0
  %v312 = vadd.f32 0.0, %v311
  %v313 = vpop.f32.mrb[0].mxu0
  %314 = vmatprep.mubr.bf16.mxu0 %v139
  %315 = vmatmul.mubr.bf16.gmra.mrb[0].mxu0 %v95
  %v316 = vpop.f32.mrb[0].mxu0
  %v317 = vadd.f32 0.0, %v316
  %v318 = vpop.f32.mrb[0].mxu0
  %v319 = vpop.f32.mrb[0].mxu0
  %v320 = vadd.f32 0.0, %v319
  %v321 = vpop.f32.mrb[0].mxu0
  %322 = vdwg.mxu0
  %v323 = vadd.f32 %v142, %v309
  %v324 = vadd.f32 %v143, %v312
  %v325 = vadd.f32 %v144, %v317
  %v326 = vadd.f32 %v145, %v320
  %327 = vst [vmem:[#allocation3] sm:$0xff] %v323
  %328 = vst [vmem:[#allocation3 + $0x8] sm:$0xff] %v324
  %329 = vst [vmem:[#allocation3 + $0x10] sm:$0xff] %v325
  %330 = vst [vmem:[#allocation3 + $0x18] sm:$0xff] %v326
  %v331 = vld [vmem:[%s0] sm:$0x7]
  %v332 = vld [vmem:[%s0 + $0x4] sm:$0x7]
  %v333 = vld [vmem:[%s0 + $0x8] sm:$0x7]
  %v334 = vld [vmem:[%s0 + $0xc] sm:$0x7]
  %v335 = vld [vmem:[%s0 + $0x50] sm:$0x7]
  %v336 = vld [vmem:[%s0 + $0x54] sm:$0x7]
  %v337 = vld [vmem:[%s0 + $0x58] sm:$0x7]
  %v338 = vld [vmem:[%s0 + $0x5c] sm:$0x7]
  %v348 = vunpack.c.l.s4 1983009808
  %v349 = vunpack.c.0.s8 %v348
  %v350 = vlaneseq
  %v351 = vshrl.u32 %v350, 7
  %v352 = vsub.s32 %v349, %v351
  %v353 = vrot.slane %v331, %v352
  %v354 = vcombine.high %v353, %v353
  %v356 = vunpack.c.l.s4 1983009808
  %v357 = vunpack.c.0.s8 %v356
  %v358 = vlaneseq
  %v359 = vshrl.u32 %v358, 7
  %v360 = vsub.s32 %v357, %v359
  %v361 = vrot.slane %v332, %v360
  %v362 = vcombine.high %v361, %v361
  %v364 = vunpack.c.l.s4 1983009808
  %v365 = vunpack.c.0.s8 %v364
  %v366 = vlaneseq
  %v367 = vshrl.u32 %v366, 7
  %v368 = vsub.s32 %v365, %v367
  %v369 = vrot.slane %v333, %v368
  %v370 = vcombine.high %v369, %v369
  %v372 = vunpack.c.l.s4 1983009808
  %v373 = vunpack.c.0.s8 %v372
  %v374 = vlaneseq
  %v375 = vshrl.u32 %v374, 7
  %v376 = vsub.s32 %v373, %v375
  %v377 = vrot.slane %v334, %v376
  %v378 = vcombine.high %v377, %v377
  %v380 = vunpack.c.l.s4 1983009808
  %v381 = vunpack.c.0.s8 %v380
  %v382 = vlaneseq
  %v383 = vshrl.u32 %v382, 7
  %v384 = vsub.s32 %v381, %v383
  %v385 = vrot.slane %v335, %v384
  %v386 = vcombine.high %v385, %v385
  %v388 = vunpack.c.l.s4 1983009808
  %v389 = vunpack.c.0.s8 %v388
  %v390 = vlaneseq
  %v391 = vshrl.u32 %v390, 7
  %v392 = vsub.s32 %v389, %v391
  %v393 = vrot.slane %v336, %v392
  %v394 = vcombine.high %v393, %v393
  %v396 = vunpack.c.l.s4 1983009808
  %v397 = vunpack.c.0.s8 %v396
  %v398 = vlaneseq
  %v399 = vshrl.u32 %v398, 7
  %v400 = vsub.s32 %v397, %v399
  %v401 = vrot.slane %v337, %v400
  %v402 = vcombine.high %v401, %v401
  %v404 = vunpack.c.l.s4 1983009808
  %v405 = vunpack.c.0.s8 %v404
  %v406 = vlaneseq
  %v407 = vshrl.u32 %v406, 7
  %v408 = vsub.s32 %v405, %v407
  %v409 = vrot.slane %v338, %v408
  %v410 = vcombine.high %v409, %v409
  %vm411 = vsmask.f32 1280
  %vm412 = vsmask.f32 3336
  %vm413 = vmor %vm411, %vm412
  %vm414 = vsmask.f32 5392
  %vm415 = vmor %vm413, %vm414
  %vm416 = vsmask.f32 7448
  %vm417 = vmor %vm415, %vm416
  %v419 = vshrl.u32 %v353, 16
  %v421 = vrot.slane %v419, 6
  %v422 = vshll.u32 %v353, 16
  %v424 = vrot.slane %v422, 7
  %v425 = vor.u32 %v421, %v424
  %v426 = vrot.slane %v425, 2
  %v428 = vshll.u32 %v354, 16
  %v430 = vrot.slane %v428, 7
  %v431 = vsel %vm417, %v426, %v430
  %v433 = vshrl.u32 %v361, 16
  %v435 = vrot.slane %v433, 6
  %v436 = vshll.u32 %v361, 16
  %v438 = vrot.slane %v436, 7
  %v439 = vor.u32 %v435, %v438
  %v440 = vrot.slane %v439, 2
  %v442 = vshll.u32 %v362, 16
  %v444 = vrot.slane %v442, 7
  %v445 = vsel %vm417, %v440, %v444
  %v447 = vshrl.u32 %v369, 16
  %v449 = vrot.slane %v447, 6
  %v450 = vshll.u32 %v369, 16
  %v452 = vrot.slane %v450, 7
  %v453 = vor.u32 %v449, %v452
  %v454 = vrot.slane %v453, 2
  %v456 = vshll.u32 %v370, 16
  %v458 = vrot.slane %v456, 7
  %v459 = vsel %vm417, %v454, %v458
  %v461 = vshrl.u32 %v377, 16
  %v463 = vrot.slane %v461, 6
  %v464 = vshll.u32 %v377, 16
  %v466 = vrot.slane %v464, 7
  %v467 = vor.u32 %v463, %v466
  %v468 = vrot.slane %v467, 2
  %v470 = vshll.u32 %v378, 16
  %v472 = vrot.slane %v470, 7
  %v473 = vsel %vm417, %v468, %v472
  %v475 = vshrl.u32 %v385, 16
  %v477 = vrot.slane %v475, 6
  %v478 = vshll.u32 %v385, 16
  %v480 = vrot.slane %v478, 7
  %v481 = vor.u32 %v477, %v480
  %v482 = vrot.slane %v481, 2
  %v484 = vshll.u32 %v386, 16
  %v486 = vrot.slane %v484, 7
  %v487 = vsel %vm417, %v482, %v486
  %v489 = vshrl.u32 %v393, 16
  %v491 = vrot.slane %v489, 6
  %v492 = vshll.u32 %v393, 16
  %v494 = vrot.slane %v492, 7
  %v495 = vor.u32 %v491, %v494
  %v496 = vrot.slane %v495, 2
  %v498 = vshll.u32 %v394, 16
  %v500 = vrot.slane %v498, 7
  %v501 = vsel %vm417, %v496, %v500
  %v503 = vshrl.u32 %v401, 16
  %v505 = vrot.slane %v503, 6
  %v506 = vshll.u32 %v401, 16
  %v508 = vrot.slane %v506, 7
  %v509 = vor.u32 %v505, %v508
  %v510 = vrot.slane %v509, 2
  %v512 = vshll.u32 %v402, 16
  %v514 = vrot.slane %v512, 7
  %v515 = vsel %vm417, %v510, %v514
  %v517 = vshrl.u32 %v409, 16
  %v519 = vrot.slane %v517, 6
  %v520 = vshll.u32 %v409, 16
  %v522 = vrot.slane %v520, 7
  %v523 = vor.u32 %v519, %v522
  %v524 = vrot.slane %v523, 2
  %v526 = vshll.u32 %v410, 16
  %v528 = vrot.slane %v526, 7
  %v529 = vsel %vm417, %v524, %v528
  %s530 = scalar_lea.vmem %s0, 40
  %v531 = vld [vmem:[%s530] sm:$0x3]
  %v532 = vld [vmem:[%s530 + $0x4] sm:$0x3]
  %v533 = vld [vmem:[%s530 + $0x8] sm:$0x3]
  %v534 = vld [vmem:[%s530 + $0xc] sm:$0x3]
  %v535 = vld [vmem:[%s530 + $0x50] sm:$0x3]
  %v536 = vld [vmem:[%s530 + $0x54] sm:$0x3]
  %v537 = vld [vmem:[%s530 + $0x58] sm:$0x3]
  %v538 = vld [vmem:[%s530 + $0x5c] sm:$0x3]
  %v539 = vcombine.low %v431, %v445
  %v540 = vcombine.low %v459, %v473
  %v542 = vunpack.c.l.s4 1983009808
  %v543 = vunpack.c.0.s8 %v542
  %v544 = vlaneseq
  %v545 = vshrl.u32 %v544, 7
  %v546 = vsub.s32 %v543, %v545
  %v547 = vrot.slane %v539, %v546
  %v549 = vunpack.c.l.s4 1983009808
  %v550 = vunpack.c.0.s8 %v549
  %v551 = vlaneseq
  %v552 = vshrl.u32 %v551, 7
  %v553 = vsub.s32 %v550, %v552
  %v554 = vrot.slane %v540, %v553
  %v555 = vcombine.low %v547, %v554
  %v556 = vcombine.low %v487, %v501
  %v557 = vcombine.low %v515, %v529
  %v559 = vunpack.c.l.s4 1983009808
  %v560 = vunpack.c.0.s8 %v559
  %v561 = vlaneseq
  %v562 = vshrl.u32 %v561, 7
  %v563 = vsub.s32 %v560, %v562
  %v564 = vrot.slane %v556, %v563
  %v566 = vunpack.c.l.s4 1983009808
  %v567 = vunpack.c.0.s8 %v566
  %v568 = vlaneseq
  %v569 = vshrl.u32 %v568, 7
  %v570 = vsub.s32 %v567, %v569
  %v571 = vrot.slane %v557, %v570
  %v572 = vcombine.low %v564, %v571
  %v583 = vcombine.low %v531, %v532
  %v584 = vcombine.low %v533, %v534
  %v586 = vunpack.c.l.s4 1983009808
  %v587 = vunpack.c.0.s8 %v586
  %v588 = vlaneseq
  %v589 = vshrl.u32 %v588, 7
  %v590 = vsub.s32 %v587, %v589
  %v591 = vrot.slane %v583, %v590
  %v593 = vunpack.c.l.s4 1983009808
  %v594 = vunpack.c.0.s8 %v593
  %v595 = vlaneseq
  %v596 = vshrl.u32 %v595, 7
  %v597 = vsub.s32 %v594, %v596
  %v598 = vrot.slane %v584, %v597
  %v599 = vcombine.low %v591, %v598
  %v600 = vcombine.low %v535, %v536
  %v601 = vcombine.low %v537, %v538
  %v603 = vunpack.c.l.s4 1983009808
  %v604 = vunpack.c.0.s8 %v603
  %v605 = vlaneseq
  %v606 = vshrl.u32 %v605, 7
  %v607 = vsub.s32 %v604, %v606
  %v608 = vrot.slane %v600, %v607
  %v610 = vunpack.c.l.s4 1983009808
  %v611 = vunpack.c.0.s8 %v610
  %v612 = vlaneseq
  %v613 = vshrl.u32 %v612, 7
  %v614 = vsub.s32 %v611, %v613
  %v615 = vrot.slane %v601, %v614
  %v616 = vcombine.low %v608, %v615
  %v619 = vld [vmem:[#allocation3] sm:$0xff]
  %v620 = vld [vmem:[#allocation3 + $0x8] sm:$0xff]
  %v621 = vld [vmem:[#allocation3 + $0x10] sm:$0xff]
  %v622 = vld [vmem:[#allocation3 + $0x18] sm:$0xff]
  %s623 = scalar_lea.vmem %s1, 128
  %v624 = vld [vmem:[%s623] sm:$0xf]
  %v625 = vld [vmem:[%s623 + $0x4] sm:$0xf]
  %v626 = vld [vmem:[%s623 + $0x8] sm:$0xf]
  %v627 = vld [vmem:[%s623 + $0xc] sm:$0xf]
  %v628 = vld [vmem:[%s623 + $0x10] sm:$0xf]
  %v629 = vld [vmem:[%s623 + $0x14] sm:$0xf]
  %v630 = vld [vmem:[%s623 + $0x18] sm:$0xf]
  %v631 = vld [vmem:[%s623 + $0x1c] sm:$0xf]
  %v632 = vld [vmem:[%s623 + $0x20] sm:$0xf]
  %v633 = vld [vmem:[%s623 + $0x24] sm:$0xf]
  %v634 = vld [vmem:[%s623 + $0x28] sm:$0xf]
  %v635 = vld [vmem:[%s623 + $0x2c] sm:$0xf]
  %v636 = vld [vmem:[%s623 + $0x30] sm:$0xf]
  %v637 = vld [vmem:[%s623 + $0x34] sm:$0xf]
  %v638 = vld [vmem:[%s623 + $0x38] sm:$0xf]
  %v639 = vld [vmem:[%s623 + $0x3c] sm:$0xf]
  %v640 = vld [vmem:[%s623 + $0x40] sm:$0xf]
  %v641 = vld [vmem:[%s623 + $0x44] sm:$0xf]
  %v642 = vld [vmem:[%s623 + $0x48] sm:$0xf]
  %v643 = vld [vmem:[%s623 + $0x4c] sm:$0xf]
  %v644 = vld [vmem:[%s623 + $0x50] sm:$0xf]
  %v645 = vld [vmem:[%s623 + $0x54] sm:$0xf]
  %v646 = vld [vmem:[%s623 + $0x58] sm:$0xf]
  %v647 = vld [vmem:[%s623 + $0x5c] sm:$0xf]
  %v648 = vld [vmem:[%s623 + $0x60] sm:$0xf]
  %v649 = vld [vmem:[%s623 + $0x64] sm:$0xf]
  %v650 = vld [vmem:[%s623 + $0x68] sm:$0xf]
  %v651 = vld [vmem:[%s623 + $0x6c] sm:$0xf]
  %v652 = vld [vmem:[%s623 + $0x70] sm:$0xf]
  %v653 = vld [vmem:[%s623 + $0x74] sm:$0xf]
  %v654 = vld [vmem:[%s623 + $0x78] sm:$0xf]
  %v655 = vld [vmem:[%s623 + $0x7c] sm:$0xf]
  %v688 = vunpack.c.l.b16 %v624
  %v689 = vunpack.c.l.b16 %v625
  %v690 = vunpack.c.l.b16 %v626
  %v691 = vunpack.c.l.b16 %v627
  %v692 = vunpack.c.l.b16 %v628
  %v693 = vunpack.c.l.b16 %v629
  %v694 = vunpack.c.l.b16 %v630
  %v695 = vunpack.c.l.b16 %v631
  %v696 = vunpack.c.l.b16 %v632
  %v697 = vunpack.c.l.b16 %v633
  %v698 = vunpack.c.l.b16 %v634
  %v699 = vunpack.c.l.b16 %v635
  %v700 = vunpack.c.l.b16 %v636
  %v701 = vunpack.c.l.b16 %v637
  %v702 = vunpack.c.l.b16 %v638
  %v703 = vunpack.c.l.b16 %v639
  %v704 = vunpack.c.l.b16 %v640
  %v705 = vunpack.c.l.b16 %v641
  %v706 = vunpack.c.l.b16 %v642
  %v707 = vunpack.c.l.b16 %v643
  %v708 = vunpack.c.l.b16 %v644
  %v709 = vunpack.c.l.b16 %v645
  %v710 = vunpack.c.l.b16 %v646
  %v711 = vunpack.c.l.b16 %v647
  %v712 = vunpack.c.l.b16 %v648
  %v713 = vunpack.c.l.b16 %v649
  %v714 = vunpack.c.l.b16 %v650
  %v715 = vunpack.c.l.b16 %v651
  %v716 = vunpack.c.l.b16 %v652
  %v717 = vunpack.c.l.b16 %v653
  %v718 = vunpack.c.l.b16 %v654
  %v719 = vunpack.c.l.b16 %v655
  %v720 = vpack.c.b16 %v689, %v688
  %v721 = vpack.c.b16 %v691, %v690
  %v722 = vpack.c.b16 %v693, %v692
  %v723 = vpack.c.b16 %v695, %v694
  %v724 = vpack.c.b16 %v697, %v696
  %v725 = vpack.c.b16 %v699, %v698
  %v726 = vpack.c.b16 %v701, %v700
  %v727 = vpack.c.b16 %v703, %v702
  %v728 = vpack.c.b16 %v705, %v704
  %v729 = vpack.c.b16 %v707, %v706
  %v730 = vpack.c.b16 %v709, %v708
  %v731 = vpack.c.b16 %v711, %v710
  %v732 = vpack.c.b16 %v713, %v712
  %v733 = vpack.c.b16 %v715, %v714
  %v734 = vpack.c.b16 %v717, %v716
  %v735 = vpack.c.b16 %v719, %v718
  %752 = vmatprep.subr.bf16.mxu0 0
  %753 = vmatpush1.bf16.msra.mxu0 %v720
  %754 = vmatprep.subr.bf16.mxu0 0
  %755 = vmatpush1.bf16.msra.mxu0 %v721
  %756 = vmatprep.subr.bf16.mxu0 0
  %757 = vmatpush1.bf16.msra.mxu0 %v722
  %758 = vmatprep.subr.bf16.mxu0 0
  %759 = vmatpush1.bf16.msra.mxu0 %v723
  %760 = vmatprep.subr.bf16.mxu0 0
  %761 = vmatpush1.bf16.msra.mxu0 %v724
  %762 = vmatprep.subr.bf16.mxu0 0
  %763 = vmatpush1.bf16.msra.mxu0 %v725
  %764 = vmatprep.subr.bf16.mxu0 0
  %765 = vmatpush1.bf16.msra.mxu0 %v726
  %766 = vmatprep.subr.bf16.mxu0 0
  %767 = vmatpush1.bf16.msra.mxu0 %v727
  %768 = vmatprep.subr.bf16.mxu0 0
  %769 = vmatpush1.bf16.msra.mxu0 %v728
  %770 = vmatprep.subr.bf16.mxu0 0
  %771 = vmatpush1.bf16.msra.mxu0 %v729
  %772 = vmatprep.subr.bf16.mxu0 0
  %773 = vmatpush1.bf16.msra.mxu0 %v730
  %774 = vmatprep.subr.bf16.mxu0 0
  %775 = vmatpush1.bf16.msra.mxu0 %v731
  %776 = vmatprep.subr.bf16.mxu0 0
  %777 = vmatpush1.bf16.msra.mxu0 %v732
  %778 = vmatprep.subr.bf16.mxu0 0
  %779 = vmatpush1.bf16.msra.mxu0 %v733
  %780 = vmatprep.subr.bf16.mxu0 0
  %781 = vmatpush1.bf16.msra.mxu0 %v734
  %782 = vmatprep.subr.bf16.mxu0 0
  %783 = vmatpush1.bf16.msra.mxu0 %v735
  %784 = vmatprep.mubr.bf16.mxu0 %v599
  %785 = vmatmul.mubr.bf16.gmra.mrb[0].mxu0 %v555
  %v786 = vpop.f32.mrb[0].mxu0
  %v787 = vadd.f32 0.0, %v786
  %v788 = vpop.f32.mrb[0].mxu0
  %v789 = vpop.f32.mrb[0].mxu0
  %v790 = vadd.f32 0.0, %v789
  %v791 = vpop.f32.mrb[0].mxu0
  %792 = vmatprep.mubr.bf16.mxu0 %v616
  %793 = vmatmul.mubr.bf16.gmra.mrb[0].mxu0 %v572
  %v794 = vpop.f32.mrb[0].mxu0
  %v795 = vadd.f32 0.0, %v794
  %v796 = vpop.f32.mrb[0].mxu0
  %v797 = vpop.f32.mrb[0].mxu0
  %v798 = vadd.f32 0.0, %v797
  %v799 = vpop.f32.mrb[0].mxu0
  %800 = vdwg.mxu0
  %v801 = vadd.f32 %v619, %v787
  %v802 = vadd.f32 %v620, %v790
  %v803 = vadd.f32 %v621, %v795
  %v804 = vadd.f32 %v622, %v798
  %805 = vst [vmem:[#allocation3] sm:$0xff] %v801
  %806 = vst [vmem:[#allocation3 + $0x8] sm:$0xff] %v802
  %807 = vst [vmem:[#allocation3 + $0x10] sm:$0xff] %v803
  %808 = vst [vmem:[#allocation3 + $0x18] sm:$0xff] %v804
  %s809 = scalar_lea.vmem %s0, 60
  %v810 = vld [vmem:[%s809] sm:$0x3]
  %v811 = vld [vmem:[%s809 + $0x4] sm:$0x3]
  %v812 = vld [vmem:[%s809 + $0x8] sm:$0x3]
  %v813 = vld [vmem:[%s809 + $0xc] sm:$0x3]
  %v814 = vld [vmem:[%s809 + $0x50] sm:$0x3]
  %v815 = vld [vmem:[%s809 + $0x54] sm:$0x3]
  %v816 = vld [vmem:[%s809 + $0x58] sm:$0x3]
  %v817 = vld [vmem:[%s809 + $0x5c] sm:$0x3]
  %v818 = vld [vmem:[%s530] sm:$0x7]
  %v819 = vld [vmem:[%s530 + $0x4] sm:$0x7]
  %v820 = vld [vmem:[%s530 + $0x8] sm:$0x7]
  %v821 = vld [vmem:[%s530 + $0xc] sm:$0x7]
  %v822 = vld [vmem:[%s530 + $0x50] sm:$0x7]
  %v823 = vld [vmem:[%s530 + $0x54] sm:$0x7]
  %v824 = vld [vmem:[%s530 + $0x58] sm:$0x7]
  %v825 = vld [vmem:[%s530 + $0x5c] sm:$0x7]
  %v835 = vunpack.c.l.s4 1983009808
  %v836 = vunpack.c.0.s8 %v835
  %v837 = vlaneseq
  %v838 = vshrl.u32 %v837, 7
  %v839 = vsub.s32 %v836, %v838
  %v840 = vrot.slane %v818, %v839
  %v841 = vcombine.high %v840, %v840
  %v843 = vunpack.c.l.s4 1983009808
  %v844 = vunpack.c.0.s8 %v843
  %v845 = vlaneseq
  %v846 = vshrl.u32 %v845, 7
  %v847 = vsub.s32 %v844, %v846
  %v848 = vrot.slane %v819, %v847
  %v849 = vcombine.high %v848, %v848
  %v851 = vunpack.c.l.s4 1983009808
  %v852 = vunpack.c.0.s8 %v851
  %v853 = vlaneseq
  %v854 = vshrl.u32 %v853, 7
  %v855 = vsub.s32 %v852, %v854
  %v856 = vrot.slane %v820, %v855
  %v857 = vcombine.high %v856, %v856
  %v859 = vunpack.c.l.s4 1983009808
  %v860 = vunpack.c.0.s8 %v859
  %v861 = vlaneseq
  %v862 = vshrl.u32 %v861, 7
  %v863 = vsub.s32 %v860, %v862
  %v864 = vrot.slane %v821, %v863
  %v865 = vcombine.high %v864, %v864
  %v867 = vunpack.c.l.s4 1983009808
  %v868 = vunpack.c.0.s8 %v867
  %v869 = vlaneseq
  %v870 = vshrl.u32 %v869, 7
  %v871 = vsub.s32 %v868, %v870
  %v872 = vrot.slane %v822, %v871
  %v873 = vcombine.high %v872, %v872
  %v875 = vunpack.c.l.s4 1983009808
  %v876 = vunpack.c.0.s8 %v875
  %v877 = vlaneseq
  %v878 = vshrl.u32 %v877, 7
  %v879 = vsub.s32 %v876, %v878
  %v880 = vrot.slane %v823, %v879
  %v881 = vcombine.high %v880, %v880
  %v883 = vunpack.c.l.s4 1983009808
  %v884 = vunpack.c.0.s8 %v883
  %v885 = vlaneseq
  %v886 = vshrl.u32 %v885, 7
  %v887 = vsub.s32 %v884, %v886
  %v888 = vrot.slane %v824, %v887
  %v889 = vcombine.high %v888, %v888
  %v891 = vunpack.c.l.s4 1983009808
  %v892 = vunpack.c.0.s8 %v891
  %v893 = vlaneseq
  %v894 = vshrl.u32 %v893, 7
  %v895 = vsub.s32 %v892, %v894
  %v896 = vrot.slane %v825, %v895
  %v897 = vcombine.high %v896, %v896
  %v899 = vshrl.u32 %v840, 16
  %v901 = vrot.slane %v899, 6
  %v902 = vshll.u32 %v840, 16
  %v904 = vrot.slane %v902, 7
  %v905 = vor.u32 %v901, %v904
  %v906 = vrot.slane %v905, 2
  %v908 = vshll.u32 %v841, 16
  %v910 = vrot.slane %v908, 7
  %v911 = vsel %vm417, %v906, %v910
  %v913 = vshrl.u32 %v848, 16
  %v915 = vrot.slane %v913, 6
  %v916 = vshll.u32 %v848, 16
  %v918 = vrot.slane %v916, 7
  %v919 = vor.u32 %v915, %v918
  %v920 = vrot.slane %v919, 2
  %v922 = vshll.u32 %v849, 16
  %v924 = vrot.slane %v922, 7
  %v925 = vsel %vm417, %v920, %v924
  %v927 = vshrl.u32 %v856, 16
  %v929 = vrot.slane %v927, 6
  %v930 = vshll.u32 %v856, 16
  %v932 = vrot.slane %v930, 7
  %v933 = vor.u32 %v929, %v932
  %v934 = vrot.slane %v933, 2
  %v936 = vshll.u32 %v857, 16
  %v938 = vrot.slane %v936, 7
  %v939 = vsel %vm417, %v934, %v938
  %v941 = vshrl.u32 %v864, 16
  %v943 = vrot.slane %v941, 6
  %v944 = vshll.u32 %v864, 16
  %v946 = vrot.slane %v944, 7
  %v947 = vor.u32 %v943, %v946
  %v948 = vrot.slane %v947, 2
  %v950 = vshll.u32 %v865, 16
  %v952 = vrot.slane %v950, 7
  %v953 = vsel %vm417, %v948, %v952
  %v955 = vshrl.u32 %v872, 16
  %v957 = vrot.slane %v955, 6
  %v958 = vshll.u32 %v872, 16
  %v960 = vrot.slane %v958, 7
  %v961 = vor.u32 %v957, %v960
  %v962 = vrot.slane %v961, 2
  %v964 = vshll.u32 %v873, 16
  %v966 = vrot.slane %v964, 7
  %v967 = vsel %vm417, %v962, %v966
  %v969 = vshrl.u32 %v880, 16
  %v971 = vrot.slane %v969, 6
  %v972 = vshll.u32 %v880, 16
  %v974 = vrot.slane %v972, 7
  %v975 = vor.u32 %v971, %v974
  %v976 = vrot.slane %v975, 2
  %v978 = vshll.u32 %v881, 16
  %v980 = vrot.slane %v978, 7
  %v981 = vsel %vm417, %v976, %v980
  %v983 = vshrl.u32 %v888, 16
  %v985 = vrot.slane %v983, 6
  %v986 = vshll.u32 %v888, 16
  %v988 = vrot.slane %v986, 7
  %v989 = vor.u32 %v985, %v988
  %v990 = vrot.slane %v989, 2
  %v992 = vshll.u32 %v889, 16
  %v994 = vrot.slane %v992, 7
  %v995 = vsel %vm417, %v990, %v994
  %v997 = vshrl.u32 %v896, 16
  %v999 = vrot.slane %v997, 6
  %v1000 = vshll.u32 %v896, 16
  %v1002 = vrot.slane %v1000, 7
  %v1003 = vor.u32 %v999, %v1002
  %v1004 = vrot.slane %v1003, 2
  %v1006 = vshll.u32 %v897, 16
  %v1008 = vrot.slane %v1006, 7
  %v1009 = vsel %vm417, %v1004, %v1008
  %v1018 = vcombine.low %v810, %v811
  %v1019 = vcombine.low %v812, %v813
  %v1021 = vunpack.c.l.s4 1983009808
  %v1022 = vunpack.c.0.s8 %v1021
  %v1023 = vlaneseq
  %v1024 = vshrl.u32 %v1023, 7
  %v1025 = vsub.s32 %v1022, %v1024
  %v1026 = vrot.slane %v1018, %v1025
  %v1028 = vunpack.c.l.s4 1983009808
  %v1029 = vunpack.c.0.s8 %v1028
  %v1030 = vlaneseq
  %v1031 = vshrl.u32 %v1030, 7
  %v1032 = vsub.s32 %v1029, %v1031
  %v1033 = vrot.slane %v1019, %v1032
  %v1034 = vcombine.low %v1026, %v1033
  %v1035 = vcombine.low %v814, %v815
  %v1036 = vcombine.low %v816, %v817
  %v1038 = vunpack.c.l.s4 1983009808
  %v1039 = vunpack.c.0.s8 %v1038
  %v1040 = vlaneseq
  %v1041 = vshrl.u32 %v1040, 7
  %v1042 = vsub.s32 %v1039, %v1041
  %v1043 = vrot.slane %v1035, %v1042
  %v1045 = vunpack.c.l.s4 1983009808
  %v1046 = vunpack.c.0.s8 %v1045
  %v1047 = vlaneseq
  %v1048 = vshrl.u32 %v1047, 7
  %v1049 = vsub.s32 %v1046, %v1048
  %v1050 = vrot.slane %v1036, %v1049
  %v1051 = vcombine.low %v1043, %v1050
  %v1054 = vcombine.low %v911, %v925
  %v1055 = vcombine.low %v939, %v953
  %v1057 = vunpack.c.l.s4 1983009808
  %v1058 = vunpack.c.0.s8 %v1057
  %v1059 = vlaneseq
  %v1060 = vshrl.u32 %v1059, 7
  %v1061 = vsub.s32 %v1058, %v1060
  %v1062 = vrot.slane %v1054, %v1061
  %v1064 = vunpack.c.l.s4 1983009808
  %v1065 = vunpack.c.0.s8 %v1064
  %v1066 = vlaneseq
  %v1067 = vshrl.u32 %v1066, 7
  %v1068 = vsub.s32 %v1065, %v1067
  %v1069 = vrot.slane %v1055, %v1068
  %v1070 = vcombine.low %v1062, %v1069
  %v1071 = vcombine.low %v967, %v981
  %v1072 = vcombine.low %v995, %v1009
  %v1074 = vunpack.c.l.s4 1983009808
  %v1075 = vunpack.c.0.s8 %v1074
  %v1076 = vlaneseq
  %v1077 = vshrl.u32 %v1076, 7
  %v1078 = vsub.s32 %v1075, %v1077
  %v1079 = vrot.slane %v1071, %v1078
  %v1081 = vunpack.c.l.s4 1983009808
  %v1082 = vunpack.c.0.s8 %v1081
  %v1083 = vlaneseq
  %v1084 = vshrl.u32 %v1083, 7
  %v1085 = vsub.s32 %v1082, %v1084
  %v1086 = vrot.slane %v1072, %v1085
  %v1087 = vcombine.low %v1079, %v1086
  %v1090 = vld [vmem:[#allocation3] sm:$0xff]
  %v1091 = vld [vmem:[#allocation3 + $0x8] sm:$0xff]
  %v1092 = vld [vmem:[#allocation3 + $0x10] sm:$0xff]
  %v1093 = vld [vmem:[#allocation3 + $0x18] sm:$0xff]
  %s1094 = scalar_lea.vmem %s1, 256
  %v1095 = vld [vmem:[%s1094] sm:$0xf]
  %v1096 = vld [vmem:[%s1094 + $0x4] sm:$0xf]
  %v1097 = vld [vmem:[%s1094 + $0x8] sm:$0xf]
  %v1098 = vld [vmem:[%s1094 + $0xc] sm:$0xf]
  %v1099 = vld [vmem:[%s1094 + $0x10] sm:$0xf]
  %v1100 = vld [vmem:[%s1094 + $0x14] sm:$0xf]
  %v1101 = vld [vmem:[%s1094 + $0x18] sm:$0xf]
  %v1102 = vld [vmem:[%s1094 + $0x1c] sm:$0xf]
  %v1103 = vld [vmem:[%s1094 + $0x20] sm:$0xf]
  %v1104 = vld [vmem:[%s1094 + $0x24] sm:$0xf]
  %v1105 = vld [vmem:[%s1094 + $0x28] sm:$0xf]
  %v1106 = vld [vmem:[%s1094 + $0x2c] sm:$0xf]
  %v1107 = vld [vmem:[%s1094 + $0x30] sm:$0xf]
  %v1108 = vld [vmem:[%s1094 + $0x34] sm:$0xf]
  %v1109 = vld [vmem:[%s1094 + $0x38] sm:$0xf]
  %v1110 = vld [vmem:[%s1094 + $0x3c] sm:$0xf]
  %v1111 = vld [vmem:[%s1094 + $0x40] sm:$0xf]
  %v1112 = vld [vmem:[%s1094 + $0x44] sm:$0xf]
  %v1113 = vld [vmem:[%s1094 + $0x48] sm:$0xf]
  %v1114 = vld [vmem:[%s1094 + $0x4c] sm:$0xf]
  %v1115 = vld [vmem:[%s1094 + $0x50] sm:$0xf]
  %v1116 = vld [vmem:[%s1094 + $0x54] sm:$0xf]
  %v1117 = vld [vmem:[%s1094 + $0x58] sm:$0xf]
  %v1118 = vld [vmem:[%s1094 + $0x5c] sm:$0xf]
  %v1119 = vld [vmem:[%s1094 + $0x60] sm:$0xf]
  %v1120 = vld [vmem:[%s1094 + $0x64] sm:$0xf]
  %v1121 = vld [vmem:[%s1094 + $0x68] sm:$0xf]
  %v1122 = vld [vmem:[%s1094 + $0x6c] sm:$0xf]
  %v1123 = vld [vmem:[%s1094 + $0x70] sm:$0xf]
  %v1124 = vld [vmem:[%s1094 + $0x74] sm:$0xf]
  %v1125 = vld [vmem:[%s1094 + $0x78] sm:$0xf]
  %v1126 = vld [vmem:[%s1094 + $0x7c] sm:$0xf]
  %v1159 = vunpack.c.l.b16 %v1095
  %v1160 = vunpack.c.l.b16 %v1096
  %v1161 = vunpack.c.l.b16 %v1097
  %v1162 = vunpack.c.l.b16 %v1098
  %v1163 = vunpack.c.l.b16 %v1099
  %v1164 = vunpack.c.l.b16 %v1100
  %v1165 = vunpack.c.l.b16 %v1101
  %v1166 = vunpack.c.l.b16 %v1102
  %v1167 = vunpack.c.l.b16 %v1103
  %v1168 = vunpack.c.l.b16 %v1104
  %v1169 = vunpack.c.l.b16 %v1105
  %v1170 = vunpack.c.l.b16 %v1106
  %v1171 = vunpack.c.l.b16 %v1107
  %v1172 = vunpack.c.l.b16 %v1108
  %v1173 = vunpack.c.l.b16 %v1109
  %v1174 = vunpack.c.l.b16 %v1110
  %v1175 = vunpack.c.l.b16 %v1111
  %v1176 = vunpack.c.l.b16 %v1112
  %v1177 = vunpack.c.l.b16 %v1113
  %v1178 = vunpack.c.l.b16 %v1114
  %v1179 = vunpack.c.l.b16 %v1115
  %v1180 = vunpack.c.l.b16 %v1116
  %v1181 = vunpack.c.l.b16 %v1117
  %v1182 = vunpack.c.l.b16 %v1118
  %v1183 = vunpack.c.l.b16 %v1119
  %v1184 = vunpack.c.l.b16 %v1120
  %v1185 = vunpack.c.l.b16 %v1121
  %v1186 = vunpack.c.l.b16 %v1122
  %v1187 = vunpack.c.l.b16 %v1123
  %v1188 = vunpack.c.l.b16 %v1124
  %v1189 = vunpack.c.l.b16 %v1125
  %v1190 = vunpack.c.l.b16 %v1126
  %v1191 = vpack.c.b16 %v1160, %v1159
  %v1192 = vpack.c.b16 %v1162, %v1161
  %v1193 = vpack.c.b16 %v1164, %v1163
  %v1194 = vpack.c.b16 %v1166, %v1165
  %v1195 = vpack.c.b16 %v1168, %v1167
  %v1196 = vpack.c.b16 %v1170, %v1169
  %v1197 = vpack.c.b16 %v1172, %v1171
  %v1198 = vpack.c.b16 %v1174, %v1173
  %v1199 = vpack.c.b16 %v1176, %v1175
  %v1200 = vpack.c.b16 %v1178, %v1177
  %v1201 = vpack.c.b16 %v1180, %v1179
  %v1202 = vpack.c.b16 %v1182, %v1181
  %v1203 = vpack.c.b16 %v1184, %v1183
  %v1204 = vpack.c.b16 %v1186, %v1185
  %v1205 = vpack.c.b16 %v1188, %v1187
  %v1206 = vpack.c.b16 %v1190, %v1189
  %1223 = vmatprep.subr.bf16.mxu0 0
  %1224 = vmatpush1.bf16.msra.mxu0 %v1191
  %1225 = vmatprep.subr.bf16.mxu0 0
  %1226 = vmatpush1.bf16.msra.mxu0 %v1192
  %1227 = vmatprep.subr.bf16.mxu0 0
  %1228 = vmatpush1.bf16.msra.mxu0 %v1193
  %1229 = vmatprep.subr.bf16.mxu0 0
  %1230 = vmatpush1.bf16.msra.mxu0 %v1194
  %1231 = vmatprep.subr.bf16.mxu0 0
  %1232 = vmatpush1.bf16.msra.mxu0 %v1195
  %1233 = vmatprep.subr.bf16.mxu0 0
  %1234 = vmatpush1.bf16.msra.mxu0 %v1196
  %1235 = vmatprep.subr.bf16.mxu0 0
  %1236 = vmatpush1.bf16.msra.mxu0 %v1197
  %1237 = vmatprep.subr.bf16.mxu0 0
  %1238 = vmatpush1.bf16.msra.mxu0 %v1198
  %1239 = vmatprep.subr.bf16.mxu0 0
  %1240 = vmatpush1.bf16.msra.mxu0 %v1199
  %1241 = vmatprep.subr.bf16.mxu0 0
  %1242 = vmatpush1.bf16.msra.mxu0 %v1200
  %1243 = vmatprep.subr.bf16.mxu0 0
  %1244 = vmatpush1.bf16.msra.mxu0 %v1201
  %1245 = vmatprep.subr.bf16.mxu0 0
  %1246 = vmatpush1.bf16.msra.mxu0 %v1202
  %1247 = vmatprep.subr.bf16.mxu0 0
  %1248 = vmatpush1.bf16.msra.mxu0 %v1203
  %1249 = vmatprep.subr.bf16.mxu0 0
  %1250 = vmatpush1.bf16.msra.mxu0 %v1204
  %1251 = vmatprep.subr.bf16.mxu0 0
  %1252 = vmatpush1.bf16.msra.mxu0 %v1205
  %1253 = vmatprep.subr.bf16.mxu0 0
  %1254 = vmatpush1.bf16.msra.mxu0 %v1206
  %1255 = vmatprep.mubr.bf16.mxu0 %v1070
  %1256 = vmatmul.mubr.bf16.gmra.mrb[0].mxu0 %v1034
  %v1257 = vpop.f32.mrb[0].mxu0
  %v1258 = vadd.f32 0.0, %v1257
  %v1259 = vpop.f32.mrb[0].mxu0
  %v1260 = vpop.f32.mrb[0].mxu0
  %v1261 = vadd.f32 0.0, %v1260
  %v1262 = vpop.f32.mrb[0].mxu0
  %1263 = vmatprep.mubr.bf16.mxu0 %v1087
  %1264 = vmatmul.mubr.bf16.gmra.mrb[0].mxu0 %v1051
  %v1265 = vpop.f32.mrb[0].mxu0
  %v1266 = vadd.f32 0.0, %v1265
  %v1267 = vpop.f32.mrb[0].mxu0
  %v1268 = vpop.f32.mrb[0].mxu0
  %v1269 = vadd.f32 0.0, %v1268
  %v1270 = vpop.f32.mrb[0].mxu0
  %1271 = vdwg.mxu0
  %v1272 = vadd.f32 %v1090, %v1258
  %v1273 = vadd.f32 %v1091, %v1261
  %v1274 = vadd.f32 %v1092, %v1266
  %v1275 = vadd.f32 %v1093, %v1269
  %1276 = vst [vmem:[#allocation3] sm:$0xff] %v1272
  %1277 = vst [vmem:[#allocation3 + $0x8] sm:$0xff] %v1273
  %1278 = vst [vmem:[#allocation3 + $0x10] sm:$0xff] %v1274
  %1279 = vst [vmem:[#allocation3 + $0x18] sm:$0xff] %v1275
  %s1280 = scalar_lea.vmem %s0, 4
  %v1281 = vld [vmem:[%s1280] sm:$0x3]
  %v1282 = vld [vmem:[%s1280 + $0x4] sm:$0x3]
  %v1283 = vld [vmem:[%s1280 + $0x8] sm:$0x3]
  %v1284 = vld [vmem:[%s1280 + $0xc] sm:$0x3]
  %v1285 = vld [vmem:[%s1280 + $0x50] sm:$0x3]
  %v1286 = vld [vmem:[%s1280 + $0x54] sm:$0x3]
  %v1287 = vld [vmem:[%s1280 + $0x58] sm:$0x3]
  %v1288 = vld [vmem:[%s1280 + $0x5c] sm:$0x3]
  %s1289 = scalar_lea.vmem %s0, 24
  %v1290 = vld [vmem:[%s1289] sm:$0x3]
  %v1291 = vld [vmem:[%s1289 + $0x4] sm:$0x3]
  %v1292 = vld [vmem:[%s1289 + $0x8] sm:$0x3]
  %v1293 = vld [vmem:[%s1289 + $0xc] sm:$0x3]
  %v1294 = vld [vmem:[%s1289 + $0x50] sm:$0x3]
  %v1295 = vld [vmem:[%s1289 + $0x54] sm:$0x3]
  %v1296 = vld [vmem:[%s1289 + $0x58] sm:$0x3]
  %v1297 = vld [vmem:[%s1289 + $0x5c] sm:$0x3]
  %v1306 = vcombine.low %v1281, %v1282
  %v1307 = vcombine.low %v1283, %v1284
  %v1309 = vunpack.c.l.s4 1983009808
  %v1310 = vunpack.c.0.s8 %v1309
  %v1311 = vlaneseq
  %v1312 = vshrl.u32 %v1311, 7
  %v1313 = vsub.s32 %v1310, %v1312
  %v1314 = vrot.slane %v1306, %v1313
  %v1316 = vunpack.c.l.s4 1983009808
  %v1317 = vunpack.c.0.s8 %v1316
  %v1318 = vlaneseq
  %v1319 = vshrl.u32 %v1318, 7
  %v1320 = vsub.s32 %v1317, %v1319
  %v1321 = vrot.slane %v1307, %v1320
  %v1322 = vcombine.low %v1314, %v1321
  %v1323 = vcombine.low %v1285, %v1286
  %v1324 = vcombine.low %v1287, %v1288
  %v1326 = vunpack.c.l.s4 1983009808
  %v1327 = vunpack.c.0.s8 %v1326
  %v1328 = vlaneseq
  %v1329 = vshrl.u32 %v1328, 7
  %v1330 = vsub.s32 %v1327, %v1329
  %v1331 = vrot.slane %v1323, %v1330
  %v1333 = vunpack.c.l.s4 1983009808
  %v1334 = vunpack.c.0.s8 %v1333
  %v1335 = vlaneseq
  %v1336 = vshrl.u32 %v1335, 7
  %v1337 = vsub.s32 %v1334, %v1336
  %v1338 = vrot.slane %v1324, %v1337
  %v1339 = vcombine.low %v1331, %v1338
  %v1350 = vcombine.low %v1290, %v1291
  %v1351 = vcombine.low %v1292, %v1293
  %v1353 = vunpack.c.l.s4 1983009808
  %v1354 = vunpack.c.0.s8 %v1353
  %v1355 = vlaneseq
  %v1356 = vshrl.u32 %v1355, 7
  %v1357 = vsub.s32 %v1354, %v1356
  %v1358 = vrot.slane %v1350, %v1357
  %v1360 = vunpack.c.l.s4 1983009808
  %v1361 = vunpack.c.0.s8 %v1360
  %v1362 = vlaneseq
  %v1363 = vshrl.u32 %v1362, 7
  %v1364 = vsub.s32 %v1361, %v1363
  %v1365 = vrot.slane %v1351, %v1364
  %v1366 = vcombine.low %v1358, %v1365
  %v1367 = vcombine.low %v1294, %v1295
  %v1368 = vcombine.low %v1296, %v1297
  %v1370 = vunpack.c.l.s4 1983009808
  %v1371 = vunpack.c.0.s8 %v1370
  %v1372 = vlaneseq
  %v1373 = vshrl.u32 %v1372, 7
  %v1374 = vsub.s32 %v1371, %v1373
  %v1375 = vrot.slane %v1367, %v1374
  %v1377 = vunpack.c.l.s4 1983009808
  %v1378 = vunpack.c.0.s8 %v1377
  %v1379 = vlaneseq
  %v1380 = vshrl.u32 %v1379, 7
  %v1381 = vsub.s32 %v1378, %v1380
  %v1382 = vrot.slane %v1368, %v1381
  %v1383 = vcombine.low %v1375, %v1382
  %v1386 = vld [vmem:[#allocation3] sm:$0xff]
  %v1387 = vld [vmem:[#allocation3 + $0x8] sm:$0xff]
  %v1388 = vld [vmem:[#allocation3 + $0x10] sm:$0xff]
  %v1389 = vld [vmem:[#allocation3 + $0x18] sm:$0xff]
  %s1390 = scalar_lea.vmem %s1, 384
  %v1391 = vld [vmem:[%s1390] sm:$0xf]
  %v1392 = vld [vmem:[%s1390 + $0x4] sm:$0xf]
  %v1393 = vld [vmem:[%s1390 + $0x8] sm:$0xf]
  %v1394 = vld [vmem:[%s1390 + $0xc] sm:$0xf]
  %v1395 = vld [vmem:[%s1390 + $0x10] sm:$0xf]
  %v1396 = vld [vmem:[%s1390 + $0x14] sm:$0xf]
  %v1397 = vld [vmem:[%s1390 + $0x18] sm:$0xf]
  %v1398 = vld [vmem:[%s1390 + $0x1c] sm:$0xf]
  %v1399 = vld [vmem:[%s1390 + $0x20] sm:$0xf]
  %v1400 = vld [vmem:[%s1390 + $0x24] sm:$0xf]
  %v1401 = vld [vmem:[%s1390 + $0x28] sm:$0xf]
  %v1402 = vld [vmem:[%s1390 + $0x2c] sm:$0xf]
  %v1403 = vld [vmem:[%s1390 + $0x30] sm:$0xf]
  %v1404 = vld [vmem:[%s1390 + $0x34] sm:$0xf]
  %v1405 = vld [vmem:[%s1390 + $0x38] sm:$0xf]
  %v1406 = vld [vmem:[%s1390 + $0x3c] sm:$0xf]
  %v1407 = vld [vmem:[%s1390 + $0x40] sm:$0xf]
  %v1408 = vld [vmem:[%s1390 + $0x44] sm:$0xf]
  %v1409 = vld [vmem:[%s1390 + $0x48] sm:$0xf]
  %v1410 = vld [vmem:[%s1390 + $0x4c] sm:$0xf]
  %v1411 = vld [vmem:[%s1390 + $0x50] sm:$0xf]
  %v1412 = vld [vmem:[%s1390 + $0x54] sm:$0xf]
  %v1413 = vld [vmem:[%s1390 + $0x58] sm:$0xf]
  %v1414 = vld [vmem:[%s1390 + $0x5c] sm:$0xf]
  %v1415 = vld [vmem:[%s1390 + $0x60] sm:$0xf]
  %v1416 = vld [vmem:[%s1390 + $0x64] sm:$0xf]
  %v1417 = vld [vmem:[%s1390 + $0x68] sm:$0xf]
  %v1418 = vld [vmem:[%s1390 + $0x6c] sm:$0xf]
  %v1419 = vld [vmem:[%s1390 + $0x70] sm:$0xf]
  %v1420 = vld [vmem:[%s1390 + $0x74] sm:$0xf]
  %v1421 = vld [vmem:[%s1390 + $0x78] sm:$0xf]
  %v1422 = vld [vmem:[%s1390 + $0x7c] sm:$0xf]
  %v1455 = vunpack.c.l.b16 %v1391
  %v1456 = vunpack.c.l.b16 %v1392
  %v1457 = vunpack.c.l.b16 %v1393
  %v1458 = vunpack.c.l.b16 %v1394
  %v1459 = vunpack.c.l.b16 %v1395
  %v1460 = vunpack.c.l.b16 %v1396
  %v1461 = vunpack.c.l.b16 %v1397
  %v1462 = vunpack.c.l.b16 %v1398
  %v1463 = vunpack.c.l.b16 %v1399
  %v1464 = vunpack.c.l.b16 %v1400
  %v1465 = vunpack.c.l.b16 %v1401
  %v1466 = vunpack.c.l.b16 %v1402
  %v1467 = vunpack.c.l.b16 %v1403
  %v1468 = vunpack.c.l.b16 %v1404
  %v1469 = vunpack.c.l.b16 %v1405
  %v1470 = vunpack.c.l.b16 %v1406
  %v1471 = vunpack.c.l.b16 %v1407
  %v1472 = vunpack.c.l.b16 %v1408
  %v1473 = vunpack.c.l.b16 %v1409
  %v1474 = vunpack.c.l.b16 %v1410
  %v1475 = vunpack.c.l.b16 %v1411
  %v1476 = vunpack.c.l.b16 %v1412
  %v1477 = vunpack.c.l.b16 %v1413
  %v1478 = vunpack.c.l.b16 %v1414
  %v1479 = vunpack.c.l.b16 %v1415
  %v1480 = vunpack.c.l.b16 %v1416
  %v1481 = vunpack.c.l.b16 %v1417
  %v1482 = vunpack.c.l.b16 %v1418
  %v1483 = vunpack.c.l.b16 %v1419
  %v1484 = vunpack.c.l.b16 %v1420
  %v1485 = vunpack.c.l.b16 %v1421
  %v1486 = vunpack.c.l.b16 %v1422
  %v1487 = vpack.c.b16 %v1456, %v1455
  %v1488 = vpack.c.b16 %v1458, %v1457
  %v1489 = vpack.c.b16 %v1460, %v1459
  %v1490 = vpack.c.b16 %v1462, %v1461
  %v1491 = vpack.c.b16 %v1464, %v1463
  %v1492 = vpack.c.b16 %v1466, %v1465
  %v1493 = vpack.c.b16 %v1468, %v1467
  %v1494 = vpack.c.b16 %v1470, %v1469
  %v1495 = vpack.c.b16 %v1472, %v1471
  %v1496 = vpack.c.b16 %v1474, %v1473
  %v1497 = vpack.c.b16 %v1476, %v1475
  %v1498 = vpack.c.b16 %v1478, %v1477
  %v1499 = vpack.c.b16 %v1480, %v1479
  %v1500 = vpack.c.b16 %v1482, %v1481
  %v1501 = vpack.c.b16 %v1484, %v1483
  %v1502 = vpack.c.b16 %v1486, %v1485
  %1519 = vmatprep.subr.bf16.mxu0 0
  %1520 = vmatpush1.bf16.msra.mxu0 %v1487
  %1521 = vmatprep.subr.bf16.mxu0 0
  %1522 = vmatpush1.bf16.msra.mxu0 %v1488
  %1523 = vmatprep.subr.bf16.mxu0 0
  %1524 = vmatpush1.bf16.msra.mxu0 %v1489
  %1525 = vmatprep.subr.bf16.mxu0 0
  %1526 = vmatpush1.bf16.msra.mxu0 %v1490
  %1527 = vmatprep.subr.bf16.mxu0 0
  %1528 = vmatpush1.bf16.msra.mxu0 %v1491
  %1529 = vmatprep.subr.bf16.mxu0 0
  %1530 = vmatpush1.bf16.msra.mxu0 %v1492
  %1531 = vmatprep.subr.bf16.mxu0 0
  %1532 = vmatpush1.bf16.msra.mxu0 %v1493
  %1533 = vmatprep.subr.bf16.mxu0 0
  %1534 = vmatpush1.bf16.msra.mxu0 %v1494
  %1535 = vmatprep.subr.bf16.mxu0 0
  %1536 = vmatpush1.bf16.msra.mxu0 %v1495
  %1537 = vmatprep.subr.bf16.mxu0 0
  %1538 = vmatpush1.bf16.msra.mxu0 %v1496
  %1539 = vmatprep.subr.bf16.mxu0 0
  %1540 = vmatpush1.bf16.msra.mxu0 %v1497
  %1541 = vmatprep.subr.bf16.mxu0 0
  %1542 = vmatpush1.bf16.msra.mxu0 %v1498
  %1543 = vmatprep.subr.bf16.mxu0 0
  %1544 = vmatpush1.bf16.msra.mxu0 %v1499
  %1545 = vmatprep.subr.bf16.mxu0 0
  %1546 = vmatpush1.bf16.msra.mxu0 %v1500
  %1547 = vmatprep.subr.bf16.mxu0 0
  %1548 = vmatpush1.bf16.msra.mxu0 %v1501
  %1549 = vmatprep.subr.bf16.mxu0 0
  %1550 = vmatpush1.bf16.msra.mxu0 %v1502
  %1551 = vmatprep.mubr.bf16.mxu0 %v1366
  %1552 = vmatmul.mubr.bf16.gmra.mrb[0].mxu0 %v1322
  %v1553 = vpop.f32.mrb[0].mxu0
  %v1554 = vadd.f32 0.0, %v1553
  %v1555 = vpop.f32.mrb[0].mxu0
  %v1556 = vpop.f32.mrb[0].mxu0
  %v1557 = vadd.f32 0.0, %v1556
  %v1558 = vpop.f32.mrb[0].mxu0
  %1559 = vmatprep.mubr.bf16.mxu0 %v1383
  %1560 = vmatmul.mubr.bf16.gmra.mrb[0].mxu0 %v1339
  %v1561 = vpop.f32.mrb[0].mxu0
  %v1562 = vadd.f32 0.0, %v1561
  %v1563 = vpop.f32.mrb[0].mxu0
  %v1564 = vpop.f32.mrb[0].mxu0
  %v1565 = vadd.f32 0.0, %v1564
  %v1566 = vpop.f32.mrb[0].mxu0
  %1567 = vdwg.mxu0
  %v1568 = vadd.f32 %v1386, %v1554
  %v1569 = vadd.f32 %v1387, %v1557
  %v1570 = vadd.f32 %v1388, %v1562
  %v1571 = vadd.f32 %v1389, %v1565
  %1572 = vst [vmem:[#allocation3] sm:$0xff] %v1568
  %1573 = vst [vmem:[#allocation3 + $0x8] sm:$0xff] %v1569
  %1574 = vst [vmem:[#allocation3 + $0x10] sm:$0xff] %v1570
  %1575 = vst [vmem:[#allocation3 + $0x18] sm:$0xff] %v1571
  %v1576 = vld [vmem:[#allocation3] sm:$0xff]
  %v1577 = vld [vmem:[#allocation3 + $0x8] sm:$0xff]
  %v1578 = vld [vmem:[#allocation3 + $0x10] sm:$0xff]
  %v1579 = vld [vmem:[#allocation3 + $0x18] sm:$0xff]
  %v1580 = vld [vmem:[%s1280] sm:$0x7]
  %v1581 = vld [vmem:[%s1280 + $0x4] sm:$0x7]
  %v1582 = vld [vmem:[%s1280 + $0x8] sm:$0x7]
  %v1583 = vld [vmem:[%s1280 + $0xc] sm:$0x7]
  %v1584 = vld [vmem:[%s1280 + $0x50] sm:$0x7]
  %v1585 = vld [vmem:[%s1280 + $0x54] sm:$0x7]
  %v1586 = vld [vmem:[%s1280 + $0x58] sm:$0x7]
  %v1587 = vld [vmem:[%s1280 + $0x5c] sm:$0x7]
  %v1597 = vunpack.c.l.s4 1983009808
  %v1598 = vunpack.c.0.s8 %v1597
  %v1599 = vlaneseq
  %v1600 = vshrl.u32 %v1599, 7
  %v1601 = vsub.s32 %v1598, %v1600
  %v1602 = vrot.slane %v1580, %v1601
  %v1603 = vcombine.high %v1602, %v1602
  %v1605 = vunpack.c.l.s4 1983009808
  %v1606 = vunpack.c.0.s8 %v1605
  %v1607 = vlaneseq
  %v1608 = vshrl.u32 %v1607, 7
  %v1609 = vsub.s32 %v1606, %v1608
  %v1610 = vrot.slane %v1581, %v1609
  %v1611 = vcombine.high %v1610, %v1610
  %v1613 = vunpack.c.l.s4 1983009808
  %v1614 = vunpack.c.0.s8 %v1613
  %v1615 = vlaneseq
  %v1616 = vshrl.u32 %v1615, 7
  %v1617 = vsub.s32 %v1614, %v1616
  %v1618 = vrot.slane %v1582, %v1617
  %v1619 = vcombine.high %v1618, %v1618
  %v1621 = vunpack.c.l.s4 1983009808
  %v1622 = vunpack.c.0.s8 %v1621
  %v1623 = vlaneseq
  %v1624 = vshrl.u32 %v1623, 7
  %v1625 = vsub.s32 %v1622, %v1624
  %v1626 = vrot.slane %v1583, %v1625
  %v1627 = vcombine.high %v1626, %v1626
  %v1629 = vunpack.c.l.s4 1983009808
  %v1630 = vunpack.c.0.s8 %v1629
  %v1631 = vlaneseq
  %v1632 = vshrl.u32 %v1631, 7
  %v1633 = vsub.s32 %v1630, %v1632
  %v1634 = vrot.slane %v1584, %v1633
  %v1635 = vcombine.high %v1634, %v1634
  %v1637 = vunpack.c.l.s4 1983009808
  %v1638 = vunpack.c.0.s8 %v1637
  %v1639 = vlaneseq
  %v1640 = vshrl.u32 %v1639, 7
  %v1641 = vsub.s32 %v1638, %v1640
  %v1642 = vrot.slane %v1585, %v1641
  %v1643 = vcombine.high %v1642, %v1642
  %v1645 = vunpack.c.l.s4 1983009808
  %v1646 = vunpack.c.0.s8 %v1645
  %v1647 = vlaneseq
  %v1648 = vshrl.u32 %v1647, 7
  %v1649 = vsub.s32 %v1646, %v1648
  %v1650 = vrot.slane %v1586, %v1649
  %v1651 = vcombine.high %v1650, %v1650
  %v1653 = vunpack.c.l.s4 1983009808
  %v1654 = vunpack.c.0.s8 %v1653
  %v1655 = vlaneseq
  %v1656 = vshrl.u32 %v1655, 7
  %v1657 = vsub.s32 %v1654, %v1656
  %v1658 = vrot.slane %v1587, %v1657
  %v1659 = vcombine.high %v1658, %v1658
  %v1661 = vshrl.u32 %v1602, 16
  %v1663 = vrot.slane %v1661, 6
  %v1664 = vshll.u32 %v1602, 16
  %v1666 = vrot.slane %v1664, 7
  %v1667 = vor.u32 %v1663, %v1666
  %v1668 = vrot.slane %v1667, 2
  %v1670 = vshll.u32 %v1603, 16
  %v1672 = vrot.slane %v1670, 7
  %v1673 = vsel %vm417, %v1668, %v1672
  %v1675 = vshrl.u32 %v1610, 16
  %v1677 = vrot.slane %v1675, 6
  %v1678 = vshll.u32 %v1610, 16
  %v1680 = vrot.slane %v1678, 7
  %v1681 = vor.u32 %v1677, %v1680
  %v1682 = vrot.slane %v1681, 2
  %v1684 = vshll.u32 %v1611, 16
  %v1686 = vrot.slane %v1684, 7
  %v1687 = vsel %vm417, %v1682, %v1686
  %v1689 = vshrl.u32 %v1618, 16
  %v1691 = vrot.slane %v1689, 6
  %v1692 = vshll.u32 %v1618, 16
  %v1694 = vrot.slane %v1692, 7
  %v1695 = vor.u32 %v1691, %v1694
  %v1696 = vrot.slane %v1695, 2
  %v1698 = vshll.u32 %v1619, 16
  %v1700 = vrot.slane %v1698, 7
  %v1701 = vsel %vm417, %v1696, %v1700
  %v1703 = vshrl.u32 %v1626, 16
  %v1705 = vrot.slane %v1703, 6
  %v1706 = vshll.u32 %v1626, 16
  %v1708 = vrot.slane %v1706, 7
  %v1709 = vor.u32 %v1705, %v1708
  %v1710 = vrot.slane %v1709, 2
  %v1712 = vshll.u32 %v1627, 16
  %v1714 = vrot.slane %v1712, 7
  %v1715 = vsel %vm417, %v1710, %v1714
  %v1717 = vshrl.u32 %v1634, 16
  %v1719 = vrot.slane %v1717, 6
  %v1720 = vshll.u32 %v1634, 16
  %v1722 = vrot.slane %v1720, 7
  %v1723 = vor.u32 %v1719, %v1722
  %v1724 = vrot.slane %v1723, 2
  %v1726 = vshll.u32 %v1635, 16
  %v1728 = vrot.slane %v1726, 7
  %v1729 = vsel %vm417, %v1724, %v1728
  %v1731 = vshrl.u32 %v1642, 16
  %v1733 = vrot.slane %v1731, 6
  %v1734 = vshll.u32 %v1642, 16
  %v1736 = vrot.slane %v1734, 7
  %v1737 = vor.u32 %v1733, %v1736
  %v1738 = vrot.slane %v1737, 2
  %v1740 = vshll.u32 %v1643, 16
  %v1742 = vrot.slane %v1740, 7
  %v1743 = vsel %vm417, %v1738, %v1742
  %v1745 = vshrl.u32 %v1650, 16
  %v1747 = vrot.slane %v1745, 6
  %v1748 = vshll.u32 %v1650, 16
  %v1750 = vrot.slane %v1748, 7
  %v1751 = vor.u32 %v1747, %v1750
  %v1752 = vrot.slane %v1751, 2
  %v1754 = vshll.u32 %v1651, 16
  %v1756 = vrot.slane %v1754, 7
  %v1757 = vsel %vm417, %v1752, %v1756
  %v1759 = vshrl.u32 %v1658, 16
  %v1761 = vrot.slane %v1759, 6
  %v1762 = vshll.u32 %v1658, 16
  %v1764 = vrot.slane %v1762, 7
  %v1765 = vor.u32 %v1761, %v1764
  %v1766 = vrot.slane %v1765, 2
  %v1768 = vshll.u32 %v1659, 16
  %v1770 = vrot.slane %v1768, 7
  %v1771 = vsel %vm417, %v1766, %v1770
  %v1772 = vld [vmem:[%s2] sm:$0xf]
  %v1773 = vld [vmem:[%s2 + $0x4] sm:$0xf]
  %v1774 = vld [vmem:[%s2 + $0x8] sm:$0xf]
  %v1775 = vld [vmem:[%s2 + $0xc] sm:$0xf]
  %v1776 = vld [vmem:[%s2 + $0x10] sm:$0xf]
  %v1777 = vld [vmem:[%s2 + $0x14] sm:$0xf]
  %v1778 = vld [vmem:[%s2 + $0x18] sm:$0xf]
  %v1779 = vld [vmem:[%s2 + $0x1c] sm:$0xf]
  %v1780 = vld [vmem:[%s2 + $0x20] sm:$0xf]
  %v1781 = vld [vmem:[%s2 + $0x24] sm:$0xf]
  %v1782 = vld [vmem:[%s2 + $0x28] sm:$0xf]
  %v1783 = vld [vmem:[%s2 + $0x2c] sm:$0xf]
  %v1784 = vld [vmem:[%s2 + $0x30] sm:$0xf]
  %v1785 = vld [vmem:[%s2 + $0x34] sm:$0xf]
  %v1786 = vld [vmem:[%s2 + $0x38] sm:$0xf]
  %v1787 = vld [vmem:[%s2 + $0x3c] sm:$0xf]
  %v1788 = vcombine.low %v1673, %v1687
  %v1789 = vcombine.low %v1701, %v1715
  %v1791 = vunpack.c.l.s4 1983009808
  %v1792 = vunpack.c.0.s8 %v1791
  %v1793 = vlaneseq
  %v1794 = vshrl.u32 %v1793, 7
  %v1795 = vsub.s32 %v1792, %v1794
  %v1796 = vrot.slane %v1788, %v1795
  %v1798 = vunpack.c.l.s4 1983009808
  %v1799 = vunpack.c.0.s8 %v1798
  %v1800 = vlaneseq
  %v1801 = vshrl.u32 %v1800, 7
  %v1802 = vsub.s32 %v1799, %v1801
  %v1803 = vrot.slane %v1789, %v1802
  %v1804 = vcombine.low %v1796, %v1803
  %v1805 = vcombine.low %v1729, %v1743
  %v1806 = vcombine.low %v1757, %v1771
  %v1808 = vunpack.c.l.s4 1983009808
  %v1809 = vunpack.c.0.s8 %v1808
  %v1810 = vlaneseq
  %v1811 = vshrl.u32 %v1810, 7
  %v1812 = vsub.s32 %v1809, %v1811
  %v1813 = vrot.slane %v1805, %v1812
  %v1815 = vunpack.c.l.s4 1983009808
  %v1816 = vunpack.c.0.s8 %v1815
  %v1817 = vlaneseq
  %v1818 = vshrl.u32 %v1817, 7
  %v1819 = vsub.s32 %v1816, %v1818
  %v1820 = vrot.slane %v1806, %v1819
  %v1821 = vcombine.low %v1813, %v1820
  %v1840 = vunpack.c.l.b16 %v1772
  %v1841 = vunpack.c.l.b16 %v1773
  %v1842 = vunpack.c.l.b16 %v1774
  %v1843 = vunpack.c.l.b16 %v1775
  %v1844 = vunpack.c.l.b16 %v1776
  %v1845 = vunpack.c.l.b16 %v1777
  %v1846 = vunpack.c.l.b16 %v1778
  %v1847 = vunpack.c.l.b16 %v1779
  %v1848 = vunpack.c.l.b16 %v1780
  %v1849 = vunpack.c.l.b16 %v1781
  %v1850 = vunpack.c.l.b16 %v1782
  %v1851 = vunpack.c.l.b16 %v1783
  %v1852 = vunpack.c.l.b16 %v1784
  %v1853 = vunpack.c.l.b16 %v1785
  %v1854 = vunpack.c.l.b16 %v1786
  %v1855 = vunpack.c.l.b16 %v1787
  %v1856 = vpack.c.b16 %v1841, %v1840
  %v1857 = vpack.c.b16 %v1843, %v1842
  %v1858 = vpack.c.b16 %v1845, %v1844
  %v1859 = vpack.c.b16 %v1847, %v1846
  %v1860 = vpack.c.b16 %v1849, %v1848
  %v1861 = vpack.c.b16 %v1851, %v1850
  %v1862 = vpack.c.b16 %v1853, %v1852
  %v1863 = vpack.c.b16 %v1855, %v1854
  %1872 = vmatprep.subr.bf16.mxu0 0
  %1873 = vmatpush1.bf16.msra.mxu0 %v1856
  %1874 = vmatprep.subr.bf16.mxu0 0
  %1875 = vmatpush1.bf16.msra.mxu0 %v1857
  %1876 = vmatprep.subr.bf16.mxu0 0
  %1877 = vmatpush1.bf16.msra.mxu0 %v1858
  %1878 = vmatprep.subr.bf16.mxu0 0
  %1879 = vmatpush1.bf16.msra.mxu0 %v1859
  %1880 = vmatprep.subr.bf16.mxu0 0
  %1881 = vmatpush1.bf16.msra.mxu0 %v1860
  %1882 = vmatprep.subr.bf16.mxu0 0
  %1883 = vmatpush1.bf16.msra.mxu0 %v1861
  %1884 = vmatprep.subr.bf16.mxu0 0
  %1885 = vmatpush1.bf16.msra.mxu0 %v1862
  %1886 = vmatprep.subr.bf16.mxu0 0
  %1887 = vmatpush1.bf16.msra.mxu0 %v1863
  %1888 = vmatprep.subr.bf16.mxu0 0
  %1889 = vmatpush1.bf16.msra.mxu0 0
  %1890 = vmatprep.subr.bf16.mxu0 0
  %1891 = vmatpush1.bf16.msra.mxu0 0
  %1892 = vmatprep.subr.bf16.mxu0 0
  %1893 = vmatpush1.bf16.msra.mxu0 0
  %1894 = vmatprep.subr.bf16.mxu0 0
  %1895 = vmatpush1.bf16.msra.mxu0 0
  %1896 = vmatprep.subr.bf16.mxu0 0
  %1897 = vmatpush1.bf16.msra.mxu0 0
  %1898 = vmatprep.subr.bf16.mxu0 0
  %1899 = vmatpush1.bf16.msra.mxu0 0
  %1900 = vmatprep.subr.bf16.mxu0 0
  %1901 = vmatpush1.bf16.msra.mxu0 0
  %1902 = vmatprep.subr.bf16.mxu0 0
  %1903 = vmatpush1.bf16.msra.mxu0 0
  %1904 = vmatprep.mubr.bf16.mxu0 0
  %1905 = vmatmul.mubr.bf16.gmra.mrb[0].mxu0 %v1804
  %v1906 = vpop.f32.mrb[0].mxu0
  %v1907 = vadd.f32 0.0, %v1906
  %v1908 = vpop.f32.mrb[0].mxu0
  %v1909 = vpop.f32.mrb[0].mxu0
  %v1910 = vadd.f32 0.0, %v1909
  %v1911 = vpop.f32.mrb[0].mxu0
  %1912 = vmatprep.mubr.bf16.mxu0 0
  %1913 = vmatmul.mubr.bf16.gmra.mrb[0].mxu0 %v1821
  %v1914 = vpop.f32.mrb[0].mxu0
  %v1915 = vadd.f32 0.0, %v1914
  %v1916 = vpop.f32.mrb[0].mxu0
  %v1917 = vpop.f32.mrb[0].mxu0
  %v1918 = vadd.f32 0.0, %v1917
  %v1919 = vpop.f32.mrb[0].mxu0
  %1920 = vdwg.mxu0
  %v1921 = vadd.f32 %v1576, %v1907
  %v1922 = vadd.f32 %v1577, %v1910
  %v1923 = vadd.f32 %v1578, %v1915
  %v1924 = vadd.f32 %v1579, %v1918
  %1925 = vst [vmem:[#allocation3] sm:$0xff] %v1921
  %1926 = vst [vmem:[#allocation3 + $0x8] sm:$0xff] %v1922
  %1927 = vst [vmem:[#allocation3 + $0x10] sm:$0xff] %v1923
  %1928 = vst [vmem:[#allocation3 + $0x18] sm:$0xff] %v1924
  %v1929 = vld [vmem:[#allocation3] sm:$0xff]
  %v1930 = vld [vmem:[#allocation3 + $0x8] sm:$0xff]
  %v1931 = vld [vmem:[#allocation3 + $0x10] sm:$0xff]
  %v1932 = vld [vmem:[#allocation3 + $0x18] sm:$0xff]
  %v1933 = vld [vmem:[%s3] sm:$0x1]
  %v1935 = vlaneseq
  %v1936 = vshrl.u32 %v1935, 7
  %v1937 = vsub.s32 0, %v1936
  %v1938 = vrot.slane %v1933, %v1937
  %v1940 = vadd.f32 %v1929, %v1938
  %v1941 = vadd.f32 %v1930, %v1938
  %v1942 = vadd.f32 %v1931, %v1938
  %v1943 = vadd.f32 %v1932, %v1938
  %v1944 = vmax.f32 %v1940, 0.0
  %v1945 = vmax.f32 %v1941, 0.0
  %v1946 = vmax.f32 %v1942, 0.0
  %v1947 = vmax.f32 %v1943, 0.0
  %1948 = vst [vmem:[#allocation2] sm:$0x7] 0
  %1949 = vst [vmem:[#allocation2 + $0x4] sm:$0x7] 0
  %1950 = vst [vmem:[#allocation2 + $0x8] sm:$0x7] 0
  %1951 = vst [vmem:[#allocation2 + $0xc] sm:$0x7] 0
  %1952 = vst [vmem:[#allocation2 + $0x10] sm:$0x7] 0
  %1953 = vst [vmem:[#allocation2 + $0x14] sm:$0x7] 0
  %1954 = vst [vmem:[#allocation2 + $0x18] sm:$0x7] 0
  %1955 = vst [vmem:[#allocation2 + $0x1c] sm:$0x7] 0
  %1956 = vst [vmem:[#allocation2 + $0x20] sm:$0x7] 0
  %1957 = vst [vmem:[#allocation2 + $0x24] sm:$0x7] 0
  %1958 = vst [vmem:[#allocation2 + $0x28] sm:$0x7] 0
  %1959 = vst [vmem:[#allocation2 + $0x2c] sm:$0x7] 0
  %v1964 = vcombine.high %v1944, %v1944
  %v1965 = vcombine.high %v1945, %v1945
  %v1966 = vcombine.high %v1946, %v1946
  %v1967 = vcombine.high %v1947, %v1947
  %v1972 = vpack.c.bf16 %v1944, %v1944
  %v1973 = vpack.c.bf16 %v1964, %v1964
  %v1974 = vpack.c.bf16 %v1945, %v1945
  %v1975 = vpack.c.bf16 %v1965, %v1965
  %v1976 = vpack.c.bf16 %v1946, %v1946
  %v1977 = vpack.c.bf16 %v1966, %v1966
  %v1978 = vpack.c.bf16 %v1947, %v1947
  %v1979 = vpack.c.bf16 %v1967, %v1967
  %v1988 = vunpack.c.l.b16 %v1972
  %v1989 = vunpack.c.l.b16 %v1973
  %v1990 = vunpack.c.l.b16 %v1974
  %v1991 = vunpack.c.l.b16 %v1975
  %v1992 = vunpack.c.l.b16 %v1976
  %v1993 = vunpack.c.l.b16 %v1977
  %v1994 = vunpack.c.l.b16 %v1978
  %v1995 = vunpack.c.l.b16 %v1979
  %v1996 = vpack.c.b16 %v1988, %v1988
  %v1997 = vpack.c.b16 %v1989, %v1989
  %v1998 = vpack.c.b16 %v1990, %v1990
  %v1999 = vpack.c.b16 %v1991, %v1991
  %v2000 = vpack.c.b16 %v1992, %v1992
  %v2001 = vpack.c.b16 %v1993, %v1993
  %v2002 = vpack.c.b16 %v1994, %v1994
  %v2003 = vpack.c.b16 %v1995, %v1995
  %v2005 = vshrl.u32 %v1996, 16
  %v2007 = vrot.slane %v2005, 7
  %v2008 = vshll.u32 %v1996, 16
  %v2010 = vor.u32 %v2007, %v2008
  %v2012 = vshrl.u32 %v1997, 16
  %v2014 = vrot.slane %v2012, 7
  %v2015 = vshll.u32 %v1997, 16
  %v2017 = vor.u32 %v2014, %v2015
  %v2019 = vshrl.u32 %v1998, 16
  %v2021 = vrot.slane %v2019, 7
  %v2022 = vshll.u32 %v1998, 16
  %v2024 = vor.u32 %v2021, %v2022
  %v2026 = vshrl.u32 %v1999, 16
  %v2028 = vrot.slane %v2026, 7
  %v2029 = vshll.u32 %v1999, 16
  %v2031 = vor.u32 %v2028, %v2029
  %v2033 = vshrl.u32 %v2000, 16
  %v2035 = vrot.slane %v2033, 7
  %v2036 = vshll.u32 %v2000, 16
  %v2038 = vor.u32 %v2035, %v2036
  %v2040 = vshrl.u32 %v2001, 16
  %v2042 = vrot.slane %v2040, 7
  %v2043 = vshll.u32 %v2001, 16
  %v2045 = vor.u32 %v2042, %v2043
  %v2047 = vshrl.u32 %v2002, 16
  %v2049 = vrot.slane %v2047, 7
  %v2050 = vshll.u32 %v2002, 16
  %v2052 = vor.u32 %v2049, %v2050
  %v2054 = vshrl.u32 %v2003, 16
  %v2056 = vrot.slane %v2054, 7
  %v2057 = vshll.u32 %v2003, 16
  %v2059 = vor.u32 %v2056, %v2057
  %s2068 = scalar_lea.vmem [#allocation2], 4
  %vm2069 = vcmask 1042432
  %vm2070 = vsmask.f32 2306
  %vm2071 = vmand %vm2069, %vm2070
  %v2072 = vld [vmem:[%s2068] sm:$0x7]
  %v2073 = vsel %vm2071, %v2010, %v2072
  %2074 = vst [vmem:[%s2068] sm:$0x7] %v2073
  %v2075 = vld [vmem:[%s2068 + $0x4] sm:$0x7]
  %v2076 = vsel %vm2071, %v2017, %v2075
  %2077 = vst [vmem:[%s2068 + $0x4] sm:$0x7] %v2076
  %v2078 = vld [vmem:[%s2068 + $0x8] sm:$0x7]
  %v2079 = vsel %vm2071, %v2024, %v2078
  %2080 = vst [vmem:[%s2068 + $0x8] sm:$0x7] %v2079
  %v2081 = vld [vmem:[%s2068 + $0xc] sm:$0x7]
  %v2082 = vsel %vm2071, %v2031, %v2081
  %2083 = vst [vmem:[%s2068 + $0xc] sm:$0x7] %v2082
  %v2084 = vld [vmem:[%s2068 + $0x18] sm:$0x7]
  %v2085 = vsel %vm2071, %v2038, %v2084
  %2086 = vst [vmem:[%s2068 + $0x18] sm:$0x7] %v2085
  %v2087 = vld [vmem:[%s2068 + $0x1c] sm:$0x7]
  %v2088 = vsel %vm2071, %v2045, %v2087
  %2089 = vst [vmem:[%s2068 + $0x1c] sm:$0x7] %v2088
  %v2090 = vld [vmem:[%s2068 + $0x20] sm:$0x7]
  %v2091 = vsel %vm2071, %v2052, %v2090
  %2092 = vst [vmem:[%s2068 + $0x20] sm:$0x7] %v2091
  %v2093 = vld [vmem:[%s2068 + $0x24] sm:$0x7]
  %v2094 = vsel %vm2071, %v2059, %v2093
  %2095 = vst [vmem:[%s2068 + $0x24] sm:$0x7] %v2094
  %2096 = vst [vmem:[#allocation3] sm:$0xff] 0.0
  %2097 = vst [vmem:[#allocation3 + $0x8] sm:$0xff] 0.0
  %2098 = vst [vmem:[#allocation3 + $0x10] sm:$0xff] 0.0
  %2099 = vst [vmem:[#allocation3 + $0x18] sm:$0xff] 0.0
  %v2100 = vld [vmem:[#allocation2] sm:$0x3]
  %v2101 = vld [vmem:[#allocation2 + $0x4] sm:$0x3]
  %v2102 = vld [vmem:[#allocation2 + $0x8] sm:$0x3]
  %v2103 = vld [vmem:[#allocation2 + $0xc] sm:$0x3]
  %v2104 = vld [vmem:[#allocation2 + $0x18] sm:$0x3]
  %v2105 = vld [vmem:[#allocation2 + $0x1c] sm:$0x3]
  %v2106 = vld [vmem:[#allocation2 + $0x20] sm:$0x3]
  %v2107 = vld [vmem:[#allocation2 + $0x24] sm:$0x3]
  %v2108 = vld [vmem:[#allocation2] sm:$0x7]
  %v2109 = vld [vmem:[#allocation2 + $0x4] sm:$0x7]
  %v2110 = vld [vmem:[#allocation2 + $0x8] sm:$0x7]
  %v2111 = vld [vmem:[#allocation2 + $0xc] sm:$0x7]
  %v2112 = vld [vmem:[#allocation2 + $0x18] sm:$0x7]
  %v2113 = vld [vmem:[#allocation2 + $0x1c] sm:$0x7]
  %v2114 = vld [vmem:[#allocation2 + $0x20] sm:$0x7]
  %v2115 = vld [vmem:[#allocation2 + $0x24] sm:$0x7]
  %v2125 = vunpack.c.l.s4 1983009808
  %v2126 = vunpack.c.0.s8 %v2125
  %v2127 = vlaneseq
  %v2128 = vshrl.u32 %v2127, 7
  %v2129 = vsub.s32 %v2126, %v2128
  %v2130 = vrot.slane %v2108, %v2129
  %v2131 = vcombine.high %v2130, %v2130
  %v2133 = vunpack.c.l.s4 1983009808
  %v2134 = vunpack.c.0.s8 %v2133
  %v2135 = vlaneseq
  %v2136 = vshrl.u32 %v2135, 7
  %v2137 = vsub.s32 %v2134, %v2136
  %v2138 = vrot.slane %v2109, %v2137
  %v2139 = vcombine.high %v2138, %v2138
  %v2141 = vunpack.c.l.s4 1983009808
  %v2142 = vunpack.c.0.s8 %v2141
  %v2143 = vlaneseq
  %v2144 = vshrl.u32 %v2143, 7
  %v2145 = vsub.s32 %v2142, %v2144
  %v2146 = vrot.slane %v2110, %v2145
  %v2147 = vcombine.high %v2146, %v2146
  %v2149 = vunpack.c.l.s4 1983009808
  %v2150 = vunpack.c.0.s8 %v2149
  %v2151 = vlaneseq
  %v2152 = vshrl.u32 %v2151, 7
  %v2153 = vsub.s32 %v2150, %v2152
  %v2154 = vrot.slane %v2111, %v2153
  %v2155 = vcombine.high %v2154, %v2154
  %v2157 = vunpack.c.l.s4 1983009808
  %v2158 = vunpack.c.0.s8 %v2157
  %v2159 = vlaneseq
  %v2160 = vshrl.u32 %v2159, 7
  %v2161 = vsub.s32 %v2158, %v2160
  %v2162 = vrot.slane %v2112, %v2161
  %v2163 = vcombine.high %v2162, %v2162
  %v2165 = vunpack.c.l.s4 1983009808
  %v2166 = vunpack.c.0.s8 %v2165
  %v2167 = vlaneseq
  %v2168 = vshrl.u32 %v2167, 7
  %v2169 = vsub.s32 %v2166, %v2168
  %v2170 = vrot.slane %v2113, %v2169
  %v2171 = vcombine.high %v2170, %v2170
  %v2173 = vunpack.c.l.s4 1983009808
  %v2174 = vunpack.c.0.s8 %v2173
  %v2175 = vlaneseq
  %v2176 = vshrl.u32 %v2175, 7
  %v2177 = vsub.s32 %v2174, %v2176
  %v2178 = vrot.slane %v2114, %v2177
  %v2179 = vcombine.high %v2178, %v2178
  %v2181 = vunpack.c.l.s4 1983009808
  %v2182 = vunpack.c.0.s8 %v2181
  %v2183 = vlaneseq
  %v2184 = vshrl.u32 %v2183, 7
  %v2185 = vsub.s32 %v2182, %v2184
  %v2186 = vrot.slane %v2115, %v2185
  %v2187 = vcombine.high %v2186, %v2186
  %v2189 = vshrl.u32 %v2130, 16
  %v2191 = vrot.slane %v2189, 6
  %v2192 = vshll.u32 %v2130, 16
  %v2194 = vrot.slane %v2192, 7
  %v2195 = vor.u32 %v2191, %v2194
  %v2196 = vrot.slane %v2195, 2
  %v2198 = vshll.u32 %v2131, 16
  %v2200 = vrot.slane %v2198, 7
  %v2201 = vsel %vm417, %v2196, %v2200
  %v2203 = vshrl.u32 %v2138, 16
  %v2205 = vrot.slane %v2203, 6
  %v2206 = vshll.u32 %v2138, 16
  %v2208 = vrot.slane %v2206, 7
  %v2209 = vor.u32 %v2205, %v2208
  %v2210 = vrot.slane %v2209, 2
  %v2212 = vshll.u32 %v2139, 16
  %v2214 = vrot.slane %v2212, 7
  %v2215 = vsel %vm417, %v2210, %v2214
  %v2217 = vshrl.u32 %v2146, 16
  %v2219 = vrot.slane %v2217, 6
  %v2220 = vshll.u32 %v2146, 16
  %v2222 = vrot.slane %v2220, 7
  %v2223 = vor.u32 %v2219, %v2222
  %v2224 = vrot.slane %v2223, 2
  %v2226 = vshll.u32 %v2147, 16
  %v2228 = vrot.slane %v2226, 7
  %v2229 = vsel %vm417, %v2224, %v2228
  %v2231 = vshrl.u32 %v2154, 16
  %v2233 = vrot.slane %v2231, 6
  %v2234 = vshll.u32 %v2154, 16
  %v2236 = vrot.slane %v2234, 7
  %v2237 = vor.u32 %v2233, %v2236
  %v2238 = vrot.slane %v2237, 2
  %v2240 = vshll.u32 %v2155, 16
  %v2242 = vrot.slane %v2240, 7
  %v2243 = vsel %vm417, %v2238, %v2242
  %v2245 = vshrl.u32 %v2162, 16
  %v2247 = vrot.slane %v2245, 6
  %v2248 = vshll.u32 %v2162, 16
  %v2250 = vrot.slane %v2248, 7
  %v2251 = vor.u32 %v2247, %v2250
  %v2252 = vrot.slane %v2251, 2
  %v2254 = vshll.u32 %v2163, 16
  %v2256 = vrot.slane %v2254, 7
  %v2257 = vsel %vm417, %v2252, %v2256
  %v2259 = vshrl.u32 %v2170, 16
  %v2261 = vrot.slane %v2259, 6
  %v2262 = vshll.u32 %v2170, 16
  %v2264 = vrot.slane %v2262, 7
  %v2265 = vor.u32 %v2261, %v2264
  %v2266 = vrot.slane %v2265, 2
  %v2268 = vshll.u32 %v2171, 16
  %v2270 = vrot.slane %v2268, 7
  %v2271 = vsel %vm417, %v2266, %v2270
  %v2273 = vshrl.u32 %v2178, 16
  %v2275 = vrot.slane %v2273, 6
  %v2276 = vshll.u32 %v2178, 16
  %v2278 = vrot.slane %v2276, 7
  %v2279 = vor.u32 %v2275, %v2278
  %v2280 = vrot.slane %v2279, 2
  %v2282 = vshll.u32 %v2179, 16
  %v2284 = vrot.slane %v2282, 7
  %v2285 = vsel %vm417, %v2280, %v2284
  %v2287 = vshrl.u32 %v2186, 16
  %v2289 = vrot.slane %v2287, 6
  %v2290 = vshll.u32 %v2186, 16
  %v2292 = vrot.slane %v2290, 7
  %v2293 = vor.u32 %v2289, %v2292
  %v2294 = vrot.slane %v2293, 2
  %v2296 = vshll.u32 %v2187, 16
  %v2298 = vrot.slane %v2296, 7
  %v2299 = vsel %vm417, %v2294, %v2298
  %v2308 = vcombine.low %v2100, %v2101
  %v2309 = vcombine.low %v2102, %v2103
  %v2311 = vunpack.c.l.s4 1983009808
  %v2312 = vunpack.c.0.s8 %v2311
  %v2313 = vlaneseq
  %v2314 = vshrl.u32 %v2313, 7
  %v2315 = vsub.s32 %v2312, %v2314
  %v2316 = vrot.slane %v2308, %v2315
  %v2318 = vunpack.c.l.s4 1983009808
  %v2319 = vunpack.c.0.s8 %v2318
  %v2320 = vlaneseq
  %v2321 = vshrl.u32 %v2320, 7
  %v2322 = vsub.s32 %v2319, %v2321
  %v2323 = vrot.slane %v2309, %v2322
  %v2324 = vcombine.low %v2316, %v2323
  %v2325 = vcombine.low %v2104, %v2105
  %v2326 = vcombine.low %v2106, %v2107
  %v2328 = vunpack.c.l.s4 1983009808
  %v2329 = vunpack.c.0.s8 %v2328
  %v2330 = vlaneseq
  %v2331 = vshrl.u32 %v2330, 7
  %v2332 = vsub.s32 %v2329, %v2331
  %v2333 = vrot.slane %v2325, %v2332
  %v2335 = vunpack.c.l.s4 1983009808
  %v2336 = vunpack.c.0.s8 %v2335
  %v2337 = vlaneseq
  %v2338 = vshrl.u32 %v2337, 7
  %v2339 = vsub.s32 %v2336, %v2338
  %v2340 = vrot.slane %v2326, %v2339
  %v2341 = vcombine.low %v2333, %v2340
  %v2344 = vcombine.low %v2201, %v2215
  %v2345 = vcombine.low %v2229, %v2243
  %v2347 = vunpack.c.l.s4 1983009808
  %v2348 = vunpack.c.0.s8 %v2347
  %v2349 = vlaneseq
  %v2350 = vshrl.u32 %v2349, 7
  %v2351 = vsub.s32 %v2348, %v2350
  %v2352 = vrot.slane %v2344, %v2351
  %v2354 = vunpack.c.l.s4 1983009808
  %v2355 = vunpack.c.0.s8 %v2354
  %v2356 = vlaneseq
  %v2357 = vshrl.u32 %v2356, 7
  %v2358 = vsub.s32 %v2355, %v2357
  %v2359 = vrot.slane %v2345, %v2358
  %v2360 = vcombine.low %v2352, %v2359
  %v2361 = vcombine.low %v2257, %v2271
  %v2362 = vcombine.low %v2285, %v2299
  %v2364 = vunpack.c.l.s4 1983009808
  %v2365 = vunpack.c.0.s8 %v2364
  %v2366 = vlaneseq
  %v2367 = vshrl.u32 %v2366, 7
  %v2368 = vsub.s32 %v2365, %v2367
  %v2369 = vrot.slane %v2361, %v2368
  %v2371 = vunpack.c.l.s4 1983009808
  %v2372 = vunpack.c.0.s8 %v2371
  %v2373 = vlaneseq
  %v2374 = vshrl.u32 %v2373, 7
  %v2375 = vsub.s32 %v2372, %v2374
  %v2376 = vrot.slane %v2362, %v2375
  %v2377 = vcombine.low %v2369, %v2376
  %v2380 = vld [vmem:[#allocation3] sm:$0xff]
  %v2381 = vld [vmem:[#allocation3 + $0x8] sm:$0xff]
  %v2382 = vld [vmem:[#allocation3 + $0x10] sm:$0xff]
  %v2383 = vld [vmem:[#allocation3 + $0x18] sm:$0xff]
  %v2384 = vld [vmem:[%s4] sm:$0xf]
  %v2385 = vld [vmem:[%s4 + $0x4] sm:$0xf]
  %v2386 = vld [vmem:[%s4 + $0x8] sm:$0xf]
  %v2387 = vld [vmem:[%s4 + $0xc] sm:$0xf]
  %v2388 = vld [vmem:[%s4 + $0x10] sm:$0xf]
  %v2389 = vld [vmem:[%s4 + $0x14] sm:$0xf]
  %v2390 = vld [vmem:[%s4 + $0x18] sm:$0xf]
  %v2391 = vld [vmem:[%s4 + $0x1c] sm:$0xf]
  %v2392 = vld [vmem:[%s4 + $0x20] sm:$0xf]
  %v2393 = vld [vmem:[%s4 + $0x24] sm:$0xf]
  %v2394 = vld [vmem:[%s4 + $0x28] sm:$0xf]
  %v2395 = vld [vmem:[%s4 + $0x2c] sm:$0xf]
  %v2396 = vld [vmem:[%s4 + $0x30] sm:$0xf]
  %v2397 = vld [vmem:[%s4 + $0x34] sm:$0xf]
  %v2398 = vld [vmem:[%s4 + $0x38] sm:$0xf]
  %v2399 = vld [vmem:[%s4 + $0x3c] sm:$0xf]
  %v2400 = vld [vmem:[%s4 + $0x40] sm:$0xf]
  %v2401 = vld [vmem:[%s4 + $0x44] sm:$0xf]
  %v2402 = vld [vmem:[%s4 + $0x48] sm:$0xf]
  %v2403 = vld [vmem:[%s4 + $0x4c] sm:$0xf]
  %v2404 = vld [vmem:[%s4 + $0x50] sm:$0xf]
  %v2405 = vld [vmem:[%s4 + $0x54] sm:$0xf]
  %v2406 = vld [vmem:[%s4 + $0x58] sm:$0xf]
  %v2407 = vld [vmem:[%s4 + $0x5c] sm:$0xf]
  %v2408 = vld [vmem:[%s4 + $0x60] sm:$0xf]
  %v2409 = vld [vmem:[%s4 + $0x64] sm:$0xf]
  %v2410 = vld [vmem:[%s4 + $0x68] sm:$0xf]
  %v2411 = vld [vmem:[%s4 + $0x6c] sm:$0xf]
  %v2412 = vld [vmem:[%s4 + $0x70] sm:$0xf]
  %v2413 = vld [vmem:[%s4 + $0x74] sm:$0xf]
  %v2414 = vld [vmem:[%s4 + $0x78] sm:$0xf]
  %v2415 = vld [vmem:[%s4 + $0x7c] sm:$0xf]
  %v2448 = vunpack.c.l.b16 %v2384
  %v2449 = vunpack.c.l.b16 %v2385
  %v2450 = vunpack.c.l.b16 %v2386
  %v2451 = vunpack.c.l.b16 %v2387
  %v2452 = vunpack.c.l.b16 %v2388
  %v2453 = vunpack.c.l.b16 %v2389
  %v2454 = vunpack.c.l.b16 %v2390
  %v2455 = vunpack.c.l.b16 %v2391
  %v2456 = vunpack.c.l.b16 %v2392
  %v2457 = vunpack.c.l.b16 %v2393
  %v2458 = vunpack.c.l.b16 %v2394
  %v2459 = vunpack.c.l.b16 %v2395
  %v2460 = vunpack.c.l.b16 %v2396
  %v2461 = vunpack.c.l.b16 %v2397
  %v2462 = vunpack.c.l.b16 %v2398
  %v2463 = vunpack.c.l.b16 %v2399
  %v2464 = vunpack.c.l.b16 %v2400
  %v2465 = vunpack.c.l.b16 %v2401
  %v2466 = vunpack.c.l.b16 %v2402
  %v2467 = vunpack.c.l.b16 %v2403
  %v2468 = vunpack.c.l.b16 %v2404
  %v2469 = vunpack.c.l.b16 %v2405
  %v2470 = vunpack.c.l.b16 %v2406
  %v2471 = vunpack.c.l.b16 %v2407
  %v2472 = vunpack.c.l.b16 %v2408
  %v2473 = vunpack.c.l.b16 %v2409
  %v2474 = vunpack.c.l.b16 %v2410
  %v2475 = vunpack.c.l.b16 %v2411
  %v2476 = vunpack.c.l.b16 %v2412
  %v2477 = vunpack.c.l.b16 %v2413
  %v2478 = vunpack.c.l.b16 %v2414
  %v2479 = vunpack.c.l.b16 %v2415
  %v2480 = vpack.c.b16 %v2449, %v2448
  %v2481 = vpack.c.b16 %v2451, %v2450
  %v2482 = vpack.c.b16 %v2453, %v2452
  %v2483 = vpack.c.b16 %v2455, %v2454
  %v2484 = vpack.c.b16 %v2457, %v2456
  %v2485 = vpack.c.b16 %v2459, %v2458
  %v2486 = vpack.c.b16 %v2461, %v2460
  %v2487 = vpack.c.b16 %v2463, %v2462
  %v2488 = vpack.c.b16 %v2465, %v2464
  %v2489 = vpack.c.b16 %v2467, %v2466
  %v2490 = vpack.c.b16 %v2469, %v2468
  %v2491 = vpack.c.b16 %v2471, %v2470
  %v2492 = vpack.c.b16 %v2473, %v2472
  %v2493 = vpack.c.b16 %v2475, %v2474
  %v2494 = vpack.c.b16 %v2477, %v2476
  %v2495 = vpack.c.b16 %v2479, %v2478
  %2512 = vmatprep.subr.bf16.mxu0 0
  %2513 = vmatpush1.bf16.msra.mxu0 %v2480
  %2514 = vmatprep.subr.bf16.mxu0 0
  %2515 = vmatpush1.bf16.msra.mxu0 %v2481
  %2516 = vmatprep.subr.bf16.mxu0 0
  %2517 = vmatpush1.bf16.msra.mxu0 %v2482
  %2518 = vmatprep.subr.bf16.mxu0 0
  %2519 = vmatpush1.bf16.msra.mxu0 %v2483
  %2520 = vmatprep.subr.bf16.mxu0 0
  %2521 = vmatpush1.bf16.msra.mxu0 %v2484
  %2522 = vmatprep.subr.bf16.mxu0 0
  %2523 = vmatpush1.bf16.msra.mxu0 %v2485
  %2524 = vmatprep.subr.bf16.mxu0 0
  %2525 = vmatpush1.bf16.msra.mxu0 %v2486
  %2526 = vmatprep.subr.bf16.mxu0 0
  %2527 = vmatpush1.bf16.msra.mxu0 %v2487
  %2528 = vmatprep.subr.bf16.mxu0 0
  %2529 = vmatpush1.bf16.msra.mxu0 %v2488
  %2530 = vmatprep.subr.bf16.mxu0 0
  %2531 = vmatpush1.bf16.msra.mxu0 %v2489
  %2532 = vmatprep.subr.bf16.mxu0 0
  %2533 = vmatpush1.bf16.msra.mxu0 %v2490
  %2534 = vmatprep.subr.bf16.mxu0 0
  %2535 = vmatpush1.bf16.msra.mxu0 %v2491
  %2536 = vmatprep.subr.bf16.mxu0 0
  %2537 = vmatpush1.bf16.msra.mxu0 %v2492
  %2538 = vmatprep.subr.bf16.mxu0 0
  %2539 = vmatpush1.bf16.msra.mxu0 %v2493
  %2540 = vmatprep.subr.bf16.mxu0 0
  %2541 = vmatpush1.bf16.msra.mxu0 %v2494
  %2542 = vmatprep.subr.bf16.mxu0 0
  %2543 = vmatpush1.bf16.msra.mxu0 %v2495
  %2544 = vmatprep.mubr.bf16.mxu0 %v2360
  %2545 = vmatmul.mubr.bf16.gmra.mrb[0].mxu0 %v2324
  %v2546 = vpop.f32.mrb[0].mxu0
  %v2547 = vadd.f32 0.0, %v2546
  %v2548 = vpop.f32.mrb[0].mxu0
  %v2549 = vpop.f32.mrb[0].mxu0
  %v2550 = vadd.f32 0.0, %v2549
  %v2551 = vpop.f32.mrb[0].mxu0
  %2552 = vmatprep.mubr.bf16.mxu0 %v2377
  %2553 = vmatmul.mubr.bf16.gmra.mrb[0].mxu0 %v2341
  %v2554 = vpop.f32.mrb[0].mxu0
  %v2555 = vadd.f32 0.0, %v2554
  %v2556 = vpop.f32.mrb[0].mxu0
  %v2557 = vpop.f32.mrb[0].mxu0
  %v2558 = vadd.f32 0.0, %v2557
  %v2559 = vpop.f32.mrb[0].mxu0
  %2560 = vdwg.mxu0
  %v2561 = vadd.f32 %v2380, %v2547
  %v2562 = vadd.f32 %v2381, %v2550
  %v2563 = vadd.f32 %v2382, %v2555
  %v2564 = vadd.f32 %v2383, %v2558
  %2565 = vst [vmem:[#allocation3] sm:$0xff] %v2561
  %2566 = vst [vmem:[#allocation3 + $0x8] sm:$0xff] %v2562
  %2567 = vst [vmem:[#allocation3 + $0x10] sm:$0xff] %v2563
  %2568 = vst [vmem:[#allocation3 + $0x18] sm:$0xff] %v2564
  %v2569 = vld [vmem:[#allocation2] sm:$0x6]
  %v2570 = vld [vmem:[#allocation2 + $0x4] sm:$0x6]
  %v2571 = vld [vmem:[#allocation2 + $0x8] sm:$0x6]
  %v2572 = vld [vmem:[#allocation2 + $0xc] sm:$0x6]
  %v2573 = vld [vmem:[#allocation2 + $0x18] sm:$0x6]
  %v2574 = vld [vmem:[#allocation2 + $0x1c] sm:$0x6]
  %v2575 = vld [vmem:[#allocation2 + $0x20] sm:$0x6]
  %v2576 = vld [vmem:[#allocation2 + $0x24] sm:$0x6]
  %v2586 = vunpack.c.l.s4 1983009808
  %v2587 = vunpack.c.0.s8 %v2586
  %v2588 = vlaneseq
  %v2589 = vshrl.u32 %v2588, 7
  %v2590 = vsub.s32 %v2587, %v2589
  %v2591 = vrot.slane %v2569, %v2590
  %v2592 = vcombine.high %v2591, %v2591
  %v2594 = vunpack.c.l.s4 1983009808
  %v2595 = vunpack.c.0.s8 %v2594
  %v2596 = vlaneseq
  %v2597 = vshrl.u32 %v2596, 7
  %v2598 = vsub.s32 %v2595, %v2597
  %v2599 = vrot.slane %v2570, %v2598
  %v2600 = vcombine.high %v2599, %v2599
  %v2602 = vunpack.c.l.s4 1983009808
  %v2603 = vunpack.c.0.s8 %v2602
  %v2604 = vlaneseq
  %v2605 = vshrl.u32 %v2604, 7
  %v2606 = vsub.s32 %v2603, %v2605
  %v2607 = vrot.slane %v2571, %v2606
  %v2608 = vcombine.high %v2607, %v2607
  %v2610 = vunpack.c.l.s4 1983009808
  %v2611 = vunpack.c.0.s8 %v2610
  %v2612 = vlaneseq
  %v2613 = vshrl.u32 %v2612, 7
  %v2614 = vsub.s32 %v2611, %v2613
  %v2615 = vrot.slane %v2572, %v2614
  %v2616 = vcombine.high %v2615, %v2615
  %v2618 = vunpack.c.l.s4 1983009808
  %v2619 = vunpack.c.0.s8 %v2618
  %v2620 = vlaneseq
  %v2621 = vshrl.u32 %v2620, 7
  %v2622 = vsub.s32 %v2619, %v2621
  %v2623 = vrot.slane %v2573, %v2622
  %v2624 = vcombine.high %v2623, %v2623
  %v2626 = vunpack.c.l.s4 1983009808
  %v2627 = vunpack.c.0.s8 %v2626
  %v2628 = vlaneseq
  %v2629 = vshrl.u32 %v2628, 7
  %v2630 = vsub.s32 %v2627, %v2629
  %v2631 = vrot.slane %v2574, %v2630
  %v2632 = vcombine.high %v2631, %v2631
  %v2634 = vunpack.c.l.s4 1983009808
  %v2635 = vunpack.c.0.s8 %v2634
  %v2636 = vlaneseq
  %v2637 = vshrl.u32 %v2636, 7
  %v2638 = vsub.s32 %v2635, %v2637
  %v2639 = vrot.slane %v2575, %v2638
  %v2640 = vcombine.high %v2639, %v2639
  %v2642 = vunpack.c.l.s4 1983009808
  %v2643 = vunpack.c.0.s8 %v2642
  %v2644 = vlaneseq
  %v2645 = vshrl.u32 %v2644, 7
  %v2646 = vsub.s32 %v2643, %v2645
  %v2647 = vrot.slane %v2576, %v2646
  %v2648 = vcombine.high %v2647, %v2647
  %vm2649 = vcmask 1040384
  %vm2650 = vcmask 1042434
  %vm2651 = vmor %vm2649, %vm2650
  %vm2652 = vcmask 1044484
  %vm2653 = vmor %vm2651, %vm2652
  %vm2654 = vcmask 1046534
  %vm2655 = vmor %vm2653, %vm2654
  %v2656 = vrot.slane %v2591, 7
  %v2657 = vrot.slane %v2656, 2
  %v2658 = vrot.slane %v2592, 7
  %v2659 = vsel %vm2655, %v2657, %v2658
  %v2660 = vrot.slane %v2599, 7
  %v2661 = vrot.slane %v2660, 2
  %v2662 = vrot.slane %v2600, 7
  %v2663 = vsel %vm2655, %v2661, %v2662
  %v2664 = vrot.slane %v2607, 7
  %v2665 = vrot.slane %v2664, 2
  %v2666 = vrot.slane %v2608, 7
  %v2667 = vsel %vm2655, %v2665, %v2666
  %v2668 = vrot.slane %v2615, 7
  %v2669 = vrot.slane %v2668, 2
  %v2670 = vrot.slane %v2616, 7
  %v2671 = vsel %vm2655, %v2669, %v2670
  %v2672 = vrot.slane %v2623, 7
  %v2673 = vrot.slane %v2672, 2
  %v2674 = vrot.slane %v2624, 7
  %v2675 = vsel %vm2655, %v2673, %v2674
  %v2676 = vrot.slane %v2631, 7
  %v2677 = vrot.slane %v2676, 2
  %v2678 = vrot.slane %v2632, 7
  %v2679 = vsel %vm2655, %v2677, %v2678
  %v2680 = vrot.slane %v2639, 7
  %v2681 = vrot.slane %v2680, 2
  %v2682 = vrot.slane %v2640, 7
  %v2683 = vsel %vm2655, %v2681, %v2682
  %v2684 = vrot.slane %v2647, 7
  %v2685 = vrot.slane %v2684, 2
  %v2686 = vrot.slane %v2648, 7
  %v2687 = vsel %vm2655, %v2685, %v2686
  %v2688 = vld [vmem:[%s2068] sm:$0x3]
  %v2689 = vld [vmem:[%s2068 + $0x4] sm:$0x3]
  %v2690 = vld [vmem:[%s2068 + $0x8] sm:$0x3]
  %v2691 = vld [vmem:[%s2068 + $0xc] sm:$0x3]
  %v2692 = vld [vmem:[%s2068 + $0x18] sm:$0x3]
  %v2693 = vld [vmem:[%s2068 + $0x1c] sm:$0x3]
  %v2694 = vld [vmem:[%s2068 + $0x20] sm:$0x3]
  %v2695 = vld [vmem:[%s2068 + $0x24] sm:$0x3]
  %v2696 = vcombine.low %v2659, %v2663
  %v2697 = vcombine.low %v2667, %v2671
  %v2699 = vunpack.c.l.s4 1983009808
  %v2700 = vunpack.c.0.s8 %v2699
  %v2701 = vlaneseq
  %v2702 = vshrl.u32 %v2701, 7
  %v2703 = vsub.s32 %v2700, %v2702
  %v2704 = vrot.slane %v2696, %v2703
  %v2706 = vunpack.c.l.s4 1983009808
  %v2707 = vunpack.c.0.s8 %v2706
  %v2708 = vlaneseq
  %v2709 = vshrl.u32 %v2708, 7
  %v2710 = vsub.s32 %v2707, %v2709
  %v2711 = vrot.slane %v2697, %v2710
  %v2712 = vcombine.low %v2704, %v2711
  %v2713 = vcombine.low %v2675, %v2679
  %v2714 = vcombine.low %v2683, %v2687
  %v2716 = vunpack.c.l.s4 1983009808
  %v2717 = vunpack.c.0.s8 %v2716
  %v2718 = vlaneseq
  %v2719 = vshrl.u32 %v2718, 7
  %v2720 = vsub.s32 %v2717, %v2719
  %v2721 = vrot.slane %v2713, %v2720
  %v2723 = vunpack.c.l.s4 1983009808
  %v2724 = vunpack.c.0.s8 %v2723
  %v2725 = vlaneseq
  %v2726 = vshrl.u32 %v2725, 7
  %v2727 = vsub.s32 %v2724, %v2726
  %v2728 = vrot.slane %v2714, %v2727
  %v2729 = vcombine.low %v2721, %v2728
  %v2740 = vcombine.low %v2688, %v2689
  %v2741 = vcombine.low %v2690, %v2691
  %v2743 = vunpack.c.l.s4 1983009808
  %v2744 = vunpack.c.0.s8 %v2743
  %v2745 = vlaneseq
  %v2746 = vshrl.u32 %v2745, 7
  %v2747 = vsub.s32 %v2744, %v2746
  %v2748 = vrot.slane %v2740, %v2747
  %v2750 = vunpack.c.l.s4 1983009808
  %v2751 = vunpack.c.0.s8 %v2750
  %v2752 = vlaneseq
  %v2753 = vshrl.u32 %v2752, 7
  %v2754 = vsub.s32 %v2751, %v2753
  %v2755 = vrot.slane %v2741, %v2754
  %v2756 = vcombine.low %v2748, %v2755
  %v2757 = vcombine.low %v2692, %v2693
  %v2758 = vcombine.low %v2694, %v2695
  %v2760 = vunpack.c.l.s4 1983009808
  %v2761 = vunpack.c.0.s8 %v2760
  %v2762 = vlaneseq
  %v2763 = vshrl.u32 %v2762, 7
  %v2764 = vsub.s32 %v2761, %v2763
  %v2765 = vrot.slane %v2757, %v2764
  %v2767 = vunpack.c.l.s4 1983009808
  %v2768 = vunpack.c.0.s8 %v2767
  %v2769 = vlaneseq
  %v2770 = vshrl.u32 %v2769, 7
  %v2771 = vsub.s32 %v2768, %v2770
  %v2772 = vrot.slane %v2758, %v2771
  %v2773 = vcombine.low %v2765, %v2772
  %v2776 = vld [vmem:[#allocation3] sm:$0xff]
  %v2777 = vld [vmem:[#allocation3 + $0x8] sm:$0xff]
  %v2778 = vld [vmem:[#allocation3 + $0x10] sm:$0xff]
  %v2779 = vld [vmem:[#allocation3 + $0x18] sm:$0xff]
  %s2780 = scalar_lea.vmem %s4, 128
  %v2781 = vld [vmem:[%s2780] sm:$0xf]
  %v2782 = vld [vmem:[%s2780 + $0x4] sm:$0xf]
  %v2783 = vld [vmem:[%s2780 + $0x8] sm:$0xf]
  %v2784 = vld [vmem:[%s2780 + $0xc] sm:$0xf]
  %v2785 = vld [vmem:[%s2780 + $0x10] sm:$0xf]
  %v2786 = vld [vmem:[%s2780 + $0x14] sm:$0xf]
  %v2787 = vld [vmem:[%s2780 + $0x18] sm:$0xf]
  %v2788 = vld [vmem:[%s2780 + $0x1c] sm:$0xf]
  %v2789 = vld [vmem:[%s2780 + $0x20] sm:$0xf]
  %v2790 = vld [vmem:[%s2780 + $0x24] sm:$0xf]
  %v2791 = vld [vmem:[%s2780 + $0x28] sm:$0xf]
  %v2792 = vld [vmem:[%s2780 + $0x2c] sm:$0xf]
  %v2793 = vld [vmem:[%s2780 + $0x30] sm:$0xf]
  %v2794 = vld [vmem:[%s2780 + $0x34] sm:$0xf]
  %v2795 = vld [vmem:[%s2780 + $0x38] sm:$0xf]
  %v2796 = vld [vmem:[%s2780 + $0x3c] sm:$0xf]
  %v2797 = vld [vmem:[%s2780 + $0x40] sm:$0xf]
  %v2798 = vld [vmem:[%s2780 + $0x44] sm:$0xf]
  %v2799 = vld [vmem:[%s2780 + $0x48] sm:$0xf]
  %v2800 = vld [vmem:[%s2780 + $0x4c] sm:$0xf]
  %v2801 = vld [vmem:[%s2780 + $0x50] sm:$0xf]
  %v2802 = vld [vmem:[%s2780 + $0x54] sm:$0xf]
  %v2803 = vld [vmem:[%s2780 + $0x58] sm:$0xf]
  %v2804 = vld [vmem:[%s2780 + $0x5c] sm:$0xf]
  %v2805 = vld [vmem:[%s2780 + $0x60] sm:$0xf]
  %v2806 = vld [vmem:[%s2780 + $0x64] sm:$0xf]
  %v2807 = vld [vmem:[%s2780 + $0x68] sm:$0xf]
  %v2808 = vld [vmem:[%s2780 + $0x6c] sm:$0xf]
  %v2809 = vld [vmem:[%s2780 + $0x70] sm:$0xf]
  %v2810 = vld [vmem:[%s2780 + $0x74] sm:$0xf]
  %v2811 = vld [vmem:[%s2780 + $0x78] sm:$0xf]
  %v2812 = vld [vmem:[%s2780 + $0x7c] sm:$0xf]
  %v2845 = vunpack.c.l.b16 %v2781
  %v2846 = vunpack.c.l.b16 %v2782
  %v2847 = vunpack.c.l.b16 %v2783
  %v2848 = vunpack.c.l.b16 %v2784
  %v2849 = vunpack.c.l.b16 %v2785
  %v2850 = vunpack.c.l.b16 %v2786
  %v2851 = vunpack.c.l.b16 %v2787
  %v2852 = vunpack.c.l.b16 %v2788
  %v2853 = vunpack.c.l.b16 %v2789
  %v2854 = vunpack.c.l.b16 %v2790
  %v2855 = vunpack.c.l.b16 %v2791
  %v2856 = vunpack.c.l.b16 %v2792
  %v2857 = vunpack.c.l.b16 %v2793
  %v2858 = vunpack.c.l.b16 %v2794
  %v2859 = vunpack.c.l.b16 %v2795
  %v2860 = vunpack.c.l.b16 %v2796
  %v2861 = vunpack.c.l.b16 %v2797
  %v2862 = vunpack.c.l.b16 %v2798
  %v2863 = vunpack.c.l.b16 %v2799
  %v2864 = vunpack.c.l.b16 %v2800
  %v2865 = vunpack.c.l.b16 %v2801
  %v2866 = vunpack.c.l.b16 %v2802
  %v2867 = vunpack.c.l.b16 %v2803
  %v2868 = vunpack.c.l.b16 %v2804
  %v2869 = vunpack.c.l.b16 %v2805
  %v2870 = vunpack.c.l.b16 %v2806
  %v2871 = vunpack.c.l.b16 %v2807
  %v2872 = vunpack.c.l.b16 %v2808
  %v2873 = vunpack.c.l.b16 %v2809
  %v2874 = vunpack.c.l.b16 %v2810
  %v2875 = vunpack.c.l.b16 %v2811
  %v2876 = vunpack.c.l.b16 %v2812
  %v2877 = vpack.c.b16 %v2846, %v2845
  %v2878 = vpack.c.b16 %v2848, %v2847
  %v2879 = vpack.c.b16 %v2850, %v2849
  %v2880 = vpack.c.b16 %v2852, %v2851
  %v2881 = vpack.c.b16 %v2854, %v2853
  %v2882 = vpack.c.b16 %v2856, %v2855
  %v2883 = vpack.c.b16 %v2858, %v2857
  %v2884 = vpack.c.b16 %v2860, %v2859
  %v2885 = vpack.c.b16 %v2862, %v2861
  %v2886 = vpack.c.b16 %v2864, %v2863
  %v2887 = vpack.c.b16 %v2866, %v2865
  %v2888 = vpack.c.b16 %v2868, %v2867
  %v2889 = vpack.c.b16 %v2870, %v2869
  %v2890 = vpack.c.b16 %v2872, %v2871
  %v2891 = vpack.c.b16 %v2874, %v2873
  %v2892 = vpack.c.b16 %v2876, %v2875
  %2909 = vmatprep.subr.bf16.mxu0 0
  %2910 = vmatpush1.bf16.msra.mxu0 %v2877
  %2911 = vmatprep.subr.bf16.mxu0 0
  %2912 = vmatpush1.bf16.msra.mxu0 %v2878
  %2913 = vmatprep.subr.bf16.mxu0 0
  %2914 = vmatpush1.bf16.msra.mxu0 %v2879
  %2915 = vmatprep.subr.bf16.mxu0 0
  %2916 = vmatpush1.bf16.msra.mxu0 %v2880
  %2917 = vmatprep.subr.bf16.mxu0 0
  %2918 = vmatpush1.bf16.msra.mxu0 %v2881
  %2919 = vmatprep.subr.bf16.mxu0 0
  %2920 = vmatpush1.bf16.msra.mxu0 %v2882
  %2921 = vmatprep.subr.bf16.mxu0 0
  %2922 = vmatpush1.bf16.msra.mxu0 %v2883
  %2923 = vmatprep.subr.bf16.mxu0 0
  %2924 = vmatpush1.bf16.msra.mxu0 %v2884
  %2925 = vmatprep.subr.bf16.mxu0 0
  %2926 = vmatpush1.bf16.msra.mxu0 %v2885
  %2927 = vmatprep.subr.bf16.mxu0 0
  %2928 = vmatpush1.bf16.msra.mxu0 %v2886
  %2929 = vmatprep.subr.bf16.mxu0 0
  %2930 = vmatpush1.bf16.msra.mxu0 %v2887
  %2931 = vmatprep.subr.bf16.mxu0 0
  %2932 = vmatpush1.bf16.msra.mxu0 %v2888
  %2933 = vmatprep.subr.bf16.mxu0 0
  %2934 = vmatpush1.bf16.msra.mxu0 %v2889
  %2935 = vmatprep.subr.bf16.mxu0 0
  %2936 = vmatpush1.bf16.msra.mxu0 %v2890
  %2937 = vmatprep.subr.bf16.mxu0 0
  %2938 = vmatpush1.bf16.msra.mxu0 %v2891
  %2939 = vmatprep.subr.bf16.mxu0 0
  %2940 = vmatpush1.bf16.msra.mxu0 %v2892
  %2941 = vmatprep.mubr.bf16.mxu0 %v2756
  %2942 = vmatmul.mubr.bf16.gmra.mrb[0].mxu0 %v2712
  %v2943 = vpop.f32.mrb[0].mxu0
  %v2944 = vadd.f32 0.0, %v2943
  %v2945 = vpop.f32.mrb[0].mxu0
  %v2946 = vpop.f32.mrb[0].mxu0
  %v2947 = vadd.f32 0.0, %v2946
  %v2948 = vpop.f32.mrb[0].mxu0
  %2949 = vmatprep.mubr.bf16.mxu0 %v2773
  %2950 = vmatmul.mubr.bf16.gmra.mrb[0].mxu0 %v2729
  %v2951 = vpop.f32.mrb[0].mxu0
  %v2952 = vadd.f32 0.0, %v2951
  %v2953 = vpop.f32.mrb[0].mxu0
  %v2954 = vpop.f32.mrb[0].mxu0
  %v2955 = vadd.f32 0.0, %v2954
  %v2956 = vpop.f32.mrb[0].mxu0
  %2957 = vdwg.mxu0
  %v2958 = vadd.f32 %v2776, %v2944
  %v2959 = vadd.f32 %v2777, %v2947
  %v2960 = vadd.f32 %v2778, %v2952
  %v2961 = vadd.f32 %v2779, %v2955
  %2962 = vst [vmem:[#allocation3] sm:$0xff] %v2958
  %2963 = vst [vmem:[#allocation3 + $0x8] sm:$0xff] %v2959
  %2964 = vst [vmem:[#allocation3 + $0x10] sm:$0xff] %v2960
  %2965 = vst [vmem:[#allocation3 + $0x18] sm:$0xff] %v2961
  %v2966 = vld [vmem:[%s2068] sm:$0x7]
  %v2967 = vld [vmem:[%s2068 + $0x4] sm:$0x7]
  %v2968 = vld [vmem:[%s2068 + $0x8] sm:$0x7]
  %v2969 = vld [vmem:[%s2068 + $0xc] sm:$0x7]
  %v2970 = vld [vmem:[%s2068 + $0x18] sm:$0x7]
  %v2971 = vld [vmem:[%s2068 + $0x1c] sm:$0x7]
  %v2972 = vld [vmem:[%s2068 + $0x20] sm:$0x7]
  %v2973 = vld [vmem:[%s2068 + $0x24] sm:$0x7]
  %v2983 = vunpack.c.l.s4 1983009808
  %v2984 = vunpack.c.0.s8 %v2983
  %v2985 = vlaneseq
  %v2986 = vshrl.u32 %v2985, 7
  %v2987 = vsub.s32 %v2984, %v2986
  %v2988 = vrot.slane %v2966, %v2987
  %v2989 = vcombine.high %v2988, %v2988
  %v2991 = vunpack.c.l.s4 1983009808
  %v2992 = vunpack.c.0.s8 %v2991
  %v2993 = vlaneseq
  %v2994 = vshrl.u32 %v2993, 7
  %v2995 = vsub.s32 %v2992, %v2994
  %v2996 = vrot.slane %v2967, %v2995
  %v2997 = vcombine.high %v2996, %v2996
  %v2999 = vunpack.c.l.s4 1983009808
  %v3000 = vunpack.c.0.s8 %v2999
  %v3001 = vlaneseq
  %v3002 = vshrl.u32 %v3001, 7
  %v3003 = vsub.s32 %v3000, %v3002
  %v3004 = vrot.slane %v2968, %v3003
  %v3005 = vcombine.high %v3004, %v3004
  %v3007 = vunpack.c.l.s4 1983009808
  %v3008 = vunpack.c.0.s8 %v3007
  %v3009 = vlaneseq
  %v3010 = vshrl.u32 %v3009, 7
  %v3011 = vsub.s32 %v3008, %v3010
  %v3012 = vrot.slane %v2969, %v3011
  %v3013 = vcombine.high %v3012, %v3012
  %v3015 = vunpack.c.l.s4 1983009808
  %v3016 = vunpack.c.0.s8 %v3015
  %v3017 = vlaneseq
  %v3018 = vshrl.u32 %v3017, 7
  %v3019 = vsub.s32 %v3016, %v3018
  %v3020 = vrot.slane %v2970, %v3019
  %v3021 = vcombine.high %v3020, %v3020
  %v3023 = vunpack.c.l.s4 1983009808
  %v3024 = vunpack.c.0.s8 %v3023
  %v3025 = vlaneseq
  %v3026 = vshrl.u32 %v3025, 7
  %v3027 = vsub.s32 %v3024, %v3026
  %v3028 = vrot.slane %v2971, %v3027
  %v3029 = vcombine.high %v3028, %v3028
  %v3031 = vunpack.c.l.s4 1983009808
  %v3032 = vunpack.c.0.s8 %v3031
  %v3033 = vlaneseq
  %v3034 = vshrl.u32 %v3033, 7
  %v3035 = vsub.s32 %v3032, %v3034
  %v3036 = vrot.slane %v2972, %v3035
  %v3037 = vcombine.high %v3036, %v3036
  %v3039 = vunpack.c.l.s4 1983009808
  %v3040 = vunpack.c.0.s8 %v3039
  %v3041 = vlaneseq
  %v3042 = vshrl.u32 %v3041, 7
  %v3043 = vsub.s32 %v3040, %v3042
  %v3044 = vrot.slane %v2973, %v3043
  %v3045 = vcombine.high %v3044, %v3044
  %v3047 = vshrl.u32 %v2988, 16
  %v3049 = vrot.slane %v3047, 6
  %v3050 = vshll.u32 %v2988, 16
  %v3052 = vrot.slane %v3050, 7
  %v3053 = vor.u32 %v3049, %v3052
  %v3054 = vrot.slane %v3053, 2
  %v3056 = vshll.u32 %v2989, 16
  %v3058 = vrot.slane %v3056, 7
  %v3059 = vsel %vm417, %v3054, %v3058
  %v3061 = vshrl.u32 %v2996, 16
  %v3063 = vrot.slane %v3061, 6
  %v3064 = vshll.u32 %v2996, 16
  %v3066 = vrot.slane %v3064, 7
  %v3067 = vor.u32 %v3063, %v3066
  %v3068 = vrot.slane %v3067, 2
  %v3070 = vshll.u32 %v2997, 16
  %v3072 = vrot.slane %v3070, 7
  %v3073 = vsel %vm417, %v3068, %v3072
  %v3075 = vshrl.u32 %v3004, 16
  %v3077 = vrot.slane %v3075, 6
  %v3078 = vshll.u32 %v3004, 16
  %v3080 = vrot.slane %v3078, 7
  %v3081 = vor.u32 %v3077, %v3080
  %v3082 = vrot.slane %v3081, 2
  %v3084 = vshll.u32 %v3005, 16
  %v3086 = vrot.slane %v3084, 7
  %v3087 = vsel %vm417, %v3082, %v3086
  %v3089 = vshrl.u32 %v3012, 16
  %v3091 = vrot.slane %v3089, 6
  %v3092 = vshll.u32 %v3012, 16
  %v3094 = vrot.slane %v3092, 7
  %v3095 = vor.u32 %v3091, %v3094
  %v3096 = vrot.slane %v3095, 2
  %v3098 = vshll.u32 %v3013, 16
  %v3100 = vrot.slane %v3098, 7
  %v3101 = vsel %vm417, %v3096, %v3100
  %v3103 = vshrl.u32 %v3020, 16
  %v3105 = vrot.slane %v3103, 6
  %v3106 = vshll.u32 %v3020, 16
  %v3108 = vrot.slane %v3106, 7
  %v3109 = vor.u32 %v3105, %v3108
  %v3110 = vrot.slane %v3109, 2
  %v3112 = vshll.u32 %v3021, 16
  %v3114 = vrot.slane %v3112, 7
  %v3115 = vsel %vm417, %v3110, %v3114
  %v3117 = vshrl.u32 %v3028, 16
  %v3119 = vrot.slane %v3117, 6
  %v3120 = vshll.u32 %v3028, 16
  %v3122 = vrot.slane %v3120, 7
  %v3123 = vor.u32 %v3119, %v3122
  %v3124 = vrot.slane %v3123, 2
  %v3126 = vshll.u32 %v3029, 16
  %v3128 = vrot.slane %v3126, 7
  %v3129 = vsel %vm417, %v3124, %v3128
  %v3131 = vshrl.u32 %v3036, 16
  %v3133 = vrot.slane %v3131, 6
  %v3134 = vshll.u32 %v3036, 16
  %v3136 = vrot.slane %v3134, 7
  %v3137 = vor.u32 %v3133, %v3136
  %v3138 = vrot.slane %v3137, 2
  %v3140 = vshll.u32 %v3037, 16
  %v3142 = vrot.slane %v3140, 7
  %v3143 = vsel %vm417, %v3138, %v3142
  %v3145 = vshrl.u32 %v3044, 16
  %v3147 = vrot.slane %v3145, 6
  %v3148 = vshll.u32 %v3044, 16
  %v3150 = vrot.slane %v3148, 7
  %v3151 = vor.u32 %v3147, %v3150
  %v3152 = vrot.slane %v3151, 2
  %v3154 = vshll.u32 %v3045, 16
  %v3156 = vrot.slane %v3154, 7
  %v3157 = vsel %vm417, %v3152, %v3156
  %v3158 = vld [vmem:[%s2068] sm:$0x6]
  %v3159 = vld [vmem:[%s2068 + $0x4] sm:$0x6]
  %v3160 = vld [vmem:[%s2068 + $0x8] sm:$0x6]
  %v3161 = vld [vmem:[%s2068 + $0xc] sm:$0x6]
  %v3162 = vld [vmem:[%s2068 + $0x18] sm:$0x6]
  %v3163 = vld [vmem:[%s2068 + $0x1c] sm:$0x6]
  %v3164 = vld [vmem:[%s2068 + $0x20] sm:$0x6]
  %v3165 = vld [vmem:[%s2068 + $0x24] sm:$0x6]
  %v3175 = vunpack.c.l.s4 1983009808
  %v3176 = vunpack.c.0.s8 %v3175
  %v3177 = vlaneseq
  %v3178 = vshrl.u32 %v3177, 7
  %v3179 = vsub.s32 %v3176, %v3178
  %v3180 = vrot.slane %v3158, %v3179
  %v3181 = vcombine.high %v3180, %v3180
  %v3183 = vunpack.c.l.s4 1983009808
  %v3184 = vunpack.c.0.s8 %v3183
  %v3185 = vlaneseq
  %v3186 = vshrl.u32 %v3185, 7
  %v3187 = vsub.s32 %v3184, %v3186
  %v3188 = vrot.slane %v3159, %v3187
  %v3189 = vcombine.high %v3188, %v3188
  %v3191 = vunpack.c.l.s4 1983009808
  %v3192 = vunpack.c.0.s8 %v3191
  %v3193 = vlaneseq
  %v3194 = vshrl.u32 %v3193, 7
  %v3195 = vsub.s32 %v3192, %v3194
  %v3196 = vrot.slane %v3160, %v3195
  %v3197 = vcombine.high %v3196, %v3196
  %v3199 = vunpack.c.l.s4 1983009808
  %v3200 = vunpack.c.0.s8 %v3199
  %v3201 = vlaneseq
  %v3202 = vshrl.u32 %v3201, 7
  %v3203 = vsub.s32 %v3200, %v3202
  %v3204 = vrot.slane %v3161, %v3203
  %v3205 = vcombine.high %v3204, %v3204
  %v3207 = vunpack.c.l.s4 1983009808
  %v3208 = vunpack.c.0.s8 %v3207
  %v3209 = vlaneseq
  %v3210 = vshrl.u32 %v3209, 7
  %v3211 = vsub.s32 %v3208, %v3210
  %v3212 = vrot.slane %v3162, %v3211
  %v3213 = vcombine.high %v3212, %v3212
  %v3215 = vunpack.c.l.s4 1983009808
  %v3216 = vunpack.c.0.s8 %v3215
  %v3217 = vlaneseq
  %v3218 = vshrl.u32 %v3217, 7
  %v3219 = vsub.s32 %v3216, %v3218
  %v3220 = vrot.slane %v3163, %v3219
  %v3221 = vcombine.high %v3220, %v3220
  %v3223 = vunpack.c.l.s4 1983009808
  %v3224 = vunpack.c.0.s8 %v3223
  %v3225 = vlaneseq
  %v3226 = vshrl.u32 %v3225, 7
  %v3227 = vsub.s32 %v3224, %v3226
  %v3228 = vrot.slane %v3164, %v3227
  %v3229 = vcombine.high %v3228, %v3228
  %v3231 = vunpack.c.l.s4 1983009808
  %v3232 = vunpack.c.0.s8 %v3231
  %v3233 = vlaneseq
  %v3234 = vshrl.u32 %v3233, 7
  %v3235 = vsub.s32 %v3232, %v3234
  %v3236 = vrot.slane %v3165, %v3235
  %v3237 = vcombine.high %v3236, %v3236
  %v3238 = vrot.slane %v3180, 7
  %v3239 = vrot.slane %v3238, 2
  %v3240 = vrot.slane %v3181, 7
  %v3241 = vsel %vm2655, %v3239, %v3240
  %v3242 = vrot.slane %v3188, 7
  %v3243 = vrot.slane %v3242, 2
  %v3244 = vrot.slane %v3189, 7
  %v3245 = vsel %vm2655, %v3243, %v3244
  %v3246 = vrot.slane %v3196, 7
  %v3247 = vrot.slane %v3246, 2
  %v3248 = vrot.slane %v3197, 7
  %v3249 = vsel %vm2655, %v3247, %v3248
  %v3250 = vrot.slane %v3204, 7
  %v3251 = vrot.slane %v3250, 2
  %v3252 = vrot.slane %v3205, 7
  %v3253 = vsel %vm2655, %v3251, %v3252
  %v3254 = vrot.slane %v3212, 7
  %v3255 = vrot.slane %v3254, 2
  %v3256 = vrot.slane %v3213, 7
  %v3257 = vsel %vm2655, %v3255, %v3256
  %v3258 = vrot.slane %v3220, 7
  %v3259 = vrot.slane %v3258, 2
  %v3260 = vrot.slane %v3221, 7
  %v3261 = vsel %vm2655, %v3259, %v3260
  %v3262 = vrot.slane %v3228, 7
  %v3263 = vrot.slane %v3262, 2
  %v3264 = vrot.slane %v3229, 7
  %v3265 = vsel %vm2655, %v3263, %v3264
  %v3266 = vrot.slane %v3236, 7
  %v3267 = vrot.slane %v3266, 2
  %v3268 = vrot.slane %v3237, 7
  %v3269 = vsel %vm2655, %v3267, %v3268
  %v3270 = vcombine.low %v3059, %v3073
  %v3271 = vcombine.low %v3087, %v3101
  %v3273 = vunpack.c.l.s4 1983009808
  %v3274 = vunpack.c.0.s8 %v3273
  %v3275 = vlaneseq
  %v3276 = vshrl.u32 %v3275, 7
  %v3277 = vsub.s32 %v3274, %v3276
  %v3278 = vrot.slane %v3270, %v3277
  %v3280 = vunpack.c.l.s4 1983009808
  %v3281 = vunpack.c.0.s8 %v3280
  %v3282 = vlaneseq
  %v3283 = vshrl.u32 %v3282, 7
  %v3284 = vsub.s32 %v3281, %v3283
  %v3285 = vrot.slane %v3271, %v3284
  %v3286 = vcombine.low %v3278, %v3285
  %v3287 = vcombine.low %v3115, %v3129
  %v3288 = vcombine.low %v3143, %v3157
  %v3290 = vunpack.c.l.s4 1983009808
  %v3291 = vunpack.c.0.s8 %v3290
  %v3292 = vlaneseq
  %v3293 = vshrl.u32 %v3292, 7
  %v3294 = vsub.s32 %v3291, %v3293
  %v3295 = vrot.slane %v3287, %v3294
  %v3297 = vunpack.c.l.s4 1983009808
  %v3298 = vunpack.c.0.s8 %v3297
  %v3299 = vlaneseq
  %v3300 = vshrl.u32 %v3299, 7
  %v3301 = vsub.s32 %v3298, %v3300
  %v3302 = vrot.slane %v3288, %v3301
  %v3303 = vcombine.low %v3295, %v3302
  %v3306 = vcombine.low %v3241, %v3245
  %v3307 = vcombine.low %v3249, %v3253
  %v3309 = vunpack.c.l.s4 1983009808
  %v3310 = vunpack.c.0.s8 %v3309
  %v3311 = vlaneseq
  %v3312 = vshrl.u32 %v3311, 7
  %v3313 = vsub.s32 %v3310, %v3312
  %v3314 = vrot.slane %v3306, %v3313
  %v3316 = vunpack.c.l.s4 1983009808
  %v3317 = vunpack.c.0.s8 %v3316
  %v3318 = vlaneseq
  %v3319 = vshrl.u32 %v3318, 7
  %v3320 = vsub.s32 %v3317, %v3319
  %v3321 = vrot.slane %v3307, %v3320
  %v3322 = vcombine.low %v3314, %v3321
  %v3323 = vcombine.low %v3257, %v3261
  %v3324 = vcombine.low %v3265, %v3269
  %v3326 = vunpack.c.l.s4 1983009808
  %v3327 = vunpack.c.0.s8 %v3326
  %v3328 = vlaneseq
  %v3329 = vshrl.u32 %v3328, 7
  %v3330 = vsub.s32 %v3327, %v3329
  %v3331 = vrot.slane %v3323, %v3330
  %v3333 = vunpack.c.l.s4 1983009808
  %v3334 = vunpack.c.0.s8 %v3333
  %v3335 = vlaneseq
  %v3336 = vshrl.u32 %v3335, 7
  %v3337 = vsub.s32 %v3334, %v3336
  %v3338 = vrot.slane %v3324, %v3337
  %v3339 = vcombine.low %v3331, %v3338
  %v3342 = vld [vmem:[#allocation3] sm:$0xff]
  %v3343 = vld [vmem:[#allocation3 + $0x8] sm:$0xff]
  %v3344 = vld [vmem:[#allocation3 + $0x10] sm:$0xff]
  %v3345 = vld [vmem:[#allocation3 + $0x18] sm:$0xff]
  %s3346 = scalar_lea.vmem %s4, 256
  %v3347 = vld [vmem:[%s3346] sm:$0xf]
  %v3348 = vld [vmem:[%s3346 + $0x4] sm:$0xf]
  %v3349 = vld [vmem:[%s3346 + $0x8] sm:$0xf]
  %v3350 = vld [vmem:[%s3346 + $0xc] sm:$0xf]
  %v3351 = vld [vmem:[%s3346 + $0x10] sm:$0xf]
  %v3352 = vld [vmem:[%s3346 + $0x14] sm:$0xf]
  %v3353 = vld [vmem:[%s3346 + $0x18] sm:$0xf]
  %v3354 = vld [vmem:[%s3346 + $0x1c] sm:$0xf]
  %v3355 = vld [vmem:[%s3346 + $0x20] sm:$0xf]
  %v3356 = vld [vmem:[%s3346 + $0x24] sm:$0xf]
  %v3357 = vld [vmem:[%s3346 + $0x28] sm:$0xf]
  %v3358 = vld [vmem:[%s3346 + $0x2c] sm:$0xf]
  %v3359 = vld [vmem:[%s3346 + $0x30] sm:$0xf]
  %v3360 = vld [vmem:[%s3346 + $0x34] sm:$0xf]
  %v3361 = vld [vmem:[%s3346 + $0x38] sm:$0xf]
  %v3362 = vld [vmem:[%s3346 + $0x3c] sm:$0xf]
  %v3363 = vld [vmem:[%s3346 + $0x40] sm:$0xf]
  %v3364 = vld [vmem:[%s3346 + $0x44] sm:$0xf]
  %v3365 = vld [vmem:[%s3346 + $0x48] sm:$0xf]
  %v3366 = vld [vmem:[%s3346 + $0x4c] sm:$0xf]
  %v3367 = vld [vmem:[%s3346 + $0x50] sm:$0xf]
  %v3368 = vld [vmem:[%s3346 + $0x54] sm:$0xf]
  %v3369 = vld [vmem:[%s3346 + $0x58] sm:$0xf]
  %v3370 = vld [vmem:[%s3346 + $0x5c] sm:$0xf]
  %v3371 = vld [vmem:[%s3346 + $0x60] sm:$0xf]
  %v3372 = vld [vmem:[%s3346 + $0x64] sm:$0xf]
  %v3373 = vld [vmem:[%s3346 + $0x68] sm:$0xf]
  %v3374 = vld [vmem:[%s3346 + $0x6c] sm:$0xf]
  %v3375 = vld [vmem:[%s3346 + $0x70] sm:$0xf]
  %v3376 = vld [vmem:[%s3346 + $0x74] sm:$0xf]
  %v3377 = vld [vmem:[%s3346 + $0x78] sm:$0xf]
  %v3378 = vld [vmem:[%s3346 + $0x7c] sm:$0xf]
  %v3411 = vunpack.c.l.b16 %v3347
  %v3412 = vunpack.c.l.b16 %v3348
  %v3413 = vunpack.c.l.b16 %v3349
  %v3414 = vunpack.c.l.b16 %v3350
  %v3415 = vunpack.c.l.b16 %v3351
  %v3416 = vunpack.c.l.b16 %v3352
  %v3417 = vunpack.c.l.b16 %v3353
  %v3418 = vunpack.c.l.b16 %v3354
  %v3419 = vunpack.c.l.b16 %v3355
  %v3420 = vunpack.c.l.b16 %v3356
  %v3421 = vunpack.c.l.b16 %v3357
  %v3422 = vunpack.c.l.b16 %v3358
  %v3423 = vunpack.c.l.b16 %v3359
  %v3424 = vunpack.c.l.b16 %v3360
  %v3425 = vunpack.c.l.b16 %v3361
  %v3426 = vunpack.c.l.b16 %v3362
  %v3427 = vunpack.c.l.b16 %v3363
  %v3428 = vunpack.c.l.b16 %v3364
  %v3429 = vunpack.c.l.b16 %v3365
  %v3430 = vunpack.c.l.b16 %v3366
  %v3431 = vunpack.c.l.b16 %v3367
  %v3432 = vunpack.c.l.b16 %v3368
  %v3433 = vunpack.c.l.b16 %v3369
  %v3434 = vunpack.c.l.b16 %v3370
  %v3435 = vunpack.c.l.b16 %v3371
  %v3436 = vunpack.c.l.b16 %v3372
  %v3437 = vunpack.c.l.b16 %v3373
  %v3438 = vunpack.c.l.b16 %v3374
  %v3439 = vunpack.c.l.b16 %v3375
  %v3440 = vunpack.c.l.b16 %v3376
  %v3441 = vunpack.c.l.b16 %v3377
  %v3442 = vunpack.c.l.b16 %v3378
  %v3443 = vpack.c.b16 %v3412, %v3411
  %v3444 = vpack.c.b16 %v3414, %v3413
  %v3445 = vpack.c.b16 %v3416, %v3415
  %v3446 = vpack.c.b16 %v3418, %v3417
  %v3447 = vpack.c.b16 %v3420, %v3419
  %v3448 = vpack.c.b16 %v3422, %v3421
  %v3449 = vpack.c.b16 %v3424, %v3423
  %v3450 = vpack.c.b16 %v3426, %v3425
  %v3451 = vpack.c.b16 %v3428, %v3427
  %v3452 = vpack.c.b16 %v3430, %v3429
  %v3453 = vpack.c.b16 %v3432, %v3431
  %v3454 = vpack.c.b16 %v3434, %v3433
  %v3455 = vpack.c.b16 %v3436, %v3435
  %v3456 = vpack.c.b16 %v3438, %v3437
  %v3457 = vpack.c.b16 %v3440, %v3439
  %v3458 = vpack.c.b16 %v3442, %v3441
  %3475 = vmatprep.subr.bf16.mxu0 0
  %3476 = vmatpush1.bf16.msra.mxu0 %v3443
  %3477 = vmatprep.subr.bf16.mxu0 0
  %3478 = vmatpush1.bf16.msra.mxu0 %v3444
  %3479 = vmatprep.subr.bf16.mxu0 0
  %3480 = vmatpush1.bf16.msra.mxu0 %v3445
  %3481 = vmatprep.subr.bf16.mxu0 0
  %3482 = vmatpush1.bf16.msra.mxu0 %v3446
  %3483 = vmatprep.subr.bf16.mxu0 0
  %3484 = vmatpush1.bf16.msra.mxu0 %v3447
  %3485 = vmatprep.subr.bf16.mxu0 0
  %3486 = vmatpush1.bf16.msra.mxu0 %v3448
  %3487 = vmatprep.subr.bf16.mxu0 0
  %3488 = vmatpush1.bf16.msra.mxu0 %v3449
  %3489 = vmatprep.subr.bf16.mxu0 0
  %3490 = vmatpush1.bf16.msra.mxu0 %v3450
  %3491 = vmatprep.subr.bf16.mxu0 0
  %3492 = vmatpush1.bf16.msra.mxu0 %v3451
  %3493 = vmatprep.subr.bf16.mxu0 0
  %3494 = vmatpush1.bf16.msra.mxu0 %v3452
  %3495 = vmatprep.subr.bf16.mxu0 0
  %3496 = vmatpush1.bf16.msra.mxu0 %v3453
  %3497 = vmatprep.subr.bf16.mxu0 0
  %3498 = vmatpush1.bf16.msra.mxu0 %v3454
  %3499 = vmatprep.subr.bf16.mxu0 0
  %3500 = vmatpush1.bf16.msra.mxu0 %v3455
  %3501 = vmatprep.subr.bf16.mxu0 0
  %3502 = vmatpush1.bf16.msra.mxu0 %v3456
  %3503 = vmatprep.subr.bf16.mxu0 0
  %3504 = vmatpush1.bf16.msra.mxu0 %v3457
  %3505 = vmatprep.subr.bf16.mxu0 0
  %3506 = vmatpush1.bf16.msra.mxu0 %v3458
  %3507 = vmatprep.mubr.bf16.mxu0 %v3322
  %3508 = vmatmul.mubr.bf16.gmra.mrb[0].mxu0 %v3286
  %v3509 = vpop.f32.mrb[0].mxu0
  %v3510 = vadd.f32 0.0, %v3509
  %v3511 = vpop.f32.mrb[0].mxu0
  %v3512 = vpop.f32.mrb[0].mxu0
  %v3513 = vadd.f32 0.0, %v3512
  %v3514 = vpop.f32.mrb[0].mxu0
  %3515 = vmatprep.mubr.bf16.mxu0 %v3339
  %3516 = vmatmul.mubr.bf16.gmra.mrb[0].mxu0 %v3303
  %v3517 = vpop.f32.mrb[0].mxu0
  %v3518 = vadd.f32 0.0, %v3517
  %v3519 = vpop.f32.mrb[0].mxu0
  %v3520 = vpop.f32.mrb[0].mxu0
  %v3521 = vadd.f32 0.0, %v3520
  %v3522 = vpop.f32.mrb[0].mxu0
  %3523 = vdwg.mxu0
  %v3524 = vadd.f32 %v3342, %v3510
  %v3525 = vadd.f32 %v3343, %v3513
  %v3526 = vadd.f32 %v3344, %v3518
  %v3527 = vadd.f32 %v3345, %v3521
  %3528 = vst [vmem:[#allocation3] sm:$0xff] %v3524
  %3529 = vst [vmem:[#allocation3 + $0x8] sm:$0xff] %v3525
  %3530 = vst [vmem:[#allocation3 + $0x10] sm:$0xff] %v3526
  %3531 = vst [vmem:[#allocation3 + $0x18] sm:$0xff] %v3527
  %s3532 = scalar_lea.vmem [#allocation2], 8
  %v3533 = vld [vmem:[%s3532] sm:$0x3]
  %v3534 = vld [vmem:[%s3532 + $0x4] sm:$0x3]
  %v3535 = vld [vmem:[%s3532 + $0x8] sm:$0x3]
  %v3536 = vld [vmem:[%s3532 + $0xc] sm:$0x3]
  %v3537 = vld [vmem:[%s3532 + $0x18] sm:$0x3]
  %v3538 = vld [vmem:[%s3532 + $0x1c] sm:$0x3]
  %v3539 = vld [vmem:[%s3532 + $0x20] sm:$0x3]
  %v3540 = vld [vmem:[%s3532 + $0x24] sm:$0x3]
  %v3541 = vld [vmem:[%s3532] sm:$0x7]
  %v3542 = vld [vmem:[%s3532 + $0x4] sm:$0x7]
  %v3543 = vld [vmem:[%s3532 + $0x8] sm:$0x7]
  %v3544 = vld [vmem:[%s3532 + $0xc] sm:$0x7]
  %v3545 = vld [vmem:[%s3532 + $0x18] sm:$0x7]
  %v3546 = vld [vmem:[%s3532 + $0x1c] sm:$0x7]
  %v3547 = vld [vmem:[%s3532 + $0x20] sm:$0x7]
  %v3548 = vld [vmem:[%s3532 + $0x24] sm:$0x7]
  %v3558 = vunpack.c.l.s4 1983009808
  %v3559 = vunpack.c.0.s8 %v3558
  %v3560 = vlaneseq
  %v3561 = vshrl.u32 %v3560, 7
  %v3562 = vsub.s32 %v3559, %v3561
  %v3563 = vrot.slane %v3541, %v3562
  %v3564 = vcombine.high %v3563, %v3563
  %v3566 = vunpack.c.l.s4 1983009808
  %v3567 = vunpack.c.0.s8 %v3566
  %v3568 = vlaneseq
  %v3569 = vshrl.u32 %v3568, 7
  %v3570 = vsub.s32 %v3567, %v3569
  %v3571 = vrot.slane %v3542, %v3570
  %v3572 = vcombine.high %v3571, %v3571
  %v3574 = vunpack.c.l.s4 1983009808
  %v3575 = vunpack.c.0.s8 %v3574
  %v3576 = vlaneseq
  %v3577 = vshrl.u32 %v3576, 7
  %v3578 = vsub.s32 %v3575, %v3577
  %v3579 = vrot.slane %v3543, %v3578
  %v3580 = vcombine.high %v3579, %v3579
  %v3582 = vunpack.c.l.s4 1983009808
  %v3583 = vunpack.c.0.s8 %v3582
  %v3584 = vlaneseq
  %v3585 = vshrl.u32 %v3584, 7
  %v3586 = vsub.s32 %v3583, %v3585
  %v3587 = vrot.slane %v3544, %v3586
  %v3588 = vcombine.high %v3587, %v3587
  %v3590 = vunpack.c.l.s4 1983009808
  %v3591 = vunpack.c.0.s8 %v3590
  %v3592 = vlaneseq
  %v3593 = vshrl.u32 %v3592, 7
  %v3594 = vsub.s32 %v3591, %v3593
  %v3595 = vrot.slane %v3545, %v3594
  %v3596 = vcombine.high %v3595, %v3595
  %v3598 = vunpack.c.l.s4 1983009808
  %v3599 = vunpack.c.0.s8 %v3598
  %v3600 = vlaneseq
  %v3601 = vshrl.u32 %v3600, 7
  %v3602 = vsub.s32 %v3599, %v3601
  %v3603 = vrot.slane %v3546, %v3602
  %v3604 = vcombine.high %v3603, %v3603
  %v3606 = vunpack.c.l.s4 1983009808
  %v3607 = vunpack.c.0.s8 %v3606
  %v3608 = vlaneseq
  %v3609 = vshrl.u32 %v3608, 7
  %v3610 = vsub.s32 %v3607, %v3609
  %v3611 = vrot.slane %v3547, %v3610
  %v3612 = vcombine.high %v3611, %v3611
  %v3614 = vunpack.c.l.s4 1983009808
  %v3615 = vunpack.c.0.s8 %v3614
  %v3616 = vlaneseq
  %v3617 = vshrl.u32 %v3616, 7
  %v3618 = vsub.s32 %v3615, %v3617
  %v3619 = vrot.slane %v3548, %v3618
  %v3620 = vcombine.high %v3619, %v3619
  %v3622 = vshrl.u32 %v3563, 16
  %v3624 = vrot.slane %v3622, 6
  %v3625 = vshll.u32 %v3563, 16
  %v3627 = vrot.slane %v3625, 7
  %v3628 = vor.u32 %v3624, %v3627
  %v3629 = vrot.slane %v3628, 2
  %v3631 = vshll.u32 %v3564, 16
  %v3633 = vrot.slane %v3631, 7
  %v3634 = vsel %vm417, %v3629, %v3633
  %v3636 = vshrl.u32 %v3571, 16
  %v3638 = vrot.slane %v3636, 6
  %v3639 = vshll.u32 %v3571, 16
  %v3641 = vrot.slane %v3639, 7
  %v3642 = vor.u32 %v3638, %v3641
  %v3643 = vrot.slane %v3642, 2
  %v3645 = vshll.u32 %v3572, 16
  %v3647 = vrot.slane %v3645, 7
  %v3648 = vsel %vm417, %v3643, %v3647
  %v3650 = vshrl.u32 %v3579, 16
  %v3652 = vrot.slane %v3650, 6
  %v3653 = vshll.u32 %v3579, 16
  %v3655 = vrot.slane %v3653, 7
  %v3656 = vor.u32 %v3652, %v3655
  %v3657 = vrot.slane %v3656, 2
  %v3659 = vshll.u32 %v3580, 16
  %v3661 = vrot.slane %v3659, 7
  %v3662 = vsel %vm417, %v3657, %v3661
  %v3664 = vshrl.u32 %v3587, 16
  %v3666 = vrot.slane %v3664, 6
  %v3667 = vshll.u32 %v3587, 16
  %v3669 = vrot.slane %v3667, 7
  %v3670 = vor.u32 %v3666, %v3669
  %v3671 = vrot.slane %v3670, 2
  %v3673 = vshll.u32 %v3588, 16
  %v3675 = vrot.slane %v3673, 7
  %v3676 = vsel %vm417, %v3671, %v3675
  %v3678 = vshrl.u32 %v3595, 16
  %v3680 = vrot.slane %v3678, 6
  %v3681 = vshll.u32 %v3595, 16
  %v3683 = vrot.slane %v3681, 7
  %v3684 = vor.u32 %v3680, %v3683
  %v3685 = vrot.slane %v3684, 2
  %v3687 = vshll.u32 %v3596, 16
  %v3689 = vrot.slane %v3687, 7
  %v3690 = vsel %vm417, %v3685, %v3689
  %v3692 = vshrl.u32 %v3603, 16
  %v3694 = vrot.slane %v3692, 6
  %v3695 = vshll.u32 %v3603, 16
  %v3697 = vrot.slane %v3695, 7
  %v3698 = vor.u32 %v3694, %v3697
  %v3699 = vrot.slane %v3698, 2
  %v3701 = vshll.u32 %v3604, 16
  %v3703 = vrot.slane %v3701, 7
  %v3704 = vsel %vm417, %v3699, %v3703
  %v3706 = vshrl.u32 %v3611, 16
  %v3708 = vrot.slane %v3706, 6
  %v3709 = vshll.u32 %v3611, 16
  %v3711 = vrot.slane %v3709, 7
  %v3712 = vor.u32 %v3708, %v3711
  %v3713 = vrot.slane %v3712, 2
  %v3715 = vshll.u32 %v3612, 16
  %v3717 = vrot.slane %v3715, 7
  %v3718 = vsel %vm417, %v3713, %v3717
  %v3720 = vshrl.u32 %v3619, 16
  %v3722 = vrot.slane %v3720, 6
  %v3723 = vshll.u32 %v3619, 16
  %v3725 = vrot.slane %v3723, 7
  %v3726 = vor.u32 %v3722, %v3725
  %v3727 = vrot.slane %v3726, 2
  %v3729 = vshll.u32 %v3620, 16
  %v3731 = vrot.slane %v3729, 7
  %v3732 = vsel %vm417, %v3727, %v3731
  %v3741 = vcombine.low %v3533, %v3534
  %v3742 = vcombine.low %v3535, %v3536
  %v3744 = vunpack.c.l.s4 1983009808
  %v3745 = vunpack.c.0.s8 %v3744
  %v3746 = vlaneseq
  %v3747 = vshrl.u32 %v3746, 7
  %v3748 = vsub.s32 %v3745, %v3747
  %v3749 = vrot.slane %v3741, %v3748
  %v3751 = vunpack.c.l.s4 1983009808
  %v3752 = vunpack.c.0.s8 %v3751
  %v3753 = vlaneseq
  %v3754 = vshrl.u32 %v3753, 7
  %v3755 = vsub.s32 %v3752, %v3754
  %v3756 = vrot.slane %v3742, %v3755
  %v3757 = vcombine.low %v3749, %v3756
  %v3758 = vcombine.low %v3537, %v3538
  %v3759 = vcombine.low %v3539, %v3540
  %v3761 = vunpack.c.l.s4 1983009808
  %v3762 = vunpack.c.0.s8 %v3761
  %v3763 = vlaneseq
  %v3764 = vshrl.u32 %v3763, 7
  %v3765 = vsub.s32 %v3762, %v3764
  %v3766 = vrot.slane %v3758, %v3765
  %v3768 = vunpack.c.l.s4 1983009808
  %v3769 = vunpack.c.0.s8 %v3768
  %v3770 = vlaneseq
  %v3771 = vshrl.u32 %v3770, 7
  %v3772 = vsub.s32 %v3769, %v3771
  %v3773 = vrot.slane %v3759, %v3772
  %v3774 = vcombine.low %v3766, %v3773
  %v3777 = vcombine.low %v3634, %v3648
  %v3778 = vcombine.low %v3662, %v3676
  %v3780 = vunpack.c.l.s4 1983009808
  %v3781 = vunpack.c.0.s8 %v3780
  %v3782 = vlaneseq
  %v3783 = vshrl.u32 %v3782, 7
  %v3784 = vsub.s32 %v3781, %v3783
  %v3785 = vrot.slane %v3777, %v3784
  %v3787 = vunpack.c.l.s4 1983009808
  %v3788 = vunpack.c.0.s8 %v3787
  %v3789 = vlaneseq
  %v3790 = vshrl.u32 %v3789, 7
  %v3791 = vsub.s32 %v3788, %v3790
  %v3792 = vrot.slane %v3778, %v3791
  %v3793 = vcombine.low %v3785, %v3792
  %v3794 = vcombine.low %v3690, %v3704
  %v3795 = vcombine.low %v3718, %v3732
  %v3797 = vunpack.c.l.s4 1983009808
  %v3798 = vunpack.c.0.s8 %v3797
  %v3799 = vlaneseq
  %v3800 = vshrl.u32 %v3799, 7
  %v3801 = vsub.s32 %v3798, %v3800
  %v3802 = vrot.slane %v3794, %v3801
  %v3804 = vunpack.c.l.s4 1983009808
  %v3805 = vunpack.c.0.s8 %v3804
  %v3806 = vlaneseq
  %v3807 = vshrl.u32 %v3806, 7
  %v3808 = vsub.s32 %v3805, %v3807
  %v3809 = vrot.slane %v3795, %v3808
  %v3810 = vcombine.low %v3802, %v3809
  %v3813 = vld [vmem:[#allocation3] sm:$0xff]
  %v3814 = vld [vmem:[#allocation3 + $0x8] sm:$0xff]
  %v3815 = vld [vmem:[#allocation3 + $0x10] sm:$0xff]
  %v3816 = vld [vmem:[#allocation3 + $0x18] sm:$0xff]
  %s3817 = scalar_lea.vmem %s4, 384
  %v3818 = vld [vmem:[%s3817] sm:$0xf]
  %v3819 = vld [vmem:[%s3817 + $0x4] sm:$0xf]
  %v3820 = vld [vmem:[%s3817 + $0x8] sm:$0xf]
  %v3821 = vld [vmem:[%s3817 + $0xc] sm:$0xf]
  %v3822 = vld [vmem:[%s3817 + $0x10] sm:$0xf]
  %v3823 = vld [vmem:[%s3817 + $0x14] sm:$0xf]
  %v3824 = vld [vmem:[%s3817 + $0x18] sm:$0xf]
  %v3825 = vld [vmem:[%s3817 + $0x1c] sm:$0xf]
  %v3826 = vld [vmem:[%s3817 + $0x20] sm:$0xf]
  %v3827 = vld [vmem:[%s3817 + $0x24] sm:$0xf]
  %v3828 = vld [vmem:[%s3817 + $0x28] sm:$0xf]
  %v3829 = vld [vmem:[%s3817 + $0x2c] sm:$0xf]
  %v3830 = vld [vmem:[%s3817 + $0x30] sm:$0xf]
  %v3831 = vld [vmem:[%s3817 + $0x34] sm:$0xf]
  %v3832 = vld [vmem:[%s3817 + $0x38] sm:$0xf]
  %v3833 = vld [vmem:[%s3817 + $0x3c] sm:$0xf]
  %v3834 = vld [vmem:[%s3817 + $0x40] sm:$0xf]
  %v3835 = vld [vmem:[%s3817 + $0x44] sm:$0xf]
  %v3836 = vld [vmem:[%s3817 + $0x48] sm:$0xf]
  %v3837 = vld [vmem:[%s3817 + $0x4c] sm:$0xf]
  %v3838 = vld [vmem:[%s3817 + $0x50] sm:$0xf]
  %v3839 = vld [vmem:[%s3817 + $0x54] sm:$0xf]
  %v3840 = vld [vmem:[%s3817 + $0x58] sm:$0xf]
  %v3841 = vld [vmem:[%s3817 + $0x5c] sm:$0xf]
  %v3842 = vld [vmem:[%s3817 + $0x60] sm:$0xf]
  %v3843 = vld [vmem:[%s3817 + $0x64] sm:$0xf]
  %v3844 = vld [vmem:[%s3817 + $0x68] sm:$0xf]
  %v3845 = vld [vmem:[%s3817 + $0x6c] sm:$0xf]
  %v3846 = vld [vmem:[%s3817 + $0x70] sm:$0xf]
  %v3847 = vld [vmem:[%s3817 + $0x74] sm:$0xf]
  %v3848 = vld [vmem:[%s3817 + $0x78] sm:$0xf]
  %v3849 = vld [vmem:[%s3817 + $0x7c] sm:$0xf]
  %v3882 = vunpack.c.l.b16 %v3818
  %v3883 = vunpack.c.l.b16 %v3819
  %v3884 = vunpack.c.l.b16 %v3820
  %v3885 = vunpack.c.l.b16 %v3821
  %v3886 = vunpack.c.l.b16 %v3822
  %v3887 = vunpack.c.l.b16 %v3823
  %v3888 = vunpack.c.l.b16 %v3824
  %v3889 = vunpack.c.l.b16 %v3825
  %v3890 = vunpack.c.l.b16 %v3826
  %v3891 = vunpack.c.l.b16 %v3827
  %v3892 = vunpack.c.l.b16 %v3828
  %v3893 = vunpack.c.l.b16 %v3829
  %v3894 = vunpack.c.l.b16 %v3830
  %v3895 = vunpack.c.l.b16 %v3831
  %v3896 = vunpack.c.l.b16 %v3832
  %v3897 = vunpack.c.l.b16 %v3833
  %v3898 = vunpack.c.l.b16 %v3834
  %v3899 = vunpack.c.l.b16 %v3835
  %v3900 = vunpack.c.l.b16 %v3836
  %v3901 = vunpack.c.l.b16 %v3837
  %v3902 = vunpack.c.l.b16 %v3838
  %v3903 = vunpack.c.l.b16 %v3839
  %v3904 = vunpack.c.l.b16 %v3840
  %v3905 = vunpack.c.l.b16 %v3841
  %v3906 = vunpack.c.l.b16 %v3842
  %v3907 = vunpack.c.l.b16 %v3843
  %v3908 = vunpack.c.l.b16 %v3844
  %v3909 = vunpack.c.l.b16 %v3845
  %v3910 = vunpack.c.l.b16 %v3846
  %v3911 = vunpack.c.l.b16 %v3847
  %v3912 = vunpack.c.l.b16 %v3848
  %v3913 = vunpack.c.l.b16 %v3849
  %v3914 = vpack.c.b16 %v3883, %v3882
  %v3915 = vpack.c.b16 %v3885, %v3884
  %v3916 = vpack.c.b16 %v3887, %v3886
  %v3917 = vpack.c.b16 %v3889, %v3888
  %v3918 = vpack.c.b16 %v3891, %v3890
  %v3919 = vpack.c.b16 %v3893, %v3892
  %v3920 = vpack.c.b16 %v3895, %v3894
  %v3921 = vpack.c.b16 %v3897, %v3896
  %v3922 = vpack.c.b16 %v3899, %v3898
  %v3923 = vpack.c.b16 %v3901, %v3900
  %v3924 = vpack.c.b16 %v3903, %v3902
  %v3925 = vpack.c.b16 %v3905, %v3904
  %v3926 = vpack.c.b16 %v3907, %v3906
  %v3927 = vpack.c.b16 %v3909, %v3908
  %v3928 = vpack.c.b16 %v3911, %v3910
  %v3929 = vpack.c.b16 %v3913, %v3912
  %3946 = vmatprep.subr.bf16.mxu0 0
  %3947 = vmatpush1.bf16.msra.mxu0 %v3914
  %3948 = vmatprep.subr.bf16.mxu0 0
  %3949 = vmatpush1.bf16.msra.mxu0 %v3915
  %3950 = vmatprep.subr.bf16.mxu0 0
  %3951 = vmatpush1.bf16.msra.mxu0 %v3916
  %3952 = vmatprep.subr.bf16.mxu0 0
  %3953 = vmatpush1.bf16.msra.mxu0 %v3917
  %3954 = vmatprep.subr.bf16.mxu0 0
  %3955 = vmatpush1.bf16.msra.mxu0 %v3918
  %3956 = vmatprep.subr.bf16.mxu0 0
  %3957 = vmatpush1.bf16.msra.mxu0 %v3919
  %3958 = vmatprep.subr.bf16.mxu0 0
  %3959 = vmatpush1.bf16.msra.mxu0 %v3920
  %3960 = vmatprep.subr.bf16.mxu0 0
  %3961 = vmatpush1.bf16.msra.mxu0 %v3921
  %3962 = vmatprep.subr.bf16.mxu0 0
  %3963 = vmatpush1.bf16.msra.mxu0 %v3922
  %3964 = vmatprep.subr.bf16.mxu0 0
  %3965 = vmatpush1.bf16.msra.mxu0 %v3923
  %3966 = vmatprep.subr.bf16.mxu0 0
  %3967 = vmatpush1.bf16.msra.mxu0 %v3924
  %3968 = vmatprep.subr.bf16.mxu0 0
  %3969 = vmatpush1.bf16.msra.mxu0 %v3925
  %3970 = vmatprep.subr.bf16.mxu0 0
  %3971 = vmatpush1.bf16.msra.mxu0 %v3926
  %3972 = vmatprep.subr.bf16.mxu0 0
  %3973 = vmatpush1.bf16.msra.mxu0 %v3927
  %3974 = vmatprep.subr.bf16.mxu0 0
  %3975 = vmatpush1.bf16.msra.mxu0 %v3928
  %3976 = vmatprep.subr.bf16.mxu0 0
  %3977 = vmatpush1.bf16.msra.mxu0 %v3929
  %3978 = vmatprep.mubr.bf16.mxu0 %v3793
  %3979 = vmatmul.mubr.bf16.gmra.mrb[0].mxu0 %v3757
  %v3980 = vpop.f32.mrb[0].mxu0
  %v3981 = vadd.f32 0.0, %v3980
  %v3982 = vpop.f32.mrb[0].mxu0
  %v3983 = vpop.f32.mrb[0].mxu0
  %v3984 = vadd.f32 0.0, %v3983
  %v3985 = vpop.f32.mrb[0].mxu0
  %3986 = vmatprep.mubr.bf16.mxu0 %v3810
  %3987 = vmatmul.mubr.bf16.gmra.mrb[0].mxu0 %v3774
  %v3988 = vpop.f32.mrb[0].mxu0
  %v3989 = vadd.f32 0.0, %v3988
  %v3990 = vpop.f32.mrb[0].mxu0
  %v3991 = vpop.f32.mrb[0].mxu0
  %v3992 = vadd.f32 0.0, %v3991
  %v3993 = vpop.f32.mrb[0].mxu0
  %3994 = vdwg.mxu0
  %v3995 = vadd.f32 %v3813, %v3981
  %v3996 = vadd.f32 %v3814, %v3984
  %v3997 = vadd.f32 %v3815, %v3989
  %v3998 = vadd.f32 %v3816, %v3992
  %3999 = vst [vmem:[#allocation3] sm:$0xff] %v3995
  %4000 = vst [vmem:[#allocation3 + $0x8] sm:$0xff] %v3996
  %4001 = vst [vmem:[#allocation3 + $0x10] sm:$0xff] %v3997
  %4002 = vst [vmem:[#allocation3 + $0x18] sm:$0xff] %v3998
  %v4003 = vld [vmem:[#allocation3] sm:$0xff]
  %v4004 = vld [vmem:[#allocation3 + $0x8] sm:$0xff]
  %v4005 = vld [vmem:[#allocation3 + $0x10] sm:$0xff]
  %v4006 = vld [vmem:[#allocation3 + $0x18] sm:$0xff]
  %v4007 = vld [vmem:[%s3532] sm:$0x6]
  %v4008 = vld [vmem:[%s3532 + $0x4] sm:$0x6]
  %v4009 = vld [vmem:[%s3532 + $0x8] sm:$0x6]
  %v4010 = vld [vmem:[%s3532 + $0xc] sm:$0x6]
  %v4011 = vld [vmem:[%s3532 + $0x18] sm:$0x6]
  %v4012 = vld [vmem:[%s3532 + $0x1c] sm:$0x6]
  %v4013 = vld [vmem:[%s3532 + $0x20] sm:$0x6]
  %v4014 = vld [vmem:[%s3532 + $0x24] sm:$0x6]
  %v4024 = vunpack.c.l.s4 1983009808
  %v4025 = vunpack.c.0.s8 %v4024
  %v4026 = vlaneseq
  %v4027 = vshrl.u32 %v4026, 7
  %v4028 = vsub.s32 %v4025, %v4027
  %v4029 = vrot.slane %v4007, %v4028
  %v4030 = vcombine.high %v4029, %v4029
  %v4032 = vunpack.c.l.s4 1983009808
  %v4033 = vunpack.c.0.s8 %v4032
  %v4034 = vlaneseq
  %v4035 = vshrl.u32 %v4034, 7
  %v4036 = vsub.s32 %v4033, %v4035
  %v4037 = vrot.slane %v4008, %v4036
  %v4038 = vcombine.high %v4037, %v4037
  %v4040 = vunpack.c.l.s4 1983009808
  %v4041 = vunpack.c.0.s8 %v4040
  %v4042 = vlaneseq
  %v4043 = vshrl.u32 %v4042, 7
  %v4044 = vsub.s32 %v4041, %v4043
  %v4045 = vrot.slane %v4009, %v4044
  %v4046 = vcombine.high %v4045, %v4045
  %v4048 = vunpack.c.l.s4 1983009808
  %v4049 = vunpack.c.0.s8 %v4048
  %v4050 = vlaneseq
  %v4051 = vshrl.u32 %v4050, 7
  %v4052 = vsub.s32 %v4049, %v4051
  %v4053 = vrot.slane %v4010, %v4052
  %v4054 = vcombine.high %v4053, %v4053
  %v4056 = vunpack.c.l.s4 1983009808
  %v4057 = vunpack.c.0.s8 %v4056
  %v4058 = vlaneseq
  %v4059 = vshrl.u32 %v4058, 7
  %v4060 = vsub.s32 %v4057, %v4059
  %v4061 = vrot.slane %v4011, %v4060
  %v4062 = vcombine.high %v4061, %v4061
  %v4064 = vunpack.c.l.s4 1983009808
  %v4065 = vunpack.c.0.s8 %v4064
  %v4066 = vlaneseq
  %v4067 = vshrl.u32 %v4066, 7
  %v4068 = vsub.s32 %v4065, %v4067
  %v4069 = vrot.slane %v4012, %v4068
  %v4070 = vcombine.high %v4069, %v4069
  %v4072 = vunpack.c.l.s4 1983009808
  %v4073 = vunpack.c.0.s8 %v4072
  %v4074 = vlaneseq
  %v4075 = vshrl.u32 %v4074, 7
  %v4076 = vsub.s32 %v4073, %v4075
  %v4077 = vrot.slane %v4013, %v4076
  %v4078 = vcombine.high %v4077, %v4077
  %v4080 = vunpack.c.l.s4 1983009808
  %v4081 = vunpack.c.0.s8 %v4080
  %v4082 = vlaneseq
  %v4083 = vshrl.u32 %v4082, 7
  %v4084 = vsub.s32 %v4081, %v4083
  %v4085 = vrot.slane %v4014, %v4084
  %v4086 = vcombine.high %v4085, %v4085
  %v4087 = vrot.slane %v4029, 7
  %v4088 = vrot.slane %v4087, 2
  %v4089 = vrot.slane %v4030, 7
  %v4090 = vsel %vm2655, %v4088, %v4089
  %v4091 = vrot.slane %v4037, 7
  %v4092 = vrot.slane %v4091, 2
  %v4093 = vrot.slane %v4038, 7
  %v4094 = vsel %vm2655, %v4092, %v4093
  %v4095 = vrot.slane %v4045, 7
  %v4096 = vrot.slane %v4095, 2
  %v4097 = vrot.slane %v4046, 7
  %v4098 = vsel %vm2655, %v4096, %v4097
  %v4099 = vrot.slane %v4053, 7
  %v4100 = vrot.slane %v4099, 2
  %v4101 = vrot.slane %v4054, 7
  %v4102 = vsel %vm2655, %v4100, %v4101
  %v4103 = vrot.slane %v4061, 7
  %v4104 = vrot.slane %v4103, 2
  %v4105 = vrot.slane %v4062, 7
  %v4106 = vsel %vm2655, %v4104, %v4105
  %v4107 = vrot.slane %v4069, 7
  %v4108 = vrot.slane %v4107, 2
  %v4109 = vrot.slane %v4070, 7
  %v4110 = vsel %vm2655, %v4108, %v4109
  %v4111 = vrot.slane %v4077, 7
  %v4112 = vrot.slane %v4111, 2
  %v4113 = vrot.slane %v4078, 7
  %v4114 = vsel %vm2655, %v4112, %v4113
  %v4115 = vrot.slane %v4085, 7
  %v4116 = vrot.slane %v4115, 2
  %v4117 = vrot.slane %v4086, 7
  %v4118 = vsel %vm2655, %v4116, %v4117
  %v4119 = vld [vmem:[%s5] sm:$0xf]
  %v4120 = vld [vmem:[%s5 + $0x4] sm:$0xf]
  %v4121 = vld [vmem:[%s5 + $0x8] sm:$0xf]
  %v4122 = vld [vmem:[%s5 + $0xc] sm:$0xf]
  %v4123 = vld [vmem:[%s5 + $0x10] sm:$0xf]
  %v4124 = vld [vmem:[%s5 + $0x14] sm:$0xf]
  %v4125 = vld [vmem:[%s5 + $0x18] sm:$0xf]
  %v4126 = vld [vmem:[%s5 + $0x1c] sm:$0xf]
  %v4127 = vld [vmem:[%s5 + $0x20] sm:$0xf]
  %v4128 = vld [vmem:[%s5 + $0x24] sm:$0xf]
  %v4129 = vld [vmem:[%s5 + $0x28] sm:$0xf]
  %v4130 = vld [vmem:[%s5 + $0x2c] sm:$0xf]
  %v4131 = vld [vmem:[%s5 + $0x30] sm:$0xf]
  %v4132 = vld [vmem:[%s5 + $0x34] sm:$0xf]
  %v4133 = vld [vmem:[%s5 + $0x38] sm:$0xf]
  %v4134 = vld [vmem:[%s5 + $0x3c] sm:$0xf]
  %v4135 = vcombine.low %v4090, %v4094
  %v4136 = vcombine.low %v4098, %v4102
  %v4138 = vunpack.c.l.s4 1983009808
  %v4139 = vunpack.c.0.s8 %v4138
  %v4140 = vlaneseq
  %v4141 = vshrl.u32 %v4140, 7
  %v4142 = vsub.s32 %v4139, %v4141
  %v4143 = vrot.slane %v4135, %v4142
  %v4145 = vunpack.c.l.s4 1983009808
  %v4146 = vunpack.c.0.s8 %v4145
  %v4147 = vlaneseq
  %v4148 = vshrl.u32 %v4147, 7
  %v4149 = vsub.s32 %v4146, %v4148
  %v4150 = vrot.slane %v4136, %v4149
  %v4151 = vcombine.low %v4143, %v4150
  %v4152 = vcombine.low %v4106, %v4110
  %v4153 = vcombine.low %v4114, %v4118
  %v4155 = vunpack.c.l.s4 1983009808
  %v4156 = vunpack.c.0.s8 %v4155
  %v4157 = vlaneseq
  %v4158 = vshrl.u32 %v4157, 7
  %v4159 = vsub.s32 %v4156, %v4158
  %v4160 = vrot.slane %v4152, %v4159
  %v4162 = vunpack.c.l.s4 1983009808
  %v4163 = vunpack.c.0.s8 %v4162
  %v4164 = vlaneseq
  %v4165 = vshrl.u32 %v4164, 7
  %v4166 = vsub.s32 %v4163, %v4165
  %v4167 = vrot.slane %v4153, %v4166
  %v4168 = vcombine.low %v4160, %v4167
  %v4187 = vunpack.c.l.b16 %v4119
  %v4188 = vunpack.c.l.b16 %v4120
  %v4189 = vunpack.c.l.b16 %v4121
  %v4190 = vunpack.c.l.b16 %v4122
  %v4191 = vunpack.c.l.b16 %v4123
  %v4192 = vunpack.c.l.b16 %v4124
  %v4193 = vunpack.c.l.b16 %v4125
  %v4194 = vunpack.c.l.b16 %v4126
  %v4195 = vunpack.c.l.b16 %v4127
  %v4196 = vunpack.c.l.b16 %v4128
  %v4197 = vunpack.c.l.b16 %v4129
  %v4198 = vunpack.c.l.b16 %v4130
  %v4199 = vunpack.c.l.b16 %v4131
  %v4200 = vunpack.c.l.b16 %v4132
  %v4201 = vunpack.c.l.b16 %v4133
  %v4202 = vunpack.c.l.b16 %v4134
  %v4203 = vpack.c.b16 %v4188, %v4187
  %v4204 = vpack.c.b16 %v4190, %v4189
  %v4205 = vpack.c.b16 %v4192, %v4191
  %v4206 = vpack.c.b16 %v4194, %v4193
  %v4207 = vpack.c.b16 %v4196, %v4195
  %v4208 = vpack.c.b16 %v4198, %v4197
  %v4209 = vpack.c.b16 %v4200, %v4199
  %v4210 = vpack.c.b16 %v4202, %v4201
  %4219 = vmatprep.subr.bf16.mxu0 0
  %4220 = vmatpush1.bf16.msra.mxu0 %v4203
  %4221 = vmatprep.subr.bf16.mxu0 0
  %4222 = vmatpush1.bf16.msra.mxu0 %v4204
  %4223 = vmatprep.subr.bf16.mxu0 0
  %4224 = vmatpush1.bf16.msra.mxu0 %v4205
  %4225 = vmatprep.subr.bf16.mxu0 0
  %4226 = vmatpush1.bf16.msra.mxu0 %v4206
  %4227 = vmatprep.subr.bf16.mxu0 0
  %4228 = vmatpush1.bf16.msra.mxu0 %v4207
  %4229 = vmatprep.subr.bf16.mxu0 0
  %4230 = vmatpush1.bf16.msra.mxu0 %v4208
  %4231 = vmatprep.subr.bf16.mxu0 0
  %4232 = vmatpush1.bf16.msra.mxu0 %v4209
  %4233 = vmatprep.subr.bf16.mxu0 0
  %4234 = vmatpush1.bf16.msra.mxu0 %v4210
  %4235 = vmatprep.subr.bf16.mxu0 0
  %4236 = vmatpush1.bf16.msra.mxu0 0
  %4237 = vmatprep.subr.bf16.mxu0 0
  %4238 = vmatpush1.bf16.msra.mxu0 0
  %4239 = vmatprep.subr.bf16.mxu0 0
  %4240 = vmatpush1.bf16.msra.mxu0 0
  %4241 = vmatprep.subr.bf16.mxu0 0
  %4242 = vmatpush1.bf16.msra.mxu0 0
  %4243 = vmatprep.subr.bf16.mxu0 0
  %4244 = vmatpush1.bf16.msra.mxu0 0
  %4245 = vmatprep.subr.bf16.mxu0 0
  %4246 = vmatpush1.bf16.msra.mxu0 0
  %4247 = vmatprep.subr.bf16.mxu0 0
  %4248 = vmatpush1.bf16.msra.mxu0 0
  %4249 = vmatprep.subr.bf16.mxu0 0
  %4250 = vmatpush1.bf16.msra.mxu0 0
  %4251 = vmatprep.mubr.bf16.mxu0 0
  %4252 = vmatmul.mubr.bf16.gmra.mrb[0].mxu0 %v4151
  %v4253 = vpop.f32.mrb[0].mxu0
  %v4254 = vadd.f32 0.0, %v4253
  %v4255 = vpop.f32.mrb[0].mxu0
  %v4256 = vpop.f32.mrb[0].mxu0
  %v4257 = vadd.f32 0.0, %v4256
  %v4258 = vpop.f32.mrb[0].mxu0
  %4259 = vmatprep.mubr.bf16.mxu0 0
  %4260 = vmatmul.mubr.bf16.gmra.mrb[0].mxu0 %v4168
  %v4261 = vpop.f32.mrb[0].mxu0
  %v4262 = vadd.f32 0.0, %v4261
  %v4263 = vpop.f32.mrb[0].mxu0
  %v4264 = vpop.f32.mrb[0].mxu0
  %v4265 = vadd.f32 0.0, %v4264
  %v4266 = vpop.f32.mrb[0].mxu0
  %4267 = vdwg.mxu0
  %v4268 = vadd.f32 %v4003, %v4254
  %v4269 = vadd.f32 %v4004, %v4257
  %v4270 = vadd.f32 %v4005, %v4262
  %v4271 = vadd.f32 %v4006, %v4265
  %4272 = vst [vmem:[#allocation3] sm:$0xff] %v4268
  %4273 = vst [vmem:[#allocation3 + $0x8] sm:$0xff] %v4269
  %4274 = vst [vmem:[#allocation3 + $0x10] sm:$0xff] %v4270
  %4275 = vst [vmem:[#allocation3 + $0x18] sm:$0xff] %v4271
  %v4276 = vld [vmem:[%s809] sm:$0x3]
  %v4277 = vld [vmem:[%s809 + $0x4] sm:$0x3]
  %v4278 = vld [vmem:[%s809 + $0x8] sm:$0x3]
  %v4279 = vld [vmem:[%s809 + $0xc] sm:$0x3]
  %v4280 = vld [vmem:[%s809 + $0x50] sm:$0x3]
  %v4281 = vld [vmem:[%s809 + $0x54] sm:$0x3]
  %v4282 = vld [vmem:[%s809 + $0x58] sm:$0x3]
  %v4283 = vld [vmem:[%s809 + $0x5c] sm:$0x3]
  %v4284 = vld [vmem:[%s7] sm:$0xf]
  %v4285 = vld [vmem:[%s7 + $0x4] sm:$0xf]
  %v4286 = vld [vmem:[%s7 + $0x8] sm:$0xf]
  %v4287 = vld [vmem:[%s7 + $0xc] sm:$0xf]
  %v4288 = vld [vmem:[%s7 + $0x10] sm:$0xf]
  %v4289 = vld [vmem:[%s7 + $0x14] sm:$0xf]
  %v4290 = vld [vmem:[%s7 + $0x18] sm:$0xf]
  %v4291 = vld [vmem:[%s7 + $0x1c] sm:$0xf]
  %v4292 = vld [vmem:[%s7 + $0x20] sm:$0xf]
  %v4293 = vld [vmem:[%s7 + $0x24] sm:$0xf]
  %v4294 = vld [vmem:[%s7 + $0x28] sm:$0xf]
  %v4295 = vld [vmem:[%s7 + $0x2c] sm:$0xf]
  %v4296 = vld [vmem:[%s7 + $0x30] sm:$0xf]
  %v4297 = vld [vmem:[%s7 + $0x34] sm:$0xf]
  %v4298 = vld [vmem:[%s7 + $0x38] sm:$0xf]
  %v4299 = vld [vmem:[%s7 + $0x3c] sm:$0xf]
  %v4300 = vld [vmem:[%s8] sm:$0x1]
  %v4302 = vlaneseq
  %v4303 = vshrl.u32 %v4302, 7
  %v4304 = vsub.s32 0, %v4303
  %v4305 = vrot.slane %v4300, %v4304
  %v4315 = vcombine.low %v4276, %v4277
  %v4316 = vcombine.low %v4278, %v4279
  %v4318 = vunpack.c.l.s4 1983009808
  %v4319 = vunpack.c.0.s8 %v4318
  %v4320 = vlaneseq
  %v4321 = vshrl.u32 %v4320, 7
  %v4322 = vsub.s32 %v4319, %v4321
  %v4323 = vrot.slane %v4315, %v4322
  %v4325 = vunpack.c.l.s4 1983009808
  %v4326 = vunpack.c.0.s8 %v4325
  %v4327 = vlaneseq
  %v4328 = vshrl.u32 %v4327, 7
  %v4329 = vsub.s32 %v4326, %v4328
  %v4330 = vrot.slane %v4316, %v4329
  %v4331 = vcombine.low %v4323, %v4330
  %v4332 = vcombine.low %v4280, %v4281
  %v4333 = vcombine.low %v4282, %v4283
  %v4335 = vunpack.c.l.s4 1983009808
  %v4336 = vunpack.c.0.s8 %v4335
  %v4337 = vlaneseq
  %v4338 = vshrl.u32 %v4337, 7
  %v4339 = vsub.s32 %v4336, %v4338
  %v4340 = vrot.slane %v4332, %v4339
  %v4342 = vunpack.c.l.s4 1983009808
  %v4343 = vunpack.c.0.s8 %v4342
  %v4344 = vlaneseq
  %v4345 = vshrl.u32 %v4344, 7
  %v4346 = vsub.s32 %v4343, %v4345
  %v4347 = vrot.slane %v4333, %v4346
  %v4348 = vcombine.low %v4340, %v4347
  %v4367 = vunpack.c.l.b16 %v4284
  %v4368 = vunpack.c.l.b16 %v4285
  %v4369 = vunpack.c.l.b16 %v4286
  %v4370 = vunpack.c.l.b16 %v4287
  %v4371 = vunpack.c.l.b16 %v4288
  %v4372 = vunpack.c.l.b16 %v4289
  %v4373 = vunpack.c.l.b16 %v4290
  %v4374 = vunpack.c.l.b16 %v4291
  %v4375 = vunpack.c.l.b16 %v4292
  %v4376 = vunpack.c.l.b16 %v4293
  %v4377 = vunpack.c.l.b16 %v4294
  %v4378 = vunpack.c.l.b16 %v4295
  %v4379 = vunpack.c.l.b16 %v4296
  %v4380 = vunpack.c.l.b16 %v4297
  %v4381 = vunpack.c.l.b16 %v4298
  %v4382 = vunpack.c.l.b16 %v4299
  %v4383 = vpack.c.b16 %v4368, %v4367
  %v4384 = vpack.c.b16 %v4370, %v4369
  %v4385 = vpack.c.b16 %v4372, %v4371
  %v4386 = vpack.c.b16 %v4374, %v4373
  %v4387 = vpack.c.b16 %v4376, %v4375
  %v4388 = vpack.c.b16 %v4378, %v4377
  %v4389 = vpack.c.b16 %v4380, %v4379
  %v4390 = vpack.c.b16 %v4382, %v4381
  %4399 = vmatprep.subr.bf16.mxu0 0
  %4400 = vmatpush1.bf16.msra.mxu0 %v4383
  %4401 = vmatprep.subr.bf16.mxu0 0
  %4402 = vmatpush1.bf16.msra.mxu0 %v4384
  %4403 = vmatprep.subr.bf16.mxu0 0
  %4404 = vmatpush1.bf16.msra.mxu0 %v4385
  %4405 = vmatprep.subr.bf16.mxu0 0
  %4406 = vmatpush1.bf16.msra.mxu0 %v4386
  %4407 = vmatprep.subr.bf16.mxu0 0
  %4408 = vmatpush1.bf16.msra.mxu0 %v4387
  %4409 = vmatprep.subr.bf16.mxu0 0
  %4410 = vmatpush1.bf16.msra.mxu0 %v4388
  %4411 = vmatprep.subr.bf16.mxu0 0
  %4412 = vmatpush1.bf16.msra.mxu0 %v4389
  %4413 = vmatprep.subr.bf16.mxu0 0
  %4414 = vmatpush1.bf16.msra.mxu0 %v4390
  %4415 = vmatprep.subr.bf16.mxu0 0
  %4416 = vmatpush1.bf16.msra.mxu0 0
  %4417 = vmatprep.subr.bf16.mxu0 0
  %4418 = vmatpush1.bf16.msra.mxu0 0
  %4419 = vmatprep.subr.bf16.mxu0 0
  %4420 = vmatpush1.bf16.msra.mxu0 0
  %4421 = vmatprep.subr.bf16.mxu0 0
  %4422 = vmatpush1.bf16.msra.mxu0 0
  %4423 = vmatprep.subr.bf16.mxu0 0
  %4424 = vmatpush1.bf16.msra.mxu0 0
  %4425 = vmatprep.subr.bf16.mxu0 0
  %4426 = vmatpush1.bf16.msra.mxu0 0
  %4427 = vmatprep.subr.bf16.mxu0 0
  %4428 = vmatpush1.bf16.msra.mxu0 0
  %4429 = vmatprep.subr.bf16.mxu0 0
  %4430 = vmatpush1.bf16.msra.mxu0 0
  %4431 = vmatprep.mubr.bf16.mxu0 0
  %4432 = vmatmul.mubr.bf16.gmra.mrb[0].mxu0 %v4331
  %v4433 = vpop.f32.mrb[0].mxu0
  %v4434 = vadd.f32 %v4305, %v4433
  %v4435 = vpop.f32.mrb[0].mxu0
  %v4436 = vpop.f32.mrb[0].mxu0
  %v4437 = vadd.f32 %v4305, %v4436
  %v4438 = vpop.f32.mrb[0].mxu0
  %4439 = vmatprep.mubr.bf16.mxu0 0
  %4440 = vmatmul.mubr.bf16.gmra.mrb[0].mxu0 %v4348
  %v4441 = vpop.f32.mrb[0].mxu0
  %v4442 = vadd.f32 %v4305, %v4441
  %v4443 = vpop.f32.mrb[0].mxu0
  %v4444 = vpop.f32.mrb[0].mxu0
  %v4445 = vadd.f32 %v4305, %v4444
  %v4446 = vpop.f32.mrb[0].mxu0
  %4447 = vdwg.mxu0
  %v4448 = vld [vmem:[#allocation3] sm:$0xff]
  %v4449 = vld [vmem:[#allocation3 + $0x8] sm:$0xff]
  %v4450 = vld [vmem:[#allocation3 + $0x10] sm:$0xff]
  %v4451 = vld [vmem:[#allocation3 + $0x18] sm:$0xff]
  %v4452 = vld [vmem:[%s6] sm:$0x1]
  %v4454 = vlaneseq
  %v4455 = vshrl.u32 %v4454, 7
  %v4456 = vsub.s32 0, %v4455
  %v4457 = vrot.slane %v4452, %v4456
  %v4459 = vadd.f32 %v4448, %v4457
  %v4460 = vadd.f32 %v4449, %v4457
  %v4461 = vadd.f32 %v4450, %v4457
  %v4462 = vadd.f32 %v4451, %v4457
  %v4463 = vadd.f32 %v4459, %v4434
  %v4464 = vadd.f32 %v4460, %v4437
  %v4465 = vadd.f32 %v4461, %v4442
  %v4466 = vadd.f32 %v4462, %v4445
  %v4467 = vmax.f32 %v4463, 0.0
  %v4468 = vmax.f32 %v4464, 0.0
  %v4469 = vmax.f32 %v4465, 0.0
  %v4470 = vmax.f32 %v4466, 0.0
  %v4475 = vcombine.high %v4467, %v4467
  %v4476 = vcombine.high %v4468, %v4468
  %v4477 = vcombine.high %v4469, %v4469
  %v4478 = vcombine.high %v4470, %v4470
  %v4483 = vpack.c.bf16 %v4467, %v4467
  %v4484 = vpack.c.bf16 %v4475, %v4475
  %v4485 = vpack.c.bf16 %v4468, %v4468
  %v4486 = vpack.c.bf16 %v4476, %v4476
  %v4487 = vpack.c.bf16 %v4469, %v4469
  %v4488 = vpack.c.bf16 %v4477, %v4477
  %v4489 = vpack.c.bf16 %v4470, %v4470
  %v4490 = vpack.c.bf16 %v4478, %v4478
  %4491 = vst [vmem:[%s9] sm:$0x3] %v4483
  %4492 = vst [vmem:[%s9 + $0x2] sm:$0x3] %v4484
  %4493 = vst [vmem:[%s9 + $0x4] sm:$0x3] %v4485
  %4494 = vst [vmem:[%s9 + $0x6] sm:$0x3] %v4486
  %4495 = vst [vmem:[%s9 + $0x8] sm:$0x3] %v4487
  %4496 = vst [vmem:[%s9 + $0xa] sm:$0x3] %v4488
  %4497 = vst [vmem:[%s9 + $0xc] sm:$0x3] %v4489
  %4498 = vst [vmem:[%s9 + $0xe] sm:$0x3] %v4490
  // Predicated region
  $region38: #{resnet_forward.6} parent=0 // pred_check
    _
  $region39: #{resnet_forward.6} parent=0 // pred_check_branch
    %4500 = sbr.rel (0) target = $region41
  $region40: #{resnet_forward.6} parent=0 // pred_region
    _
  $region41: #{resnet_forward.6} parent=0 // pred_fallthru
    _
  // Predicated region
  $region42: #{resnet_forward.6} parent=0 // pred_check
    _
  $region43: #{resnet_forward.6} parent=0 // pred_check_branch
    %4502 = sbr.rel (0) target = $region45
  $region44: #{resnet_forward.6} parent=0 // pred_region
    _
  $region45: #{resnet_forward.6} parent=0 // pred_fallthru
    _

// kernel: resnet_forward.5
$region0: #{resnet_forward.5}
  #allocation0 [shape = 'u32[]', space=smem, size = 0x4, offset = 0x4, fixed_abs, tag = 'smem constant byte address 0x4 - core index']
  #allocation1 [shape = 'u32[144,128]{1,0:T(1,128)}', space=vmem, size = 0x12000, scoped, tag = 'internal scratch']
  #allocation2 [shape = 'bf16[2,10,10,128]{3,2,1,0:T(8,128)(2,1)}', space=vmem, size = 0x14000, scoped, tag = 'scratch operand']
  #allocation3 [shape = 'f32[128,128]{1,0:T(8,128)}', space=vmem, size = 0x10000, scoped, tag = 'scratch operand']
  %s0 = inlined_call_operand.vmem [shape: bf16[2,10,10,128], index: 0, kind: input, shape index: {}]
  %s1 = inlined_call_operand.vmem [shape: bf16[4,256,128], index: 1, kind: input, shape index: {}]
  %s2 = inlined_call_operand.vmem [shape: bf16[128,128], index: 2, kind: input, shape index: {}]
  %s3 = inlined_call_operand.vmem [shape: f32[1,128], index: 3, kind: input, shape index: {}]
  %s4 = inlined_call_operand.vmem [shape: bf16[4,256,128], index: 4, kind: input, shape index: {}]
  %s5 = inlined_call_operand.vmem [shape: bf16[128,128], index: 5, kind: input, shape index: {}]
  %s6 = inlined_call_operand.vmem [shape: f32[1,128], index: 6, kind: input, shape index: {}]
  %s7 = inlined_call_operand.vmem [shape: bf16[2,10,10,128], index: 7, kind: output, shape index: {}]
  %s8 = sld [smem:[#allocation0]]
  $region38: #{resnet_forward.5} parent=0
    _
  %s10 = ssub.s32 1, %s8
  %s11 = scalar_select 0, %s10, %s8
  // Predicated region
  $region2: #{resnet_forward.5} parent=0 // pred_check
    _
  $region3: #{resnet_forward.5} parent=0 // pred_check_branch
    %13 = sbr.rel (0) target = $region5
  $region4: #{resnet_forward.5} parent=0 // pred_region
    _
  $region5: #{resnet_forward.5} parent=0 // pred_fallthru
    _
  // Predicated region
  $region6: #{resnet_forward.5} parent=0 // pred_check
    _
  $region7: #{resnet_forward.5} parent=0 // pred_check_branch
    %15 = sbr.rel (0) target = $region9
  $region8: #{resnet_forward.5} parent=0 // pred_region
    _
  $region9: #{resnet_forward.5} parent=0 // pred_fallthru
    _
  // Predicated region
  $region10: #{resnet_forward.5} parent=0 // pred_check
    _
  $region11: #{resnet_forward.5} parent=0 // pred_check_branch
    %17 = sbr.rel (0) target = $region13
  $region12: #{resnet_forward.5} parent=0 // pred_region
    _
  $region13: #{resnet_forward.5} parent=0 // pred_fallthru
    _
  // Predicated region
  $region14: #{resnet_forward.5} parent=0 // pred_check
    _
  $region15: #{resnet_forward.5} parent=0 // pred_check_branch
    %19 = sbr.rel (0) target = $region17
  $region16: #{resnet_forward.5} parent=0 // pred_region
    _
  $region17: #{resnet_forward.5} parent=0 // pred_fallthru
    _
  // Predicated region
  $region18: #{resnet_forward.5} parent=0 // pred_check
    _
  $region19: #{resnet_forward.5} parent=0 // pred_check_branch
    %21 = sbr.rel (0) target = $region21
  $region20: #{resnet_forward.5} parent=0 // pred_region
    _
  $region21: #{resnet_forward.5} parent=0 // pred_fallthru
    _
  // Predicated region
  $region22: #{resnet_forward.5} parent=0 // pred_check
    _
  $region23: #{resnet_forward.5} parent=0 // pred_check_branch
    %23 = sbr.rel (0) target = $region25
  $region24: #{resnet_forward.5} parent=0 // pred_region
    _
  $region25: #{resnet_forward.5} parent=0 // pred_fallthru
    _
  // Predicated region
  $region26: #{resnet_forward.5} parent=0 // pred_check
    _
  $region27: #{resnet_forward.5} parent=0 // pred_check_branch
    %25 = sbr.rel (0) target = $region29
  $region28: #{resnet_forward.5} parent=0 // pred_region
    _
  $region29: #{resnet_forward.5} parent=0 // pred_fallthru
    _
  %27 = vst [vmem:[#allocation3] sm:$0xff] 0.0
  %28 = vst [vmem:[#allocation3 + $0x8] sm:$0xff] 0.0
  %29 = vst [vmem:[#allocation3 + $0x10] sm:$0xff] 0.0
  %30 = vst [vmem:[#allocation3 + $0x18] sm:$0xff] 0.0
  %31 = vst [vmem:[#allocation3 + $0x20] sm:$0xff] 0.0
  %32 = vst [vmem:[#allocation3 + $0x28] sm:$0xff] 0.0
  %33 = vst [vmem:[#allocation3 + $0x30] sm:$0xff] 0.0
  %34 = vst [vmem:[#allocation3 + $0x38] sm:$0xff] 0.0
  %35 = vst [vmem:[#allocation3 + $0x40] sm:$0xff] 0.0
  %36 = vst [vmem:[#allocation3 + $0x48] sm:$0xff] 0.0
  %37 = vst [vmem:[#allocation3 + $0x50] sm:$0xff] 0.0
  %38 = vst [vmem:[#allocation3 + $0x58] sm:$0xff] 0.0
  %39 = vst [vmem:[#allocation3 + $0x60] sm:$0xff] 0.0
  %40 = vst [vmem:[#allocation3 + $0x68] sm:$0xff] 0.0
  %41 = vst [vmem:[#allocation3 + $0x70] sm:$0xff] 0.0
  %42 = vst [vmem:[#allocation3 + $0x78] sm:$0xff] 0.0
  %v43 = vld [vmem:[%s0] sm:$0xf]
  %v44 = vld [vmem:[%s0 + $0x8] sm:$0xf]
  %v45 = vld [vmem:[%s0 + $0x10] sm:$0xf]
  %v46 = vld [vmem:[%s0 + $0x18] sm:$0xf]
  %v47 = vld [vmem:[%s0 + $0x20] sm:$0xf]
  %v48 = vld [vmem:[%s0 + $0x28] sm:$0xf]
  %v49 = vld [vmem:[%s0 + $0x30] sm:$0xf]
  %v50 = vld [vmem:[%s0 + $0x38] sm:$0xf]
  %v51 = vld [vmem:[%s0 + $0x50] sm:$0xf]
  %v52 = vld [vmem:[%s0 + $0x58] sm:$0xf]
  %v53 = vld [vmem:[%s0 + $0x60] sm:$0xf]
  %v54 = vld [vmem:[%s0 + $0x68] sm:$0xf]
  %v55 = vld [vmem:[%s0 + $0x70] sm:$0xf]
  %v56 = vld [vmem:[%s0 + $0x78] sm:$0xf]
  %v57 = vld [vmem:[%s0 + $0x80] sm:$0xf]
  %v58 = vld [vmem:[%s0 + $0x88] sm:$0xf]
  %v59 = vld [vmem:[%s0 + $0x4] sm:$0x1]
  %v60 = vld [vmem:[%s0 + $0xc] sm:$0x1]
  %v61 = vld [vmem:[%s0 + $0x14] sm:$0x1]
  %v62 = vld [vmem:[%s0 + $0x1c] sm:$0x1]
  %v63 = vld [vmem:[%s0 + $0x24] sm:$0x1]
  %v64 = vld [vmem:[%s0 + $0x2c] sm:$0x1]
  %v65 = vld [vmem:[%s0 + $0x34] sm:$0x1]
  %v66 = vld [vmem:[%s0 + $0x3c] sm:$0x1]
  %v67 = vld [vmem:[%s0 + $0x54] sm:$0x1]
  %v68 = vld [vmem:[%s0 + $0x5c] sm:$0x1]
  %v69 = vld [vmem:[%s0 + $0x64] sm:$0x1]
  %v70 = vld [vmem:[%s0 + $0x6c] sm:$0x1]
  %v71 = vld [vmem:[%s0 + $0x74] sm:$0x1]
  %v72 = vld [vmem:[%s0 + $0x7c] sm:$0x1]
  %v73 = vld [vmem:[%s0 + $0x84] sm:$0x1]
  %v74 = vld [vmem:[%s0 + $0x8c] sm:$0x1]
  %vm75 = vsmask.f32 3328
  %vm76 = vsmask.f32 7440
  %vm77 = vmor %vm75, %vm76
  %v79 = vshrl.u32 %v43, 16
  %v81 = vrot.slane %v79, 4
  %v82 = vshll.u32 %v43, 16
  %v84 = vrot.slane %v82, 5
  %v85 = vor.u32 %v81, %v84
  %v86 = vrot.slane %v85, 4
  %v88 = vshll.u32 %v59, 16
  %v90 = vrot.slane %v88, 5
  %v91 = vsel %vm77, %v86, %v90
  %v93 = vshrl.u32 %v44, 16
  %v95 = vrot.slane %v93, 4
  %v96 = vshll.u32 %v44, 16
  %v98 = vrot.slane %v96, 5
  %v99 = vor.u32 %v95, %v98
  %v100 = vrot.slane %v99, 4
  %v102 = vshll.u32 %v60, 16
  %v104 = vrot.slane %v102, 5
  %v105 = vsel %vm77, %v100, %v104
  %v107 = vshrl.u32 %v45, 16
  %v109 = vrot.slane %v107, 4
  %v110 = vshll.u32 %v45, 16
  %v112 = vrot.slane %v110, 5
  %v113 = vor.u32 %v109, %v112
  %v114 = vrot.slane %v113, 4
  %v116 = vshll.u32 %v61, 16
  %v118 = vrot.slane %v116, 5
  %v119 = vsel %vm77, %v114, %v118
  %v121 = vshrl.u32 %v46, 16
  %v123 = vrot.slane %v121, 4
  %v124 = vshll.u32 %v46, 16
  %v126 = vrot.slane %v124, 5
  %v127 = vor.u32 %v123, %v126
  %v128 = vrot.slane %v127, 4
  %v130 = vshll.u32 %v62, 16
  %v132 = vrot.slane %v130, 5
  %v133 = vsel %vm77, %v128, %v132
  %v135 = vshrl.u32 %v47, 16
  %v137 = vrot.slane %v135, 4
  %v138 = vshll.u32 %v47, 16
  %v140 = vrot.slane %v138, 5
  %v141 = vor.u32 %v137, %v140
  %v142 = vrot.slane %v141, 4
  %v144 = vshll.u32 %v63, 16
  %v146 = vrot.slane %v144, 5
  %v147 = vsel %vm77, %v142, %v146
  %v149 = vshrl.u32 %v48, 16
  %v151 = vrot.slane %v149, 4
  %v152 = vshll.u32 %v48, 16
  %v154 = vrot.slane %v152, 5
  %v155 = vor.u32 %v151, %v154
  %v156 = vrot.slane %v155, 4
  %v158 = vshll.u32 %v64, 16
  %v160 = vrot.slane %v158, 5
  %v161 = vsel %vm77, %v156, %v160
  %v163 = vshrl.u32 %v49, 16
  %v165 = vrot.slane %v163, 4
  %v166 = vshll.u32 %v49, 16
  %v168 = vrot.slane %v166, 5
  %v169 = vor.u32 %v165, %v168
  %v170 = vrot.slane %v169, 4
  %v172 = vshll.u32 %v65, 16
  %v174 = vrot.slane %v172, 5
  %v175 = vsel %vm77, %v170, %v174
  %v177 = vshrl.u32 %v50, 16
  %v179 = vrot.slane %v177, 4
  %v180 = vshll.u32 %v50, 16
  %v182 = vrot.slane %v180, 5
  %v183 = vor.u32 %v179, %v182
  %v184 = vrot.slane %v183, 4
  %v186 = vshll.u32 %v66, 16
  %v188 = vrot.slane %v186, 5
  %v189 = vsel %vm77, %v184, %v188
  %v191 = vshrl.u32 %v51, 16
  %v193 = vrot.slane %v191, 4
  %v194 = vshll.u32 %v51, 16
  %v196 = vrot.slane %v194, 5
  %v197 = vor.u32 %v193, %v196
  %v198 = vrot.slane %v197, 4
  %v200 = vshll.u32 %v67, 16
  %v202 = vrot.slane %v200, 5
  %v203 = vsel %vm77, %v198, %v202
  %v205 = vshrl.u32 %v52, 16
  %v207 = vrot.slane %v205, 4
  %v208 = vshll.u32 %v52, 16
  %v210 = vrot.slane %v208, 5
  %v211 = vor.u32 %v207, %v210
  %v212 = vrot.slane %v211, 4
  %v214 = vshll.u32 %v68, 16
  %v216 = vrot.slane %v214, 5
  %v217 = vsel %vm77, %v212, %v216
  %v219 = vshrl.u32 %v53, 16
  %v221 = vrot.slane %v219, 4
  %v222 = vshll.u32 %v53, 16
  %v224 = vrot.slane %v222, 5
  %v225 = vor.u32 %v221, %v224
  %v226 = vrot.slane %v225, 4
  %v228 = vshll.u32 %v69, 16
  %v230 = vrot.slane %v228, 5
  %v231 = vsel %vm77, %v226, %v230
  %v233 = vshrl.u32 %v54, 16
  %v235 = vrot.slane %v233, 4
  %v236 = vshll.u32 %v54, 16
  %v238 = vrot.slane %v236, 5
  %v239 = vor.u32 %v235, %v238
  %v240 = vrot.slane %v239, 4
  %v242 = vshll.u32 %v70, 16
  %v244 = vrot.slane %v242, 5
  %v245 = vsel %vm77, %v240, %v244
  %v247 = vshrl.u32 %v55, 16
  %v249 = vrot.slane %v247, 4
  %v250 = vshll.u32 %v55, 16
  %v252 = vrot.slane %v250, 5
  %v253 = vor.u32 %v249, %v252
  %v254 = vrot.slane %v253, 4
  %v256 = vshll.u32 %v71, 16
  %v258 = vrot.slane %v256, 5
  %v259 = vsel %vm77, %v254, %v258
  %v261 = vshrl.u32 %v56, 16
  %v263 = vrot.slane %v261, 4
  %v264 = vshll.u32 %v56, 16
  %v266 = vrot.slane %v264, 5
  %v267 = vor.u32 %v263, %v266
  %v268 = vrot.slane %v267, 4
  %v270 = vshll.u32 %v72, 16
  %v272 = vrot.slane %v270, 5
  %v273 = vsel %vm77, %v268, %v272
  %v275 = vshrl.u32 %v57, 16
  %v277 = vrot.slane %v275, 4
  %v278 = vshll.u32 %v57, 16
  %v280 = vrot.slane %v278, 5
  %v281 = vor.u32 %v277, %v280
  %v282 = vrot.slane %v281, 4
  %v284 = vshll.u32 %v73, 16
  %v286 = vrot.slane %v284, 5
  %v287 = vsel %vm77, %v282, %v286
  %v289 = vshrl.u32 %v58, 16
  %v291 = vrot.slane %v289, 4
  %v292 = vshll.u32 %v58, 16
  %v294 = vrot.slane %v292, 5
  %v295 = vor.u32 %v291, %v294
  %v296 = vrot.slane %v295, 4
  %v298 = vshll.u32 %v74, 16
  %v300 = vrot.slane %v298, 5
  %v301 = vsel %vm77, %v296, %v300
  %v318 = vunpack.c.l.b16 %v43
  %v319 = vunpack.c.l.b16 %v44
  %v320 = vunpack.c.l.b16 %v45
  %v321 = vunpack.c.l.b16 %v46
  %v322 = vunpack.c.l.b16 %v47
  %v323 = vunpack.c.l.b16 %v48
  %v324 = vunpack.c.l.b16 %v49
  %v325 = vunpack.c.l.b16 %v50
  %v326 = vunpack.c.l.b16 %v51
  %v327 = vunpack.c.l.b16 %v52
  %v328 = vunpack.c.l.b16 %v53
  %v329 = vunpack.c.l.b16 %v54
  %v330 = vunpack.c.l.b16 %v55
  %v331 = vunpack.c.l.b16 %v56
  %v332 = vunpack.c.l.b16 %v57
  %v333 = vunpack.c.l.b16 %v58
  %v334 = vpack.c.b16 %v319, %v318
  %v335 = vpack.c.b16 %v321, %v320
  %v336 = vpack.c.b16 %v323, %v322
  %v337 = vpack.c.b16 %v325, %v324
  %v338 = vpack.c.b16 %v327, %v326
  %v339 = vpack.c.b16 %v329, %v328
  %v340 = vpack.c.b16 %v331, %v330
  %v341 = vpack.c.b16 %v333, %v332
  %v350 = vunpack.c.l.b16 %v91
  %v351 = vunpack.c.l.b16 %v105
  %v352 = vunpack.c.l.b16 %v119
  %v353 = vunpack.c.l.b16 %v133
  %v354 = vunpack.c.l.b16 %v147
  %v355 = vunpack.c.l.b16 %v161
  %v356 = vunpack.c.l.b16 %v175
  %v357 = vunpack.c.l.b16 %v189
  %v358 = vunpack.c.l.b16 %v203
  %v359 = vunpack.c.l.b16 %v217
  %v360 = vunpack.c.l.b16 %v231
  %v361 = vunpack.c.l.b16 %v245
  %v362 = vunpack.c.l.b16 %v259
  %v363 = vunpack.c.l.b16 %v273
  %v364 = vunpack.c.l.b16 %v287
  %v365 = vunpack.c.l.b16 %v301
  %v366 = vpack.c.b16 %v351, %v350
  %v367 = vpack.c.b16 %v353, %v352
  %v368 = vpack.c.b16 %v355, %v354
  %v369 = vpack.c.b16 %v357, %v356
  %v370 = vpack.c.b16 %v359, %v358
  %v371 = vpack.c.b16 %v361, %v360
  %v372 = vpack.c.b16 %v363, %v362
  %v373 = vpack.c.b16 %v365, %v364
  %v382 = vld [vmem:[#allocation3] sm:$0xff]
  %v383 = vld [vmem:[#allocation3 + $0x8] sm:$0xff]
  %v384 = vld [vmem:[#allocation3 + $0x10] sm:$0xff]
  %v385 = vld [vmem:[#allocation3 + $0x18] sm:$0xff]
  %v386 = vld [vmem:[#allocation3 + $0x20] sm:$0xff]
  %v387 = vld [vmem:[#allocation3 + $0x28] sm:$0xff]
  %v388 = vld [vmem:[#allocation3 + $0x30] sm:$0xff]
  %v389 = vld [vmem:[#allocation3 + $0x38] sm:$0xff]
  %v390 = vld [vmem:[#allocation3 + $0x40] sm:$0xff]
  %v391 = vld [vmem:[#allocation3 + $0x48] sm:$0xff]
  %v392 = vld [vmem:[#allocation3 + $0x50] sm:$0xff]
  %v393 = vld [vmem:[#allocation3 + $0x58] sm:$0xff]
  %v394 = vld [vmem:[#allocation3 + $0x60] sm:$0xff]
  %v395 = vld [vmem:[#allocation3 + $0x68] sm:$0xff]
  %v396 = vld [vmem:[#allocation3 + $0x70] sm:$0xff]
  %v397 = vld [vmem:[#allocation3 + $0x78] sm:$0xff]
  %v398 = vld [vmem:[%s1] sm:$0xf]
  %v399 = vld [vmem:[%s1 + $0x4] sm:$0xf]
  %v400 = vld [vmem:[%s1 + $0x8] sm:$0xf]
  %v401 = vld [vmem:[%s1 + $0xc] sm:$0xf]
  %v402 = vld [vmem:[%s1 + $0x10] sm:$0xf]
  %v403 = vld [vmem:[%s1 + $0x14] sm:$0xf]
  %v404 = vld [vmem:[%s1 + $0x18] sm:$0xf]
  %v405 = vld [vmem:[%s1 + $0x1c] sm:$0xf]
  %v406 = vld [vmem:[%s1 + $0x20] sm:$0xf]
  %v407 = vld [vmem:[%s1 + $0x24] sm:$0xf]
  %v408 = vld [vmem:[%s1 + $0x28] sm:$0xf]
  %v409 = vld [vmem:[%s1 + $0x2c] sm:$0xf]
  %v410 = vld [vmem:[%s1 + $0x30] sm:$0xf]
  %v411 = vld [vmem:[%s1 + $0x34] sm:$0xf]
  %v412 = vld [vmem:[%s1 + $0x38] sm:$0xf]
  %v413 = vld [vmem:[%s1 + $0x3c] sm:$0xf]
  %v414 = vld [vmem:[%s1 + $0x40] sm:$0xf]
  %v415 = vld [vmem:[%s1 + $0x44] sm:$0xf]
  %v416 = vld [vmem:[%s1 + $0x48] sm:$0xf]
  %v417 = vld [vmem:[%s1 + $0x4c] sm:$0xf]
  %v418 = vld [vmem:[%s1 + $0x50] sm:$0xf]
  %v419 = vld [vmem:[%s1 + $0x54] sm:$0xf]
  %v420 = vld [vmem:[%s1 + $0x58] sm:$0xf]
  %v421 = vld [vmem:[%s1 + $0x5c] sm:$0xf]
  %v422 = vld [vmem:[%s1 + $0x60] sm:$0xf]
  %v423 = vld [vmem:[%s1 + $0x64] sm:$0xf]
  %v424 = vld [vmem:[%s1 + $0x68] sm:$0xf]
  %v425 = vld [vmem:[%s1 + $0x6c] sm:$0xf]
  %v426 = vld [vmem:[%s1 + $0x70] sm:$0xf]
  %v427 = vld [vmem:[%s1 + $0x74] sm:$0xf]
  %v428 = vld [vmem:[%s1 + $0x78] sm:$0xf]
  %v429 = vld [vmem:[%s1 + $0x7c] sm:$0xf]
  %v462 = vunpack.c.l.b16 %v398
  %v463 = vunpack.c.l.b16 %v399
  %v464 = vunpack.c.l.b16 %v400
  %v465 = vunpack.c.l.b16 %v401
  %v466 = vunpack.c.l.b16 %v402
  %v467 = vunpack.c.l.b16 %v403
  %v468 = vunpack.c.l.b16 %v404
  %v469 = vunpack.c.l.b16 %v405
  %v470 = vunpack.c.l.b16 %v406
  %v471 = vunpack.c.l.b16 %v407
  %v472 = vunpack.c.l.b16 %v408
  %v473 = vunpack.c.l.b16 %v409
  %v474 = vunpack.c.l.b16 %v410
  %v475 = vunpack.c.l.b16 %v411
  %v476 = vunpack.c.l.b16 %v412
  %v477 = vunpack.c.l.b16 %v413
  %v478 = vunpack.c.l.b16 %v414
  %v479 = vunpack.c.l.b16 %v415
  %v480 = vunpack.c.l.b16 %v416
  %v481 = vunpack.c.l.b16 %v417
  %v482 = vunpack.c.l.b16 %v418
  %v483 = vunpack.c.l.b16 %v419
  %v484 = vunpack.c.l.b16 %v420
  %v485 = vunpack.c.l.b16 %v421
  %v486 = vunpack.c.l.b16 %v422
  %v487 = vunpack.c.l.b16 %v423
  %v488 = vunpack.c.l.b16 %v424
  %v489 = vunpack.c.l.b16 %v425
  %v490 = vunpack.c.l.b16 %v426
  %v491 = vunpack.c.l.b16 %v427
  %v492 = vunpack.c.l.b16 %v428
  %v493 = vunpack.c.l.b16 %v429
  %v494 = vpack.c.b16 %v463, %v462
  %v495 = vpack.c.b16 %v465, %v464
  %v496 = vpack.c.b16 %v467, %v466
  %v497 = vpack.c.b16 %v469, %v468
  %v498 = vpack.c.b16 %v471, %v470
  %v499 = vpack.c.b16 %v473, %v472
  %v500 = vpack.c.b16 %v475, %v474
  %v501 = vpack.c.b16 %v477, %v476
  %v502 = vpack.c.b16 %v479, %v478
  %v503 = vpack.c.b16 %v481, %v480
  %v504 = vpack.c.b16 %v483, %v482
  %v505 = vpack.c.b16 %v485, %v484
  %v506 = vpack.c.b16 %v487, %v486
  %v507 = vpack.c.b16 %v489, %v488
  %v508 = vpack.c.b16 %v491, %v490
  %v509 = vpack.c.b16 %v493, %v492
  %526 = vmatprep.subr.bf16.mxu0 0
  %527 = vmatpush1.bf16.msra.mxu0 %v494
  %528 = vmatprep.subr.bf16.mxu0 0
  %529 = vmatpush1.bf16.msra.mxu0 %v495
  %530 = vmatprep.subr.bf16.mxu0 0
  %531 = vmatpush1.bf16.msra.mxu0 %v496
  %532 = vmatprep.subr.bf16.mxu0 0
  %533 = vmatpush1.bf16.msra.mxu0 %v497
  %534 = vmatprep.subr.bf16.mxu0 0
  %535 = vmatpush1.bf16.msra.mxu0 %v498
  %536 = vmatprep.subr.bf16.mxu0 0
  %537 = vmatpush1.bf16.msra.mxu0 %v499
  %538 = vmatprep.subr.bf16.mxu0 0
  %539 = vmatpush1.bf16.msra.mxu0 %v500
  %540 = vmatprep.subr.bf16.mxu0 0
  %541 = vmatpush1.bf16.msra.mxu0 %v501
  %542 = vmatprep.subr.bf16.mxu0 0
  %543 = vmatpush1.bf16.msra.mxu0 %v502
  %544 = vmatprep.subr.bf16.mxu0 0
  %545 = vmatpush1.bf16.msra.mxu0 %v503
  %546 = vmatprep.subr.bf16.mxu0 0
  %547 = vmatpush1.bf16.msra.mxu0 %v504
  %548 = vmatprep.subr.bf16.mxu0 0
  %549 = vmatpush1.bf16.msra.mxu0 %v505
  %550 = vmatprep.subr.bf16.mxu0 0
  %551 = vmatpush1.bf16.msra.mxu0 %v506
  %552 = vmatprep.subr.bf16.mxu0 0
  %553 = vmatpush1.bf16.msra.mxu0 %v507
  %554 = vmatprep.subr.bf16.mxu0 0
  %555 = vmatpush1.bf16.msra.mxu0 %v508
  %556 = vmatprep.subr.bf16.mxu0 0
  %557 = vmatpush1.bf16.msra.mxu0 %v509
  %558 = vmatprep.mubr.bf16.mxu0 %v366
  %559 = vmatmul.mubr.bf16.gmra.mrb[0].mxu0 %v334
  %v560 = vpop.f32.mrb[0].mxu0
  %v561 = vadd.f32 0.0, %v560
  %v562 = vpop.f32.mrb[0].mxu0
  %v563 = vpop.f32.mrb[0].mxu0
  %v564 = vadd.f32 0.0, %v563
  %v565 = vpop.f32.mrb[0].mxu0
  %566 = vmatprep.mubr.bf16.mxu0 %v367
  %567 = vmatmul.mubr.bf16.gmra.mrb[0].mxu0 %v335
  %v568 = vpop.f32.mrb[0].mxu0
  %v569 = vadd.f32 0.0, %v568
  %v570 = vpop.f32.mrb[0].mxu0
  %v571 = vpop.f32.mrb[0].mxu0
  %v572 = vadd.f32 0.0, %v571
  %v573 = vpop.f32.mrb[0].mxu0
  %574 = vmatprep.mubr.bf16.mxu0 %v368
  %575 = vmatmul.mubr.bf16.gmra.mrb[0].mxu0 %v336
  %v576 = vpop.f32.mrb[0].mxu0
  %v577 = vadd.f32 0.0, %v576
  %v578 = vpop.f32.mrb[0].mxu0
  %v579 = vpop.f32.mrb[0].mxu0
  %v580 = vadd.f32 0.0, %v579
  %v581 = vpop.f32.mrb[0].mxu0
  %582 = vmatprep.mubr.bf16.mxu0 %v369
  %583 = vmatmul.mubr.bf16.gmra.mrb[0].mxu0 %v337
  %v584 = vpop.f32.mrb[0].mxu0
  %v585 = vadd.f32 0.0, %v584
  %v586 = vpop.f32.mrb[0].mxu0
  %v587 = vpop.f32.mrb[0].mxu0
  %v588 = vadd.f32 0.0, %v587
  %v589 = vpop.f32.mrb[0].mxu0
  %590 = vmatprep.mubr.bf16.mxu0 %v370
  %591 = vmatmul.mubr.bf16.gmra.mrb[0].mxu0 %v338
  %v592 = vpop.f32.mrb[0].mxu0
  %v593 = vadd.f32 0.0, %v592
  %v594 = vpop.f32.mrb[0].mxu0
  %v595 = vpop.f32.mrb[0].mxu0
  %v596 = vadd.f32 0.0, %v595
  %v597 = vpop.f32.mrb[0].mxu0
  %598 = vmatprep.mubr.bf16.mxu0 %v371
  %599 = vmatmul.mubr.bf16.gmra.mrb[0].mxu0 %v339
  %v600 = vpop.f32.mrb[0].mxu0
  %v601 = vadd.f32 0.0, %v600
  %v602 = vpop.f32.mrb[0].mxu0
  %v603 = vpop.f32.mrb[0].mxu0
  %v604 = vadd.f32 0.0, %v603
  %v605 = vpop.f32.mrb[0].mxu0
  %606 = vmatprep.mubr.bf16.mxu0 %v372
  %607 = vmatmul.mubr.bf16.gmra.mrb[0].mxu0 %v340
  %v608 = vpop.f32.mrb[0].mxu0
  %v609 = vadd.f32 0.0, %v608
  %v610 = vpop.f32.mrb[0].mxu0
  %v611 = vpop.f32.mrb[0].mxu0
  %v612 = vadd.f32 0.0, %v611
  %v613 = vpop.f32.mrb[0].mxu0
  %614 = vmatprep.mubr.bf16.mxu0 %v373
  %615 = vmatmul.mubr.bf16.gmra.mrb[0].mxu0 %v341
  %v616 = vpop.f32.mrb[0].mxu0
  %v617 = vadd.f32 0.0, %v616
  %v618 = vpop.f32.mrb[0].mxu0
  %v619 = vpop.f32.mrb[0].mxu0
  %v620 = vadd.f32 0.0, %v619
  %v621 = vpop.f32.mrb[0].mxu0
  %622 = vdwg.mxu0
  %v623 = vadd.f32 %v382, %v561
  %v624 = vadd.f32 %v383, %v564
  %v625 = vadd.f32 %v384, %v569
  %v626 = vadd.f32 %v385, %v572
  %v627 = vadd.f32 %v386, %v577
  %v628 = vadd.f32 %v387, %v580
  %v629 = vadd.f32 %v388, %v585
  %v630 = vadd.f32 %v389, %v588
  %v631 = vadd.f32 %v390, %v593
  %v632 = vadd.f32 %v391, %v596
  %v633 = vadd.f32 %v392, %v601
  %v634 = vadd.f32 %v393, %v604
  %v635 = vadd.f32 %v394, %v609
  %v636 = vadd.f32 %v395, %v612
  %v637 = vadd.f32 %v396, %v617
  %v638 = vadd.f32 %v397, %v620
  %639 = vst [vmem:[#allocation3] sm:$0xff] %v623
  %640 = vst [vmem:[#allocation3 + $0x8] sm:$0xff] %v624
  %641 = vst [vmem:[#allocation3 + $0x10] sm:$0xff] %v625
  %642 = vst [vmem:[#allocation3 + $0x18] sm:$0xff] %v626
  %643 = vst [vmem:[#allocation3 + $0x20] sm:$0xff] %v627
  %644 = vst [vmem:[#allocation3 + $0x28] sm:$0xff] %v628
  %645 = vst [vmem:[#allocation3 + $0x30] sm:$0xff] %v629
  %646 = vst [vmem:[#allocation3 + $0x38] sm:$0xff] %v630
  %647 = vst [vmem:[#allocation3 + $0x40] sm:$0xff] %v631
  %648 = vst [vmem:[#allocation3 + $0x48] sm:$0xff] %v632
  %649 = vst [vmem:[#allocation3 + $0x50] sm:$0xff] %v633
  %650 = vst [vmem:[#allocation3 + $0x58] sm:$0xff] %v634
  %651 = vst [vmem:[#allocation3 + $0x60] sm:$0xff] %v635
  %652 = vst [vmem:[#allocation3 + $0x68] sm:$0xff] %v636
  %653 = vst [vmem:[#allocation3 + $0x70] sm:$0xff] %v637
  %654 = vst [vmem:[#allocation3 + $0x78] sm:$0xff] %v638
  %v655 = vld [vmem:[%s0] sm:$0xe]
  %v656 = vld [vmem:[%s0 + $0x4] sm:$0x1]
  %v657 = vld [vmem:[%s0 + $0x8] sm:$0xe]
  %v658 = vld [vmem:[%s0 + $0xc] sm:$0x1]
  %v659 = vld [vmem:[%s0 + $0x10] sm:$0xe]
  %v660 = vld [vmem:[%s0 + $0x14] sm:$0x1]
  %v661 = vld [vmem:[%s0 + $0x18] sm:$0xe]
  %v662 = vld [vmem:[%s0 + $0x1c] sm:$0x1]
  %v663 = vld [vmem:[%s0 + $0x20] sm:$0xe]
  %v664 = vld [vmem:[%s0 + $0x24] sm:$0x1]
  %v665 = vld [vmem:[%s0 + $0x28] sm:$0xe]
  %v666 = vld [vmem:[%s0 + $0x2c] sm:$0x1]
  %v667 = vld [vmem:[%s0 + $0x30] sm:$0xe]
  %v668 = vld [vmem:[%s0 + $0x34] sm:$0x1]
  %v669 = vld [vmem:[%s0 + $0x38] sm:$0xe]
  %v670 = vld [vmem:[%s0 + $0x3c] sm:$0x1]
  %v671 = vld [vmem:[%s0 + $0x50] sm:$0xe]
  %v672 = vld [vmem:[%s0 + $0x54] sm:$0x1]
  %v673 = vld [vmem:[%s0 + $0x58] sm:$0xe]
  %v674 = vld [vmem:[%s0 + $0x5c] sm:$0x1]
  %v675 = vld [vmem:[%s0 + $0x60] sm:$0xe]
  %v676 = vld [vmem:[%s0 + $0x64] sm:$0x1]
  %v677 = vld [vmem:[%s0 + $0x68] sm:$0xe]
  %v678 = vld [vmem:[%s0 + $0x6c] sm:$0x1]
  %v679 = vld [vmem:[%s0 + $0x70] sm:$0xe]
  %v680 = vld [vmem:[%s0 + $0x74] sm:$0x1]
  %v681 = vld [vmem:[%s0 + $0x78] sm:$0xe]
  %v682 = vld [vmem:[%s0 + $0x7c] sm:$0x1]
  %v683 = vld [vmem:[%s0 + $0x80] sm:$0xe]
  %v684 = vld [vmem:[%s0 + $0x84] sm:$0x1]
  %v685 = vld [vmem:[%s0 + $0x88] sm:$0xe]
  %v686 = vld [vmem:[%s0 + $0x8c] sm:$0x1]
  %vm719 = vcmask 1042432
  %vm720 = vcmask 1046532
  %vm721 = vmor %vm719, %vm720
  %v722 = vrot.slane %v655, 5
  %v723 = vrot.slane %v722, 4
  %v724 = vrot.slane %v656, 5
  %v725 = vsel %vm721, %v723, %v724
  %v726 = vrot.slane %v657, 5
  %v727 = vrot.slane %v726, 4
  %v728 = vrot.slane %v658, 5
  %v729 = vsel %vm721, %v727, %v728
  %v730 = vrot.slane %v659, 5
  %v731 = vrot.slane %v730, 4
  %v732 = vrot.slane %v660, 5
  %v733 = vsel %vm721, %v731, %v732
  %v734 = vrot.slane %v661, 5
  %v735 = vrot.slane %v734, 4
  %v736 = vrot.slane %v662, 5
  %v737 = vsel %vm721, %v735, %v736
  %v738 = vrot.slane %v663, 5
  %v739 = vrot.slane %v738, 4
  %v740 = vrot.slane %v664, 5
  %v741 = vsel %vm721, %v739, %v740
  %v742 = vrot.slane %v665, 5
  %v743 = vrot.slane %v742, 4
  %v744 = vrot.slane %v666, 5
  %v745 = vsel %vm721, %v743, %v744
  %v746 = vrot.slane %v667, 5
  %v747 = vrot.slane %v746, 4
  %v748 = vrot.slane %v668, 5
  %v749 = vsel %vm721, %v747, %v748
  %v750 = vrot.slane %v669, 5
  %v751 = vrot.slane %v750, 4
  %v752 = vrot.slane %v670, 5
  %v753 = vsel %vm721, %v751, %v752
  %v754 = vrot.slane %v671, 5
  %v755 = vrot.slane %v754, 4
  %v756 = vrot.slane %v672, 5
  %v757 = vsel %vm721, %v755, %v756
  %v758 = vrot.slane %v673, 5
  %v759 = vrot.slane %v758, 4
  %v760 = vrot.slane %v674, 5
  %v761 = vsel %vm721, %v759, %v760
  %v762 = vrot.slane %v675, 5
  %v763 = vrot.slane %v762, 4
  %v764 = vrot.slane %v676, 5
  %v765 = vsel %vm721, %v763, %v764
  %v766 = vrot.slane %v677, 5
  %v767 = vrot.slane %v766, 4
  %v768 = vrot.slane %v678, 5
  %v769 = vsel %vm721, %v767, %v768
  %v770 = vrot.slane %v679, 5
  %v771 = vrot.slane %v770, 4
  %v772 = vrot.slane %v680, 5
  %v773 = vsel %vm721, %v771, %v772
  %v774 = vrot.slane %v681, 5
  %v775 = vrot.slane %v774, 4
  %v776 = vrot.slane %v682, 5
  %v777 = vsel %vm721, %v775, %v776
  %v778 = vrot.slane %v683, 5
  %v779 = vrot.slane %v778, 4
  %v780 = vrot.slane %v684, 5
  %v781 = vsel %vm721, %v779, %v780
  %v782 = vrot.slane %v685, 5
  %v783 = vrot.slane %v782, 4
  %v784 = vrot.slane %v686, 5
  %v785 = vsel %vm721, %v783, %v784
  %s786 = scalar_lea.vmem %s0, 8
  %v787 = vld [vmem:[%s786] sm:$0xf]
  %v788 = vld [vmem:[%s786 + $0x8] sm:$0xf]
  %v789 = vld [vmem:[%s786 + $0x10] sm:$0xf]
  %v790 = vld [vmem:[%s786 + $0x18] sm:$0xf]
  %v791 = vld [vmem:[%s786 + $0x20] sm:$0xf]
  %v792 = vld [vmem:[%s786 + $0x28] sm:$0xf]
  %v793 = vld [vmem:[%s786 + $0x30] sm:$0xf]
  %v794 = vld [vmem:[%s786 + $0x38] sm:$0xf]
  %v795 = vld [vmem:[%s786 + $0x50] sm:$0xf]
  %v796 = vld [vmem:[%s786 + $0x58] sm:$0xf]
  %v797 = vld [vmem:[%s786 + $0x60] sm:$0xf]
  %v798 = vld [vmem:[%s786 + $0x68] sm:$0xf]
  %v799 = vld [vmem:[%s786 + $0x70] sm:$0xf]
  %v800 = vld [vmem:[%s786 + $0x78] sm:$0xf]
  %v801 = vld [vmem:[%s786 + $0x80] sm:$0xf]
  %v802 = vld [vmem:[%s786 + $0x88] sm:$0xf]
  %v803 = vunpack.c.l.b16 %v725
  %v804 = vunpack.c.l.b16 %v729
  %v805 = vunpack.c.l.b16 %v733
  %v806 = vunpack.c.l.b16 %v737
  %v807 = vunpack.c.l.b16 %v741
  %v808 = vunpack.c.l.b16 %v745
  %v809 = vunpack.c.l.b16 %v749
  %v810 = vunpack.c.l.b16 %v753
  %v811 = vunpack.c.l.b16 %v757
  %v812 = vunpack.c.l.b16 %v761
  %v813 = vunpack.c.l.b16 %v765
  %v814 = vunpack.c.l.b16 %v769
  %v815 = vunpack.c.l.b16 %v773
  %v816 = vunpack.c.l.b16 %v777
  %v817 = vunpack.c.l.b16 %v781
  %v818 = vunpack.c.l.b16 %v785
  %v819 = vpack.c.b16 %v804, %v803
  %v820 = vpack.c.b16 %v806, %v805
  %v821 = vpack.c.b16 %v808, %v807
  %v822 = vpack.c.b16 %v810, %v809
  %v823 = vpack.c.b16 %v812, %v811
  %v824 = vpack.c.b16 %v814, %v813
  %v825 = vpack.c.b16 %v816, %v815
  %v826 = vpack.c.b16 %v818, %v817
  %v851 = vunpack.c.l.b16 %v787
  %v852 = vunpack.c.l.b16 %v788
  %v853 = vunpack.c.l.b16 %v789
  %v854 = vunpack.c.l.b16 %v790
  %v855 = vunpack.c.l.b16 %v791
  %v856 = vunpack.c.l.b16 %v792
  %v857 = vunpack.c.l.b16 %v793
  %v858 = vunpack.c.l.b16 %v794
  %v859 = vunpack.c.l.b16 %v795
  %v860 = vunpack.c.l.b16 %v796
  %v861 = vunpack.c.l.b16 %v797
  %v862 = vunpack.c.l.b16 %v798
  %v863 = vunpack.c.l.b16 %v799
  %v864 = vunpack.c.l.b16 %v800
  %v865 = vunpack.c.l.b16 %v801
  %v866 = vunpack.c.l.b16 %v802
  %v867 = vpack.c.b16 %v852, %v851
  %v868 = vpack.c.b16 %v854, %v853
  %v869 = vpack.c.b16 %v856, %v855
  %v870 = vpack.c.b16 %v858, %v857
  %v871 = vpack.c.b16 %v860, %v859
  %v872 = vpack.c.b16 %v862, %v861
  %v873 = vpack.c.b16 %v864, %v863
  %v874 = vpack.c.b16 %v866, %v865
  %v883 = vld [vmem:[#allocation3] sm:$0xff]
  %v884 = vld [vmem:[#allocation3 + $0x8] sm:$0xff]
  %v885 = vld [vmem:[#allocation3 + $0x10] sm:$0xff]
  %v886 = vld [vmem:[#allocation3 + $0x18] sm:$0xff]
  %v887 = vld [vmem:[#allocation3 + $0x20] sm:$0xff]
  %v888 = vld [vmem:[#allocation3 + $0x28] sm:$0xff]
  %v889 = vld [vmem:[#allocation3 + $0x30] sm:$0xff]
  %v890 = vld [vmem:[#allocation3 + $0x38] sm:$0xff]
  %v891 = vld [vmem:[#allocation3 + $0x40] sm:$0xff]
  %v892 = vld [vmem:[#allocation3 + $0x48] sm:$0xff]
  %v893 = vld [vmem:[#allocation3 + $0x50] sm:$0xff]
  %v894 = vld [vmem:[#allocation3 + $0x58] sm:$0xff]
  %v895 = vld [vmem:[#allocation3 + $0x60] sm:$0xff]
  %v896 = vld [vmem:[#allocation3 + $0x68] sm:$0xff]
  %v897 = vld [vmem:[#allocation3 + $0x70] sm:$0xff]
  %v898 = vld [vmem:[#allocation3 + $0x78] sm:$0xff]
  %s899 = scalar_lea.vmem %s1, 128
  %v900 = vld [vmem:[%s899] sm:$0xf]
  %v901 = vld [vmem:[%s899 + $0x4] sm:$0xf]
  %v902 = vld [vmem:[%s899 + $0x8] sm:$0xf]
  %v903 = vld [vmem:[%s899 + $0xc] sm:$0xf]
  %v904 = vld [vmem:[%s899 + $0x10] sm:$0xf]
  %v905 = vld [vmem:[%s899 + $0x14] sm:$0xf]
  %v906 = vld [vmem:[%s899 + $0x18] sm:$0xf]
  %v907 = vld [vmem:[%s899 + $0x1c] sm:$0xf]
  %v908 = vld [vmem:[%s899 + $0x20] sm:$0xf]
  %v909 = vld [vmem:[%s899 + $0x24] sm:$0xf]
  %v910 = vld [vmem:[%s899 + $0x28] sm:$0xf]
  %v911 = vld [vmem:[%s899 + $0x2c] sm:$0xf]
  %v912 = vld [vmem:[%s899 + $0x30] sm:$0xf]
  %v913 = vld [vmem:[%s899 + $0x34] sm:$0xf]
  %v914 = vld [vmem:[%s899 + $0x38] sm:$0xf]
  %v915 = vld [vmem:[%s899 + $0x3c] sm:$0xf]
  %v916 = vld [vmem:[%s899 + $0x40] sm:$0xf]
  %v917 = vld [vmem:[%s899 + $0x44] sm:$0xf]
  %v918 = vld [vmem:[%s899 + $0x48] sm:$0xf]
  %v919 = vld [vmem:[%s899 + $0x4c] sm:$0xf]
  %v920 = vld [vmem:[%s899 + $0x50] sm:$0xf]
  %v921 = vld [vmem:[%s899 + $0x54] sm:$0xf]
  %v922 = vld [vmem:[%s899 + $0x58] sm:$0xf]
  %v923 = vld [vmem:[%s899 + $0x5c] sm:$0xf]
  %v924 = vld [vmem:[%s899 + $0x60] sm:$0xf]
  %v925 = vld [vmem:[%s899 + $0x64] sm:$0xf]
  %v926 = vld [vmem:[%s899 + $0x68] sm:$0xf]
  %v927 = vld [vmem:[%s899 + $0x6c] sm:$0xf]
  %v928 = vld [vmem:[%s899 + $0x70] sm:$0xf]
  %v929 = vld [vmem:[%s899 + $0x74] sm:$0xf]
  %v930 = vld [vmem:[%s899 + $0x78] sm:$0xf]
  %v931 = vld [vmem:[%s899 + $0x7c] sm:$0xf]
  %v964 = vunpack.c.l.b16 %v900
  %v965 = vunpack.c.l.b16 %v901
  %v966 = vunpack.c.l.b16 %v902
  %v967 = vunpack.c.l.b16 %v903
  %v968 = vunpack.c.l.b16 %v904
  %v969 = vunpack.c.l.b16 %v905
  %v970 = vunpack.c.l.b16 %v906
  %v971 = vunpack.c.l.b16 %v907
  %v972 = vunpack.c.l.b16 %v908
  %v973 = vunpack.c.l.b16 %v909
  %v974 = vunpack.c.l.b16 %v910
  %v975 = vunpack.c.l.b16 %v911
  %v976 = vunpack.c.l.b16 %v912
  %v977 = vunpack.c.l.b16 %v913
  %v978 = vunpack.c.l.b16 %v914
  %v979 = vunpack.c.l.b16 %v915
  %v980 = vunpack.c.l.b16 %v916
  %v981 = vunpack.c.l.b16 %v917
  %v982 = vunpack.c.l.b16 %v918
  %v983 = vunpack.c.l.b16 %v919
  %v984 = vunpack.c.l.b16 %v920
  %v985 = vunpack.c.l.b16 %v921
  %v986 = vunpack.c.l.b16 %v922
  %v987 = vunpack.c.l.b16 %v923
  %v988 = vunpack.c.l.b16 %v924
  %v989 = vunpack.c.l.b16 %v925
  %v990 = vunpack.c.l.b16 %v926
  %v991 = vunpack.c.l.b16 %v927
  %v992 = vunpack.c.l.b16 %v928
  %v993 = vunpack.c.l.b16 %v929
  %v994 = vunpack.c.l.b16 %v930
  %v995 = vunpack.c.l.b16 %v931
  %v996 = vpack.c.b16 %v965, %v964
  %v997 = vpack.c.b16 %v967, %v966
  %v998 = vpack.c.b16 %v969, %v968
  %v999 = vpack.c.b16 %v971, %v970
  %v1000 = vpack.c.b16 %v973, %v972
  %v1001 = vpack.c.b16 %v975, %v974
  %v1002 = vpack.c.b16 %v977, %v976
  %v1003 = vpack.c.b16 %v979, %v978
  %v1004 = vpack.c.b16 %v981, %v980
  %v1005 = vpack.c.b16 %v983, %v982
  %v1006 = vpack.c.b16 %v985, %v984
  %v1007 = vpack.c.b16 %v987, %v986
  %v1008 = vpack.c.b16 %v989, %v988
  %v1009 = vpack.c.b16 %v991, %v990
  %v1010 = vpack.c.b16 %v993, %v992
  %v1011 = vpack.c.b16 %v995, %v994
  %1028 = vmatprep.subr.bf16.mxu0 0
  %1029 = vmatpush1.bf16.msra.mxu0 %v996
  %1030 = vmatprep.subr.bf16.mxu0 0
  %1031 = vmatpush1.bf16.msra.mxu0 %v997
  %1032 = vmatprep.subr.bf16.mxu0 0
  %1033 = vmatpush1.bf16.msra.mxu0 %v998
  %1034 = vmatprep.subr.bf16.mxu0 0
  %1035 = vmatpush1.bf16.msra.mxu0 %v999
  %1036 = vmatprep.subr.bf16.mxu0 0
  %1037 = vmatpush1.bf16.msra.mxu0 %v1000
  %1038 = vmatprep.subr.bf16.mxu0 0
  %1039 = vmatpush1.bf16.msra.mxu0 %v1001
  %1040 = vmatprep.subr.bf16.mxu0 0
  %1041 = vmatpush1.bf16.msra.mxu0 %v1002
  %1042 = vmatprep.subr.bf16.mxu0 0
  %1043 = vmatpush1.bf16.msra.mxu0 %v1003
  %1044 = vmatprep.subr.bf16.mxu0 0
  %1045 = vmatpush1.bf16.msra.mxu0 %v1004
  %1046 = vmatprep.subr.bf16.mxu0 0
  %1047 = vmatpush1.bf16.msra.mxu0 %v1005
  %1048 = vmatprep.subr.bf16.mxu0 0
  %1049 = vmatpush1.bf16.msra.mxu0 %v1006
  %1050 = vmatprep.subr.bf16.mxu0 0
  %1051 = vmatpush1.bf16.msra.mxu0 %v1007
  %1052 = vmatprep.subr.bf16.mxu0 0
  %1053 = vmatpush1.bf16.msra.mxu0 %v1008
  %1054 = vmatprep.subr.bf16.mxu0 0
  %1055 = vmatpush1.bf16.msra.mxu0 %v1009
  %1056 = vmatprep.subr.bf16.mxu0 0
  %1057 = vmatpush1.bf16.msra.mxu0 %v1010
  %1058 = vmatprep.subr.bf16.mxu0 0
  %1059 = vmatpush1.bf16.msra.mxu0 %v1011
  %1060 = vmatprep.mubr.bf16.mxu0 %v867
  %1061 = vmatmul.mubr.bf16.gmra.mrb[0].mxu0 %v819
  %v1062 = vpop.f32.mrb[0].mxu0
  %v1063 = vadd.f32 0.0, %v1062
  %v1064 = vpop.f32.mrb[0].mxu0
  %v1065 = vpop.f32.mrb[0].mxu0
  %v1066 = vadd.f32 0.0, %v1065
  %v1067 = vpop.f32.mrb[0].mxu0
  %1068 = vmatprep.mubr.bf16.mxu0 %v868
  %1069 = vmatmul.mubr.bf16.gmra.mrb[0].mxu0 %v820
  %v1070 = vpop.f32.mrb[0].mxu0
  %v1071 = vadd.f32 0.0, %v1070
  %v1072 = vpop.f32.mrb[0].mxu0
  %v1073 = vpop.f32.mrb[0].mxu0
  %v1074 = vadd.f32 0.0, %v1073
  %v1075 = vpop.f32.mrb[0].mxu0
  %1076 = vmatprep.mubr.bf16.mxu0 %v869
  %1077 = vmatmul.mubr.bf16.gmra.mrb[0].mxu0 %v821
  %v1078 = vpop.f32.mrb[0].mxu0
  %v1079 = vadd.f32 0.0, %v1078
  %v1080 = vpop.f32.mrb[0].mxu0
  %v1081 = vpop.f32.mrb[0].mxu0
  %v1082 = vadd.f32 0.0, %v1081
  %v1083 = vpop.f32.mrb[0].mxu0
  %1084 = vmatprep.mubr.bf16.mxu0 %v870
  %1085 = vmatmul.mubr.bf16.gmra.mrb[0].mxu0 %v822
  %v1086 = vpop.f32.mrb[0].mxu0
  %v1087 = vadd.f32 0.0, %v1086
  %v1088 = vpop.f32.mrb[0].mxu0
  %v1089 = vpop.f32.mrb[0].mxu0
  %v1090 = vadd.f32 0.0, %v1089
  %v1091 = vpop.f32.mrb[0].mxu0
  %1092 = vmatprep.mubr.bf16.mxu0 %v871
  %1093 = vmatmul.mubr.bf16.gmra.mrb[0].mxu0 %v823
  %v1094 = vpop.f32.mrb[0].mxu0
  %v1095 = vadd.f32 0.0, %v1094
  %v1096 = vpop.f32.mrb[0].mxu0
  %v1097 = vpop.f32.mrb[0].mxu0
  %v1098 = vadd.f32 0.0, %v1097
  %v1099 = vpop.f32.mrb[0].mxu0
  %1100 = vmatprep.mubr.bf16.mxu0 %v872
  %1101 = vmatmul.mubr.bf16.gmra.mrb[0].mxu0 %v824
  %v1102 = vpop.f32.mrb[0].mxu0
  %v1103 = vadd.f32 0.0, %v1102
  %v1104 = vpop.f32.mrb[0].mxu0
  %v1105 = vpop.f32.mrb[0].mxu0
  %v1106 = vadd.f32 0.0, %v1105
  %v1107 = vpop.f32.mrb[0].mxu0
  %1108 = vmatprep.mubr.bf16.mxu0 %v873
  %1109 = vmatmul.mubr.bf16.gmra.mrb[0].mxu0 %v825
  %v1110 = vpop.f32.mrb[0].mxu0
  %v1111 = vadd.f32 0.0, %v1110
  %v1112 = vpop.f32.mrb[0].mxu0
  %v1113 = vpop.f32.mrb[0].mxu0
  %v1114 = vadd.f32 0.0, %v1113
  %v1115 = vpop.f32.mrb[0].mxu0
  %1116 = vmatprep.mubr.bf16.mxu0 %v874
  %1117 = vmatmul.mubr.bf16.gmra.mrb[0].mxu0 %v826
  %v1118 = vpop.f32.mrb[0].mxu0
  %v1119 = vadd.f32 0.0, %v1118
  %v1120 = vpop.f32.mrb[0].mxu0
  %v1121 = vpop.f32.mrb[0].mxu0
  %v1122 = vadd.f32 0.0, %v1121
  %v1123 = vpop.f32.mrb[0].mxu0
  %1124 = vdwg.mxu0
  %v1125 = vadd.f32 %v883, %v1063
  %v1126 = vadd.f32 %v884, %v1066
  %v1127 = vadd.f32 %v885, %v1071
  %v1128 = vadd.f32 %v886, %v1074
  %v1129 = vadd.f32 %v887, %v1079
  %v1130 = vadd.f32 %v888, %v1082
  %v1131 = vadd.f32 %v889, %v1087
  %v1132 = vadd.f32 %v890, %v1090
  %v1133 = vadd.f32 %v891, %v1095
  %v1134 = vadd.f32 %v892, %v1098
  %v1135 = vadd.f32 %v893, %v1103
  %v1136 = vadd.f32 %v894, %v1106
  %v1137 = vadd.f32 %v895, %v1111
  %v1138 = vadd.f32 %v896, %v1114
  %v1139 = vadd.f32 %v897, %v1119
  %v1140 = vadd.f32 %v898, %v1122
  %1141 = vst [vmem:[#allocation3] sm:$0xff] %v1125
  %1142 = vst [vmem:[#allocation3 + $0x8] sm:$0xff] %v1126
  %1143 = vst [vmem:[#allocation3 + $0x10] sm:$0xff] %v1127
  %1144 = vst [vmem:[#allocation3 + $0x18] sm:$0xff] %v1128
  %1145 = vst [vmem:[#allocation3 + $0x20] sm:$0xff] %v1129
  %1146 = vst [vmem:[#allocation3 + $0x28] sm:$0xff] %v1130
  %1147 = vst [vmem:[#allocation3 + $0x30] sm:$0xff] %v1131
  %1148 = vst [vmem:[#allocation3 + $0x38] sm:$0xff] %v1132
  %1149 = vst [vmem:[#allocation3 + $0x40] sm:$0xff] %v1133
  %1150 = vst [vmem:[#allocation3 + $0x48] sm:$0xff] %v1134
  %1151 = vst [vmem:[#allocation3 + $0x50] sm:$0xff] %v1135
  %1152 = vst [vmem:[#allocation3 + $0x58] sm:$0xff] %v1136
  %1153 = vst [vmem:[#allocation3 + $0x60] sm:$0xff] %v1137
  %1154 = vst [vmem:[#allocation3 + $0x68] sm:$0xff] %v1138
  %1155 = vst [vmem:[#allocation3 + $0x70] sm:$0xff] %v1139
  %1156 = vst [vmem:[#allocation3 + $0x78] sm:$0xff] %v1140
  %v1157 = vld [vmem:[%s786] sm:$0xf]
  %v1158 = vld [vmem:[%s786 + $0x4] sm:$0x1]
  %v1159 = vld [vmem:[%s786 + $0x8] sm:$0xf]
  %v1160 = vld [vmem:[%s786 + $0xc] sm:$0x1]
  %v1161 = vld [vmem:[%s786 + $0x10] sm:$0xf]
  %v1162 = vld [vmem:[%s786 + $0x14] sm:$0x1]
  %v1163 = vld [vmem:[%s786 + $0x18] sm:$0xf]
  %v1164 = vld [vmem:[%s786 + $0x1c] sm:$0x1]
  %v1165 = vld [vmem:[%s786 + $0x20] sm:$0xf]
  %v1166 = vld [vmem:[%s786 + $0x24] sm:$0x1]
  %v1167 = vld [vmem:[%s786 + $0x28] sm:$0xf]
  %v1168 = vld [vmem:[%s786 + $0x2c] sm:$0x1]
  %v1169 = vld [vmem:[%s786 + $0x30] sm:$0xf]
  %v1170 = vld [vmem:[%s786 + $0x34] sm:$0x1]
  %v1171 = vld [vmem:[%s786 + $0x38] sm:$0xf]
  %v1172 = vld [vmem:[%s786 + $0x3c] sm:$0x1]
  %v1173 = vld [vmem:[%s786 + $0x50] sm:$0xf]
  %v1174 = vld [vmem:[%s786 + $0x54] sm:$0x1]
  %v1175 = vld [vmem:[%s786 + $0x58] sm:$0xf]
  %v1176 = vld [vmem:[%s786 + $0x5c] sm:$0x1]
  %v1177 = vld [vmem:[%s786 + $0x60] sm:$0xf]
  %v1178 = vld [vmem:[%s786 + $0x64] sm:$0x1]
  %v1179 = vld [vmem:[%s786 + $0x68] sm:$0xf]
  %v1180 = vld [vmem:[%s786 + $0x6c] sm:$0x1]
  %v1181 = vld [vmem:[%s786 + $0x70] sm:$0xf]
  %v1182 = vld [vmem:[%s786 + $0x74] sm:$0x1]
  %v1183 = vld [vmem:[%s786 + $0x78] sm:$0xf]
  %v1184 = vld [vmem:[%s786 + $0x7c] sm:$0x1]
  %v1185 = vld [vmem:[%s786 + $0x80] sm:$0xf]
  %v1186 = vld [vmem:[%s786 + $0x84] sm:$0x1]
  %v1187 = vld [vmem:[%s786 + $0x88] sm:$0xf]
  %v1188 = vld [vmem:[%s786 + $0x8c] sm:$0x1]
  %v1190 = vshrl.u32 %v1157, 16
  %v1192 = vrot.slane %v1190, 4
  %v1193 = vshll.u32 %v1157, 16
  %v1195 = vrot.slane %v1193, 5
  %v1196 = vor.u32 %v1192, %v1195
  %v1197 = vrot.slane %v1196, 4
  %v1199 = vshll.u32 %v1158, 16
  %v1201 = vrot.slane %v1199, 5
  %v1202 = vsel %vm77, %v1197, %v1201
  %v1204 = vshrl.u32 %v1159, 16
  %v1206 = vrot.slane %v1204, 4
  %v1207 = vshll.u32 %v1159, 16
  %v1209 = vrot.slane %v1207, 5
  %v1210 = vor.u32 %v1206, %v1209
  %v1211 = vrot.slane %v1210, 4
  %v1213 = vshll.u32 %v1160, 16
  %v1215 = vrot.slane %v1213, 5
  %v1216 = vsel %vm77, %v1211, %v1215
  %v1218 = vshrl.u32 %v1161, 16
  %v1220 = vrot.slane %v1218, 4
  %v1221 = vshll.u32 %v1161, 16
  %v1223 = vrot.slane %v1221, 5
  %v1224 = vor.u32 %v1220, %v1223
  %v1225 = vrot.slane %v1224, 4
  %v1227 = vshll.u32 %v1162, 16
  %v1229 = vrot.slane %v1227, 5
  %v1230 = vsel %vm77, %v1225, %v1229
  %v1232 = vshrl.u32 %v1163, 16
  %v1234 = vrot.slane %v1232, 4
  %v1235 = vshll.u32 %v1163, 16
  %v1237 = vrot.slane %v1235, 5
  %v1238 = vor.u32 %v1234, %v1237
  %v1239 = vrot.slane %v1238, 4
  %v1241 = vshll.u32 %v1164, 16
  %v1243 = vrot.slane %v1241, 5
  %v1244 = vsel %vm77, %v1239, %v1243
  %v1246 = vshrl.u32 %v1165, 16
  %v1248 = vrot.slane %v1246, 4
  %v1249 = vshll.u32 %v1165, 16
  %v1251 = vrot.slane %v1249, 5
  %v1252 = vor.u32 %v1248, %v1251
  %v1253 = vrot.slane %v1252, 4
  %v1255 = vshll.u32 %v1166, 16
  %v1257 = vrot.slane %v1255, 5
  %v1258 = vsel %vm77, %v1253, %v1257
  %v1260 = vshrl.u32 %v1167, 16
  %v1262 = vrot.slane %v1260, 4
  %v1263 = vshll.u32 %v1167, 16
  %v1265 = vrot.slane %v1263, 5
  %v1266 = vor.u32 %v1262, %v1265
  %v1267 = vrot.slane %v1266, 4
  %v1269 = vshll.u32 %v1168, 16
  %v1271 = vrot.slane %v1269, 5
  %v1272 = vsel %vm77, %v1267, %v1271
  %v1274 = vshrl.u32 %v1169, 16
  %v1276 = vrot.slane %v1274, 4
  %v1277 = vshll.u32 %v1169, 16
  %v1279 = vrot.slane %v1277, 5
  %v1280 = vor.u32 %v1276, %v1279
  %v1281 = vrot.slane %v1280, 4
  %v1283 = vshll.u32 %v1170, 16
  %v1285 = vrot.slane %v1283, 5
  %v1286 = vsel %vm77, %v1281, %v1285
  %v1288 = vshrl.u32 %v1171, 16
  %v1290 = vrot.slane %v1288, 4
  %v1291 = vshll.u32 %v1171, 16
  %v1293 = vrot.slane %v1291, 5
  %v1294 = vor.u32 %v1290, %v1293
  %v1295 = vrot.slane %v1294, 4
  %v1297 = vshll.u32 %v1172, 16
  %v1299 = vrot.slane %v1297, 5
  %v1300 = vsel %vm77, %v1295, %v1299
  %v1302 = vshrl.u32 %v1173, 16
  %v1304 = vrot.slane %v1302, 4
  %v1305 = vshll.u32 %v1173, 16
  %v1307 = vrot.slane %v1305, 5
  %v1308 = vor.u32 %v1304, %v1307
  %v1309 = vrot.slane %v1308, 4
  %v1311 = vshll.u32 %v1174, 16
  %v1313 = vrot.slane %v1311, 5
  %v1314 = vsel %vm77, %v1309, %v1313
  %v1316 = vshrl.u32 %v1175, 16
  %v1318 = vrot.slane %v1316, 4
  %v1319 = vshll.u32 %v1175, 16
  %v1321 = vrot.slane %v1319, 5
  %v1322 = vor.u32 %v1318, %v1321
  %v1323 = vrot.slane %v1322, 4
  %v1325 = vshll.u32 %v1176, 16
  %v1327 = vrot.slane %v1325, 5
  %v1328 = vsel %vm77, %v1323, %v1327
  %v1330 = vshrl.u32 %v1177, 16
  %v1332 = vrot.slane %v1330, 4
  %v1333 = vshll.u32 %v1177, 16
  %v1335 = vrot.slane %v1333, 5
  %v1336 = vor.u32 %v1332, %v1335
  %v1337 = vrot.slane %v1336, 4
  %v1339 = vshll.u32 %v1178, 16
  %v1341 = vrot.slane %v1339, 5
  %v1342 = vsel %vm77, %v1337, %v1341
  %v1344 = vshrl.u32 %v1179, 16
  %v1346 = vrot.slane %v1344, 4
  %v1347 = vshll.u32 %v1179, 16
  %v1349 = vrot.slane %v1347, 5
  %v1350 = vor.u32 %v1346, %v1349
  %v1351 = vrot.slane %v1350, 4
  %v1353 = vshll.u32 %v1180, 16
  %v1355 = vrot.slane %v1353, 5
  %v1356 = vsel %vm77, %v1351, %v1355
  %v1358 = vshrl.u32 %v1181, 16
  %v1360 = vrot.slane %v1358, 4
  %v1361 = vshll.u32 %v1181, 16
  %v1363 = vrot.slane %v1361, 5
  %v1364 = vor.u32 %v1360, %v1363
  %v1365 = vrot.slane %v1364, 4
  %v1367 = vshll.u32 %v1182, 16
  %v1369 = vrot.slane %v1367, 5
  %v1370 = vsel %vm77, %v1365, %v1369
  %v1372 = vshrl.u32 %v1183, 16
  %v1374 = vrot.slane %v1372, 4
  %v1375 = vshll.u32 %v1183, 16
  %v1377 = vrot.slane %v1375, 5
  %v1378 = vor.u32 %v1374, %v1377
  %v1379 = vrot.slane %v1378, 4
  %v1381 = vshll.u32 %v1184, 16
  %v1383 = vrot.slane %v1381, 5
  %v1384 = vsel %vm77, %v1379, %v1383
  %v1386 = vshrl.u32 %v1185, 16
  %v1388 = vrot.slane %v1386, 4
  %v1389 = vshll.u32 %v1185, 16
  %v1391 = vrot.slane %v1389, 5
  %v1392 = vor.u32 %v1388, %v1391
  %v1393 = vrot.slane %v1392, 4
  %v1395 = vshll.u32 %v1186, 16
  %v1397 = vrot.slane %v1395, 5
  %v1398 = vsel %vm77, %v1393, %v1397
  %v1400 = vshrl.u32 %v1187, 16
  %v1402 = vrot.slane %v1400, 4
  %v1403 = vshll.u32 %v1187, 16
  %v1405 = vrot.slane %v1403, 5
  %v1406 = vor.u32 %v1402, %v1405
  %v1407 = vrot.slane %v1406, 4
  %v1409 = vshll.u32 %v1188, 16
  %v1411 = vrot.slane %v1409, 5
  %v1412 = vsel %vm77, %v1407, %v1411
  %v1413 = vld [vmem:[%s786] sm:$0xe]
  %v1414 = vld [vmem:[%s786 + $0x8] sm:$0xe]
  %v1415 = vld [vmem:[%s786 + $0x10] sm:$0xe]
  %v1416 = vld [vmem:[%s786 + $0x18] sm:$0xe]
  %v1417 = vld [vmem:[%s786 + $0x20] sm:$0xe]
  %v1418 = vld [vmem:[%s786 + $0x28] sm:$0xe]
  %v1419 = vld [vmem:[%s786 + $0x30] sm:$0xe]
  %v1420 = vld [vmem:[%s786 + $0x38] sm:$0xe]
  %v1421 = vld [vmem:[%s786 + $0x50] sm:$0xe]
  %v1422 = vld [vmem:[%s786 + $0x58] sm:$0xe]
  %v1423 = vld [vmem:[%s786 + $0x60] sm:$0xe]
  %v1424 = vld [vmem:[%s786 + $0x68] sm:$0xe]
  %v1425 = vld [vmem:[%s786 + $0x70] sm:$0xe]
  %v1426 = vld [vmem:[%s786 + $0x78] sm:$0xe]
  %v1427 = vld [vmem:[%s786 + $0x80] sm:$0xe]
  %v1428 = vld [vmem:[%s786 + $0x88] sm:$0xe]
  %v1461 = vrot.slane %v1413, 5
  %v1462 = vrot.slane %v1461, 4
  %v1463 = vrot.slane %v1158, 5
  %v1464 = vsel %vm721, %v1462, %v1463
  %v1465 = vrot.slane %v1414, 5
  %v1466 = vrot.slane %v1465, 4
  %v1467 = vrot.slane %v1160, 5
  %v1468 = vsel %vm721, %v1466, %v1467
  %v1469 = vrot.slane %v1415, 5
  %v1470 = vrot.slane %v1469, 4
  %v1471 = vrot.slane %v1162, 5
  %v1472 = vsel %vm721, %v1470, %v1471
  %v1473 = vrot.slane %v1416, 5
  %v1474 = vrot.slane %v1473, 4
  %v1475 = vrot.slane %v1164, 5
  %v1476 = vsel %vm721, %v1474, %v1475
  %v1477 = vrot.slane %v1417, 5
  %v1478 = vrot.slane %v1477, 4
  %v1479 = vrot.slane %v1166, 5
  %v1480 = vsel %vm721, %v1478, %v1479
  %v1481 = vrot.slane %v1418, 5
  %v1482 = vrot.slane %v1481, 4
  %v1483 = vrot.slane %v1168, 5
  %v1484 = vsel %vm721, %v1482, %v1483
  %v1485 = vrot.slane %v1419, 5
  %v1486 = vrot.slane %v1485, 4
  %v1487 = vrot.slane %v1170, 5
  %v1488 = vsel %vm721, %v1486, %v1487
  %v1489 = vrot.slane %v1420, 5
  %v1490 = vrot.slane %v1489, 4
  %v1491 = vrot.slane %v1172, 5
  %v1492 = vsel %vm721, %v1490, %v1491
  %v1493 = vrot.slane %v1421, 5
  %v1494 = vrot.slane %v1493, 4
  %v1495 = vrot.slane %v1174, 5
  %v1496 = vsel %vm721, %v1494, %v1495
  %v1497 = vrot.slane %v1422, 5
  %v1498 = vrot.slane %v1497, 4
  %v1499 = vrot.slane %v1176, 5
  %v1500 = vsel %vm721, %v1498, %v1499
  %v1501 = vrot.slane %v1423, 5
  %v1502 = vrot.slane %v1501, 4
  %v1503 = vrot.slane %v1178, 5
  %v1504 = vsel %vm721, %v1502, %v1503
  %v1505 = vrot.slane %v1424, 5
  %v1506 = vrot.slane %v1505, 4
  %v1507 = vrot.slane %v1180, 5
  %v1508 = vsel %vm721, %v1506, %v1507
  %v1509 = vrot.slane %v1425, 5
  %v1510 = vrot.slane %v1509, 4
  %v1511 = vrot.slane %v1182, 5
  %v1512 = vsel %vm721, %v1510, %v1511
  %v1513 = vrot.slane %v1426, 5
  %v1514 = vrot.slane %v1513, 4
  %v1515 = vrot.slane %v1184, 5
  %v1516 = vsel %vm721, %v1514, %v1515
  %v1517 = vrot.slane %v1427, 5
  %v1518 = vrot.slane %v1517, 4
  %v1519 = vrot.slane %v1186, 5
  %v1520 = vsel %vm721, %v1518, %v1519
  %v1521 = vrot.slane %v1428, 5
  %v1522 = vrot.slane %v1521, 4
  %v1523 = vrot.slane %v1188, 5
  %v1524 = vsel %vm721, %v1522, %v1523
  %v1525 = vunpack.c.l.b16 %v1202
  %v1526 = vunpack.c.l.b16 %v1216
  %v1527 = vunpack.c.l.b16 %v1230
  %v1528 = vunpack.c.l.b16 %v1244
  %v1529 = vunpack.c.l.b16 %v1258
  %v1530 = vunpack.c.l.b16 %v1272
  %v1531 = vunpack.c.l.b16 %v1286
  %v1532 = vunpack.c.l.b16 %v1300
  %v1533 = vunpack.c.l.b16 %v1314
  %v1534 = vunpack.c.l.b16 %v1328
  %v1535 = vunpack.c.l.b16 %v1342
  %v1536 = vunpack.c.l.b16 %v1356
  %v1537 = vunpack.c.l.b16 %v1370
  %v1538 = vunpack.c.l.b16 %v1384
  %v1539 = vunpack.c.l.b16 %v1398
  %v1540 = vunpack.c.l.b16 %v1412
  %v1541 = vpack.c.b16 %v1526, %v1525
  %v1542 = vpack.c.b16 %v1528, %v1527
  %v1543 = vpack.c.b16 %v1530, %v1529
  %v1544 = vpack.c.b16 %v1532, %v1531
  %v1545 = vpack.c.b16 %v1534, %v1533
  %v1546 = vpack.c.b16 %v1536, %v1535
  %v1547 = vpack.c.b16 %v1538, %v1537
  %v1548 = vpack.c.b16 %v1540, %v1539
  %v1557 = vunpack.c.l.b16 %v1464
  %v1558 = vunpack.c.l.b16 %v1468
  %v1559 = vunpack.c.l.b16 %v1472
  %v1560 = vunpack.c.l.b16 %v1476
  %v1561 = vunpack.c.l.b16 %v1480
  %v1562 = vunpack.c.l.b16 %v1484
  %v1563 = vunpack.c.l.b16 %v1488
  %v1564 = vunpack.c.l.b16 %v1492
  %v1565 = vunpack.c.l.b16 %v1496
  %v1566 = vunpack.c.l.b16 %v1500
  %v1567 = vunpack.c.l.b16 %v1504
  %v1568 = vunpack.c.l.b16 %v1508
  %v1569 = vunpack.c.l.b16 %v1512
  %v1570 = vunpack.c.l.b16 %v1516
  %v1571 = vunpack.c.l.b16 %v1520
  %v1572 = vunpack.c.l.b16 %v1524
  %v1573 = vpack.c.b16 %v1558, %v1557
  %v1574 = vpack.c.b16 %v1560, %v1559
  %v1575 = vpack.c.b16 %v1562, %v1561
  %v1576 = vpack.c.b16 %v1564, %v1563
  %v1577 = vpack.c.b16 %v1566, %v1565
  %v1578 = vpack.c.b16 %v1568, %v1567
  %v1579 = vpack.c.b16 %v1570, %v1569
  %v1580 = vpack.c.b16 %v1572, %v1571
  %v1589 = vld [vmem:[#allocation3] sm:$0xff]
  %v1590 = vld [vmem:[#allocation3 + $0x8] sm:$0xff]
  %v1591 = vld [vmem:[#allocation3 + $0x10] sm:$0xff]
  %v1592 = vld [vmem:[#allocation3 + $0x18] sm:$0xff]
  %v1593 = vld [vmem:[#allocation3 + $0x20] sm:$0xff]
  %v1594 = vld [vmem:[#allocation3 + $0x28] sm:$0xff]
  %v1595 = vld [vmem:[#allocation3 + $0x30] sm:$0xff]
  %v1596 = vld [vmem:[#allocation3 + $0x38] sm:$0xff]
  %v1597 = vld [vmem:[#allocation3 + $0x40] sm:$0xff]
  %v1598 = vld [vmem:[#allocation3 + $0x48] sm:$0xff]
  %v1599 = vld [vmem:[#allocation3 + $0x50] sm:$0xff]
  %v1600 = vld [vmem:[#allocation3 + $0x58] sm:$0xff]
  %v1601 = vld [vmem:[#allocation3 + $0x60] sm:$0xff]
  %v1602 = vld [vmem:[#allocation3 + $0x68] sm:$0xff]
  %v1603 = vld [vmem:[#allocation3 + $0x70] sm:$0xff]
  %v1604 = vld [vmem:[#allocation3 + $0x78] sm:$0xff]
  %s1605 = scalar_lea.vmem %s1, 256
  %v1606 = vld [vmem:[%s1605] sm:$0xf]
  %v1607 = vld [vmem:[%s1605 + $0x4] sm:$0xf]
  %v1608 = vld [vmem:[%s1605 + $0x8] sm:$0xf]
  %v1609 = vld [vmem:[%s1605 + $0xc] sm:$0xf]
  %v1610 = vld [vmem:[%s1605 + $0x10] sm:$0xf]
  %v1611 = vld [vmem:[%s1605 + $0x14] sm:$0xf]
  %v1612 = vld [vmem:[%s1605 + $0x18] sm:$0xf]
  %v1613 = vld [vmem:[%s1605 + $0x1c] sm:$0xf]
  %v1614 = vld [vmem:[%s1605 + $0x20] sm:$0xf]
  %v1615 = vld [vmem:[%s1605 + $0x24] sm:$0xf]
  %v1616 = vld [vmem:[%s1605 + $0x28] sm:$0xf]
  %v1617 = vld [vmem:[%s1605 + $0x2c] sm:$0xf]
  %v1618 = vld [vmem:[%s1605 + $0x30] sm:$0xf]
  %v1619 = vld [vmem:[%s1605 + $0x34] sm:$0xf]
  %v1620 = vld [vmem:[%s1605 + $0x38] sm:$0xf]
  %v1621 = vld [vmem:[%s1605 + $0x3c] sm:$0xf]
  %v1622 = vld [vmem:[%s1605 + $0x40] sm:$0xf]
  %v1623 = vld [vmem:[%s1605 + $0x44] sm:$0xf]
  %v1624 = vld [vmem:[%s1605 + $0x48] sm:$0xf]
  %v1625 = vld [vmem:[%s1605 + $0x4c] sm:$0xf]
  %v1626 = vld [vmem:[%s1605 + $0x50] sm:$0xf]
  %v1627 = vld [vmem:[%s1605 + $0x54] sm:$0xf]
  %v1628 = vld [vmem:[%s1605 + $0x58] sm:$0xf]
  %v1629 = vld [vmem:[%s1605 + $0x5c] sm:$0xf]
  %v1630 = vld [vmem:[%s1605 + $0x60] sm:$0xf]
  %v1631 = vld [vmem:[%s1605 + $0x64] sm:$0xf]
  %v1632 = vld [vmem:[%s1605 + $0x68] sm:$0xf]
  %v1633 = vld [vmem:[%s1605 + $0x6c] sm:$0xf]
  %v1634 = vld [vmem:[%s1605 + $0x70] sm:$0xf]
  %v1635 = vld [vmem:[%s1605 + $0x74] sm:$0xf]
  %v1636 = vld [vmem:[%s1605 + $0x78] sm:$0xf]
  %v1637 = vld [vmem:[%s1605 + $0x7c] sm:$0xf]
  %v1670 = vunpack.c.l.b16 %v1606
  %v1671 = vunpack.c.l.b16 %v1607
  %v1672 = vunpack.c.l.b16 %v1608
  %v1673 = vunpack.c.l.b16 %v1609
  %v1674 = vunpack.c.l.b16 %v1610
  %v1675 = vunpack.c.l.b16 %v1611
  %v1676 = vunpack.c.l.b16 %v1612
  %v1677 = vunpack.c.l.b16 %v1613
  %v1678 = vunpack.c.l.b16 %v1614
  %v1679 = vunpack.c.l.b16 %v1615
  %v1680 = vunpack.c.l.b16 %v1616
  %v1681 = vunpack.c.l.b16 %v1617
  %v1682 = vunpack.c.l.b16 %v1618
  %v1683 = vunpack.c.l.b16 %v1619
  %v1684 = vunpack.c.l.b16 %v1620
  %v1685 = vunpack.c.l.b16 %v1621
  %v1686 = vunpack.c.l.b16 %v1622
  %v1687 = vunpack.c.l.b16 %v1623
  %v1688 = vunpack.c.l.b16 %v1624
  %v1689 = vunpack.c.l.b16 %v1625
  %v1690 = vunpack.c.l.b16 %v1626
  %v1691 = vunpack.c.l.b16 %v1627
  %v1692 = vunpack.c.l.b16 %v1628
  %v1693 = vunpack.c.l.b16 %v1629
  %v1694 = vunpack.c.l.b16 %v1630
  %v1695 = vunpack.c.l.b16 %v1631
  %v1696 = vunpack.c.l.b16 %v1632
  %v1697 = vunpack.c.l.b16 %v1633
  %v1698 = vunpack.c.l.b16 %v1634
  %v1699 = vunpack.c.l.b16 %v1635
  %v1700 = vunpack.c.l.b16 %v1636
  %v1701 = vunpack.c.l.b16 %v1637
  %v1702 = vpack.c.b16 %v1671, %v1670
  %v1703 = vpack.c.b16 %v1673, %v1672
  %v1704 = vpack.c.b16 %v1675, %v1674
  %v1705 = vpack.c.b16 %v1677, %v1676
  %v1706 = vpack.c.b16 %v1679, %v1678
  %v1707 = vpack.c.b16 %v1681, %v1680
  %v1708 = vpack.c.b16 %v1683, %v1682
  %v1709 = vpack.c.b16 %v1685, %v1684
  %v1710 = vpack.c.b16 %v1687, %v1686
  %v1711 = vpack.c.b16 %v1689, %v1688
  %v1712 = vpack.c.b16 %v1691, %v1690
  %v1713 = vpack.c.b16 %v1693, %v1692
  %v1714 = vpack.c.b16 %v1695, %v1694
  %v1715 = vpack.c.b16 %v1697, %v1696
  %v1716 = vpack.c.b16 %v1699, %v1698
  %v1717 = vpack.c.b16 %v1701, %v1700
  %1734 = vmatprep.subr.bf16.mxu0 0
  %1735 = vmatpush1.bf16.msra.mxu0 %v1702
  %1736 = vmatprep.subr.bf16.mxu0 0
  %1737 = vmatpush1.bf16.msra.mxu0 %v1703
  %1738 = vmatprep.subr.bf16.mxu0 0
  %1739 = vmatpush1.bf16.msra.mxu0 %v1704
  %1740 = vmatprep.subr.bf16.mxu0 0
  %1741 = vmatpush1.bf16.msra.mxu0 %v1705
  %1742 = vmatprep.subr.bf16.mxu0 0
  %1743 = vmatpush1.bf16.msra.mxu0 %v1706
  %1744 = vmatprep.subr.bf16.mxu0 0
  %1745 = vmatpush1.bf16.msra.mxu0 %v1707
  %1746 = vmatprep.subr.bf16.mxu0 0
  %1747 = vmatpush1.bf16.msra.mxu0 %v1708
  %1748 = vmatprep.subr.bf16.mxu0 0
  %1749 = vmatpush1.bf16.msra.mxu0 %v1709
  %1750 = vmatprep.subr.bf16.mxu0 0
  %1751 = vmatpush1.bf16.msra.mxu0 %v1710
  %1752 = vmatprep.subr.bf16.mxu0 0
  %1753 = vmatpush1.bf16.msra.mxu0 %v1711
  %1754 = vmatprep.subr.bf16.mxu0 0
  %1755 = vmatpush1.bf16.msra.mxu0 %v1712
  %1756 = vmatprep.subr.bf16.mxu0 0
  %1757 = vmatpush1.bf16.msra.mxu0 %v1713
  %1758 = vmatprep.subr.bf16.mxu0 0
  %1759 = vmatpush1.bf16.msra.mxu0 %v1714
  %1760 = vmatprep.subr.bf16.mxu0 0
  %1761 = vmatpush1.bf16.msra.mxu0 %v1715
  %1762 = vmatprep.subr.bf16.mxu0 0
  %1763 = vmatpush1.bf16.msra.mxu0 %v1716
  %1764 = vmatprep.subr.bf16.mxu0 0
  %1765 = vmatpush1.bf16.msra.mxu0 %v1717
  %1766 = vmatprep.mubr.bf16.mxu0 %v1573
  %1767 = vmatmul.mubr.bf16.gmra.mrb[0].mxu0 %v1541
  %v1768 = vpop.f32.mrb[0].mxu0
  %v1769 = vadd.f32 0.0, %v1768
  %v1770 = vpop.f32.mrb[0].mxu0
  %v1771 = vpop.f32.mrb[0].mxu0
  %v1772 = vadd.f32 0.0, %v1771
  %v1773 = vpop.f32.mrb[0].mxu0
  %1774 = vmatprep.mubr.bf16.mxu0 %v1574
  %1775 = vmatmul.mubr.bf16.gmra.mrb[0].mxu0 %v1542
  %v1776 = vpop.f32.mrb[0].mxu0
  %v1777 = vadd.f32 0.0, %v1776
  %v1778 = vpop.f32.mrb[0].mxu0
  %v1779 = vpop.f32.mrb[0].mxu0
  %v1780 = vadd.f32 0.0, %v1779
  %v1781 = vpop.f32.mrb[0].mxu0
  %1782 = vmatprep.mubr.bf16.mxu0 %v1575
  %1783 = vmatmul.mubr.bf16.gmra.mrb[0].mxu0 %v1543
  %v1784 = vpop.f32.mrb[0].mxu0
  %v1785 = vadd.f32 0.0, %v1784
  %v1786 = vpop.f32.mrb[0].mxu0
  %v1787 = vpop.f32.mrb[0].mxu0
  %v1788 = vadd.f32 0.0, %v1787
  %v1789 = vpop.f32.mrb[0].mxu0
  %1790 = vmatprep.mubr.bf16.mxu0 %v1576
  %1791 = vmatmul.mubr.bf16.gmra.mrb[0].mxu0 %v1544
  %v1792 = vpop.f32.mrb[0].mxu0
  %v1793 = vadd.f32 0.0, %v1792
  %v1794 = vpop.f32.mrb[0].mxu0
  %v1795 = vpop.f32.mrb[0].mxu0
  %v1796 = vadd.f32 0.0, %v1795
  %v1797 = vpop.f32.mrb[0].mxu0
  %1798 = vmatprep.mubr.bf16.mxu0 %v1577
  %1799 = vmatmul.mubr.bf16.gmra.mrb[0].mxu0 %v1545
  %v1800 = vpop.f32.mrb[0].mxu0
  %v1801 = vadd.f32 0.0, %v1800
  %v1802 = vpop.f32.mrb[0].mxu0
  %v1803 = vpop.f32.mrb[0].mxu0
  %v1804 = vadd.f32 0.0, %v1803
  %v1805 = vpop.f32.mrb[0].mxu0
  %1806 = vmatprep.mubr.bf16.mxu0 %v1578
  %1807 = vmatmul.mubr.bf16.gmra.mrb[0].mxu0 %v1546
  %v1808 = vpop.f32.mrb[0].mxu0
  %v1809 = vadd.f32 0.0, %v1808
  %v1810 = vpop.f32.mrb[0].mxu0
  %v1811 = vpop.f32.mrb[0].mxu0
  %v1812 = vadd.f32 0.0, %v1811
  %v1813 = vpop.f32.mrb[0].mxu0
  %1814 = vmatprep.mubr.bf16.mxu0 %v1579
  %1815 = vmatmul.mubr.bf16.gmra.mrb[0].mxu0 %v1547
  %v1816 = vpop.f32.mrb[0].mxu0
  %v1817 = vadd.f32 0.0, %v1816
  %v1818 = vpop.f32.mrb[0].mxu0
  %v1819 = vpop.f32.mrb[0].mxu0
  %v1820 = vadd.f32 0.0, %v1819
  %v1821 = vpop.f32.mrb[0].mxu0
  %1822 = vmatprep.mubr.bf16.mxu0 %v1580
  %1823 = vmatmul.mubr.bf16.gmra.mrb[0].mxu0 %v1548
  %v1824 = vpop.f32.mrb[0].mxu0
  %v1825 = vadd.f32 0.0, %v1824
  %v1826 = vpop.f32.mrb[0].mxu0
  %v1827 = vpop.f32.mrb[0].mxu0
  %v1828 = vadd.f32 0.0, %v1827
  %v1829 = vpop.f32.mrb[0].mxu0
  %1830 = vdwg.mxu0
  %v1831 = vadd.f32 %v1589, %v1769
  %v1832 = vadd.f32 %v1590, %v1772
  %v1833 = vadd.f32 %v1591, %v1777
  %v1834 = vadd.f32 %v1592, %v1780
  %v1835 = vadd.f32 %v1593, %v1785
  %v1836 = vadd.f32 %v1594, %v1788
  %v1837 = vadd.f32 %v1595, %v1793
  %v1838 = vadd.f32 %v1596, %v1796
  %v1839 = vadd.f32 %v1597, %v1801
  %v1840 = vadd.f32 %v1598, %v1804
  %v1841 = vadd.f32 %v1599, %v1809
  %v1842 = vadd.f32 %v1600, %v1812
  %v1843 = vadd.f32 %v1601, %v1817
  %v1844 = vadd.f32 %v1602, %v1820
  %v1845 = vadd.f32 %v1603, %v1825
  %v1846 = vadd.f32 %v1604, %v1828
  %1847 = vst [vmem:[#allocation3] sm:$0xff] %v1831
  %1848 = vst [vmem:[#allocation3 + $0x8] sm:$0xff] %v1832
  %1849 = vst [vmem:[#allocation3 + $0x10] sm:$0xff] %v1833
  %1850 = vst [vmem:[#allocation3 + $0x18] sm:$0xff] %v1834
  %1851 = vst [vmem:[#allocation3 + $0x20] sm:$0xff] %v1835
  %1852 = vst [vmem:[#allocation3 + $0x28] sm:$0xff] %v1836
  %1853 = vst [vmem:[#allocation3 + $0x30] sm:$0xff] %v1837
  %1854 = vst [vmem:[#allocation3 + $0x38] sm:$0xff] %v1838
  %1855 = vst [vmem:[#allocation3 + $0x40] sm:$0xff] %v1839
  %1856 = vst [vmem:[#allocation3 + $0x48] sm:$0xff] %v1840
  %1857 = vst [vmem:[#allocation3 + $0x50] sm:$0xff] %v1841
  %1858 = vst [vmem:[#allocation3 + $0x58] sm:$0xff] %v1842
  %1859 = vst [vmem:[#allocation3 + $0x60] sm:$0xff] %v1843
  %1860 = vst [vmem:[#allocation3 + $0x68] sm:$0xff] %v1844
  %1861 = vst [vmem:[#allocation3 + $0x70] sm:$0xff] %v1845
  %1862 = vst [vmem:[#allocation3 + $0x78] sm:$0xff] %v1846
  %s1863 = scalar_lea.vmem %s0, 16
  %v1864 = vld [vmem:[%s1863] sm:$0xf]
  %v1865 = vld [vmem:[%s1863 + $0x8] sm:$0xf]
  %v1866 = vld [vmem:[%s1863 + $0x10] sm:$0xf]
  %v1867 = vld [vmem:[%s1863 + $0x18] sm:$0xf]
  %v1868 = vld [vmem:[%s1863 + $0x20] sm:$0xf]
  %v1869 = vld [vmem:[%s1863 + $0x28] sm:$0xf]
  %v1870 = vld [vmem:[%s1863 + $0x30] sm:$0xf]
  %v1871 = vld [vmem:[%s1863 + $0x38] sm:$0xf]
  %v1872 = vld [vmem:[%s1863 + $0x50] sm:$0xf]
  %v1873 = vld [vmem:[%s1863 + $0x58] sm:$0xf]
  %v1874 = vld [vmem:[%s1863 + $0x60] sm:$0xf]
  %v1875 = vld [vmem:[%s1863 + $0x68] sm:$0xf]
  %v1876 = vld [vmem:[%s1863 + $0x70] sm:$0xf]
  %v1877 = vld [vmem:[%s1863 + $0x78] sm:$0xf]
  %v1878 = vld [vmem:[%s1863 + $0x80] sm:$0xf]
  %v1879 = vld [vmem:[%s1863 + $0x88] sm:$0xf]
  %v1880 = vld [vmem:[%s1863 + $0x4] sm:$0x1]
  %v1881 = vld [vmem:[%s1863 + $0xc] sm:$0x1]
  %v1882 = vld [vmem:[%s1863 + $0x14] sm:$0x1]
  %v1883 = vld [vmem:[%s1863 + $0x1c] sm:$0x1]
  %v1884 = vld [vmem:[%s1863 + $0x24] sm:$0x1]
  %v1885 = vld [vmem:[%s1863 + $0x2c] sm:$0x1]
  %v1886 = vld [vmem:[%s1863 + $0x34] sm:$0x1]
  %v1887 = vld [vmem:[%s1863 + $0x3c] sm:$0x1]
  %v1888 = vld [vmem:[%s1863 + $0x54] sm:$0x1]
  %v1889 = vld [vmem:[%s1863 + $0x5c] sm:$0x1]
  %v1890 = vld [vmem:[%s1863 + $0x64] sm:$0x1]
  %v1891 = vld [vmem:[%s1863 + $0x6c] sm:$0x1]
  %v1892 = vld [vmem:[%s1863 + $0x74] sm:$0x1]
  %v1893 = vld [vmem:[%s1863 + $0x7c] sm:$0x1]
  %v1894 = vld [vmem:[%s1863 + $0x84] sm:$0x1]
  %v1895 = vld [vmem:[%s1863 + $0x8c] sm:$0x1]
  %v1897 = vshrl.u32 %v1864, 16
  %v1899 = vrot.slane %v1897, 4
  %v1900 = vshll.u32 %v1864, 16
  %v1902 = vrot.slane %v1900, 5
  %v1903 = vor.u32 %v1899, %v1902
  %v1904 = vrot.slane %v1903, 4
  %v1906 = vshll.u32 %v1880, 16
  %v1908 = vrot.slane %v1906, 5
  %v1909 = vsel %vm77, %v1904, %v1908
  %v1911 = vshrl.u32 %v1865, 16
  %v1913 = vrot.slane %v1911, 4
  %v1914 = vshll.u32 %v1865, 16
  %v1916 = vrot.slane %v1914, 5
  %v1917 = vor.u32 %v1913, %v1916
  %v1918 = vrot.slane %v1917, 4
  %v1920 = vshll.u32 %v1881, 16
  %v1922 = vrot.slane %v1920, 5
  %v1923 = vsel %vm77, %v1918, %v1922
  %v1925 = vshrl.u32 %v1866, 16
  %v1927 = vrot.slane %v1925, 4
  %v1928 = vshll.u32 %v1866, 16
  %v1930 = vrot.slane %v1928, 5
  %v1931 = vor.u32 %v1927, %v1930
  %v1932 = vrot.slane %v1931, 4
  %v1934 = vshll.u32 %v1882, 16
  %v1936 = vrot.slane %v1934, 5
  %v1937 = vsel %vm77, %v1932, %v1936
  %v1939 = vshrl.u32 %v1867, 16
  %v1941 = vrot.slane %v1939, 4
  %v1942 = vshll.u32 %v1867, 16
  %v1944 = vrot.slane %v1942, 5
  %v1945 = vor.u32 %v1941, %v1944
  %v1946 = vrot.slane %v1945, 4
  %v1948 = vshll.u32 %v1883, 16
  %v1950 = vrot.slane %v1948, 5
  %v1951 = vsel %vm77, %v1946, %v1950
  %v1953 = vshrl.u32 %v1868, 16
  %v1955 = vrot.slane %v1953, 4
  %v1956 = vshll.u32 %v1868, 16
  %v1958 = vrot.slane %v1956, 5
  %v1959 = vor.u32 %v1955, %v1958
  %v1960 = vrot.slane %v1959, 4
  %v1962 = vshll.u32 %v1884, 16
  %v1964 = vrot.slane %v1962, 5
  %v1965 = vsel %vm77, %v1960, %v1964
  %v1967 = vshrl.u32 %v1869, 16
  %v1969 = vrot.slane %v1967, 4
  %v1970 = vshll.u32 %v1869, 16
  %v1972 = vrot.slane %v1970, 5
  %v1973 = vor.u32 %v1969, %v1972
  %v1974 = vrot.slane %v1973, 4
  %v1976 = vshll.u32 %v1885, 16
  %v1978 = vrot.slane %v1976, 5
  %v1979 = vsel %vm77, %v1974, %v1978
  %v1981 = vshrl.u32 %v1870, 16
  %v1983 = vrot.slane %v1981, 4
  %v1984 = vshll.u32 %v1870, 16
  %v1986 = vrot.slane %v1984, 5
  %v1987 = vor.u32 %v1983, %v1986
  %v1988 = vrot.slane %v1987, 4
  %v1990 = vshll.u32 %v1886, 16
  %v1992 = vrot.slane %v1990, 5
  %v1993 = vsel %vm77, %v1988, %v1992
  %v1995 = vshrl.u32 %v1871, 16
  %v1997 = vrot.slane %v1995, 4
  %v1998 = vshll.u32 %v1871, 16
  %v2000 = vrot.slane %v1998, 5
  %v2001 = vor.u32 %v1997, %v2000
  %v2002 = vrot.slane %v2001, 4
  %v2004 = vshll.u32 %v1887, 16
  %v2006 = vrot.slane %v2004, 5
  %v2007 = vsel %vm77, %v2002, %v2006
  %v2009 = vshrl.u32 %v1872, 16
  %v2011 = vrot.slane %v2009, 4
  %v2012 = vshll.u32 %v1872, 16
  %v2014 = vrot.slane %v2012, 5
  %v2015 = vor.u32 %v2011, %v2014
  %v2016 = vrot.slane %v2015, 4
  %v2018 = vshll.u32 %v1888, 16
  %v2020 = vrot.slane %v2018, 5
  %v2021 = vsel %vm77, %v2016, %v2020
  %v2023 = vshrl.u32 %v1873, 16
  %v2025 = vrot.slane %v2023, 4
  %v2026 = vshll.u32 %v1873, 16
  %v2028 = vrot.slane %v2026, 5
  %v2029 = vor.u32 %v2025, %v2028
  %v2030 = vrot.slane %v2029, 4
  %v2032 = vshll.u32 %v1889, 16
  %v2034 = vrot.slane %v2032, 5
  %v2035 = vsel %vm77, %v2030, %v2034
  %v2037 = vshrl.u32 %v1874, 16
  %v2039 = vrot.slane %v2037, 4
  %v2040 = vshll.u32 %v1874, 16
  %v2042 = vrot.slane %v2040, 5
  %v2043 = vor.u32 %v2039, %v2042
  %v2044 = vrot.slane %v2043, 4
  %v2046 = vshll.u32 %v1890, 16
  %v2048 = vrot.slane %v2046, 5
  %v2049 = vsel %vm77, %v2044, %v2048
  %v2051 = vshrl.u32 %v1875, 16
  %v2053 = vrot.slane %v2051, 4
  %v2054 = vshll.u32 %v1875, 16
  %v2056 = vrot.slane %v2054, 5
  %v2057 = vor.u32 %v2053, %v2056
  %v2058 = vrot.slane %v2057, 4
  %v2060 = vshll.u32 %v1891, 16
  %v2062 = vrot.slane %v2060, 5
  %v2063 = vsel %vm77, %v2058, %v2062
  %v2065 = vshrl.u32 %v1876, 16
  %v2067 = vrot.slane %v2065, 4
  %v2068 = vshll.u32 %v1876, 16
  %v2070 = vrot.slane %v2068, 5
  %v2071 = vor.u32 %v2067, %v2070
  %v2072 = vrot.slane %v2071, 4
  %v2074 = vshll.u32 %v1892, 16
  %v2076 = vrot.slane %v2074, 5
  %v2077 = vsel %vm77, %v2072, %v2076
  %v2079 = vshrl.u32 %v1877, 16
  %v2081 = vrot.slane %v2079, 4
  %v2082 = vshll.u32 %v1877, 16
  %v2084 = vrot.slane %v2082, 5
  %v2085 = vor.u32 %v2081, %v2084
  %v2086 = vrot.slane %v2085, 4
  %v2088 = vshll.u32 %v1893, 16
  %v2090 = vrot.slane %v2088, 5
  %v2091 = vsel %vm77, %v2086, %v2090
  %v2093 = vshrl.u32 %v1878, 16
  %v2095 = vrot.slane %v2093, 4
  %v2096 = vshll.u32 %v1878, 16
  %v2098 = vrot.slane %v2096, 5
  %v2099 = vor.u32 %v2095, %v2098
  %v2100 = vrot.slane %v2099, 4
  %v2102 = vshll.u32 %v1894, 16
  %v2104 = vrot.slane %v2102, 5
  %v2105 = vsel %vm77, %v2100, %v2104
  %v2107 = vshrl.u32 %v1879, 16
  %v2109 = vrot.slane %v2107, 4
  %v2110 = vshll.u32 %v1879, 16
  %v2112 = vrot.slane %v2110, 5
  %v2113 = vor.u32 %v2109, %v2112
  %v2114 = vrot.slane %v2113, 4
  %v2116 = vshll.u32 %v1895, 16
  %v2118 = vrot.slane %v2116, 5
  %v2119 = vsel %vm77, %v2114, %v2118
  %v2136 = vunpack.c.l.b16 %v1864
  %v2137 = vunpack.c.l.b16 %v1865
  %v2138 = vunpack.c.l.b16 %v1866
  %v2139 = vunpack.c.l.b16 %v1867
  %v2140 = vunpack.c.l.b16 %v1868
  %v2141 = vunpack.c.l.b16 %v1869
  %v2142 = vunpack.c.l.b16 %v1870
  %v2143 = vunpack.c.l.b16 %v1871
  %v2144 = vunpack.c.l.b16 %v1872
  %v2145 = vunpack.c.l.b16 %v1873
  %v2146 = vunpack.c.l.b16 %v1874
  %v2147 = vunpack.c.l.b16 %v1875
  %v2148 = vunpack.c.l.b16 %v1876
  %v2149 = vunpack.c.l.b16 %v1877
  %v2150 = vunpack.c.l.b16 %v1878
  %v2151 = vunpack.c.l.b16 %v1879
  %v2152 = vpack.c.b16 %v2137, %v2136
  %v2153 = vpack.c.b16 %v2139, %v2138
  %v2154 = vpack.c.b16 %v2141, %v2140
  %v2155 = vpack.c.b16 %v2143, %v2142
  %v2156 = vpack.c.b16 %v2145, %v2144
  %v2157 = vpack.c.b16 %v2147, %v2146
  %v2158 = vpack.c.b16 %v2149, %v2148
  %v2159 = vpack.c.b16 %v2151, %v2150
  %v2168 = vunpack.c.l.b16 %v1909
  %v2169 = vunpack.c.l.b16 %v1923
  %v2170 = vunpack.c.l.b16 %v1937
  %v2171 = vunpack.c.l.b16 %v1951
  %v2172 = vunpack.c.l.b16 %v1965
  %v2173 = vunpack.c.l.b16 %v1979
  %v2174 = vunpack.c.l.b16 %v1993
  %v2175 = vunpack.c.l.b16 %v2007
  %v2176 = vunpack.c.l.b16 %v2021
  %v2177 = vunpack.c.l.b16 %v2035
  %v2178 = vunpack.c.l.b16 %v2049
  %v2179 = vunpack.c.l.b16 %v2063
  %v2180 = vunpack.c.l.b16 %v2077
  %v2181 = vunpack.c.l.b16 %v2091
  %v2182 = vunpack.c.l.b16 %v2105
  %v2183 = vunpack.c.l.b16 %v2119
  %v2184 = vpack.c.b16 %v2169, %v2168
  %v2185 = vpack.c.b16 %v2171, %v2170
  %v2186 = vpack.c.b16 %v2173, %v2172
  %v2187 = vpack.c.b16 %v2175, %v2174
  %v2188 = vpack.c.b16 %v2177, %v2176
  %v2189 = vpack.c.b16 %v2179, %v2178
  %v2190 = vpack.c.b16 %v2181, %v2180
  %v2191 = vpack.c.b16 %v2183, %v2182
  %v2200 = vld [vmem:[#allocation3] sm:$0xff]
  %v2201 = vld [vmem:[#allocation3 + $0x8] sm:$0xff]
  %v2202 = vld [vmem:[#allocation3 + $0x10] sm:$0xff]
  %v2203 = vld [vmem:[#allocation3 + $0x18] sm:$0xff]
  %v2204 = vld [vmem:[#allocation3 + $0x20] sm:$0xff]
  %v2205 = vld [vmem:[#allocation3 + $0x28] sm:$0xff]
  %v2206 = vld [vmem:[#allocation3 + $0x30] sm:$0xff]
  %v2207 = vld [vmem:[#allocation3 + $0x38] sm:$0xff]
  %v2208 = vld [vmem:[#allocation3 + $0x40] sm:$0xff]
  %v2209 = vld [vmem:[#allocation3 + $0x48] sm:$0xff]
  %v2210 = vld [vmem:[#allocation3 + $0x50] sm:$0xff]
  %v2211 = vld [vmem:[#allocation3 + $0x58] sm:$0xff]
  %v2212 = vld [vmem:[#allocation3 + $0x60] sm:$0xff]
  %v2213 = vld [vmem:[#allocation3 + $0x68] sm:$0xff]
  %v2214 = vld [vmem:[#allocation3 + $0x70] sm:$0xff]
  %v2215 = vld [vmem:[#allocation3 + $0x78] sm:$0xff]
  %s2216 = scalar_lea.vmem %s1, 384
  %v2217 = vld [vmem:[%s2216] sm:$0xf]
  %v2218 = vld [vmem:[%s2216 + $0x4] sm:$0xf]
  %v2219 = vld [vmem:[%s2216 + $0x8] sm:$0xf]
  %v2220 = vld [vmem:[%s2216 + $0xc] sm:$0xf]
  %v2221 = vld [vmem:[%s2216 + $0x10] sm:$0xf]
  %v2222 = vld [vmem:[%s2216 + $0x14] sm:$0xf]
  %v2223 = vld [vmem:[%s2216 + $0x18] sm:$0xf]
  %v2224 = vld [vmem:[%s2216 + $0x1c] sm:$0xf]
  %v2225 = vld [vmem:[%s2216 + $0x20] sm:$0xf]
  %v2226 = vld [vmem:[%s2216 + $0x24] sm:$0xf]
  %v2227 = vld [vmem:[%s2216 + $0x28] sm:$0xf]
  %v2228 = vld [vmem:[%s2216 + $0x2c] sm:$0xf]
  %v2229 = vld [vmem:[%s2216 + $0x30] sm:$0xf]
  %v2230 = vld [vmem:[%s2216 + $0x34] sm:$0xf]
  %v2231 = vld [vmem:[%s2216 + $0x38] sm:$0xf]
  %v2232 = vld [vmem:[%s2216 + $0x3c] sm:$0xf]
  %v2233 = vld [vmem:[%s2216 + $0x40] sm:$0xf]
  %v2234 = vld [vmem:[%s2216 + $0x44] sm:$0xf]
  %v2235 = vld [vmem:[%s2216 + $0x48] sm:$0xf]
  %v2236 = vld [vmem:[%s2216 + $0x4c] sm:$0xf]
  %v2237 = vld [vmem:[%s2216 + $0x50] sm:$0xf]
  %v2238 = vld [vmem:[%s2216 + $0x54] sm:$0xf]
  %v2239 = vld [vmem:[%s2216 + $0x58] sm:$0xf]
  %v2240 = vld [vmem:[%s2216 + $0x5c] sm:$0xf]
  %v2241 = vld [vmem:[%s2216 + $0x60] sm:$0xf]
  %v2242 = vld [vmem:[%s2216 + $0x64] sm:$0xf]
  %v2243 = vld [vmem:[%s2216 + $0x68] sm:$0xf]
  %v2244 = vld [vmem:[%s2216 + $0x6c] sm:$0xf]
  %v2245 = vld [vmem:[%s2216 + $0x70] sm:$0xf]
  %v2246 = vld [vmem:[%s2216 + $0x74] sm:$0xf]
  %v2247 = vld [vmem:[%s2216 + $0x78] sm:$0xf]
  %v2248 = vld [vmem:[%s2216 + $0x7c] sm:$0xf]
  %v2281 = vunpack.c.l.b16 %v2217
  %v2282 = vunpack.c.l.b16 %v2218
  %v2283 = vunpack.c.l.b16 %v2219
  %v2284 = vunpack.c.l.b16 %v2220
  %v2285 = vunpack.c.l.b16 %v2221
  %v2286 = vunpack.c.l.b16 %v2222
  %v2287 = vunpack.c.l.b16 %v2223
  %v2288 = vunpack.c.l.b16 %v2224
  %v2289 = vunpack.c.l.b16 %v2225
  %v2290 = vunpack.c.l.b16 %v2226
  %v2291 = vunpack.c.l.b16 %v2227
  %v2292 = vunpack.c.l.b16 %v2228
  %v2293 = vunpack.c.l.b16 %v2229
  %v2294 = vunpack.c.l.b16 %v2230
  %v2295 = vunpack.c.l.b16 %v2231
  %v2296 = vunpack.c.l.b16 %v2232
  %v2297 = vunpack.c.l.b16 %v2233
  %v2298 = vunpack.c.l.b16 %v2234
  %v2299 = vunpack.c.l.b16 %v2235
  %v2300 = vunpack.c.l.b16 %v2236
  %v2301 = vunpack.c.l.b16 %v2237
  %v2302 = vunpack.c.l.b16 %v2238
  %v2303 = vunpack.c.l.b16 %v2239
  %v2304 = vunpack.c.l.b16 %v2240
  %v2305 = vunpack.c.l.b16 %v2241
  %v2306 = vunpack.c.l.b16 %v2242
  %v2307 = vunpack.c.l.b16 %v2243
  %v2308 = vunpack.c.l.b16 %v2244
  %v2309 = vunpack.c.l.b16 %v2245
  %v2310 = vunpack.c.l.b16 %v2246
  %v2311 = vunpack.c.l.b16 %v2247
  %v2312 = vunpack.c.l.b16 %v2248
  %v2313 = vpack.c.b16 %v2282, %v2281
  %v2314 = vpack.c.b16 %v2284, %v2283
  %v2315 = vpack.c.b16 %v2286, %v2285
  %v2316 = vpack.c.b16 %v2288, %v2287
  %v2317 = vpack.c.b16 %v2290, %v2289
  %v2318 = vpack.c.b16 %v2292, %v2291
  %v2319 = vpack.c.b16 %v2294, %v2293
  %v2320 = vpack.c.b16 %v2296, %v2295
  %v2321 = vpack.c.b16 %v2298, %v2297
  %v2322 = vpack.c.b16 %v2300, %v2299
  %v2323 = vpack.c.b16 %v2302, %v2301
  %v2324 = vpack.c.b16 %v2304, %v2303
  %v2325 = vpack.c.b16 %v2306, %v2305
  %v2326 = vpack.c.b16 %v2308, %v2307
  %v2327 = vpack.c.b16 %v2310, %v2309
  %v2328 = vpack.c.b16 %v2312, %v2311
  %2345 = vmatprep.subr.bf16.mxu0 0
  %2346 = vmatpush1.bf16.msra.mxu0 %v2313
  %2347 = vmatprep.subr.bf16.mxu0 0
  %2348 = vmatpush1.bf16.msra.mxu0 %v2314
  %2349 = vmatprep.subr.bf16.mxu0 0
  %2350 = vmatpush1.bf16.msra.mxu0 %v2315
  %2351 = vmatprep.subr.bf16.mxu0 0
  %2352 = vmatpush1.bf16.msra.mxu0 %v2316
  %2353 = vmatprep.subr.bf16.mxu0 0
  %2354 = vmatpush1.bf16.msra.mxu0 %v2317
  %2355 = vmatprep.subr.bf16.mxu0 0
  %2356 = vmatpush1.bf16.msra.mxu0 %v2318
  %2357 = vmatprep.subr.bf16.mxu0 0
  %2358 = vmatpush1.bf16.msra.mxu0 %v2319
  %2359 = vmatprep.subr.bf16.mxu0 0
  %2360 = vmatpush1.bf16.msra.mxu0 %v2320
  %2361 = vmatprep.subr.bf16.mxu0 0
  %2362 = vmatpush1.bf16.msra.mxu0 %v2321
  %2363 = vmatprep.subr.bf16.mxu0 0
  %2364 = vmatpush1.bf16.msra.mxu0 %v2322
  %2365 = vmatprep.subr.bf16.mxu0 0
  %2366 = vmatpush1.bf16.msra.mxu0 %v2323
  %2367 = vmatprep.subr.bf16.mxu0 0
  %2368 = vmatpush1.bf16.msra.mxu0 %v2324
  %2369 = vmatprep.subr.bf16.mxu0 0
  %2370 = vmatpush1.bf16.msra.mxu0 %v2325
  %2371 = vmatprep.subr.bf16.mxu0 0
  %2372 = vmatpush1.bf16.msra.mxu0 %v2326
  %2373 = vmatprep.subr.bf16.mxu0 0
  %2374 = vmatpush1.bf16.msra.mxu0 %v2327
  %2375 = vmatprep.subr.bf16.mxu0 0
  %2376 = vmatpush1.bf16.msra.mxu0 %v2328
  %2377 = vmatprep.mubr.bf16.mxu0 %v2184
  %2378 = vmatmul.mubr.bf16.gmra.mrb[0].mxu0 %v2152
  %v2379 = vpop.f32.mrb[0].mxu0
  %v2380 = vadd.f32 0.0, %v2379
  %v2381 = vpop.f32.mrb[0].mxu0
  %v2382 = vpop.f32.mrb[0].mxu0
  %v2383 = vadd.f32 0.0, %v2382
  %v2384 = vpop.f32.mrb[0].mxu0
  %2385 = vmatprep.mubr.bf16.mxu0 %v2185
  %2386 = vmatmul.mubr.bf16.gmra.mrb[0].mxu0 %v2153
  %v2387 = vpop.f32.mrb[0].mxu0
  %v2388 = vadd.f32 0.0, %v2387
  %v2389 = vpop.f32.mrb[0].mxu0
  %v2390 = vpop.f32.mrb[0].mxu0
  %v2391 = vadd.f32 0.0, %v2390
  %v2392 = vpop.f32.mrb[0].mxu0
  %2393 = vmatprep.mubr.bf16.mxu0 %v2186
  %2394 = vmatmul.mubr.bf16.gmra.mrb[0].mxu0 %v2154
  %v2395 = vpop.f32.mrb[0].mxu0
  %v2396 = vadd.f32 0.0, %v2395
  %v2397 = vpop.f32.mrb[0].mxu0
  %v2398 = vpop.f32.mrb[0].mxu0
  %v2399 = vadd.f32 0.0, %v2398
  %v2400 = vpop.f32.mrb[0].mxu0
  %2401 = vmatprep.mubr.bf16.mxu0 %v2187
  %2402 = vmatmul.mubr.bf16.gmra.mrb[0].mxu0 %v2155
  %v2403 = vpop.f32.mrb[0].mxu0
  %v2404 = vadd.f32 0.0, %v2403
  %v2405 = vpop.f32.mrb[0].mxu0
  %v2406 = vpop.f32.mrb[0].mxu0
  %v2407 = vadd.f32 0.0, %v2406
  %v2408 = vpop.f32.mrb[0].mxu0
  %2409 = vmatprep.mubr.bf16.mxu0 %v2188
  %2410 = vmatmul.mubr.bf16.gmra.mrb[0].mxu0 %v2156
  %v2411 = vpop.f32.mrb[0].mxu0
  %v2412 = vadd.f32 0.0, %v2411
  %v2413 = vpop.f32.mrb[0].mxu0
  %v2414 = vpop.f32.mrb[0].mxu0
  %v2415 = vadd.f32 0.0, %v2414
  %v2416 = vpop.f32.mrb[0].mxu0
  %2417 = vmatprep.mubr.bf16.mxu0 %v2189
  %2418 = vmatmul.mubr.bf16.gmra.mrb[0].mxu0 %v2157
  %v2419 = vpop.f32.mrb[0].mxu0
  %v2420 = vadd.f32 0.0, %v2419
  %v2421 = vpop.f32.mrb[0].mxu0
  %v2422 = vpop.f32.mrb[0].mxu0
  %v2423 = vadd.f32 0.0, %v2422
  %v2424 = vpop.f32.mrb[0].mxu0
  %2425 = vmatprep.mubr.bf16.mxu0 %v2190
  %2426 = vmatmul.mubr.bf16.gmra.mrb[0].mxu0 %v2158
  %v2427 = vpop.f32.mrb[0].mxu0
  %v2428 = vadd.f32 0.0, %v2427
  %v2429 = vpop.f32.mrb[0].mxu0
  %v2430 = vpop.f32.mrb[0].mxu0
  %v2431 = vadd.f32 0.0, %v2430
  %v2432 = vpop.f32.mrb[0].mxu0
  %2433 = vmatprep.mubr.bf16.mxu0 %v2191
  %2434 = vmatmul.mubr.bf16.gmra.mrb[0].mxu0 %v2159
  %v2435 = vpop.f32.mrb[0].mxu0
  %v2436 = vadd.f32 0.0, %v2435
  %v2437 = vpop.f32.mrb[0].mxu0
  %v2438 = vpop.f32.mrb[0].mxu0
  %v2439 = vadd.f32 0.0, %v2438
  %v2440 = vpop.f32.mrb[0].mxu0
  %2441 = vdwg.mxu0
  %v2442 = vadd.f32 %v2200, %v2380
  %v2443 = vadd.f32 %v2201, %v2383
  %v2444 = vadd.f32 %v2202, %v2388
  %v2445 = vadd.f32 %v2203, %v2391
  %v2446 = vadd.f32 %v2204, %v2396
  %v2447 = vadd.f32 %v2205, %v2399
  %v2448 = vadd.f32 %v2206, %v2404
  %v2449 = vadd.f32 %v2207, %v2407
  %v2450 = vadd.f32 %v2208, %v2412
  %v2451 = vadd.f32 %v2209, %v2415
  %v2452 = vadd.f32 %v2210, %v2420
  %v2453 = vadd.f32 %v2211, %v2423
  %v2454 = vadd.f32 %v2212, %v2428
  %v2455 = vadd.f32 %v2213, %v2431
  %v2456 = vadd.f32 %v2214, %v2436
  %v2457 = vadd.f32 %v2215, %v2439
  %2458 = vst [vmem:[#allocation3] sm:$0xff] %v2442
  %2459 = vst [vmem:[#allocation3 + $0x8] sm:$0xff] %v2443
  %2460 = vst [vmem:[#allocation3 + $0x10] sm:$0xff] %v2444
  %2461 = vst [vmem:[#allocation3 + $0x18] sm:$0xff] %v2445
  %2462 = vst [vmem:[#allocation3 + $0x20] sm:$0xff] %v2446
  %2463 = vst [vmem:[#allocation3 + $0x28] sm:$0xff] %v2447
  %2464 = vst [vmem:[#allocation3 + $0x30] sm:$0xff] %v2448
  %2465 = vst [vmem:[#allocation3 + $0x38] sm:$0xff] %v2449
  %2466 = vst [vmem:[#allocation3 + $0x40] sm:$0xff] %v2450
  %2467 = vst [vmem:[#allocation3 + $0x48] sm:$0xff] %v2451
  %2468 = vst [vmem:[#allocation3 + $0x50] sm:$0xff] %v2452
  %2469 = vst [vmem:[#allocation3 + $0x58] sm:$0xff] %v2453
  %2470 = vst [vmem:[#allocation3 + $0x60] sm:$0xff] %v2454
  %2471 = vst [vmem:[#allocation3 + $0x68] sm:$0xff] %v2455
  %2472 = vst [vmem:[#allocation3 + $0x70] sm:$0xff] %v2456
  %2473 = vst [vmem:[#allocation3 + $0x78] sm:$0xff] %v2457
  %v2474 = vld [vmem:[#allocation3] sm:$0xff]
  %v2475 = vld [vmem:[#allocation3 + $0x8] sm:$0xff]
  %v2476 = vld [vmem:[#allocation3 + $0x10] sm:$0xff]
  %v2477 = vld [vmem:[#allocation3 + $0x18] sm:$0xff]
  %v2478 = vld [vmem:[#allocation3 + $0x20] sm:$0xff]
  %v2479 = vld [vmem:[#allocation3 + $0x28] sm:$0xff]
  %v2480 = vld [vmem:[#allocation3 + $0x30] sm:$0xff]
  %v2481 = vld [vmem:[#allocation3 + $0x38] sm:$0xff]
  %v2482 = vld [vmem:[#allocation3 + $0x40] sm:$0xff]
  %v2483 = vld [vmem:[#allocation3 + $0x48] sm:$0xff]
  %v2484 = vld [vmem:[#allocation3 + $0x50] sm:$0xff]
  %v2485 = vld [vmem:[#allocation3 + $0x58] sm:$0xff]
  %v2486 = vld [vmem:[#allocation3 + $0x60] sm:$0xff]
  %v2487 = vld [vmem:[#allocation3 + $0x68] sm:$0xff]
  %v2488 = vld [vmem:[#allocation3 + $0x70] sm:$0xff]
  %v2489 = vld [vmem:[#allocation3 + $0x78] sm:$0xff]
  %v2490 = vld [vmem:[%s1863] sm:$0xe]
  %v2491 = vld [vmem:[%s1863 + $0x4] sm:$0x1]
  %v2492 = vld [vmem:[%s1863 + $0x8] sm:$0xe]
  %v2493 = vld [vmem:[%s1863 + $0xc] sm:$0x1]
  %v2494 = vld [vmem:[%s1863 + $0x10] sm:$0xe]
  %v2495 = vld [vmem:[%s1863 + $0x14] sm:$0x1]
  %v2496 = vld [vmem:[%s1863 + $0x18] sm:$0xe]
  %v2497 = vld [vmem:[%s1863 + $0x1c] sm:$0x1]
  %v2498 = vld [vmem:[%s1863 + $0x20] sm:$0xe]
  %v2499 = vld [vmem:[%s1863 + $0x24] sm:$0x1]
  %v2500 = vld [vmem:[%s1863 + $0x28] sm:$0xe]
  %v2501 = vld [vmem:[%s1863 + $0x2c] sm:$0x1]
  %v2502 = vld [vmem:[%s1863 + $0x30] sm:$0xe]
  %v2503 = vld [vmem:[%s1863 + $0x34] sm:$0x1]
  %v2504 = vld [vmem:[%s1863 + $0x38] sm:$0xe]
  %v2505 = vld [vmem:[%s1863 + $0x3c] sm:$0x1]
  %v2506 = vld [vmem:[%s1863 + $0x50] sm:$0xe]
  %v2507 = vld [vmem:[%s1863 + $0x54] sm:$0x1]
  %v2508 = vld [vmem:[%s1863 + $0x58] sm:$0xe]
  %v2509 = vld [vmem:[%s1863 + $0x5c] sm:$0x1]
  %v2510 = vld [vmem:[%s1863 + $0x60] sm:$0xe]
  %v2511 = vld [vmem:[%s1863 + $0x64] sm:$0x1]
  %v2512 = vld [vmem:[%s1863 + $0x68] sm:$0xe]
  %v2513 = vld [vmem:[%s1863 + $0x6c] sm:$0x1]
  %v2514 = vld [vmem:[%s1863 + $0x70] sm:$0xe]
  %v2515 = vld [vmem:[%s1863 + $0x74] sm:$0x1]
  %v2516 = vld [vmem:[%s1863 + $0x78] sm:$0xe]
  %v2517 = vld [vmem:[%s1863 + $0x7c] sm:$0x1]
  %v2518 = vld [vmem:[%s1863 + $0x80] sm:$0xe]
  %v2519 = vld [vmem:[%s1863 + $0x84] sm:$0x1]
  %v2520 = vld [vmem:[%s1863 + $0x88] sm:$0xe]
  %v2521 = vld [vmem:[%s1863 + $0x8c] sm:$0x1]
  %v2554 = vrot.slane %v2490, 5
  %v2555 = vrot.slane %v2554, 4
  %v2556 = vrot.slane %v2491, 5
  %v2557 = vsel %vm721, %v2555, %v2556
  %v2558 = vrot.slane %v2492, 5
  %v2559 = vrot.slane %v2558, 4
  %v2560 = vrot.slane %v2493, 5
  %v2561 = vsel %vm721, %v2559, %v2560
  %v2562 = vrot.slane %v2494, 5
  %v2563 = vrot.slane %v2562, 4
  %v2564 = vrot.slane %v2495, 5
  %v2565 = vsel %vm721, %v2563, %v2564
  %v2566 = vrot.slane %v2496, 5
  %v2567 = vrot.slane %v2566, 4
  %v2568 = vrot.slane %v2497, 5
  %v2569 = vsel %vm721, %v2567, %v2568
  %v2570 = vrot.slane %v2498, 5
  %v2571 = vrot.slane %v2570, 4
  %v2572 = vrot.slane %v2499, 5
  %v2573 = vsel %vm721, %v2571, %v2572
  %v2574 = vrot.slane %v2500, 5
  %v2575 = vrot.slane %v2574, 4
  %v2576 = vrot.slane %v2501, 5
  %v2577 = vsel %vm721, %v2575, %v2576
  %v2578 = vrot.slane %v2502, 5
  %v2579 = vrot.slane %v2578, 4
  %v2580 = vrot.slane %v2503, 5
  %v2581 = vsel %vm721, %v2579, %v2580
  %v2582 = vrot.slane %v2504, 5
  %v2583 = vrot.slane %v2582, 4
  %v2584 = vrot.slane %v2505, 5
  %v2585 = vsel %vm721, %v2583, %v2584
  %v2586 = vrot.slane %v2506, 5
  %v2587 = vrot.slane %v2586, 4
  %v2588 = vrot.slane %v2507, 5
  %v2589 = vsel %vm721, %v2587, %v2588
  %v2590 = vrot.slane %v2508, 5
  %v2591 = vrot.slane %v2590, 4
  %v2592 = vrot.slane %v2509, 5
  %v2593 = vsel %vm721, %v2591, %v2592
  %v2594 = vrot.slane %v2510, 5
  %v2595 = vrot.slane %v2594, 4
  %v2596 = vrot.slane %v2511, 5
  %v2597 = vsel %vm721, %v2595, %v2596
  %v2598 = vrot.slane %v2512, 5
  %v2599 = vrot.slane %v2598, 4
  %v2600 = vrot.slane %v2513, 5
  %v2601 = vsel %vm721, %v2599, %v2600
  %v2602 = vrot.slane %v2514, 5
  %v2603 = vrot.slane %v2602, 4
  %v2604 = vrot.slane %v2515, 5
  %v2605 = vsel %vm721, %v2603, %v2604
  %v2606 = vrot.slane %v2516, 5
  %v2607 = vrot.slane %v2606, 4
  %v2608 = vrot.slane %v2517, 5
  %v2609 = vsel %vm721, %v2607, %v2608
  %v2610 = vrot.slane %v2518, 5
  %v2611 = vrot.slane %v2610, 4
  %v2612 = vrot.slane %v2519, 5
  %v2613 = vsel %vm721, %v2611, %v2612
  %v2614 = vrot.slane %v2520, 5
  %v2615 = vrot.slane %v2614, 4
  %v2616 = vrot.slane %v2521, 5
  %v2617 = vsel %vm721, %v2615, %v2616
  %v2618 = vld [vmem:[%s2] sm:$0xf]
  %v2619 = vld [vmem:[%s2 + $0x4] sm:$0xf]
  %v2620 = vld [vmem:[%s2 + $0x8] sm:$0xf]
  %v2621 = vld [vmem:[%s2 + $0xc] sm:$0xf]
  %v2622 = vld [vmem:[%s2 + $0x10] sm:$0xf]
  %v2623 = vld [vmem:[%s2 + $0x14] sm:$0xf]
  %v2624 = vld [vmem:[%s2 + $0x18] sm:$0xf]
  %v2625 = vld [vmem:[%s2 + $0x1c] sm:$0xf]
  %v2626 = vld [vmem:[%s2 + $0x20] sm:$0xf]
  %v2627 = vld [vmem:[%s2 + $0x24] sm:$0xf]
  %v2628 = vld [vmem:[%s2 + $0x28] sm:$0xf]
  %v2629 = vld [vmem:[%s2 + $0x2c] sm:$0xf]
  %v2630 = vld [vmem:[%s2 + $0x30] sm:$0xf]
  %v2631 = vld [vmem:[%s2 + $0x34] sm:$0xf]
  %v2632 = vld [vmem:[%s2 + $0x38] sm:$0xf]
  %v2633 = vld [vmem:[%s2 + $0x3c] sm:$0xf]
  %v2634 = vunpack.c.l.b16 %v2557
  %v2635 = vunpack.c.l.b16 %v2561
  %v2636 = vunpack.c.l.b16 %v2565
  %v2637 = vunpack.c.l.b16 %v2569
  %v2638 = vunpack.c.l.b16 %v2573
  %v2639 = vunpack.c.l.b16 %v2577
  %v2640 = vunpack.c.l.b16 %v2581
  %v2641 = vunpack.c.l.b16 %v2585
  %v2642 = vunpack.c.l.b16 %v2589
  %v2643 = vunpack.c.l.b16 %v2593
  %v2644 = vunpack.c.l.b16 %v2597
  %v2645 = vunpack.c.l.b16 %v2601
  %v2646 = vunpack.c.l.b16 %v2605
  %v2647 = vunpack.c.l.b16 %v2609
  %v2648 = vunpack.c.l.b16 %v2613
  %v2649 = vunpack.c.l.b16 %v2617
  %v2650 = vpack.c.b16 %v2635, %v2634
  %v2651 = vpack.c.b16 %v2637, %v2636
  %v2652 = vpack.c.b16 %v2639, %v2638
  %v2653 = vpack.c.b16 %v2641, %v2640
  %v2654 = vpack.c.b16 %v2643, %v2642
  %v2655 = vpack.c.b16 %v2645, %v2644
  %v2656 = vpack.c.b16 %v2647, %v2646
  %v2657 = vpack.c.b16 %v2649, %v2648
  %v2682 = vunpack.c.l.b16 %v2618
  %v2683 = vunpack.c.l.b16 %v2619
  %v2684 = vunpack.c.l.b16 %v2620
  %v2685 = vunpack.c.l.b16 %v2621
  %v2686 = vunpack.c.l.b16 %v2622
  %v2687 = vunpack.c.l.b16 %v2623
  %v2688 = vunpack.c.l.b16 %v2624
  %v2689 = vunpack.c.l.b16 %v2625
  %v2690 = vunpack.c.l.b16 %v2626
  %v2691 = vunpack.c.l.b16 %v2627
  %v2692 = vunpack.c.l.b16 %v2628
  %v2693 = vunpack.c.l.b16 %v2629
  %v2694 = vunpack.c.l.b16 %v2630
  %v2695 = vunpack.c.l.b16 %v2631
  %v2696 = vunpack.c.l.b16 %v2632
  %v2697 = vunpack.c.l.b16 %v2633
  %v2698 = vpack.c.b16 %v2683, %v2682
  %v2699 = vpack.c.b16 %v2685, %v2684
  %v2700 = vpack.c.b16 %v2687, %v2686
  %v2701 = vpack.c.b16 %v2689, %v2688
  %v2702 = vpack.c.b16 %v2691, %v2690
  %v2703 = vpack.c.b16 %v2693, %v2692
  %v2704 = vpack.c.b16 %v2695, %v2694
  %v2705 = vpack.c.b16 %v2697, %v2696
  %2714 = vmatprep.subr.bf16.mxu0 0
  %2715 = vmatpush1.bf16.msra.mxu0 %v2698
  %2716 = vmatprep.subr.bf16.mxu0 0
  %2717 = vmatpush1.bf16.msra.mxu0 %v2699
  %2718 = vmatprep.subr.bf16.mxu0 0
  %2719 = vmatpush1.bf16.msra.mxu0 %v2700
  %2720 = vmatprep.subr.bf16.mxu0 0
  %2721 = vmatpush1.bf16.msra.mxu0 %v2701
  %2722 = vmatprep.subr.bf16.mxu0 0
  %2723 = vmatpush1.bf16.msra.mxu0 %v2702
  %2724 = vmatprep.subr.bf16.mxu0 0
  %2725 = vmatpush1.bf16.msra.mxu0 %v2703
  %2726 = vmatprep.subr.bf16.mxu0 0
  %2727 = vmatpush1.bf16.msra.mxu0 %v2704
  %2728 = vmatprep.subr.bf16.mxu0 0
  %2729 = vmatpush1.bf16.msra.mxu0 %v2705
  %2730 = vmatprep.subr.bf16.mxu0 0
  %2731 = vmatpush1.bf16.msra.mxu0 0
  %2732 = vmatprep.subr.bf16.mxu0 0
  %2733 = vmatpush1.bf16.msra.mxu0 0
  %2734 = vmatprep.subr.bf16.mxu0 0
  %2735 = vmatpush1.bf16.msra.mxu0 0
  %2736 = vmatprep.subr.bf16.mxu0 0
  %2737 = vmatpush1.bf16.msra.mxu0 0
  %2738 = vmatprep.subr.bf16.mxu0 0
  %2739 = vmatpush1.bf16.msra.mxu0 0
  %2740 = vmatprep.subr.bf16.mxu0 0
  %2741 = vmatpush1.bf16.msra.mxu0 0
  %2742 = vmatprep.subr.bf16.mxu0 0
  %2743 = vmatpush1.bf16.msra.mxu0 0
  %2744 = vmatprep.subr.bf16.mxu0 0
  %2745 = vmatpush1.bf16.msra.mxu0 0
  %2746 = vmatprep.mubr.bf16.mxu0 0
  %2747 = vmatmul.mubr.bf16.gmra.mrb[0].mxu0 %v2650
  %v2748 = vpop.f32.mrb[0].mxu0
  %v2749 = vadd.f32 0.0, %v2748
  %v2750 = vpop.f32.mrb[0].mxu0
  %v2751 = vpop.f32.mrb[0].mxu0
  %v2752 = vadd.f32 0.0, %v2751
  %v2753 = vpop.f32.mrb[0].mxu0
  %2754 = vmatprep.mubr.bf16.mxu0 0
  %2755 = vmatmul.mubr.bf16.gmra.mrb[0].mxu0 %v2651
  %v2756 = vpop.f32.mrb[0].mxu0
  %v2757 = vadd.f32 0.0, %v2756
  %v2758 = vpop.f32.mrb[0].mxu0
  %v2759 = vpop.f32.mrb[0].mxu0
  %v2760 = vadd.f32 0.0, %v2759
  %v2761 = vpop.f32.mrb[0].mxu0
  %2762 = vmatprep.mubr.bf16.mxu0 0
  %2763 = vmatmul.mubr.bf16.gmra.mrb[0].mxu0 %v2652
  %v2764 = vpop.f32.mrb[0].mxu0
  %v2765 = vadd.f32 0.0, %v2764
  %v2766 = vpop.f32.mrb[0].mxu0
  %v2767 = vpop.f32.mrb[0].mxu0
  %v2768 = vadd.f32 0.0, %v2767
  %v2769 = vpop.f32.mrb[0].mxu0
  %2770 = vmatprep.mubr.bf16.mxu0 0
  %2771 = vmatmul.mubr.bf16.gmra.mrb[0].mxu0 %v2653
  %v2772 = vpop.f32.mrb[0].mxu0
  %v2773 = vadd.f32 0.0, %v2772
  %v2774 = vpop.f32.mrb[0].mxu0
  %v2775 = vpop.f32.mrb[0].mxu0
  %v2776 = vadd.f32 0.0, %v2775
  %v2777 = vpop.f32.mrb[0].mxu0
  %2778 = vmatprep.mubr.bf16.mxu0 0
  %2779 = vmatmul.mubr.bf16.gmra.mrb[0].mxu0 %v2654
  %v2780 = vpop.f32.mrb[0].mxu0
  %v2781 = vadd.f32 0.0, %v2780
  %v2782 = vpop.f32.mrb[0].mxu0
  %v2783 = vpop.f32.mrb[0].mxu0
  %v2784 = vadd.f32 0.0, %v2783
  %v2785 = vpop.f32.mrb[0].mxu0
  %2786 = vmatprep.mubr.bf16.mxu0 0
  %2787 = vmatmul.mubr.bf16.gmra.mrb[0].mxu0 %v2655
  %v2788 = vpop.f32.mrb[0].mxu0
  %v2789 = vadd.f32 0.0, %v2788
  %v2790 = vpop.f32.mrb[0].mxu0
  %v2791 = vpop.f32.mrb[0].mxu0
  %v2792 = vadd.f32 0.0, %v2791
  %v2793 = vpop.f32.mrb[0].mxu0
  %2794 = vmatprep.mubr.bf16.mxu0 0
  %2795 = vmatmul.mubr.bf16.gmra.mrb[0].mxu0 %v2656
  %v2796 = vpop.f32.mrb[0].mxu0
  %v2797 = vadd.f32 0.0, %v2796
  %v2798 = vpop.f32.mrb[0].mxu0
  %v2799 = vpop.f32.mrb[0].mxu0
  %v2800 = vadd.f32 0.0, %v2799
  %v2801 = vpop.f32.mrb[0].mxu0
  %2802 = vmatprep.mubr.bf16.mxu0 0
  %2803 = vmatmul.mubr.bf16.gmra.mrb[0].mxu0 %v2657
  %v2804 = vpop.f32.mrb[0].mxu0
  %v2805 = vadd.f32 0.0, %v2804
  %v2806 = vpop.f32.mrb[0].mxu0
  %v2807 = vpop.f32.mrb[0].mxu0
  %v2808 = vadd.f32 0.0, %v2807
  %v2809 = vpop.f32.mrb[0].mxu0
  %2810 = vdwg.mxu0
  %v2811 = vadd.f32 %v2474, %v2749
  %v2812 = vadd.f32 %v2475, %v2752
  %v2813 = vadd.f32 %v2476, %v2757
  %v2814 = vadd.f32 %v2477, %v2760
  %v2815 = vadd.f32 %v2478, %v2765
  %v2816 = vadd.f32 %v2479, %v2768
  %v2817 = vadd.f32 %v2480, %v2773
  %v2818 = vadd.f32 %v2481, %v2776
  %v2819 = vadd.f32 %v2482, %v2781
  %v2820 = vadd.f32 %v2483, %v2784
  %v2821 = vadd.f32 %v2484, %v2789
  %v2822 = vadd.f32 %v2485, %v2792
  %v2823 = vadd.f32 %v2486, %v2797
  %v2824 = vadd.f32 %v2487, %v2800
  %v2825 = vadd.f32 %v2488, %v2805
  %v2826 = vadd.f32 %v2489, %v2808
  %2827 = vst [vmem:[#allocation3] sm:$0xff] %v2811
  %2828 = vst [vmem:[#allocation3 + $0x8] sm:$0xff] %v2812
  %2829 = vst [vmem:[#allocation3 + $0x10] sm:$0xff] %v2813
  %2830 = vst [vmem:[#allocation3 + $0x18] sm:$0xff] %v2814
  %2831 = vst [vmem:[#allocation3 + $0x20] sm:$0xff] %v2815
  %2832 = vst [vmem:[#allocation3 + $0x28] sm:$0xff] %v2816
  %2833 = vst [vmem:[#allocation3 + $0x30] sm:$0xff] %v2817
  %2834 = vst [vmem:[#allocation3 + $0x38] sm:$0xff] %v2818
  %2835 = vst [vmem:[#allocation3 + $0x40] sm:$0xff] %v2819
  %2836 = vst [vmem:[#allocation3 + $0x48] sm:$0xff] %v2820
  %2837 = vst [vmem:[#allocation3 + $0x50] sm:$0xff] %v2821
  %2838 = vst [vmem:[#allocation3 + $0x58] sm:$0xff] %v2822
  %2839 = vst [vmem:[#allocation3 + $0x60] sm:$0xff] %v2823
  %2840 = vst [vmem:[#allocation3 + $0x68] sm:$0xff] %v2824
  %2841 = vst [vmem:[#allocation3 + $0x70] sm:$0xff] %v2825
  %2842 = vst [vmem:[#allocation3 + $0x78] sm:$0xff] %v2826
  %v2843 = vld [vmem:[#allocation3] sm:$0xff]
  %v2844 = vld [vmem:[#allocation3 + $0x8] sm:$0xff]
  %v2845 = vld [vmem:[#allocation3 + $0x10] sm:$0xff]
  %v2846 = vld [vmem:[#allocation3 + $0x18] sm:$0xff]
  %v2847 = vld [vmem:[#allocation3 + $0x20] sm:$0xff]
  %v2848 = vld [vmem:[#allocation3 + $0x28] sm:$0xff]
  %v2849 = vld [vmem:[#allocation3 + $0x30] sm:$0xff]
  %v2850 = vld [vmem:[#allocation3 + $0x38] sm:$0xff]
  %v2851 = vld [vmem:[#allocation3 + $0x40] sm:$0xff]
  %v2852 = vld [vmem:[#allocation3 + $0x48] sm:$0xff]
  %v2853 = vld [vmem:[#allocation3 + $0x50] sm:$0xff]
  %v2854 = vld [vmem:[#allocation3 + $0x58] sm:$0xff]
  %v2855 = vld [vmem:[#allocation3 + $0x60] sm:$0xff]
  %v2856 = vld [vmem:[#allocation3 + $0x68] sm:$0xff]
  %v2857 = vld [vmem:[#allocation3 + $0x70] sm:$0xff]
  %v2858 = vld [vmem:[#allocation3 + $0x78] sm:$0xff]
  %v2859 = vld [vmem:[%s3] sm:$0x1]
  %v2861 = vlaneseq
  %v2862 = vshrl.u32 %v2861, 7
  %v2863 = vsub.s32 0, %v2862
  %v2864 = vrot.slane %v2859, %v2863
  %v2866 = vadd.f32 %v2843, %v2864
  %v2867 = vadd.f32 %v2844, %v2864
  %v2868 = vadd.f32 %v2845, %v2864
  %v2869 = vadd.f32 %v2846, %v2864
  %v2870 = vadd.f32 %v2847, %v2864
  %v2871 = vadd.f32 %v2848, %v2864
  %v2872 = vadd.f32 %v2849, %v2864
  %v2873 = vadd.f32 %v2850, %v2864
  %v2874 = vadd.f32 %v2851, %v2864
  %v2875 = vadd.f32 %v2852, %v2864
  %v2876 = vadd.f32 %v2853, %v2864
  %v2877 = vadd.f32 %v2854, %v2864
  %v2878 = vadd.f32 %v2855, %v2864
  %v2879 = vadd.f32 %v2856, %v2864
  %v2880 = vadd.f32 %v2857, %v2864
  %v2881 = vadd.f32 %v2858, %v2864
  %v2882 = vmax.f32 %v2866, 0.0
  %v2883 = vmax.f32 %v2867, 0.0
  %v2884 = vmax.f32 %v2868, 0.0
  %v2885 = vmax.f32 %v2869, 0.0
  %v2886 = vmax.f32 %v2870, 0.0
  %v2887 = vmax.f32 %v2871, 0.0
  %v2888 = vmax.f32 %v2872, 0.0
  %v2889 = vmax.f32 %v2873, 0.0
  %v2890 = vmax.f32 %v2874, 0.0
  %v2891 = vmax.f32 %v2875, 0.0
  %v2892 = vmax.f32 %v2876, 0.0
  %v2893 = vmax.f32 %v2877, 0.0
  %v2894 = vmax.f32 %v2878, 0.0
  %v2895 = vmax.f32 %v2879, 0.0
  %v2896 = vmax.f32 %v2880, 0.0
  %v2897 = vmax.f32 %v2881, 0.0
  %2898 = vst [vmem:[#allocation2] sm:$0xf] 0
  %2899 = vst [vmem:[#allocation2 + $0x4] sm:$0x1] 0
  %2900 = vst [vmem:[#allocation2 + $0x8] sm:$0xf] 0
  %2901 = vst [vmem:[#allocation2 + $0xc] sm:$0x1] 0
  %2902 = vst [vmem:[#allocation2 + $0x10] sm:$0xf] 0
  %2903 = vst [vmem:[#allocation2 + $0x14] sm:$0x1] 0
  %2904 = vst [vmem:[#allocation2 + $0x18] sm:$0xf] 0
  %2905 = vst [vmem:[#allocation2 + $0x1c] sm:$0x1] 0
  %2906 = vst [vmem:[#allocation2 + $0x20] sm:$0xf] 0
  %2907 = vst [vmem:[#allocation2 + $0x24] sm:$0x1] 0
  %2908 = vst [vmem:[#allocation2 + $0x28] sm:$0xf] 0
  %2909 = vst [vmem:[#allocation2 + $0x2c] sm:$0x1] 0
  %2910 = vst [vmem:[#allocation2 + $0x30] sm:$0xf] 0
  %2911 = vst [vmem:[#allocation2 + $0x34] sm:$0x1] 0
  %2912 = vst [vmem:[#allocation2 + $0x38] sm:$0xf] 0
  %2913 = vst [vmem:[#allocation2 + $0x3c] sm:$0x1] 0
  %2914 = vst [vmem:[#allocation2 + $0x40] sm:$0xf] 0
  %2915 = vst [vmem:[#allocation2 + $0x44] sm:$0x1] 0
  %2916 = vst [vmem:[#allocation2 + $0x48] sm:$0xf] 0
  %2917 = vst [vmem:[#allocation2 + $0x4c] sm:$0x1] 0
  %2918 = vst [vmem:[#allocation2 + $0x50] sm:$0xf] 0
  %2919 = vst [vmem:[#allocation2 + $0x54] sm:$0x1] 0
  %2920 = vst [vmem:[#allocation2 + $0x58] sm:$0xf] 0
  %2921 = vst [vmem:[#allocation2 + $0x5c] sm:$0x1] 0
  %2922 = vst [vmem:[#allocation2 + $0x60] sm:$0xf] 0
  %2923 = vst [vmem:[#allocation2 + $0x64] sm:$0x1] 0
  %2924 = vst [vmem:[#allocation2 + $0x68] sm:$0xf] 0
  %2925 = vst [vmem:[#allocation2 + $0x6c] sm:$0x1] 0
  %2926 = vst [vmem:[#allocation2 + $0x70] sm:$0xf] 0
  %2927 = vst [vmem:[#allocation2 + $0x74] sm:$0x1] 0
  %2928 = vst [vmem:[#allocation2 + $0x78] sm:$0xf] 0
  %2929 = vst [vmem:[#allocation2 + $0x7c] sm:$0x1] 0
  %2930 = vst [vmem:[#allocation2 + $0x80] sm:$0xf] 0
  %2931 = vst [vmem:[#allocation2 + $0x84] sm:$0x1] 0
  %2932 = vst [vmem:[#allocation2 + $0x88] sm:$0xf] 0
  %2933 = vst [vmem:[#allocation2 + $0x8c] sm:$0x1] 0
  %2934 = vst [vmem:[#allocation2 + $0x90] sm:$0xf] 0
  %2935 = vst [vmem:[#allocation2 + $0x94] sm:$0x1] 0
  %2936 = vst [vmem:[#allocation2 + $0x98] sm:$0xf] 0
  %2937 = vst [vmem:[#allocation2 + $0x9c] sm:$0x1] 0
  %v2938 = vpack.c.bf16 %v2882, %v2882
  %v2939 = vpack.c.bf16 %v2883, %v2883
  %v2940 = vpack.c.bf16 %v2884, %v2884
  %v2941 = vpack.c.bf16 %v2885, %v2885
  %v2942 = vpack.c.bf16 %v2886, %v2886
  %v2943 = vpack.c.bf16 %v2887, %v2887
  %v2944 = vpack.c.bf16 %v2888, %v2888
  %v2945 = vpack.c.bf16 %v2889, %v2889
  %v2946 = vpack.c.bf16 %v2890, %v2890
  %v2947 = vpack.c.bf16 %v2891, %v2891
  %v2948 = vpack.c.bf16 %v2892, %v2892
  %v2949 = vpack.c.bf16 %v2893, %v2893
  %v2950 = vpack.c.bf16 %v2894, %v2894
  %v2951 = vpack.c.bf16 %v2895, %v2895
  %v2952 = vpack.c.bf16 %v2896, %v2896
  %v2953 = vpack.c.bf16 %v2897, %v2897
  %v2970 = vunpack.c.l.b16 %v2938
  %v2971 = vunpack.c.l.b16 %v2939
  %v2972 = vunpack.c.l.b16 %v2940
  %v2973 = vunpack.c.l.b16 %v2941
  %v2974 = vunpack.c.l.b16 %v2942
  %v2975 = vunpack.c.l.b16 %v2943
  %v2976 = vunpack.c.l.b16 %v2944
  %v2977 = vunpack.c.l.b16 %v2945
  %v2978 = vunpack.c.l.b16 %v2946
  %v2979 = vunpack.c.l.b16 %v2947
  %v2980 = vunpack.c.l.b16 %v2948
  %v2981 = vunpack.c.l.b16 %v2949
  %v2982 = vunpack.c.l.b16 %v2950
  %v2983 = vunpack.c.l.b16 %v2951
  %v2984 = vunpack.c.l.b16 %v2952
  %v2985 = vunpack.c.l.b16 %v2953
  %v2986 = vpack.c.b16 %v2970, %v2970
  %v2987 = vpack.c.b16 %v2971, %v2971
  %v2988 = vpack.c.b16 %v2972, %v2972
  %v2989 = vpack.c.b16 %v2973, %v2973
  %v2990 = vpack.c.b16 %v2974, %v2974
  %v2991 = vpack.c.b16 %v2975, %v2975
  %v2992 = vpack.c.b16 %v2976, %v2976
  %v2993 = vpack.c.b16 %v2977, %v2977
  %v2994 = vpack.c.b16 %v2978, %v2978
  %v2995 = vpack.c.b16 %v2979, %v2979
  %v2996 = vpack.c.b16 %v2980, %v2980
  %v2997 = vpack.c.b16 %v2981, %v2981
  %v2998 = vpack.c.b16 %v2982, %v2982
  %v2999 = vpack.c.b16 %v2983, %v2983
  %v3000 = vpack.c.b16 %v2984, %v2984
  %v3001 = vpack.c.b16 %v2985, %v2985
  %v3003 = vshrl.u32 %v2986, 16
  %v3005 = vrot.slane %v3003, 7
  %v3006 = vshll.u32 %v2986, 16
  %v3008 = vor.u32 %v3005, %v3006
  %v3009 = vrot.slane %v3005, 4
  %v3011 = vshrl.u32 %v2987, 16
  %v3013 = vrot.slane %v3011, 7
  %v3014 = vshll.u32 %v2987, 16
  %v3016 = vor.u32 %v3013, %v3014
  %v3017 = vrot.slane %v3013, 4
  %v3019 = vshrl.u32 %v2988, 16
  %v3021 = vrot.slane %v3019, 7
  %v3022 = vshll.u32 %v2988, 16
  %v3024 = vor.u32 %v3021, %v3022
  %v3025 = vrot.slane %v3021, 4
  %v3027 = vshrl.u32 %v2989, 16
  %v3029 = vrot.slane %v3027, 7
  %v3030 = vshll.u32 %v2989, 16
  %v3032 = vor.u32 %v3029, %v3030
  %v3033 = vrot.slane %v3029, 4
  %v3035 = vshrl.u32 %v2990, 16
  %v3037 = vrot.slane %v3035, 7
  %v3038 = vshll.u32 %v2990, 16
  %v3040 = vor.u32 %v3037, %v3038
  %v3041 = vrot.slane %v3037, 4
  %v3043 = vshrl.u32 %v2991, 16
  %v3045 = vrot.slane %v3043, 7
  %v3046 = vshll.u32 %v2991, 16
  %v3048 = vor.u32 %v3045, %v3046
  %v3049 = vrot.slane %v3045, 4
  %v3051 = vshrl.u32 %v2992, 16
  %v3053 = vrot.slane %v3051, 7
  %v3054 = vshll.u32 %v2992, 16
  %v3056 = vor.u32 %v3053, %v3054
  %v3057 = vrot.slane %v3053, 4
  %v3059 = vshrl.u32 %v2993, 16
  %v3061 = vrot.slane %v3059, 7
  %v3062 = vshll.u32 %v2993, 16
  %v3064 = vor.u32 %v3061, %v3062
  %v3065 = vrot.slane %v3061, 4
  %v3067 = vshrl.u32 %v2994, 16
  %v3069 = vrot.slane %v3067, 7
  %v3070 = vshll.u32 %v2994, 16
  %v3072 = vor.u32 %v3069, %v3070
  %v3073 = vrot.slane %v3069, 4
  %v3075 = vshrl.u32 %v2995, 16
  %v3077 = vrot.slane %v3075, 7
  %v3078 = vshll.u32 %v2995, 16
  %v3080 = vor.u32 %v3077, %v3078
  %v3081 = vrot.slane %v3077, 4
  %v3083 = vshrl.u32 %v2996, 16
  %v3085 = vrot.slane %v3083, 7
  %v3086 = vshll.u32 %v2996, 16
  %v3088 = vor.u32 %v3085, %v3086
  %v3089 = vrot.slane %v3085, 4
  %v3091 = vshrl.u32 %v2997, 16
  %v3093 = vrot.slane %v3091, 7
  %v3094 = vshll.u32 %v2997, 16
  %v3096 = vor.u32 %v3093, %v3094
  %v3097 = vrot.slane %v3093, 4
  %v3099 = vshrl.u32 %v2998, 16
  %v3101 = vrot.slane %v3099, 7
  %v3102 = vshll.u32 %v2998, 16
  %v3104 = vor.u32 %v3101, %v3102
  %v3105 = vrot.slane %v3101, 4
  %v3107 = vshrl.u32 %v2999, 16
  %v3109 = vrot.slane %v3107, 7
  %v3110 = vshll.u32 %v2999, 16
  %v3112 = vor.u32 %v3109, %v3110
  %v3113 = vrot.slane %v3109, 4
  %v3115 = vshrl.u32 %v3000, 16
  %v3117 = vrot.slane %v3115, 7
  %v3118 = vshll.u32 %v3000, 16
  %v3120 = vor.u32 %v3117, %v3118
  %v3121 = vrot.slane %v3117, 4
  %v3123 = vshrl.u32 %v3001, 16
  %v3125 = vrot.slane %v3123, 7
  %v3126 = vshll.u32 %v3001, 16
  %v3128 = vor.u32 %v3125, %v3126
  %v3129 = vrot.slane %v3125, 4
  %s3162 = scalar_lea.vmem [#allocation2], 8
  %vm3163 = vcmask 1043456
  %vm3164 = vsmask.f32 7938
  %vm3165 = vmand %vm3163, %vm3164
  %v3166 = vld [vmem:[%s3162] sm:$0xf]
  %v3167 = vsel %vm3165, %v3008, %v3166
  %3168 = vst [vmem:[%s3162] sm:$0xf] %v3167
  %vm3169 = vcmask 1040384
  %vm3170 = vsmask.f32 256
  %vm3171 = vmand %vm3169, %vm3170
  %v3172 = vld [vmem:[%s3162 + $0x4] sm:$0x1]
  %v3173 = vsel %vm3171, %v3009, %v3172
  %3174 = vst [vmem:[%s3162 + $0x4] sm:$0x1] %v3173
  %v3175 = vld [vmem:[%s3162 + $0x8] sm:$0xf]
  %v3176 = vsel %vm3165, %v3016, %v3175
  %3177 = vst [vmem:[%s3162 + $0x8] sm:$0xf] %v3176
  %v3178 = vld [vmem:[%s3162 + $0xc] sm:$0x1]
  %v3179 = vsel %vm3171, %v3017, %v3178
  %3180 = vst [vmem:[%s3162 + $0xc] sm:$0x1] %v3179
  %v3181 = vld [vmem:[%s3162 + $0x10] sm:$0xf]
  %v3182 = vsel %vm3165, %v3024, %v3181
  %3183 = vst [vmem:[%s3162 + $0x10] sm:$0xf] %v3182
  %v3184 = vld [vmem:[%s3162 + $0x14] sm:$0x1]
  %v3185 = vsel %vm3171, %v3025, %v3184
  %3186 = vst [vmem:[%s3162 + $0x14] sm:$0x1] %v3185
  %v3187 = vld [vmem:[%s3162 + $0x18] sm:$0xf]
  %v3188 = vsel %vm3165, %v3032, %v3187
  %3189 = vst [vmem:[%s3162 + $0x18] sm:$0xf] %v3188
  %v3190 = vld [vmem:[%s3162 + $0x1c] sm:$0x1]
  %v3191 = vsel %vm3171, %v3033, %v3190
  %3192 = vst [vmem:[%s3162 + $0x1c] sm:$0x1] %v3191
  %v3193 = vld [vmem:[%s3162 + $0x20] sm:$0xf]
  %v3194 = vsel %vm3165, %v3040, %v3193
  %3195 = vst [vmem:[%s3162 + $0x20] sm:$0xf] %v3194
  %v3196 = vld [vmem:[%s3162 + $0x24] sm:$0x1]
  %v3197 = vsel %vm3171, %v3041, %v3196
  %3198 = vst [vmem:[%s3162 + $0x24] sm:$0x1] %v3197
  %v3199 = vld [vmem:[%s3162 + $0x28] sm:$0xf]
  %v3200 = vsel %vm3165, %v3048, %v3199
  %3201 = vst [vmem:[%s3162 + $0x28] sm:$0xf] %v3200
  %v3202 = vld [vmem:[%s3162 + $0x2c] sm:$0x1]
  %v3203 = vsel %vm3171, %v3049, %v3202
  %3204 = vst [vmem:[%s3162 + $0x2c] sm:$0x1] %v3203
  %v3205 = vld [vmem:[%s3162 + $0x30] sm:$0xf]
  %v3206 = vsel %vm3165, %v3056, %v3205
  %3207 = vst [vmem:[%s3162 + $0x30] sm:$0xf] %v3206
  %v3208 = vld [vmem:[%s3162 + $0x34] sm:$0x1]
  %v3209 = vsel %vm3171, %v3057, %v3208
  %3210 = vst [vmem:[%s3162 + $0x34] sm:$0x1] %v3209
  %v3211 = vld [vmem:[%s3162 + $0x38] sm:$0xf]
  %v3212 = vsel %vm3165, %v3064, %v3211
  %3213 = vst [vmem:[%s3162 + $0x38] sm:$0xf] %v3212
  %v3214 = vld [vmem:[%s3162 + $0x3c] sm:$0x1]
  %v3215 = vsel %vm3171, %v3065, %v3214
  %3216 = vst [vmem:[%s3162 + $0x3c] sm:$0x1] %v3215
  %v3217 = vld [vmem:[%s3162 + $0x50] sm:$0xf]
  %v3218 = vsel %vm3165, %v3072, %v3217
  %3219 = vst [vmem:[%s3162 + $0x50] sm:$0xf] %v3218
  %v3220 = vld [vmem:[%s3162 + $0x54] sm:$0x1]
  %v3221 = vsel %vm3171, %v3073, %v3220
  %3222 = vst [vmem:[%s3162 + $0x54] sm:$0x1] %v3221
  %v3223 = vld [vmem:[%s3162 + $0x58] sm:$0xf]
  %v3224 = vsel %vm3165, %v3080, %v3223
  %3225 = vst [vmem:[%s3162 + $0x58] sm:$0xf] %v3224
  %v3226 = vld [vmem:[%s3162 + $0x5c] sm:$0x1]
  %v3227 = vsel %vm3171, %v3081, %v3226
  %3228 = vst [vmem:[%s3162 + $0x5c] sm:$0x1] %v3227
  %v3229 = vld [vmem:[%s3162 + $0x60] sm:$0xf]
  %v3230 = vsel %vm3165, %v3088, %v3229
  %3231 = vst [vmem:[%s3162 + $0x60] sm:$0xf] %v3230
  %v3232 = vld [vmem:[%s3162 + $0x64] sm:$0x1]
  %v3233 = vsel %vm3171, %v3089, %v3232
  %3234 = vst [vmem:[%s3162 + $0x64] sm:$0x1] %v3233
  %v3235 = vld [vmem:[%s3162 + $0x68] sm:$0xf]
  %v3236 = vsel %vm3165, %v3096, %v3235
  %3237 = vst [vmem:[%s3162 + $0x68] sm:$0xf] %v3236
  %v3238 = vld [vmem:[%s3162 + $0x6c] sm:$0x1]
  %v3239 = vsel %vm3171, %v3097, %v3238
  %3240 = vst [vmem:[%s3162 + $0x6c] sm:$0x1] %v3239
  %v3241 = vld [vmem:[%s3162 + $0x70] sm:$0xf]
  %v3242 = vsel %vm3165, %v3104, %v3241
  %3243 = vst [vmem:[%s3162 + $0x70] sm:$0xf] %v3242
  %v3244 = vld [vmem:[%s3162 + $0x74] sm:$0x1]
  %v3245 = vsel %vm3171, %v3105, %v3244
  %3246 = vst [vmem:[%s3162 + $0x74] sm:$0x1] %v3245
  %v3247 = vld [vmem:[%s3162 + $0x78] sm:$0xf]
  %v3248 = vsel %vm3165, %v3112, %v3247
  %3249 = vst [vmem:[%s3162 + $0x78] sm:$0xf] %v3248
  %v3250 = vld [vmem:[%s3162 + $0x7c] sm:$0x1]
  %v3251 = vsel %vm3171, %v3113, %v3250
  %3252 = vst [vmem:[%s3162 + $0x7c] sm:$0x1] %v3251
  %v3253 = vld [vmem:[%s3162 + $0x80] sm:$0xf]
  %v3254 = vsel %vm3165, %v3120, %v3253
  %3255 = vst [vmem:[%s3162 + $0x80] sm:$0xf] %v3254
  %v3256 = vld [vmem:[%s3162 + $0x84] sm:$0x1]
  %v3257 = vsel %vm3171, %v3121, %v3256
  %3258 = vst [vmem:[%s3162 + $0x84] sm:$0x1] %v3257
  %v3259 = vld [vmem:[%s3162 + $0x88] sm:$0xf]
  %v3260 = vsel %vm3165, %v3128, %v3259
  %3261 = vst [vmem:[%s3162 + $0x88] sm:$0xf] %v3260
  %v3262 = vld [vmem:[%s3162 + $0x8c] sm:$0x1]
  %v3263 = vsel %vm3171, %v3129, %v3262
  %3264 = vst [vmem:[%s3162 + $0x8c] sm:$0x1] %v3263
  %3265 = vst [vmem:[#allocation3] sm:$0xff] 0.0
  %3266 = vst [vmem:[#allocation3 + $0x8] sm:$0xff] 0.0
  %3267 = vst [vmem:[#allocation3 + $0x10] sm:$0xff] 0.0
  %3268 = vst [vmem:[#allocation3 + $0x18] sm:$0xff] 0.0
  %3269 = vst [vmem:[#allocation3 + $0x20] sm:$0xff] 0.0
  %3270 = vst [vmem:[#allocation3 + $0x28] sm:$0xff] 0.0
  %3271 = vst [vmem:[#allocation3 + $0x30] sm:$0xff] 0.0
  %3272 = vst [vmem:[#allocation3 + $0x38] sm:$0xff] 0.0
  %3273 = vst [vmem:[#allocation3 + $0x40] sm:$0xff] 0.0
  %3274 = vst [vmem:[#allocation3 + $0x48] sm:$0xff] 0.0
  %3275 = vst [vmem:[#allocation3 + $0x50] sm:$0xff] 0.0
  %3276 = vst [vmem:[#allocation3 + $0x58] sm:$0xff] 0.0
  %3277 = vst [vmem:[#allocation3 + $0x60] sm:$0xff] 0.0
  %3278 = vst [vmem:[#allocation3 + $0x68] sm:$0xff] 0.0
  %3279 = vst [vmem:[#allocation3 + $0x70] sm:$0xff] 0.0
  %3280 = vst [vmem:[#allocation3 + $0x78] sm:$0xff] 0.0
  %v3281 = vld [vmem:[#allocation2] sm:$0xf]
  %v3282 = vld [vmem:[#allocation2 + $0x8] sm:$0xf]
  %v3283 = vld [vmem:[#allocation2 + $0x10] sm:$0xf]
  %v3284 = vld [vmem:[#allocation2 + $0x18] sm:$0xf]
  %v3285 = vld [vmem:[#allocation2 + $0x20] sm:$0xf]
  %v3286 = vld [vmem:[#allocation2 + $0x28] sm:$0xf]
  %v3287 = vld [vmem:[#allocation2 + $0x30] sm:$0xf]
  %v3288 = vld [vmem:[#allocation2 + $0x38] sm:$0xf]
  %v3289 = vld [vmem:[#allocation2 + $0x50] sm:$0xf]
  %v3290 = vld [vmem:[#allocation2 + $0x58] sm:$0xf]
  %v3291 = vld [vmem:[#allocation2 + $0x60] sm:$0xf]
  %v3292 = vld [vmem:[#allocation2 + $0x68] sm:$0xf]
  %v3293 = vld [vmem:[#allocation2 + $0x70] sm:$0xf]
  %v3294 = vld [vmem:[#allocation2 + $0x78] sm:$0xf]
  %v3295 = vld [vmem:[#allocation2 + $0x80] sm:$0xf]
  %v3296 = vld [vmem:[#allocation2 + $0x88] sm:$0xf]
  %v3297 = vld [vmem:[#allocation2 + $0x4] sm:$0x1]
  %v3298 = vld [vmem:[#allocation2 + $0xc] sm:$0x1]
  %v3299 = vld [vmem:[#allocation2 + $0x14] sm:$0x1]
  %v3300 = vld [vmem:[#allocation2 + $0x1c] sm:$0x1]
  %v3301 = vld [vmem:[#allocation2 + $0x24] sm:$0x1]
  %v3302 = vld [vmem:[#allocation2 + $0x2c] sm:$0x1]
  %v3303 = vld [vmem:[#allocation2 + $0x34] sm:$0x1]
  %v3304 = vld [vmem:[#allocation2 + $0x3c] sm:$0x1]
  %v3305 = vld [vmem:[#allocation2 + $0x54] sm:$0x1]
  %v3306 = vld [vmem:[#allocation2 + $0x5c] sm:$0x1]
  %v3307 = vld [vmem:[#allocation2 + $0x64] sm:$0x1]
  %v3308 = vld [vmem:[#allocation2 + $0x6c] sm:$0x1]
  %v3309 = vld [vmem:[#allocation2 + $0x74] sm:$0x1]
  %v3310 = vld [vmem:[#allocation2 + $0x7c] sm:$0x1]
  %v3311 = vld [vmem:[#allocation2 + $0x84] sm:$0x1]
  %v3312 = vld [vmem:[#allocation2 + $0x8c] sm:$0x1]
  %v3314 = vshrl.u32 %v3281, 16
  %v3316 = vrot.slane %v3314, 4
  %v3317 = vshll.u32 %v3281, 16
  %v3319 = vrot.slane %v3317, 5
  %v3320 = vor.u32 %v3316, %v3319
  %v3321 = vrot.slane %v3320, 4
  %v3323 = vshll.u32 %v3297, 16
  %v3325 = vrot.slane %v3323, 5
  %v3326 = vsel %vm77, %v3321, %v3325
  %v3328 = vshrl.u32 %v3282, 16
  %v3330 = vrot.slane %v3328, 4
  %v3331 = vshll.u32 %v3282, 16
  %v3333 = vrot.slane %v3331, 5
  %v3334 = vor.u32 %v3330, %v3333
  %v3335 = vrot.slane %v3334, 4
  %v3337 = vshll.u32 %v3298, 16
  %v3339 = vrot.slane %v3337, 5
  %v3340 = vsel %vm77, %v3335, %v3339
  %v3342 = vshrl.u32 %v3283, 16
  %v3344 = vrot.slane %v3342, 4
  %v3345 = vshll.u32 %v3283, 16
  %v3347 = vrot.slane %v3345, 5
  %v3348 = vor.u32 %v3344, %v3347
  %v3349 = vrot.slane %v3348, 4
  %v3351 = vshll.u32 %v3299, 16
  %v3353 = vrot.slane %v3351, 5
  %v3354 = vsel %vm77, %v3349, %v3353
  %v3356 = vshrl.u32 %v3284, 16
  %v3358 = vrot.slane %v3356, 4
  %v3359 = vshll.u32 %v3284, 16
  %v3361 = vrot.slane %v3359, 5
  %v3362 = vor.u32 %v3358, %v3361
  %v3363 = vrot.slane %v3362, 4
  %v3365 = vshll.u32 %v3300, 16
  %v3367 = vrot.slane %v3365, 5
  %v3368 = vsel %vm77, %v3363, %v3367
  %v3370 = vshrl.u32 %v3285, 16
  %v3372 = vrot.slane %v3370, 4
  %v3373 = vshll.u32 %v3285, 16
  %v3375 = vrot.slane %v3373, 5
  %v3376 = vor.u32 %v3372, %v3375
  %v3377 = vrot.slane %v3376, 4
  %v3379 = vshll.u32 %v3301, 16
  %v3381 = vrot.slane %v3379, 5
  %v3382 = vsel %vm77, %v3377, %v3381
  %v3384 = vshrl.u32 %v3286, 16
  %v3386 = vrot.slane %v3384, 4
  %v3387 = vshll.u32 %v3286, 16
  %v3389 = vrot.slane %v3387, 5
  %v3390 = vor.u32 %v3386, %v3389
  %v3391 = vrot.slane %v3390, 4
  %v3393 = vshll.u32 %v3302, 16
  %v3395 = vrot.slane %v3393, 5
  %v3396 = vsel %vm77, %v3391, %v3395
  %v3398 = vshrl.u32 %v3287, 16
  %v3400 = vrot.slane %v3398, 4
  %v3401 = vshll.u32 %v3287, 16
  %v3403 = vrot.slane %v3401, 5
  %v3404 = vor.u32 %v3400, %v3403
  %v3405 = vrot.slane %v3404, 4
  %v3407 = vshll.u32 %v3303, 16
  %v3409 = vrot.slane %v3407, 5
  %v3410 = vsel %vm77, %v3405, %v3409
  %v3412 = vshrl.u32 %v3288, 16
  %v3414 = vrot.slane %v3412, 4
  %v3415 = vshll.u32 %v3288, 16
  %v3417 = vrot.slane %v3415, 5
  %v3418 = vor.u32 %v3414, %v3417
  %v3419 = vrot.slane %v3418, 4
  %v3421 = vshll.u32 %v3304, 16
  %v3423 = vrot.slane %v3421, 5
  %v3424 = vsel %vm77, %v3419, %v3423
  %v3426 = vshrl.u32 %v3289, 16
  %v3428 = vrot.slane %v3426, 4
  %v3429 = vshll.u32 %v3289, 16
  %v3431 = vrot.slane %v3429, 5
  %v3432 = vor.u32 %v3428, %v3431
  %v3433 = vrot.slane %v3432, 4
  %v3435 = vshll.u32 %v3305, 16
  %v3437 = vrot.slane %v3435, 5
  %v3438 = vsel %vm77, %v3433, %v3437
  %v3440 = vshrl.u32 %v3290, 16
  %v3442 = vrot.slane %v3440, 4
  %v3443 = vshll.u32 %v3290, 16
  %v3445 = vrot.slane %v3443, 5
  %v3446 = vor.u32 %v3442, %v3445
  %v3447 = vrot.slane %v3446, 4
  %v3449 = vshll.u32 %v3306, 16
  %v3451 = vrot.slane %v3449, 5
  %v3452 = vsel %vm77, %v3447, %v3451
  %v3454 = vshrl.u32 %v3291, 16
  %v3456 = vrot.slane %v3454, 4
  %v3457 = vshll.u32 %v3291, 16
  %v3459 = vrot.slane %v3457, 5
  %v3460 = vor.u32 %v3456, %v3459
  %v3461 = vrot.slane %v3460, 4
  %v3463 = vshll.u32 %v3307, 16
  %v3465 = vrot.slane %v3463, 5
  %v3466 = vsel %vm77, %v3461, %v3465
  %v3468 = vshrl.u32 %v3292, 16
  %v3470 = vrot.slane %v3468, 4
  %v3471 = vshll.u32 %v3292, 16
  %v3473 = vrot.slane %v3471, 5
  %v3474 = vor.u32 %v3470, %v3473
  %v3475 = vrot.slane %v3474, 4
  %v3477 = vshll.u32 %v3308, 16
  %v3479 = vrot.slane %v3477, 5
  %v3480 = vsel %vm77, %v3475, %v3479
  %v3482 = vshrl.u32 %v3293, 16
  %v3484 = vrot.slane %v3482, 4
  %v3485 = vshll.u32 %v3293, 16
  %v3487 = vrot.slane %v3485, 5
  %v3488 = vor.u32 %v3484, %v3487
  %v3489 = vrot.slane %v3488, 4
  %v3491 = vshll.u32 %v3309, 16
  %v3493 = vrot.slane %v3491, 5
  %v3494 = vsel %vm77, %v3489, %v3493
  %v3496 = vshrl.u32 %v3294, 16
  %v3498 = vrot.slane %v3496, 4
  %v3499 = vshll.u32 %v3294, 16
  %v3501 = vrot.slane %v3499, 5
  %v3502 = vor.u32 %v3498, %v3501
  %v3503 = vrot.slane %v3502, 4
  %v3505 = vshll.u32 %v3310, 16
  %v3507 = vrot.slane %v3505, 5
  %v3508 = vsel %vm77, %v3503, %v3507
  %v3510 = vshrl.u32 %v3295, 16
  %v3512 = vrot.slane %v3510, 4
  %v3513 = vshll.u32 %v3295, 16
  %v3515 = vrot.slane %v3513, 5
  %v3516 = vor.u32 %v3512, %v3515
  %v3517 = vrot.slane %v3516, 4
  %v3519 = vshll.u32 %v3311, 16
  %v3521 = vrot.slane %v3519, 5
  %v3522 = vsel %vm77, %v3517, %v3521
  %v3524 = vshrl.u32 %v3296, 16
  %v3526 = vrot.slane %v3524, 4
  %v3527 = vshll.u32 %v3296, 16
  %v3529 = vrot.slane %v3527, 5
  %v3530 = vor.u32 %v3526, %v3529
  %v3531 = vrot.slane %v3530, 4
  %v3533 = vshll.u32 %v3312, 16
  %v3535 = vrot.slane %v3533, 5
  %v3536 = vsel %vm77, %v3531, %v3535
  %v3553 = vunpack.c.l.b16 %v3281
  %v3554 = vunpack.c.l.b16 %v3282
  %v3555 = vunpack.c.l.b16 %v3283
  %v3556 = vunpack.c.l.b16 %v3284
  %v3557 = vunpack.c.l.b16 %v3285
  %v3558 = vunpack.c.l.b16 %v3286
  %v3559 = vunpack.c.l.b16 %v3287
  %v3560 = vunpack.c.l.b16 %v3288
  %v3561 = vunpack.c.l.b16 %v3289
  %v3562 = vunpack.c.l.b16 %v3290
  %v3563 = vunpack.c.l.b16 %v3291
  %v3564 = vunpack.c.l.b16 %v3292
  %v3565 = vunpack.c.l.b16 %v3293
  %v3566 = vunpack.c.l.b16 %v3294
  %v3567 = vunpack.c.l.b16 %v3295
  %v3568 = vunpack.c.l.b16 %v3296
  %v3569 = vpack.c.b16 %v3554, %v3553
  %v3570 = vpack.c.b16 %v3556, %v3555
  %v3571 = vpack.c.b16 %v3558, %v3557
  %v3572 = vpack.c.b16 %v3560, %v3559
  %v3573 = vpack.c.b16 %v3562, %v3561
  %v3574 = vpack.c.b16 %v3564, %v3563
  %v3575 = vpack.c.b16 %v3566, %v3565
  %v3576 = vpack.c.b16 %v3568, %v3567
  %v3585 = vunpack.c.l.b16 %v3326
  %v3586 = vunpack.c.l.b16 %v3340
  %v3587 = vunpack.c.l.b16 %v3354
  %v3588 = vunpack.c.l.b16 %v3368
  %v3589 = vunpack.c.l.b16 %v3382
  %v3590 = vunpack.c.l.b16 %v3396
  %v3591 = vunpack.c.l.b16 %v3410
  %v3592 = vunpack.c.l.b16 %v3424
  %v3593 = vunpack.c.l.b16 %v3438
  %v3594 = vunpack.c.l.b16 %v3452
  %v3595 = vunpack.c.l.b16 %v3466
  %v3596 = vunpack.c.l.b16 %v3480
  %v3597 = vunpack.c.l.b16 %v3494
  %v3598 = vunpack.c.l.b16 %v3508
  %v3599 = vunpack.c.l.b16 %v3522
  %v3600 = vunpack.c.l.b16 %v3536
  %v3601 = vpack.c.b16 %v3586, %v3585
  %v3602 = vpack.c.b16 %v3588, %v3587
  %v3603 = vpack.c.b16 %v3590, %v3589
  %v3604 = vpack.c.b16 %v3592, %v3591
  %v3605 = vpack.c.b16 %v3594, %v3593
  %v3606 = vpack.c.b16 %v3596, %v3595
  %v3607 = vpack.c.b16 %v3598, %v3597
  %v3608 = vpack.c.b16 %v3600, %v3599
  %v3617 = vld [vmem:[#allocation3] sm:$0xff]
  %v3618 = vld [vmem:[#allocation3 + $0x8] sm:$0xff]
  %v3619 = vld [vmem:[#allocation3 + $0x10] sm:$0xff]
  %v3620 = vld [vmem:[#allocation3 + $0x18] sm:$0xff]
  %v3621 = vld [vmem:[#allocation3 + $0x20] sm:$0xff]
  %v3622 = vld [vmem:[#allocation3 + $0x28] sm:$0xff]
  %v3623 = vld [vmem:[#allocation3 + $0x30] sm:$0xff]
  %v3624 = vld [vmem:[#allocation3 + $0x38] sm:$0xff]
  %v3625 = vld [vmem:[#allocation3 + $0x40] sm:$0xff]
  %v3626 = vld [vmem:[#allocation3 + $0x48] sm:$0xff]
  %v3627 = vld [vmem:[#allocation3 + $0x50] sm:$0xff]
  %v3628 = vld [vmem:[#allocation3 + $0x58] sm:$0xff]
  %v3629 = vld [vmem:[#allocation3 + $0x60] sm:$0xff]
  %v3630 = vld [vmem:[#allocation3 + $0x68] sm:$0xff]
  %v3631 = vld [vmem:[#allocation3 + $0x70] sm:$0xff]
  %v3632 = vld [vmem:[#allocation3 + $0x78] sm:$0xff]
  %v3633 = vld [vmem:[%s4] sm:$0xf]
  %v3634 = vld [vmem:[%s4 + $0x4] sm:$0xf]
  %v3635 = vld [vmem:[%s4 + $0x8] sm:$0xf]
  %v3636 = vld [vmem:[%s4 + $0xc] sm:$0xf]
  %v3637 = vld [vmem:[%s4 + $0x10] sm:$0xf]
  %v3638 = vld [vmem:[%s4 + $0x14] sm:$0xf]
  %v3639 = vld [vmem:[%s4 + $0x18] sm:$0xf]
  %v3640 = vld [vmem:[%s4 + $0x1c] sm:$0xf]
  %v3641 = vld [vmem:[%s4 + $0x20] sm:$0xf]
  %v3642 = vld [vmem:[%s4 + $0x24] sm:$0xf]
  %v3643 = vld [vmem:[%s4 + $0x28] sm:$0xf]
  %v3644 = vld [vmem:[%s4 + $0x2c] sm:$0xf]
  %v3645 = vld [vmem:[%s4 + $0x30] sm:$0xf]
  %v3646 = vld [vmem:[%s4 + $0x34] sm:$0xf]
  %v3647 = vld [vmem:[%s4 + $0x38] sm:$0xf]
  %v3648 = vld [vmem:[%s4 + $0x3c] sm:$0xf]
  %v3649 = vld [vmem:[%s4 + $0x40] sm:$0xf]
  %v3650 = vld [vmem:[%s4 + $0x44] sm:$0xf]
  %v3651 = vld [vmem:[%s4 + $0x48] sm:$0xf]
  %v3652 = vld [vmem:[%s4 + $0x4c] sm:$0xf]
  %v3653 = vld [vmem:[%s4 + $0x50] sm:$0xf]
  %v3654 = vld [vmem:[%s4 + $0x54] sm:$0xf]
  %v3655 = vld [vmem:[%s4 + $0x58] sm:$0xf]
  %v3656 = vld [vmem:[%s4 + $0x5c] sm:$0xf]
  %v3657 = vld [vmem:[%s4 + $0x60] sm:$0xf]
  %v3658 = vld [vmem:[%s4 + $0x64] sm:$0xf]
  %v3659 = vld [vmem:[%s4 + $0x68] sm:$0xf]
  %v3660 = vld [vmem:[%s4 + $0x6c] sm:$0xf]
  %v3661 = vld [vmem:[%s4 + $0x70] sm:$0xf]
  %v3662 = vld [vmem:[%s4 + $0x74] sm:$0xf]
  %v3663 = vld [vmem:[%s4 + $0x78] sm:$0xf]
  %v3664 = vld [vmem:[%s4 + $0x7c] sm:$0xf]
  %v3697 = vunpack.c.l.b16 %v3633
  %v3698 = vunpack.c.l.b16 %v3634
  %v3699 = vunpack.c.l.b16 %v3635
  %v3700 = vunpack.c.l.b16 %v3636
  %v3701 = vunpack.c.l.b16 %v3637
  %v3702 = vunpack.c.l.b16 %v3638
  %v3703 = vunpack.c.l.b16 %v3639
  %v3704 = vunpack.c.l.b16 %v3640
  %v3705 = vunpack.c.l.b16 %v3641
  %v3706 = vunpack.c.l.b16 %v3642
  %v3707 = vunpack.c.l.b16 %v3643
  %v3708 = vunpack.c.l.b16 %v3644
  %v3709 = vunpack.c.l.b16 %v3645
  %v3710 = vunpack.c.l.b16 %v3646
  %v3711 = vunpack.c.l.b16 %v3647
  %v3712 = vunpack.c.l.b16 %v3648
  %v3713 = vunpack.c.l.b16 %v3649
  %v3714 = vunpack.c.l.b16 %v3650
  %v3715 = vunpack.c.l.b16 %v3651
  %v3716 = vunpack.c.l.b16 %v3652
  %v3717 = vunpack.c.l.b16 %v3653
  %v3718 = vunpack.c.l.b16 %v3654
  %v3719 = vunpack.c.l.b16 %v3655
  %v3720 = vunpack.c.l.b16 %v3656
  %v3721 = vunpack.c.l.b16 %v3657
  %v3722 = vunpack.c.l.b16 %v3658
  %v3723 = vunpack.c.l.b16 %v3659
  %v3724 = vunpack.c.l.b16 %v3660
  %v3725 = vunpack.c.l.b16 %v3661
  %v3726 = vunpack.c.l.b16 %v3662
  %v3727 = vunpack.c.l.b16 %v3663
  %v3728 = vunpack.c.l.b16 %v3664
  %v3729 = vpack.c.b16 %v3698, %v3697
  %v3730 = vpack.c.b16 %v3700, %v3699
  %v3731 = vpack.c.b16 %v3702, %v3701
  %v3732 = vpack.c.b16 %v3704, %v3703
  %v3733 = vpack.c.b16 %v3706, %v3705
  %v3734 = vpack.c.b16 %v3708, %v3707
  %v3735 = vpack.c.b16 %v3710, %v3709
  %v3736 = vpack.c.b16 %v3712, %v3711
  %v3737 = vpack.c.b16 %v3714, %v3713
  %v3738 = vpack.c.b16 %v3716, %v3715
  %v3739 = vpack.c.b16 %v3718, %v3717
  %v3740 = vpack.c.b16 %v3720, %v3719
  %v3741 = vpack.c.b16 %v3722, %v3721
  %v3742 = vpack.c.b16 %v3724, %v3723
  %v3743 = vpack.c.b16 %v3726, %v3725
  %v3744 = vpack.c.b16 %v3728, %v3727
  %3761 = vmatprep.subr.bf16.mxu0 0
  %3762 = vmatpush1.bf16.msra.mxu0 %v3729
  %3763 = vmatprep.subr.bf16.mxu0 0
  %3764 = vmatpush1.bf16.msra.mxu0 %v3730
  %3765 = vmatprep.subr.bf16.mxu0 0
  %3766 = vmatpush1.bf16.msra.mxu0 %v3731
  %3767 = vmatprep.subr.bf16.mxu0 0
  %3768 = vmatpush1.bf16.msra.mxu0 %v3732
  %3769 = vmatprep.subr.bf16.mxu0 0
  %3770 = vmatpush1.bf16.msra.mxu0 %v3733
  %3771 = vmatprep.subr.bf16.mxu0 0
  %3772 = vmatpush1.bf16.msra.mxu0 %v3734
  %3773 = vmatprep.subr.bf16.mxu0 0
  %3774 = vmatpush1.bf16.msra.mxu0 %v3735
  %3775 = vmatprep.subr.bf16.mxu0 0
  %3776 = vmatpush1.bf16.msra.mxu0 %v3736
  %3777 = vmatprep.subr.bf16.mxu0 0
  %3778 = vmatpush1.bf16.msra.mxu0 %v3737
  %3779 = vmatprep.subr.bf16.mxu0 0
  %3780 = vmatpush1.bf16.msra.mxu0 %v3738
  %3781 = vmatprep.subr.bf16.mxu0 0
  %3782 = vmatpush1.bf16.msra.mxu0 %v3739
  %3783 = vmatprep.subr.bf16.mxu0 0
  %3784 = vmatpush1.bf16.msra.mxu0 %v3740
  %3785 = vmatprep.subr.bf16.mxu0 0
  %3786 = vmatpush1.bf16.msra.mxu0 %v3741
  %3787 = vmatprep.subr.bf16.mxu0 0
  %3788 = vmatpush1.bf16.msra.mxu0 %v3742
  %3789 = vmatprep.subr.bf16.mxu0 0
  %3790 = vmatpush1.bf16.msra.mxu0 %v3743
  %3791 = vmatprep.subr.bf16.mxu0 0
  %3792 = vmatpush1.bf16.msra.mxu0 %v3744
  %3793 = vmatprep.mubr.bf16.mxu0 %v3601
  %3794 = vmatmul.mubr.bf16.gmra.mrb[0].mxu0 %v3569
  %v3795 = vpop.f32.mrb[0].mxu0
  %v3796 = vadd.f32 0.0, %v3795
  %v3797 = vpop.f32.mrb[0].mxu0
  %v3798 = vpop.f32.mrb[0].mxu0
  %v3799 = vadd.f32 0.0, %v3798
  %v3800 = vpop.f32.mrb[0].mxu0
  %3801 = vmatprep.mubr.bf16.mxu0 %v3602
  %3802 = vmatmul.mubr.bf16.gmra.mrb[0].mxu0 %v3570
  %v3803 = vpop.f32.mrb[0].mxu0
  %v3804 = vadd.f32 0.0, %v3803
  %v3805 = vpop.f32.mrb[0].mxu0
  %v3806 = vpop.f32.mrb[0].mxu0
  %v3807 = vadd.f32 0.0, %v3806
  %v3808 = vpop.f32.mrb[0].mxu0
  %3809 = vmatprep.mubr.bf16.mxu0 %v3603
  %3810 = vmatmul.mubr.bf16.gmra.mrb[0].mxu0 %v3571
  %v3811 = vpop.f32.mrb[0].mxu0
  %v3812 = vadd.f32 0.0, %v3811
  %v3813 = vpop.f32.mrb[0].mxu0
  %v3814 = vpop.f32.mrb[0].mxu0
  %v3815 = vadd.f32 0.0, %v3814
  %v3816 = vpop.f32.mrb[0].mxu0
  %3817 = vmatprep.mubr.bf16.mxu0 %v3604
  %3818 = vmatmul.mubr.bf16.gmra.mrb[0].mxu0 %v3572
  %v3819 = vpop.f32.mrb[0].mxu0
  %v3820 = vadd.f32 0.0, %v3819
  %v3821 = vpop.f32.mrb[0].mxu0
  %v3822 = vpop.f32.mrb[0].mxu0
  %v3823 = vadd.f32 0.0, %v3822
  %v3824 = vpop.f32.mrb[0].mxu0
  %3825 = vmatprep.mubr.bf16.mxu0 %v3605
  %3826 = vmatmul.mubr.bf16.gmra.mrb[0].mxu0 %v3573
  %v3827 = vpop.f32.mrb[0].mxu0
  %v3828 = vadd.f32 0.0, %v3827
  %v3829 = vpop.f32.mrb[0].mxu0
  %v3830 = vpop.f32.mrb[0].mxu0
  %v3831 = vadd.f32 0.0, %v3830
  %v3832 = vpop.f32.mrb[0].mxu0
  %3833 = vmatprep.mubr.bf16.mxu0 %v3606
  %3834 = vmatmul.mubr.bf16.gmra.mrb[0].mxu0 %v3574
  %v3835 = vpop.f32.mrb[0].mxu0
  %v3836 = vadd.f32 0.0, %v3835
  %v3837 = vpop.f32.mrb[0].mxu0
  %v3838 = vpop.f32.mrb[0].mxu0
  %v3839 = vadd.f32 0.0, %v3838
  %v3840 = vpop.f32.mrb[0].mxu0
  %3841 = vmatprep.mubr.bf16.mxu0 %v3607
  %3842 = vmatmul.mubr.bf16.gmra.mrb[0].mxu0 %v3575
  %v3843 = vpop.f32.mrb[0].mxu0
  %v3844 = vadd.f32 0.0, %v3843
  %v3845 = vpop.f32.mrb[0].mxu0
  %v3846 = vpop.f32.mrb[0].mxu0
  %v3847 = vadd.f32 0.0, %v3846
  %v3848 = vpop.f32.mrb[0].mxu0
  %3849 = vmatprep.mubr.bf16.mxu0 %v3608
  %3850 = vmatmul.mubr.bf16.gmra.mrb[0].mxu0 %v3576
  %v3851 = vpop.f32.mrb[0].mxu0
  %v3852 = vadd.f32 0.0, %v3851
  %v3853 = vpop.f32.mrb[0].mxu0
  %v3854 = vpop.f32.mrb[0].mxu0
  %v3855 = vadd.f32 0.0, %v3854
  %v3856 = vpop.f32.mrb[0].mxu0
  %3857 = vdwg.mxu0
  %v3858 = vadd.f32 %v3617, %v3796
  %v3859 = vadd.f32 %v3618, %v3799
  %v3860 = vadd.f32 %v3619, %v3804
  %v3861 = vadd.f32 %v3620, %v3807
  %v3862 = vadd.f32 %v3621, %v3812
  %v3863 = vadd.f32 %v3622, %v3815
  %v3864 = vadd.f32 %v3623, %v3820
  %v3865 = vadd.f32 %v3624, %v3823
  %v3866 = vadd.f32 %v3625, %v3828
  %v3867 = vadd.f32 %v3626, %v3831
  %v3868 = vadd.f32 %v3627, %v3836
  %v3869 = vadd.f32 %v3628, %v3839
  %v3870 = vadd.f32 %v3629, %v3844
  %v3871 = vadd.f32 %v3630, %v3847
  %v3872 = vadd.f32 %v3631, %v3852
  %v3873 = vadd.f32 %v3632, %v3855
  %3874 = vst [vmem:[#allocation3] sm:$0xff] %v3858
  %3875 = vst [vmem:[#allocation3 + $0x8] sm:$0xff] %v3859
  %3876 = vst [vmem:[#allocation3 + $0x10] sm:$0xff] %v3860
  %3877 = vst [vmem:[#allocation3 + $0x18] sm:$0xff] %v3861
  %3878 = vst [vmem:[#allocation3 + $0x20] sm:$0xff] %v3862
  %3879 = vst [vmem:[#allocation3 + $0x28] sm:$0xff] %v3863
  %3880 = vst [vmem:[#allocation3 + $0x30] sm:$0xff] %v3864
  %3881 = vst [vmem:[#allocation3 + $0x38] sm:$0xff] %v3865
  %3882 = vst [vmem:[#allocation3 + $0x40] sm:$0xff] %v3866
  %3883 = vst [vmem:[#allocation3 + $0x48] sm:$0xff] %v3867
  %3884 = vst [vmem:[#allocation3 + $0x50] sm:$0xff] %v3868
  %3885 = vst [vmem:[#allocation3 + $0x58] sm:$0xff] %v3869
  %3886 = vst [vmem:[#allocation3 + $0x60] sm:$0xff] %v3870
  %3887 = vst [vmem:[#allocation3 + $0x68] sm:$0xff] %v3871
  %3888 = vst [vmem:[#allocation3 + $0x70] sm:$0xff] %v3872
  %3889 = vst [vmem:[#allocation3 + $0x78] sm:$0xff] %v3873
  %v3890 = vld [vmem:[#allocation2] sm:$0xe]
  %v3891 = vld [vmem:[#allocation2 + $0x4] sm:$0x1]
  %v3892 = vld [vmem:[#allocation2 + $0x8] sm:$0xe]
  %v3893 = vld [vmem:[#allocation2 + $0xc] sm:$0x1]
  %v3894 = vld [vmem:[#allocation2 + $0x10] sm:$0xe]
  %v3895 = vld [vmem:[#allocation2 + $0x14] sm:$0x1]
  %v3896 = vld [vmem:[#allocation2 + $0x18] sm:$0xe]
  %v3897 = vld [vmem:[#allocation2 + $0x1c] sm:$0x1]
  %v3898 = vld [vmem:[#allocation2 + $0x20] sm:$0xe]
  %v3899 = vld [vmem:[#allocation2 + $0x24] sm:$0x1]
  %v3900 = vld [vmem:[#allocation2 + $0x28] sm:$0xe]
  %v3901 = vld [vmem:[#allocation2 + $0x2c] sm:$0x1]
  %v3902 = vld [vmem:[#allocation2 + $0x30] sm:$0xe]
  %v3903 = vld [vmem:[#allocation2 + $0x34] sm:$0x1]
  %v3904 = vld [vmem:[#allocation2 + $0x38] sm:$0xe]
  %v3905 = vld [vmem:[#allocation2 + $0x3c] sm:$0x1]
  %v3906 = vld [vmem:[#allocation2 + $0x50] sm:$0xe]
  %v3907 = vld [vmem:[#allocation2 + $0x54] sm:$0x1]
  %v3908 = vld [vmem:[#allocation2 + $0x58] sm:$0xe]
  %v3909 = vld [vmem:[#allocation2 + $0x5c] sm:$0x1]
  %v3910 = vld [vmem:[#allocation2 + $0x60] sm:$0xe]
  %v3911 = vld [vmem:[#allocation2 + $0x64] sm:$0x1]
  %v3912 = vld [vmem:[#allocation2 + $0x68] sm:$0xe]
  %v3913 = vld [vmem:[#allocation2 + $0x6c] sm:$0x1]
  %v3914 = vld [vmem:[#allocation2 + $0x70] sm:$0xe]
  %v3915 = vld [vmem:[#allocation2 + $0x74] sm:$0x1]
  %v3916 = vld [vmem:[#allocation2 + $0x78] sm:$0xe]
  %v3917 = vld [vmem:[#allocation2 + $0x7c] sm:$0x1]
  %v3918 = vld [vmem:[#allocation2 + $0x80] sm:$0xe]
  %v3919 = vld [vmem:[#allocation2 + $0x84] sm:$0x1]
  %v3920 = vld [vmem:[#allocation2 + $0x88] sm:$0xe]
  %v3921 = vld [vmem:[#allocation2 + $0x8c] sm:$0x1]
  %v3954 = vrot.slane %v3890, 5
  %v3955 = vrot.slane %v3954, 4
  %v3956 = vrot.slane %v3891, 5
  %v3957 = vsel %vm721, %v3955, %v3956
  %v3958 = vrot.slane %v3892, 5
  %v3959 = vrot.slane %v3958, 4
  %v3960 = vrot.slane %v3893, 5
  %v3961 = vsel %vm721, %v3959, %v3960
  %v3962 = vrot.slane %v3894, 5
  %v3963 = vrot.slane %v3962, 4
  %v3964 = vrot.slane %v3895, 5
  %v3965 = vsel %vm721, %v3963, %v3964
  %v3966 = vrot.slane %v3896, 5
  %v3967 = vrot.slane %v3966, 4
  %v3968 = vrot.slane %v3897, 5
  %v3969 = vsel %vm721, %v3967, %v3968
  %v3970 = vrot.slane %v3898, 5
  %v3971 = vrot.slane %v3970, 4
  %v3972 = vrot.slane %v3899, 5
  %v3973 = vsel %vm721, %v3971, %v3972
  %v3974 = vrot.slane %v3900, 5
  %v3975 = vrot.slane %v3974, 4
  %v3976 = vrot.slane %v3901, 5
  %v3977 = vsel %vm721, %v3975, %v3976
  %v3978 = vrot.slane %v3902, 5
  %v3979 = vrot.slane %v3978, 4
  %v3980 = vrot.slane %v3903, 5
  %v3981 = vsel %vm721, %v3979, %v3980
  %v3982 = vrot.slane %v3904, 5
  %v3983 = vrot.slane %v3982, 4
  %v3984 = vrot.slane %v3905, 5
  %v3985 = vsel %vm721, %v3983, %v3984
  %v3986 = vrot.slane %v3906, 5
  %v3987 = vrot.slane %v3986, 4
  %v3988 = vrot.slane %v3907, 5
  %v3989 = vsel %vm721, %v3987, %v3988
  %v3990 = vrot.slane %v3908, 5
  %v3991 = vrot.slane %v3990, 4
  %v3992 = vrot.slane %v3909, 5
  %v3993 = vsel %vm721, %v3991, %v3992
  %v3994 = vrot.slane %v3910, 5
  %v3995 = vrot.slane %v3994, 4
  %v3996 = vrot.slane %v3911, 5
  %v3997 = vsel %vm721, %v3995, %v3996
  %v3998 = vrot.slane %v3912, 5
  %v3999 = vrot.slane %v3998, 4
  %v4000 = vrot.slane %v3913, 5
  %v4001 = vsel %vm721, %v3999, %v4000
  %v4002 = vrot.slane %v3914, 5
  %v4003 = vrot.slane %v4002, 4
  %v4004 = vrot.slane %v3915, 5
  %v4005 = vsel %vm721, %v4003, %v4004
  %v4006 = vrot.slane %v3916, 5
  %v4007 = vrot.slane %v4006, 4
  %v4008 = vrot.slane %v3917, 5
  %v4009 = vsel %vm721, %v4007, %v4008
  %v4010 = vrot.slane %v3918, 5
  %v4011 = vrot.slane %v4010, 4
  %v4012 = vrot.slane %v3919, 5
  %v4013 = vsel %vm721, %v4011, %v4012
  %v4014 = vrot.slane %v3920, 5
  %v4015 = vrot.slane %v4014, 4
  %v4016 = vrot.slane %v3921, 5
  %v4017 = vsel %vm721, %v4015, %v4016
  %v4018 = vld [vmem:[%s3162] sm:$0xf]
  %v4019 = vld [vmem:[%s3162 + $0x8] sm:$0xf]
  %v4020 = vld [vmem:[%s3162 + $0x10] sm:$0xf]
  %v4021 = vld [vmem:[%s3162 + $0x18] sm:$0xf]
  %v4022 = vld [vmem:[%s3162 + $0x20] sm:$0xf]
  %v4023 = vld [vmem:[%s3162 + $0x28] sm:$0xf]
  %v4024 = vld [vmem:[%s3162 + $0x30] sm:$0xf]
  %v4025 = vld [vmem:[%s3162 + $0x38] sm:$0xf]
  %v4026 = vld [vmem:[%s3162 + $0x50] sm:$0xf]
  %v4027 = vld [vmem:[%s3162 + $0x58] sm:$0xf]
  %v4028 = vld [vmem:[%s3162 + $0x60] sm:$0xf]
  %v4029 = vld [vmem:[%s3162 + $0x68] sm:$0xf]
  %v4030 = vld [vmem:[%s3162 + $0x70] sm:$0xf]
  %v4031 = vld [vmem:[%s3162 + $0x78] sm:$0xf]
  %v4032 = vld [vmem:[%s3162 + $0x80] sm:$0xf]
  %v4033 = vld [vmem:[%s3162 + $0x88] sm:$0xf]
  %v4034 = vunpack.c.l.b16 %v3957
  %v4035 = vunpack.c.l.b16 %v3961
  %v4036 = vunpack.c.l.b16 %v3965
  %v4037 = vunpack.c.l.b16 %v3969
  %v4038 = vunpack.c.l.b16 %v3973
  %v4039 = vunpack.c.l.b16 %v3977
  %v4040 = vunpack.c.l.b16 %v3981
  %v4041 = vunpack.c.l.b16 %v3985
  %v4042 = vunpack.c.l.b16 %v3989
  %v4043 = vunpack.c.l.b16 %v3993
  %v4044 = vunpack.c.l.b16 %v3997
  %v4045 = vunpack.c.l.b16 %v4001
  %v4046 = vunpack.c.l.b16 %v4005
  %v4047 = vunpack.c.l.b16 %v4009
  %v4048 = vunpack.c.l.b16 %v4013
  %v4049 = vunpack.c.l.b16 %v4017
  %v4050 = vpack.c.b16 %v4035, %v4034
  %v4051 = vpack.c.b16 %v4037, %v4036
  %v4052 = vpack.c.b16 %v4039, %v4038
  %v4053 = vpack.c.b16 %v4041, %v4040
  %v4054 = vpack.c.b16 %v4043, %v4042
  %v4055 = vpack.c.b16 %v4045, %v4044
  %v4056 = vpack.c.b16 %v4047, %v4046
  %v4057 = vpack.c.b16 %v4049, %v4048
  %v4082 = vunpack.c.l.b16 %v4018
  %v4083 = vunpack.c.l.b16 %v4019
  %v4084 = vunpack.c.l.b16 %v4020
  %v4085 = vunpack.c.l.b16 %v4021
  %v4086 = vunpack.c.l.b16 %v4022
  %v4087 = vunpack.c.l.b16 %v4023
  %v4088 = vunpack.c.l.b16 %v4024
  %v4089 = vunpack.c.l.b16 %v4025
  %v4090 = vunpack.c.l.b16 %v4026
  %v4091 = vunpack.c.l.b16 %v4027
  %v4092 = vunpack.c.l.b16 %v4028
  %v4093 = vunpack.c.l.b16 %v4029
  %v4094 = vunpack.c.l.b16 %v4030
  %v4095 = vunpack.c.l.b16 %v4031
  %v4096 = vunpack.c.l.b16 %v4032
  %v4097 = vunpack.c.l.b16 %v4033
  %v4098 = vpack.c.b16 %v4083, %v4082
  %v4099 = vpack.c.b16 %v4085, %v4084
  %v4100 = vpack.c.b16 %v4087, %v4086
  %v4101 = vpack.c.b16 %v4089, %v4088
  %v4102 = vpack.c.b16 %v4091, %v4090
  %v4103 = vpack.c.b16 %v4093, %v4092
  %v4104 = vpack.c.b16 %v4095, %v4094
  %v4105 = vpack.c.b16 %v4097, %v4096
  %v4114 = vld [vmem:[#allocation3] sm:$0xff]
  %v4115 = vld [vmem:[#allocation3 + $0x8] sm:$0xff]
  %v4116 = vld [vmem:[#allocation3 + $0x10] sm:$0xff]
  %v4117 = vld [vmem:[#allocation3 + $0x18] sm:$0xff]
  %v4118 = vld [vmem:[#allocation3 + $0x20] sm:$0xff]
  %v4119 = vld [vmem:[#allocation3 + $0x28] sm:$0xff]
  %v4120 = vld [vmem:[#allocation3 + $0x30] sm:$0xff]
  %v4121 = vld [vmem:[#allocation3 + $0x38] sm:$0xff]
  %v4122 = vld [vmem:[#allocation3 + $0x40] sm:$0xff]
  %v4123 = vld [vmem:[#allocation3 + $0x48] sm:$0xff]
  %v4124 = vld [vmem:[#allocation3 + $0x50] sm:$0xff]
  %v4125 = vld [vmem:[#allocation3 + $0x58] sm:$0xff]
  %v4126 = vld [vmem:[#allocation3 + $0x60] sm:$0xff]
  %v4127 = vld [vmem:[#allocation3 + $0x68] sm:$0xff]
  %v4128 = vld [vmem:[#allocation3 + $0x70] sm:$0xff]
  %v4129 = vld [vmem:[#allocation3 + $0x78] sm:$0xff]
  %s4130 = scalar_lea.vmem %s4, 128
  %v4131 = vld [vmem:[%s4130] sm:$0xf]
  %v4132 = vld [vmem:[%s4130 + $0x4] sm:$0xf]
  %v4133 = vld [vmem:[%s4130 + $0x8] sm:$0xf]
  %v4134 = vld [vmem:[%s4130 + $0xc] sm:$0xf]
  %v4135 = vld [vmem:[%s4130 + $0x10] sm:$0xf]
  %v4136 = vld [vmem:[%s4130 + $0x14] sm:$0xf]
  %v4137 = vld [vmem:[%s4130 + $0x18] sm:$0xf]
  %v4138 = vld [vmem:[%s4130 + $0x1c] sm:$0xf]
  %v4139 = vld [vmem:[%s4130 + $0x20] sm:$0xf]
  %v4140 = vld [vmem:[%s4130 + $0x24] sm:$0xf]
  %v4141 = vld [vmem:[%s4130 + $0x28] sm:$0xf]
  %v4142 = vld [vmem:[%s4130 + $0x2c] sm:$0xf]
  %v4143 = vld [vmem:[%s4130 + $0x30] sm:$0xf]
  %v4144 = vld [vmem:[%s4130 + $0x34] sm:$0xf]
  %v4145 = vld [vmem:[%s4130 + $0x38] sm:$0xf]
  %v4146 = vld [vmem:[%s4130 + $0x3c] sm:$0xf]
  %v4147 = vld [vmem:[%s4130 + $0x40] sm:$0xf]
  %v4148 = vld [vmem:[%s4130 + $0x44] sm:$0xf]
  %v4149 = vld [vmem:[%s4130 + $0x48] sm:$0xf]
  %v4150 = vld [vmem:[%s4130 + $0x4c] sm:$0xf]
  %v4151 = vld [vmem:[%s4130 + $0x50] sm:$0xf]
  %v4152 = vld [vmem:[%s4130 + $0x54] sm:$0xf]
  %v4153 = vld [vmem:[%s4130 + $0x58] sm:$0xf]
  %v4154 = vld [vmem:[%s4130 + $0x5c] sm:$0xf]
  %v4155 = vld [vmem:[%s4130 + $0x60] sm:$0xf]
  %v4156 = vld [vmem:[%s4130 + $0x64] sm:$0xf]
  %v4157 = vld [vmem:[%s4130 + $0x68] sm:$0xf]
  %v4158 = vld [vmem:[%s4130 + $0x6c] sm:$0xf]
  %v4159 = vld [vmem:[%s4130 + $0x70] sm:$0xf]
  %v4160 = vld [vmem:[%s4130 + $0x74] sm:$0xf]
  %v4161 = vld [vmem:[%s4130 + $0x78] sm:$0xf]
  %v4162 = vld [vmem:[%s4130 + $0x7c] sm:$0xf]
  %v4195 = vunpack.c.l.b16 %v4131
  %v4196 = vunpack.c.l.b16 %v4132
  %v4197 = vunpack.c.l.b16 %v4133
  %v4198 = vunpack.c.l.b16 %v4134
  %v4199 = vunpack.c.l.b16 %v4135
  %v4200 = vunpack.c.l.b16 %v4136
  %v4201 = vunpack.c.l.b16 %v4137
  %v4202 = vunpack.c.l.b16 %v4138
  %v4203 = vunpack.c.l.b16 %v4139
  %v4204 = vunpack.c.l.b16 %v4140
  %v4205 = vunpack.c.l.b16 %v4141
  %v4206 = vunpack.c.l.b16 %v4142
  %v4207 = vunpack.c.l.b16 %v4143
  %v4208 = vunpack.c.l.b16 %v4144
  %v4209 = vunpack.c.l.b16 %v4145
  %v4210 = vunpack.c.l.b16 %v4146
  %v4211 = vunpack.c.l.b16 %v4147
  %v4212 = vunpack.c.l.b16 %v4148
  %v4213 = vunpack.c.l.b16 %v4149
  %v4214 = vunpack.c.l.b16 %v4150
  %v4215 = vunpack.c.l.b16 %v4151
  %v4216 = vunpack.c.l.b16 %v4152
  %v4217 = vunpack.c.l.b16 %v4153
  %v4218 = vunpack.c.l.b16 %v4154
  %v4219 = vunpack.c.l.b16 %v4155
  %v4220 = vunpack.c.l.b16 %v4156
  %v4221 = vunpack.c.l.b16 %v4157
  %v4222 = vunpack.c.l.b16 %v4158
  %v4223 = vunpack.c.l.b16 %v4159
  %v4224 = vunpack.c.l.b16 %v4160
  %v4225 = vunpack.c.l.b16 %v4161
  %v4226 = vunpack.c.l.b16 %v4162
  %v4227 = vpack.c.b16 %v4196, %v4195
  %v4228 = vpack.c.b16 %v4198, %v4197
  %v4229 = vpack.c.b16 %v4200, %v4199
  %v4230 = vpack.c.b16 %v4202, %v4201
  %v4231 = vpack.c.b16 %v4204, %v4203
  %v4232 = vpack.c.b16 %v4206, %v4205
  %v4233 = vpack.c.b16 %v4208, %v4207
  %v4234 = vpack.c.b16 %v4210, %v4209
  %v4235 = vpack.c.b16 %v4212, %v4211
  %v4236 = vpack.c.b16 %v4214, %v4213
  %v4237 = vpack.c.b16 %v4216, %v4215
  %v4238 = vpack.c.b16 %v4218, %v4217
  %v4239 = vpack.c.b16 %v4220, %v4219
  %v4240 = vpack.c.b16 %v4222, %v4221
  %v4241 = vpack.c.b16 %v4224, %v4223
  %v4242 = vpack.c.b16 %v4226, %v4225
  %4259 = vmatprep.subr.bf16.mxu0 0
  %4260 = vmatpush1.bf16.msra.mxu0 %v4227
  %4261 = vmatprep.subr.bf16.mxu0 0
  %4262 = vmatpush1.bf16.msra.mxu0 %v4228
  %4263 = vmatprep.subr.bf16.mxu0 0
  %4264 = vmatpush1.bf16.msra.mxu0 %v4229
  %4265 = vmatprep.subr.bf16.mxu0 0
  %4266 = vmatpush1.bf16.msra.mxu0 %v4230
  %4267 = vmatprep.subr.bf16.mxu0 0
  %4268 = vmatpush1.bf16.msra.mxu0 %v4231
  %4269 = vmatprep.subr.bf16.mxu0 0
  %4270 = vmatpush1.bf16.msra.mxu0 %v4232
  %4271 = vmatprep.subr.bf16.mxu0 0
  %4272 = vmatpush1.bf16.msra.mxu0 %v4233
  %4273 = vmatprep.subr.bf16.mxu0 0
  %4274 = vmatpush1.bf16.msra.mxu0 %v4234
  %4275 = vmatprep.subr.bf16.mxu0 0
  %4276 = vmatpush1.bf16.msra.mxu0 %v4235
  %4277 = vmatprep.subr.bf16.mxu0 0
  %4278 = vmatpush1.bf16.msra.mxu0 %v4236
  %4279 = vmatprep.subr.bf16.mxu0 0
  %4280 = vmatpush1.bf16.msra.mxu0 %v4237
  %4281 = vmatprep.subr.bf16.mxu0 0
  %4282 = vmatpush1.bf16.msra.mxu0 %v4238
  %4283 = vmatprep.subr.bf16.mxu0 0
  %4284 = vmatpush1.bf16.msra.mxu0 %v4239
  %4285 = vmatprep.subr.bf16.mxu0 0
  %4286 = vmatpush1.bf16.msra.mxu0 %v4240
  %4287 = vmatprep.subr.bf16.mxu0 0
  %4288 = vmatpush1.bf16.msra.mxu0 %v4241
  %4289 = vmatprep.subr.bf16.mxu0 0
  %4290 = vmatpush1.bf16.msra.mxu0 %v4242
  %4291 = vmatprep.mubr.bf16.mxu0 %v4098
  %4292 = vmatmul.mubr.bf16.gmra.mrb[0].mxu0 %v4050
  %v4293 = vpop.f32.mrb[0].mxu0
  %v4294 = vadd.f32 0.0, %v4293
  %v4295 = vpop.f32.mrb[0].mxu0
  %v4296 = vpop.f32.mrb[0].mxu0
  %v4297 = vadd.f32 0.0, %v4296
  %v4298 = vpop.f32.mrb[0].mxu0
  %4299 = vmatprep.mubr.bf16.mxu0 %v4099
  %4300 = vmatmul.mubr.bf16.gmra.mrb[0].mxu0 %v4051
  %v4301 = vpop.f32.mrb[0].mxu0
  %v4302 = vadd.f32 0.0, %v4301
  %v4303 = vpop.f32.mrb[0].mxu0
  %v4304 = vpop.f32.mrb[0].mxu0
  %v4305 = vadd.f32 0.0, %v4304
  %v4306 = vpop.f32.mrb[0].mxu0
  %4307 = vmatprep.mubr.bf16.mxu0 %v4100
  %4308 = vmatmul.mubr.bf16.gmra.mrb[0].mxu0 %v4052
  %v4309 = vpop.f32.mrb[0].mxu0
  %v4310 = vadd.f32 0.0, %v4309
  %v4311 = vpop.f32.mrb[0].mxu0
  %v4312 = vpop.f32.mrb[0].mxu0
  %v4313 = vadd.f32 0.0, %v4312
  %v4314 = vpop.f32.mrb[0].mxu0
  %4315 = vmatprep.mubr.bf16.mxu0 %v4101
  %4316 = vmatmul.mubr.bf16.gmra.mrb[0].mxu0 %v4053
  %v4317 = vpop.f32.mrb[0].mxu0
  %v4318 = vadd.f32 0.0, %v4317
  %v4319 = vpop.f32.mrb[0].mxu0
  %v4320 = vpop.f32.mrb[0].mxu0
  %v4321 = vadd.f32 0.0, %v4320
  %v4322 = vpop.f32.mrb[0].mxu0
  %4323 = vmatprep.mubr.bf16.mxu0 %v4102
  %4324 = vmatmul.mubr.bf16.gmra.mrb[0].mxu0 %v4054
  %v4325 = vpop.f32.mrb[0].mxu0
  %v4326 = vadd.f32 0.0, %v4325
  %v4327 = vpop.f32.mrb[0].mxu0
  %v4328 = vpop.f32.mrb[0].mxu0
  %v4329 = vadd.f32 0.0, %v4328
  %v4330 = vpop.f32.mrb[0].mxu0
  %4331 = vmatprep.mubr.bf16.mxu0 %v4103
  %4332 = vmatmul.mubr.bf16.gmra.mrb[0].mxu0 %v4055
  %v4333 = vpop.f32.mrb[0].mxu0
  %v4334 = vadd.f32 0.0, %v4333
  %v4335 = vpop.f32.mrb[0].mxu0
  %v4336 = vpop.f32.mrb[0].mxu0
  %v4337 = vadd.f32 0.0, %v4336
  %v4338 = vpop.f32.mrb[0].mxu0
  %4339 = vmatprep.mubr.bf16.mxu0 %v4104
  %4340 = vmatmul.mubr.bf16.gmra.mrb[0].mxu0 %v4056
  %v4341 = vpop.f32.mrb[0].mxu0
  %v4342 = vadd.f32 0.0, %v4341
  %v4343 = vpop.f32.mrb[0].mxu0
  %v4344 = vpop.f32.mrb[0].mxu0
  %v4345 = vadd.f32 0.0, %v4344
  %v4346 = vpop.f32.mrb[0].mxu0
  %4347 = vmatprep.mubr.bf16.mxu0 %v4105
  %4348 = vmatmul.mubr.bf16.gmra.mrb[0].mxu0 %v4057
  %v4349 = vpop.f32.mrb[0].mxu0
  %v4350 = vadd.f32 0.0, %v4349
  %v4351 = vpop.f32.mrb[0].mxu0
  %v4352 = vpop.f32.mrb[0].mxu0
  %v4353 = vadd.f32 0.0, %v4352
  %v4354 = vpop.f32.mrb[0].mxu0
  %4355 = vdwg.mxu0
  %v4356 = vadd.f32 %v4114, %v4294
  %v4357 = vadd.f32 %v4115, %v4297
  %v4358 = vadd.f32 %v4116, %v4302
  %v4359 = vadd.f32 %v4117, %v4305
  %v4360 = vadd.f32 %v4118, %v4310
  %v4361 = vadd.f32 %v4119, %v4313
  %v4362 = vadd.f32 %v4120, %v4318
  %v4363 = vadd.f32 %v4121, %v4321
  %v4364 = vadd.f32 %v4122, %v4326
  %v4365 = vadd.f32 %v4123, %v4329
  %v4366 = vadd.f32 %v4124, %v4334
  %v4367 = vadd.f32 %v4125, %v4337
  %v4368 = vadd.f32 %v4126, %v4342
  %v4369 = vadd.f32 %v4127, %v4345
  %v4370 = vadd.f32 %v4128, %v4350
  %v4371 = vadd.f32 %v4129, %v4353
  %4372 = vst [vmem:[#allocation3] sm:$0xff] %v4356
  %4373 = vst [vmem:[#allocation3 + $0x8] sm:$0xff] %v4357
  %4374 = vst [vmem:[#allocation3 + $0x10] sm:$0xff] %v4358
  %4375 = vst [vmem:[#allocation3 + $0x18] sm:$0xff] %v4359
  %4376 = vst [vmem:[#allocation3 + $0x20] sm:$0xff] %v4360
  %4377 = vst [vmem:[#allocation3 + $0x28] sm:$0xff] %v4361
  %4378 = vst [vmem:[#allocation3 + $0x30] sm:$0xff] %v4362
  %4379 = vst [vmem:[#allocation3 + $0x38] sm:$0xff] %v4363
  %4380 = vst [vmem:[#allocation3 + $0x40] sm:$0xff] %v4364
  %4381 = vst [vmem:[#allocation3 + $0x48] sm:$0xff] %v4365
  %4382 = vst [vmem:[#allocation3 + $0x50] sm:$0xff] %v4366
  %4383 = vst [vmem:[#allocation3 + $0x58] sm:$0xff] %v4367
  %4384 = vst [vmem:[#allocation3 + $0x60] sm:$0xff] %v4368
  %4385 = vst [vmem:[#allocation3 + $0x68] sm:$0xff] %v4369
  %4386 = vst [vmem:[#allocation3 + $0x70] sm:$0xff] %v4370
  %4387 = vst [vmem:[#allocation3 + $0x78] sm:$0xff] %v4371
  %v4388 = vld [vmem:[%s3162] sm:$0xf]
  %v4389 = vld [vmem:[%s3162 + $0x4] sm:$0x1]
  %v4390 = vld [vmem:[%s3162 + $0x8] sm:$0xf]
  %v4391 = vld [vmem:[%s3162 + $0xc] sm:$0x1]
  %v4392 = vld [vmem:[%s3162 + $0x10] sm:$0xf]
  %v4393 = vld [vmem:[%s3162 + $0x14] sm:$0x1]
  %v4394 = vld [vmem:[%s3162 + $0x18] sm:$0xf]
  %v4395 = vld [vmem:[%s3162 + $0x1c] sm:$0x1]
  %v4396 = vld [vmem:[%s3162 + $0x20] sm:$0xf]
  %v4397 = vld [vmem:[%s3162 + $0x24] sm:$0x1]
  %v4398 = vld [vmem:[%s3162 + $0x28] sm:$0xf]
  %v4399 = vld [vmem:[%s3162 + $0x2c] sm:$0x1]
  %v4400 = vld [vmem:[%s3162 + $0x30] sm:$0xf]
  %v4401 = vld [vmem:[%s3162 + $0x34] sm:$0x1]
  %v4402 = vld [vmem:[%s3162 + $0x38] sm:$0xf]
  %v4403 = vld [vmem:[%s3162 + $0x3c] sm:$0x1]
  %v4404 = vld [vmem:[%s3162 + $0x50] sm:$0xf]
  %v4405 = vld [vmem:[%s3162 + $0x54] sm:$0x1]
  %v4406 = vld [vmem:[%s3162 + $0x58] sm:$0xf]
  %v4407 = vld [vmem:[%s3162 + $0x5c] sm:$0x1]
  %v4408 = vld [vmem:[%s3162 + $0x60] sm:$0xf]
  %v4409 = vld [vmem:[%s3162 + $0x64] sm:$0x1]
  %v4410 = vld [vmem:[%s3162 + $0x68] sm:$0xf]
  %v4411 = vld [vmem:[%s3162 + $0x6c] sm:$0x1]
  %v4412 = vld [vmem:[%s3162 + $0x70] sm:$0xf]
  %v4413 = vld [vmem:[%s3162 + $0x74] sm:$0x1]
  %v4414 = vld [vmem:[%s3162 + $0x78] sm:$0xf]
  %v4415 = vld [vmem:[%s3162 + $0x7c] sm:$0x1]
  %v4416 = vld [vmem:[%s3162 + $0x80] sm:$0xf]
  %v4417 = vld [vmem:[%s3162 + $0x84] sm:$0x1]
  %v4418 = vld [vmem:[%s3162 + $0x88] sm:$0xf]
  %v4419 = vld [vmem:[%s3162 + $0x8c] sm:$0x1]
  %v4421 = vshrl.u32 %v4388, 16
  %v4423 = vrot.slane %v4421, 4
  %v4424 = vshll.u32 %v4388, 16
  %v4426 = vrot.slane %v4424, 5
  %v4427 = vor.u32 %v4423, %v4426
  %v4428 = vrot.slane %v4427, 4
  %v4430 = vshll.u32 %v4389, 16
  %v4432 = vrot.slane %v4430, 5
  %v4433 = vsel %vm77, %v4428, %v4432
  %v4435 = vshrl.u32 %v4390, 16
  %v4437 = vrot.slane %v4435, 4
  %v4438 = vshll.u32 %v4390, 16
  %v4440 = vrot.slane %v4438, 5
  %v4441 = vor.u32 %v4437, %v4440
  %v4442 = vrot.slane %v4441, 4
  %v4444 = vshll.u32 %v4391, 16
  %v4446 = vrot.slane %v4444, 5
  %v4447 = vsel %vm77, %v4442, %v4446
  %v4449 = vshrl.u32 %v4392, 16
  %v4451 = vrot.slane %v4449, 4
  %v4452 = vshll.u32 %v4392, 16
  %v4454 = vrot.slane %v4452, 5
  %v4455 = vor.u32 %v4451, %v4454
  %v4456 = vrot.slane %v4455, 4
  %v4458 = vshll.u32 %v4393, 16
  %v4460 = vrot.slane %v4458, 5
  %v4461 = vsel %vm77, %v4456, %v4460
  %v4463 = vshrl.u32 %v4394, 16
  %v4465 = vrot.slane %v4463, 4
  %v4466 = vshll.u32 %v4394, 16
  %v4468 = vrot.slane %v4466, 5
  %v4469 = vor.u32 %v4465, %v4468
  %v4470 = vrot.slane %v4469, 4
  %v4472 = vshll.u32 %v4395, 16
  %v4474 = vrot.slane %v4472, 5
  %v4475 = vsel %vm77, %v4470, %v4474
  %v4477 = vshrl.u32 %v4396, 16
  %v4479 = vrot.slane %v4477, 4
  %v4480 = vshll.u32 %v4396, 16
  %v4482 = vrot.slane %v4480, 5
  %v4483 = vor.u32 %v4479, %v4482
  %v4484 = vrot.slane %v4483, 4
  %v4486 = vshll.u32 %v4397, 16
  %v4488 = vrot.slane %v4486, 5
  %v4489 = vsel %vm77, %v4484, %v4488
  %v4491 = vshrl.u32 %v4398, 16
  %v4493 = vrot.slane %v4491, 4
  %v4494 = vshll.u32 %v4398, 16
  %v4496 = vrot.slane %v4494, 5
  %v4497 = vor.u32 %v4493, %v4496
  %v4498 = vrot.slane %v4497, 4
  %v4500 = vshll.u32 %v4399, 16
  %v4502 = vrot.slane %v4500, 5
  %v4503 = vsel %vm77, %v4498, %v4502
  %v4505 = vshrl.u32 %v4400, 16
  %v4507 = vrot.slane %v4505, 4
  %v4508 = vshll.u32 %v4400, 16
  %v4510 = vrot.slane %v4508, 5
  %v4511 = vor.u32 %v4507, %v4510
  %v4512 = vrot.slane %v4511, 4
  %v4514 = vshll.u32 %v4401, 16
  %v4516 = vrot.slane %v4514, 5
  %v4517 = vsel %vm77, %v4512, %v4516
  %v4519 = vshrl.u32 %v4402, 16
  %v4521 = vrot.slane %v4519, 4
  %v4522 = vshll.u32 %v4402, 16
  %v4524 = vrot.slane %v4522, 5
  %v4525 = vor.u32 %v4521, %v4524
  %v4526 = vrot.slane %v4525, 4
  %v4528 = vshll.u32 %v4403, 16
  %v4530 = vrot.slane %v4528, 5
  %v4531 = vsel %vm77, %v4526, %v4530
  %v4533 = vshrl.u32 %v4404, 16
  %v4535 = vrot.slane %v4533, 4
  %v4536 = vshll.u32 %v4404, 16
  %v4538 = vrot.slane %v4536, 5
  %v4539 = vor.u32 %v4535, %v4538
  %v4540 = vrot.slane %v4539, 4
  %v4542 = vshll.u32 %v4405, 16
  %v4544 = vrot.slane %v4542, 5
  %v4545 = vsel %vm77, %v4540, %v4544
  %v4547 = vshrl.u32 %v4406, 16
  %v4549 = vrot.slane %v4547, 4
  %v4550 = vshll.u32 %v4406, 16
  %v4552 = vrot.slane %v4550, 5
  %v4553 = vor.u32 %v4549, %v4552
  %v4554 = vrot.slane %v4553, 4
  %v4556 = vshll.u32 %v4407, 16
  %v4558 = vrot.slane %v4556, 5
  %v4559 = vsel %vm77, %v4554, %v4558
  %v4561 = vshrl.u32 %v4408, 16
  %v4563 = vrot.slane %v4561, 4
  %v4564 = vshll.u32 %v4408, 16
  %v4566 = vrot.slane %v4564, 5
  %v4567 = vor.u32 %v4563, %v4566
  %v4568 = vrot.slane %v4567, 4
  %v4570 = vshll.u32 %v4409, 16
  %v4572 = vrot.slane %v4570, 5
  %v4573 = vsel %vm77, %v4568, %v4572
  %v4575 = vshrl.u32 %v4410, 16
  %v4577 = vrot.slane %v4575, 4
  %v4578 = vshll.u32 %v4410, 16
  %v4580 = vrot.slane %v4578, 5
  %v4581 = vor.u32 %v4577, %v4580
  %v4582 = vrot.slane %v4581, 4
  %v4584 = vshll.u32 %v4411, 16
  %v4586 = vrot.slane %v4584, 5
  %v4587 = vsel %vm77, %v4582, %v4586
  %v4589 = vshrl.u32 %v4412, 16
  %v4591 = vrot.slane %v4589, 4
  %v4592 = vshll.u32 %v4412, 16
  %v4594 = vrot.slane %v4592, 5
  %v4595 = vor.u32 %v4591, %v4594
  %v4596 = vrot.slane %v4595, 4
  %v4598 = vshll.u32 %v4413, 16
  %v4600 = vrot.slane %v4598, 5
  %v4601 = vsel %vm77, %v4596, %v4600
  %v4603 = vshrl.u32 %v4414, 16
  %v4605 = vrot.slane %v4603, 4
  %v4606 = vshll.u32 %v4414, 16
  %v4608 = vrot.slane %v4606, 5
  %v4609 = vor.u32 %v4605, %v4608
  %v4610 = vrot.slane %v4609, 4
  %v4612 = vshll.u32 %v4415, 16
  %v4614 = vrot.slane %v4612, 5
  %v4615 = vsel %vm77, %v4610, %v4614
  %v4617 = vshrl.u32 %v4416, 16
  %v4619 = vrot.slane %v4617, 4
  %v4620 = vshll.u32 %v4416, 16
  %v4622 = vrot.slane %v4620, 5
  %v4623 = vor.u32 %v4619, %v4622
  %v4624 = vrot.slane %v4623, 4
  %v4626 = vshll.u32 %v4417, 16
  %v4628 = vrot.slane %v4626, 5
  %v4629 = vsel %vm77, %v4624, %v4628
  %v4631 = vshrl.u32 %v4418, 16
  %v4633 = vrot.slane %v4631, 4
  %v4634 = vshll.u32 %v4418, 16
  %v4636 = vrot.slane %v4634, 5
  %v4637 = vor.u32 %v4633, %v4636
  %v4638 = vrot.slane %v4637, 4
  %v4640 = vshll.u32 %v4419, 16
  %v4642 = vrot.slane %v4640, 5
  %v4643 = vsel %vm77, %v4638, %v4642
  %v4644 = vld [vmem:[%s3162] sm:$0xe]
  %v4645 = vld [vmem:[%s3162 + $0x8] sm:$0xe]
  %v4646 = vld [vmem:[%s3162 + $0x10] sm:$0xe]
  %v4647 = vld [vmem:[%s3162 + $0x18] sm:$0xe]
  %v4648 = vld [vmem:[%s3162 + $0x20] sm:$0xe]
  %v4649 = vld [vmem:[%s3162 + $0x28] sm:$0xe]
  %v4650 = vld [vmem:[%s3162 + $0x30] sm:$0xe]
  %v4651 = vld [vmem:[%s3162 + $0x38] sm:$0xe]
  %v4652 = vld [vmem:[%s3162 + $0x50] sm:$0xe]
  %v4653 = vld [vmem:[%s3162 + $0x58] sm:$0xe]
  %v4654 = vld [vmem:[%s3162 + $0x60] sm:$0xe]
  %v4655 = vld [vmem:[%s3162 + $0x68] sm:$0xe]
  %v4656 = vld [vmem:[%s3162 + $0x70] sm:$0xe]
  %v4657 = vld [vmem:[%s3162 + $0x78] sm:$0xe]
  %v4658 = vld [vmem:[%s3162 + $0x80] sm:$0xe]
  %v4659 = vld [vmem:[%s3162 + $0x88] sm:$0xe]
  %v4692 = vrot.slane %v4644, 5
  %v4693 = vrot.slane %v4692, 4
  %v4694 = vrot.slane %v4389, 5
  %v4695 = vsel %vm721, %v4693, %v4694
  %v4696 = vrot.slane %v4645, 5
  %v4697 = vrot.slane %v4696, 4
  %v4698 = vrot.slane %v4391, 5
  %v4699 = vsel %vm721, %v4697, %v4698
  %v4700 = vrot.slane %v4646, 5
  %v4701 = vrot.slane %v4700, 4
  %v4702 = vrot.slane %v4393, 5
  %v4703 = vsel %vm721, %v4701, %v4702
  %v4704 = vrot.slane %v4647, 5
  %v4705 = vrot.slane %v4704, 4
  %v4706 = vrot.slane %v4395, 5
  %v4707 = vsel %vm721, %v4705, %v4706
  %v4708 = vrot.slane %v4648, 5
  %v4709 = vrot.slane %v4708, 4
  %v4710 = vrot.slane %v4397, 5
  %v4711 = vsel %vm721, %v4709, %v4710
  %v4712 = vrot.slane %v4649, 5
  %v4713 = vrot.slane %v4712, 4
  %v4714 = vrot.slane %v4399, 5
  %v4715 = vsel %vm721, %v4713, %v4714
  %v4716 = vrot.slane %v4650, 5
  %v4717 = vrot.slane %v4716, 4
  %v4718 = vrot.slane %v4401, 5
  %v4719 = vsel %vm721, %v4717, %v4718
  %v4720 = vrot.slane %v4651, 5
  %v4721 = vrot.slane %v4720, 4
  %v4722 = vrot.slane %v4403, 5
  %v4723 = vsel %vm721, %v4721, %v4722
  %v4724 = vrot.slane %v4652, 5
  %v4725 = vrot.slane %v4724, 4
  %v4726 = vrot.slane %v4405, 5
  %v4727 = vsel %vm721, %v4725, %v4726
  %v4728 = vrot.slane %v4653, 5
  %v4729 = vrot.slane %v4728, 4
  %v4730 = vrot.slane %v4407, 5
  %v4731 = vsel %vm721, %v4729, %v4730
  %v4732 = vrot.slane %v4654, 5
  %v4733 = vrot.slane %v4732, 4
  %v4734 = vrot.slane %v4409, 5
  %v4735 = vsel %vm721, %v4733, %v4734
  %v4736 = vrot.slane %v4655, 5
  %v4737 = vrot.slane %v4736, 4
  %v4738 = vrot.slane %v4411, 5
  %v4739 = vsel %vm721, %v4737, %v4738
  %v4740 = vrot.slane %v4656, 5
  %v4741 = vrot.slane %v4740, 4
  %v4742 = vrot.slane %v4413, 5
  %v4743 = vsel %vm721, %v4741, %v4742
  %v4744 = vrot.slane %v4657, 5
  %v4745 = vrot.slane %v4744, 4
  %v4746 = vrot.slane %v4415, 5
  %v4747 = vsel %vm721, %v4745, %v4746
  %v4748 = vrot.slane %v4658, 5
  %v4749 = vrot.slane %v4748, 4
  %v4750 = vrot.slane %v4417, 5
  %v4751 = vsel %vm721, %v4749, %v4750
  %v4752 = vrot.slane %v4659, 5
  %v4753 = vrot.slane %v4752, 4
  %v4754 = vrot.slane %v4419, 5
  %v4755 = vsel %vm721, %v4753, %v4754
  %v4756 = vunpack.c.l.b16 %v4433
  %v4757 = vunpack.c.l.b16 %v4447
  %v4758 = vunpack.c.l.b16 %v4461
  %v4759 = vunpack.c.l.b16 %v4475
  %v4760 = vunpack.c.l.b16 %v4489
  %v4761 = vunpack.c.l.b16 %v4503
  %v4762 = vunpack.c.l.b16 %v4517
  %v4763 = vunpack.c.l.b16 %v4531
  %v4764 = vunpack.c.l.b16 %v4545
  %v4765 = vunpack.c.l.b16 %v4559
  %v4766 = vunpack.c.l.b16 %v4573
  %v4767 = vunpack.c.l.b16 %v4587
  %v4768 = vunpack.c.l.b16 %v4601
  %v4769 = vunpack.c.l.b16 %v4615
  %v4770 = vunpack.c.l.b16 %v4629
  %v4771 = vunpack.c.l.b16 %v4643
  %v4772 = vpack.c.b16 %v4757, %v4756
  %v4773 = vpack.c.b16 %v4759, %v4758
  %v4774 = vpack.c.b16 %v4761, %v4760
  %v4775 = vpack.c.b16 %v4763, %v4762
  %v4776 = vpack.c.b16 %v4765, %v4764
  %v4777 = vpack.c.b16 %v4767, %v4766
  %v4778 = vpack.c.b16 %v4769, %v4768
  %v4779 = vpack.c.b16 %v4771, %v4770
  %v4788 = vunpack.c.l.b16 %v4695
  %v4789 = vunpack.c.l.b16 %v4699
  %v4790 = vunpack.c.l.b16 %v4703
  %v4791 = vunpack.c.l.b16 %v4707
  %v4792 = vunpack.c.l.b16 %v4711
  %v4793 = vunpack.c.l.b16 %v4715
  %v4794 = vunpack.c.l.b16 %v4719
  %v4795 = vunpack.c.l.b16 %v4723
  %v4796 = vunpack.c.l.b16 %v4727
  %v4797 = vunpack.c.l.b16 %v4731
  %v4798 = vunpack.c.l.b16 %v4735
  %v4799 = vunpack.c.l.b16 %v4739
  %v4800 = vunpack.c.l.b16 %v4743
  %v4801 = vunpack.c.l.b16 %v4747
  %v4802 = vunpack.c.l.b16 %v4751
  %v4803 = vunpack.c.l.b16 %v4755
  %v4804 = vpack.c.b16 %v4789, %v4788
  %v4805 = vpack.c.b16 %v4791, %v4790
  %v4806 = vpack.c.b16 %v4793, %v4792
  %v4807 = vpack.c.b16 %v4795, %v4794
  %v4808 = vpack.c.b16 %v4797, %v4796
  %v4809 = vpack.c.b16 %v4799, %v4798
  %v4810 = vpack.c.b16 %v4801, %v4800
  %v4811 = vpack.c.b16 %v4803, %v4802
  %v4820 = vld [vmem:[#allocation3] sm:$0xff]
  %v4821 = vld [vmem:[#allocation3 + $0x8] sm:$0xff]
  %v4822 = vld [vmem:[#allocation3 + $0x10] sm:$0xff]
  %v4823 = vld [vmem:[#allocation3 + $0x18] sm:$0xff]
  %v4824 = vld [vmem:[#allocation3 + $0x20] sm:$0xff]
  %v4825 = vld [vmem:[#allocation3 + $0x28] sm:$0xff]
  %v4826 = vld [vmem:[#allocation3 + $0x30] sm:$0xff]
  %v4827 = vld [vmem:[#allocation3 + $0x38] sm:$0xff]
  %v4828 = vld [vmem:[#allocation3 + $0x40] sm:$0xff]
  %v4829 = vld [vmem:[#allocation3 + $0x48] sm:$0xff]
  %v4830 = vld [vmem:[#allocation3 + $0x50] sm:$0xff]
  %v4831 = vld [vmem:[#allocation3 + $0x58] sm:$0xff]
  %v4832 = vld [vmem:[#allocation3 + $0x60] sm:$0xff]
  %v4833 = vld [vmem:[#allocation3 + $0x68] sm:$0xff]
  %v4834 = vld [vmem:[#allocation3 + $0x70] sm:$0xff]
  %v4835 = vld [vmem:[#allocation3 + $0x78] sm:$0xff]
  %s4836 = scalar_lea.vmem %s4, 256
  %v4837 = vld [vmem:[%s4836] sm:$0xf]
  %v4838 = vld [vmem:[%s4836 + $0x4] sm:$0xf]
  %v4839 = vld [vmem:[%s4836 + $0x8] sm:$0xf]
  %v4840 = vld [vmem:[%s4836 + $0xc] sm:$0xf]
  %v4841 = vld [vmem:[%s4836 + $0x10] sm:$0xf]
  %v4842 = vld [vmem:[%s4836 + $0x14] sm:$0xf]
  %v4843 = vld [vmem:[%s4836 + $0x18] sm:$0xf]
  %v4844 = vld [vmem:[%s4836 + $0x1c] sm:$0xf]
  %v4845 = vld [vmem:[%s4836 + $0x20] sm:$0xf]
  %v4846 = vld [vmem:[%s4836 + $0x24] sm:$0xf]
  %v4847 = vld [vmem:[%s4836 + $0x28] sm:$0xf]
  %v4848 = vld [vmem:[%s4836 + $0x2c] sm:$0xf]
  %v4849 = vld [vmem:[%s4836 + $0x30] sm:$0xf]
  %v4850 = vld [vmem:[%s4836 + $0x34] sm:$0xf]
  %v4851 = vld [vmem:[%s4836 + $0x38] sm:$0xf]
  %v4852 = vld [vmem:[%s4836 + $0x3c] sm:$0xf]
  %v4853 = vld [vmem:[%s4836 + $0x40] sm:$0xf]
  %v4854 = vld [vmem:[%s4836 + $0x44] sm:$0xf]
  %v4855 = vld [vmem:[%s4836 + $0x48] sm:$0xf]
  %v4856 = vld [vmem:[%s4836 + $0x4c] sm:$0xf]
  %v4857 = vld [vmem:[%s4836 + $0x50] sm:$0xf]
  %v4858 = vld [vmem:[%s4836 + $0x54] sm:$0xf]
  %v4859 = vld [vmem:[%s4836 + $0x58] sm:$0xf]
  %v4860 = vld [vmem:[%s4836 + $0x5c] sm:$0xf]
  %v4861 = vld [vmem:[%s4836 + $0x60] sm:$0xf]
  %v4862 = vld [vmem:[%s4836 + $0x64] sm:$0xf]
  %v4863 = vld [vmem:[%s4836 + $0x68] sm:$0xf]
  %v4864 = vld [vmem:[%s4836 + $0x6c] sm:$0xf]
  %v4865 = vld [vmem:[%s4836 + $0x70] sm:$0xf]
  %v4866 = vld [vmem:[%s4836 + $0x74] sm:$0xf]
  %v4867 = vld [vmem:[%s4836 + $0x78] sm:$0xf]
  %v4868 = vld [vmem:[%s4836 + $0x7c] sm:$0xf]
  %v4901 = vunpack.c.l.b16 %v4837
  %v4902 = vunpack.c.l.b16 %v4838
  %v4903 = vunpack.c.l.b16 %v4839
  %v4904 = vunpack.c.l.b16 %v4840
  %v4905 = vunpack.c.l.b16 %v4841
  %v4906 = vunpack.c.l.b16 %v4842
  %v4907 = vunpack.c.l.b16 %v4843
  %v4908 = vunpack.c.l.b16 %v4844
  %v4909 = vunpack.c.l.b16 %v4845
  %v4910 = vunpack.c.l.b16 %v4846
  %v4911 = vunpack.c.l.b16 %v4847
  %v4912 = vunpack.c.l.b16 %v4848
  %v4913 = vunpack.c.l.b16 %v4849
  %v4914 = vunpack.c.l.b16 %v4850
  %v4915 = vunpack.c.l.b16 %v4851
  %v4916 = vunpack.c.l.b16 %v4852
  %v4917 = vunpack.c.l.b16 %v4853
  %v4918 = vunpack.c.l.b16 %v4854
  %v4919 = vunpack.c.l.b16 %v4855
  %v4920 = vunpack.c.l.b16 %v4856
  %v4921 = vunpack.c.l.b16 %v4857
  %v4922 = vunpack.c.l.b16 %v4858
  %v4923 = vunpack.c.l.b16 %v4859
  %v4924 = vunpack.c.l.b16 %v4860
  %v4925 = vunpack.c.l.b16 %v4861
  %v4926 = vunpack.c.l.b16 %v4862
  %v4927 = vunpack.c.l.b16 %v4863
  %v4928 = vunpack.c.l.b16 %v4864
  %v4929 = vunpack.c.l.b16 %v4865
  %v4930 = vunpack.c.l.b16 %v4866
  %v4931 = vunpack.c.l.b16 %v4867
  %v4932 = vunpack.c.l.b16 %v4868
  %v4933 = vpack.c.b16 %v4902, %v4901
  %v4934 = vpack.c.b16 %v4904, %v4903
  %v4935 = vpack.c.b16 %v4906, %v4905
  %v4936 = vpack.c.b16 %v4908, %v4907
  %v4937 = vpack.c.b16 %v4910, %v4909
  %v4938 = vpack.c.b16 %v4912, %v4911
  %v4939 = vpack.c.b16 %v4914, %v4913
  %v4940 = vpack.c.b16 %v4916, %v4915
  %v4941 = vpack.c.b16 %v4918, %v4917
  %v4942 = vpack.c.b16 %v4920, %v4919
  %v4943 = vpack.c.b16 %v4922, %v4921
  %v4944 = vpack.c.b16 %v4924, %v4923
  %v4945 = vpack.c.b16 %v4926, %v4925
  %v4946 = vpack.c.b16 %v4928, %v4927
  %v4947 = vpack.c.b16 %v4930, %v4929
  %v4948 = vpack.c.b16 %v4932, %v4931
  %4965 = vmatprep.subr.bf16.mxu0 0
  %4966 = vmatpush1.bf16.msra.mxu0 %v4933
  %4967 = vmatprep.subr.bf16.mxu0 0
  %4968 = vmatpush1.bf16.msra.mxu0 %v4934
  %4969 = vmatprep.subr.bf16.mxu0 0
  %4970 = vmatpush1.bf16.msra.mxu0 %v4935
  %4971 = vmatprep.subr.bf16.mxu0 0
  %4972 = vmatpush1.bf16.msra.mxu0 %v4936
  %4973 = vmatprep.subr.bf16.mxu0 0
  %4974 = vmatpush1.bf16.msra.mxu0 %v4937
  %4975 = vmatprep.subr.bf16.mxu0 0
  %4976 = vmatpush1.bf16.msra.mxu0 %v4938
  %4977 = vmatprep.subr.bf16.mxu0 0
  %4978 = vmatpush1.bf16.msra.mxu0 %v4939
  %4979 = vmatprep.subr.bf16.mxu0 0
  %4980 = vmatpush1.bf16.msra.mxu0 %v4940
  %4981 = vmatprep.subr.bf16.mxu0 0
  %4982 = vmatpush1.bf16.msra.mxu0 %v4941
  %4983 = vmatprep.subr.bf16.mxu0 0
  %4984 = vmatpush1.bf16.msra.mxu0 %v4942
  %4985 = vmatprep.subr.bf16.mxu0 0
  %4986 = vmatpush1.bf16.msra.mxu0 %v4943
  %4987 = vmatprep.subr.bf16.mxu0 0
  %4988 = vmatpush1.bf16.msra.mxu0 %v4944
  %4989 = vmatprep.subr.bf16.mxu0 0
  %4990 = vmatpush1.bf16.msra.mxu0 %v4945
  %4991 = vmatprep.subr.bf16.mxu0 0
  %4992 = vmatpush1.bf16.msra.mxu0 %v4946
  %4993 = vmatprep.subr.bf16.mxu0 0
  %4994 = vmatpush1.bf16.msra.mxu0 %v4947
  %4995 = vmatprep.subr.bf16.mxu0 0
  %4996 = vmatpush1.bf16.msra.mxu0 %v4948
  %4997 = vmatprep.mubr.bf16.mxu0 %v4804
  %4998 = vmatmul.mubr.bf16.gmra.mrb[0].mxu0 %v4772
  %v4999 = vpop.f32.mrb[0].mxu0
  %v5000 = vadd.f32 0.0, %v4999
  %v5001 = vpop.f32.mrb[0].mxu0
  %v5002 = vpop.f32.mrb[0].mxu0
  %v5003 = vadd.f32 0.0, %v5002
  %v5004 = vpop.f32.mrb[0].mxu0
  %5005 = vmatprep.mubr.bf16.mxu0 %v4805
  %5006 = vmatmul.mubr.bf16.gmra.mrb[0].mxu0 %v4773
  %v5007 = vpop.f32.mrb[0].mxu0
  %v5008 = vadd.f32 0.0, %v5007
  %v5009 = vpop.f32.mrb[0].mxu0
  %v5010 = vpop.f32.mrb[0].mxu0
  %v5011 = vadd.f32 0.0, %v5010
  %v5012 = vpop.f32.mrb[0].mxu0
  %5013 = vmatprep.mubr.bf16.mxu0 %v4806
  %5014 = vmatmul.mubr.bf16.gmra.mrb[0].mxu0 %v4774
  %v5015 = vpop.f32.mrb[0].mxu0
  %v5016 = vadd.f32 0.0, %v5015
  %v5017 = vpop.f32.mrb[0].mxu0
  %v5018 = vpop.f32.mrb[0].mxu0
  %v5019 = vadd.f32 0.0, %v5018
  %v5020 = vpop.f32.mrb[0].mxu0
  %5021 = vmatprep.mubr.bf16.mxu0 %v4807
  %5022 = vmatmul.mubr.bf16.gmra.mrb[0].mxu0 %v4775
  %v5023 = vpop.f32.mrb[0].mxu0
  %v5024 = vadd.f32 0.0, %v5023
  %v5025 = vpop.f32.mrb[0].mxu0
  %v5026 = vpop.f32.mrb[0].mxu0
  %v5027 = vadd.f32 0.0, %v5026
  %v5028 = vpop.f32.mrb[0].mxu0
  %5029 = vmatprep.mubr.bf16.mxu0 %v4808
  %5030 = vmatmul.mubr.bf16.gmra.mrb[0].mxu0 %v4776
  %v5031 = vpop.f32.mrb[0].mxu0
  %v5032 = vadd.f32 0.0, %v5031
  %v5033 = vpop.f32.mrb[0].mxu0
  %v5034 = vpop.f32.mrb[0].mxu0
  %v5035 = vadd.f32 0.0, %v5034
  %v5036 = vpop.f32.mrb[0].mxu0
  %5037 = vmatprep.mubr.bf16.mxu0 %v4809
  %5038 = vmatmul.mubr.bf16.gmra.mrb[0].mxu0 %v4777
  %v5039 = vpop.f32.mrb[0].mxu0
  %v5040 = vadd.f32 0.0, %v5039
  %v5041 = vpop.f32.mrb[0].mxu0
  %v5042 = vpop.f32.mrb[0].mxu0
  %v5043 = vadd.f32 0.0, %v5042
  %v5044 = vpop.f32.mrb[0].mxu0
  %5045 = vmatprep.mubr.bf16.mxu0 %v4810
  %5046 = vmatmul.mubr.bf16.gmra.mrb[0].mxu0 %v4778
  %v5047 = vpop.f32.mrb[0].mxu0
  %v5048 = vadd.f32 0.0, %v5047
  %v5049 = vpop.f32.mrb[0].mxu0
  %v5050 = vpop.f32.mrb[0].mxu0
  %v5051 = vadd.f32 0.0, %v5050
  %v5052 = vpop.f32.mrb[0].mxu0
  %5053 = vmatprep.mubr.bf16.mxu0 %v4811
  %5054 = vmatmul.mubr.bf16.gmra.mrb[0].mxu0 %v4779
  %v5055 = vpop.f32.mrb[0].mxu0
  %v5056 = vadd.f32 0.0, %v5055
  %v5057 = vpop.f32.mrb[0].mxu0
  %v5058 = vpop.f32.mrb[0].mxu0
  %v5059 = vadd.f32 0.0, %v5058
  %v5060 = vpop.f32.mrb[0].mxu0
  %5061 = vdwg.mxu0
  %v5062 = vadd.f32 %v4820, %v5000
  %v5063 = vadd.f32 %v4821, %v5003
  %v5064 = vadd.f32 %v4822, %v5008
  %v5065 = vadd.f32 %v4823, %v5011
  %v5066 = vadd.f32 %v4824, %v5016
  %v5067 = vadd.f32 %v4825, %v5019
  %v5068 = vadd.f32 %v4826, %v5024
  %v5069 = vadd.f32 %v4827, %v5027
  %v5070 = vadd.f32 %v4828, %v5032
  %v5071 = vadd.f32 %v4829, %v5035
  %v5072 = vadd.f32 %v4830, %v5040
  %v5073 = vadd.f32 %v4831, %v5043
  %v5074 = vadd.f32 %v4832, %v5048
  %v5075 = vadd.f32 %v4833, %v5051
  %v5076 = vadd.f32 %v4834, %v5056
  %v5077 = vadd.f32 %v4835, %v5059
  %5078 = vst [vmem:[#allocation3] sm:$0xff] %v5062
  %5079 = vst [vmem:[#allocation3 + $0x8] sm:$0xff] %v5063
  %5080 = vst [vmem:[#allocation3 + $0x10] sm:$0xff] %v5064
  %5081 = vst [vmem:[#allocation3 + $0x18] sm:$0xff] %v5065
  %5082 = vst [vmem:[#allocation3 + $0x20] sm:$0xff] %v5066
  %5083 = vst [vmem:[#allocation3 + $0x28] sm:$0xff] %v5067
  %5084 = vst [vmem:[#allocation3 + $0x30] sm:$0xff] %v5068
  %5085 = vst [vmem:[#allocation3 + $0x38] sm:$0xff] %v5069
  %5086 = vst [vmem:[#allocation3 + $0x40] sm:$0xff] %v5070
  %5087 = vst [vmem:[#allocation3 + $0x48] sm:$0xff] %v5071
  %5088 = vst [vmem:[#allocation3 + $0x50] sm:$0xff] %v5072
  %5089 = vst [vmem:[#allocation3 + $0x58] sm:$0xff] %v5073
  %5090 = vst [vmem:[#allocation3 + $0x60] sm:$0xff] %v5074
  %5091 = vst [vmem:[#allocation3 + $0x68] sm:$0xff] %v5075
  %5092 = vst [vmem:[#allocation3 + $0x70] sm:$0xff] %v5076
  %5093 = vst [vmem:[#allocation3 + $0x78] sm:$0xff] %v5077
  %s5094 = scalar_lea.vmem [#allocation2], 16
  %v5095 = vld [vmem:[%s5094] sm:$0xf]
  %v5096 = vld [vmem:[%s5094 + $0x8] sm:$0xf]
  %v5097 = vld [vmem:[%s5094 + $0x10] sm:$0xf]
  %v5098 = vld [vmem:[%s5094 + $0x18] sm:$0xf]
  %v5099 = vld [vmem:[%s5094 + $0x20] sm:$0xf]
  %v5100 = vld [vmem:[%s5094 + $0x28] sm:$0xf]
  %v5101 = vld [vmem:[%s5094 + $0x30] sm:$0xf]
  %v5102 = vld [vmem:[%s5094 + $0x38] sm:$0xf]
  %v5103 = vld [vmem:[%s5094 + $0x50] sm:$0xf]
  %v5104 = vld [vmem:[%s5094 + $0x58] sm:$0xf]
  %v5105 = vld [vmem:[%s5094 + $0x60] sm:$0xf]
  %v5106 = vld [vmem:[%s5094 + $0x68] sm:$0xf]
  %v5107 = vld [vmem:[%s5094 + $0x70] sm:$0xf]
  %v5108 = vld [vmem:[%s5094 + $0x78] sm:$0xf]
  %v5109 = vld [vmem:[%s5094 + $0x80] sm:$0xf]
  %v5110 = vld [vmem:[%s5094 + $0x88] sm:$0xf]
  %v5111 = vld [vmem:[%s5094 + $0x4] sm:$0x1]
  %v5112 = vld [vmem:[%s5094 + $0xc] sm:$0x1]
  %v5113 = vld [vmem:[%s5094 + $0x14] sm:$0x1]
  %v5114 = vld [vmem:[%s5094 + $0x1c] sm:$0x1]
  %v5115 = vld [vmem:[%s5094 + $0x24] sm:$0x1]
  %v5116 = vld [vmem:[%s5094 + $0x2c] sm:$0x1]
  %v5117 = vld [vmem:[%s5094 + $0x34] sm:$0x1]
  %v5118 = vld [vmem:[%s5094 + $0x3c] sm:$0x1]
  %v5119 = vld [vmem:[%s5094 + $0x54] sm:$0x1]
  %v5120 = vld [vmem:[%s5094 + $0x5c] sm:$0x1]
  %v5121 = vld [vmem:[%s5094 + $0x64] sm:$0x1]
  %v5122 = vld [vmem:[%s5094 + $0x6c] sm:$0x1]
  %v5123 = vld [vmem:[%s5094 + $0x74] sm:$0x1]
  %v5124 = vld [vmem:[%s5094 + $0x7c] sm:$0x1]
  %v5125 = vld [vmem:[%s5094 + $0x84] sm:$0x1]
  %v5126 = vld [vmem:[%s5094 + $0x8c] sm:$0x1]
  %v5128 = vshrl.u32 %v5095, 16
  %v5130 = vrot.slane %v5128, 4
  %v5131 = vshll.u32 %v5095, 16
  %v5133 = vrot.slane %v5131, 5
  %v5134 = vor.u32 %v5130, %v5133
  %v5135 = vrot.slane %v5134, 4
  %v5137 = vshll.u32 %v5111, 16
  %v5139 = vrot.slane %v5137, 5
  %v5140 = vsel %vm77, %v5135, %v5139
  %v5142 = vshrl.u32 %v5096, 16
  %v5144 = vrot.slane %v5142, 4
  %v5145 = vshll.u32 %v5096, 16
  %v5147 = vrot.slane %v5145, 5
  %v5148 = vor.u32 %v5144, %v5147
  %v5149 = vrot.slane %v5148, 4
  %v5151 = vshll.u32 %v5112, 16
  %v5153 = vrot.slane %v5151, 5
  %v5154 = vsel %vm77, %v5149, %v5153
  %v5156 = vshrl.u32 %v5097, 16
  %v5158 = vrot.slane %v5156, 4
  %v5159 = vshll.u32 %v5097, 16
  %v5161 = vrot.slane %v5159, 5
  %v5162 = vor.u32 %v5158, %v5161
  %v5163 = vrot.slane %v5162, 4
  %v5165 = vshll.u32 %v5113, 16
  %v5167 = vrot.slane %v5165, 5
  %v5168 = vsel %vm77, %v5163, %v5167
  %v5170 = vshrl.u32 %v5098, 16
  %v5172 = vrot.slane %v5170, 4
  %v5173 = vshll.u32 %v5098, 16
  %v5175 = vrot.slane %v5173, 5
  %v5176 = vor.u32 %v5172, %v5175
  %v5177 = vrot.slane %v5176, 4
  %v5179 = vshll.u32 %v5114, 16
  %v5181 = vrot.slane %v5179, 5
  %v5182 = vsel %vm77, %v5177, %v5181
  %v5184 = vshrl.u32 %v5099, 16
  %v5186 = vrot.slane %v5184, 4
  %v5187 = vshll.u32 %v5099, 16
  %v5189 = vrot.slane %v5187, 5
  %v5190 = vor.u32 %v5186, %v5189
  %v5191 = vrot.slane %v5190, 4
  %v5193 = vshll.u32 %v5115, 16
  %v5195 = vrot.slane %v5193, 5
  %v5196 = vsel %vm77, %v5191, %v5195
  %v5198 = vshrl.u32 %v5100, 16
  %v5200 = vrot.slane %v5198, 4
  %v5201 = vshll.u32 %v5100, 16
  %v5203 = vrot.slane %v5201, 5
  %v5204 = vor.u32 %v5200, %v5203
  %v5205 = vrot.slane %v5204, 4
  %v5207 = vshll.u32 %v5116, 16
  %v5209 = vrot.slane %v5207, 5
  %v5210 = vsel %vm77, %v5205, %v5209
  %v5212 = vshrl.u32 %v5101, 16
  %v5214 = vrot.slane %v5212, 4
  %v5215 = vshll.u32 %v5101, 16
  %v5217 = vrot.slane %v5215, 5
  %v5218 = vor.u32 %v5214, %v5217
  %v5219 = vrot.slane %v5218, 4
  %v5221 = vshll.u32 %v5117, 16
  %v5223 = vrot.slane %v5221, 5
  %v5224 = vsel %vm77, %v5219, %v5223
  %v5226 = vshrl.u32 %v5102, 16
  %v5228 = vrot.slane %v5226, 4
  %v5229 = vshll.u32 %v5102, 16
  %v5231 = vrot.slane %v5229, 5
  %v5232 = vor.u32 %v5228, %v5231
  %v5233 = vrot.slane %v5232, 4
  %v5235 = vshll.u32 %v5118, 16
  %v5237 = vrot.slane %v5235, 5
  %v5238 = vsel %vm77, %v5233, %v5237
  %v5240 = vshrl.u32 %v5103, 16
  %v5242 = vrot.slane %v5240, 4
  %v5243 = vshll.u32 %v5103, 16
  %v5245 = vrot.slane %v5243, 5
  %v5246 = vor.u32 %v5242, %v5245
  %v5247 = vrot.slane %v5246, 4
  %v5249 = vshll.u32 %v5119, 16
  %v5251 = vrot.slane %v5249, 5
  %v5252 = vsel %vm77, %v5247, %v5251
  %v5254 = vshrl.u32 %v5104, 16
  %v5256 = vrot.slane %v5254, 4
  %v5257 = vshll.u32 %v5104, 16
  %v5259 = vrot.slane %v5257, 5
  %v5260 = vor.u32 %v5256, %v5259
  %v5261 = vrot.slane %v5260, 4
  %v5263 = vshll.u32 %v5120, 16
  %v5265 = vrot.slane %v5263, 5
  %v5266 = vsel %vm77, %v5261, %v5265
  %v5268 = vshrl.u32 %v5105, 16
  %v5270 = vrot.slane %v5268, 4
  %v5271 = vshll.u32 %v5105, 16
  %v5273 = vrot.slane %v5271, 5
  %v5274 = vor.u32 %v5270, %v5273
  %v5275 = vrot.slane %v5274, 4
  %v5277 = vshll.u32 %v5121, 16
  %v5279 = vrot.slane %v5277, 5
  %v5280 = vsel %vm77, %v5275, %v5279
  %v5282 = vshrl.u32 %v5106, 16
  %v5284 = vrot.slane %v5282, 4
  %v5285 = vshll.u32 %v5106, 16
  %v5287 = vrot.slane %v5285, 5
  %v5288 = vor.u32 %v5284, %v5287
  %v5289 = vrot.slane %v5288, 4
  %v5291 = vshll.u32 %v5122, 16
  %v5293 = vrot.slane %v5291, 5
  %v5294 = vsel %vm77, %v5289, %v5293
  %v5296 = vshrl.u32 %v5107, 16
  %v5298 = vrot.slane %v5296, 4
  %v5299 = vshll.u32 %v5107, 16
  %v5301 = vrot.slane %v5299, 5
  %v5302 = vor.u32 %v5298, %v5301
  %v5303 = vrot.slane %v5302, 4
  %v5305 = vshll.u32 %v5123, 16
  %v5307 = vrot.slane %v5305, 5
  %v5308 = vsel %vm77, %v5303, %v5307
  %v5310 = vshrl.u32 %v5108, 16
  %v5312 = vrot.slane %v5310, 4
  %v5313 = vshll.u32 %v5108, 16
  %v5315 = vrot.slane %v5313, 5
  %v5316 = vor.u32 %v5312, %v5315
  %v5317 = vrot.slane %v5316, 4
  %v5319 = vshll.u32 %v5124, 16
  %v5321 = vrot.slane %v5319, 5
  %v5322 = vsel %vm77, %v5317, %v5321
  %v5324 = vshrl.u32 %v5109, 16
  %v5326 = vrot.slane %v5324, 4
  %v5327 = vshll.u32 %v5109, 16
  %v5329 = vrot.slane %v5327, 5
  %v5330 = vor.u32 %v5326, %v5329
  %v5331 = vrot.slane %v5330, 4
  %v5333 = vshll.u32 %v5125, 16
  %v5335 = vrot.slane %v5333, 5
  %v5336 = vsel %vm77, %v5331, %v5335
  %v5338 = vshrl.u32 %v5110, 16
  %v5340 = vrot.slane %v5338, 4
  %v5341 = vshll.u32 %v5110, 16
  %v5343 = vrot.slane %v5341, 5
  %v5344 = vor.u32 %v5340, %v5343
  %v5345 = vrot.slane %v5344, 4
  %v5347 = vshll.u32 %v5126, 16
  %v5349 = vrot.slane %v5347, 5
  %v5350 = vsel %vm77, %v5345, %v5349
  %v5367 = vunpack.c.l.b16 %v5095
  %v5368 = vunpack.c.l.b16 %v5096
  %v5369 = vunpack.c.l.b16 %v5097
  %v5370 = vunpack.c.l.b16 %v5098
  %v5371 = vunpack.c.l.b16 %v5099
  %v5372 = vunpack.c.l.b16 %v5100
  %v5373 = vunpack.c.l.b16 %v5101
  %v5374 = vunpack.c.l.b16 %v5102
  %v5375 = vunpack.c.l.b16 %v5103
  %v5376 = vunpack.c.l.b16 %v5104
  %v5377 = vunpack.c.l.b16 %v5105
  %v5378 = vunpack.c.l.b16 %v5106
  %v5379 = vunpack.c.l.b16 %v5107
  %v5380 = vunpack.c.l.b16 %v5108
  %v5381 = vunpack.c.l.b16 %v5109
  %v5382 = vunpack.c.l.b16 %v5110
  %v5383 = vpack.c.b16 %v5368, %v5367
  %v5384 = vpack.c.b16 %v5370, %v5369
  %v5385 = vpack.c.b16 %v5372, %v5371
  %v5386 = vpack.c.b16 %v5374, %v5373
  %v5387 = vpack.c.b16 %v5376, %v5375
  %v5388 = vpack.c.b16 %v5378, %v5377
  %v5389 = vpack.c.b16 %v5380, %v5379
  %v5390 = vpack.c.b16 %v5382, %v5381
  %v5399 = vunpack.c.l.b16 %v5140
  %v5400 = vunpack.c.l.b16 %v5154
  %v5401 = vunpack.c.l.b16 %v5168
  %v5402 = vunpack.c.l.b16 %v5182
  %v5403 = vunpack.c.l.b16 %v5196
  %v5404 = vunpack.c.l.b16 %v5210
  %v5405 = vunpack.c.l.b16 %v5224
  %v5406 = vunpack.c.l.b16 %v5238
  %v5407 = vunpack.c.l.b16 %v5252
  %v5408 = vunpack.c.l.b16 %v5266
  %v5409 = vunpack.c.l.b16 %v5280
  %v5410 = vunpack.c.l.b16 %v5294
  %v5411 = vunpack.c.l.b16 %v5308
  %v5412 = vunpack.c.l.b16 %v5322
  %v5413 = vunpack.c.l.b16 %v5336
  %v5414 = vunpack.c.l.b16 %v5350
  %v5415 = vpack.c.b16 %v5400, %v5399
  %v5416 = vpack.c.b16 %v5402, %v5401
  %v5417 = vpack.c.b16 %v5404, %v5403
  %v5418 = vpack.c.b16 %v5406, %v5405
  %v5419 = vpack.c.b16 %v5408, %v5407
  %v5420 = vpack.c.b16 %v5410, %v5409
  %v5421 = vpack.c.b16 %v5412, %v5411
  %v5422 = vpack.c.b16 %v5414, %v5413
  %v5431 = vld [vmem:[#allocation3] sm:$0xff]
  %v5432 = vld [vmem:[#allocation3 + $0x8] sm:$0xff]
  %v5433 = vld [vmem:[#allocation3 + $0x10] sm:$0xff]
  %v5434 = vld [vmem:[#allocation3 + $0x18] sm:$0xff]
  %v5435 = vld [vmem:[#allocation3 + $0x20] sm:$0xff]
  %v5436 = vld [vmem:[#allocation3 + $0x28] sm:$0xff]
  %v5437 = vld [vmem:[#allocation3 + $0x30] sm:$0xff]
  %v5438 = vld [vmem:[#allocation3 + $0x38] sm:$0xff]
  %v5439 = vld [vmem:[#allocation3 + $0x40] sm:$0xff]
  %v5440 = vld [vmem:[#allocation3 + $0x48] sm:$0xff]
  %v5441 = vld [vmem:[#allocation3 + $0x50] sm:$0xff]
  %v5442 = vld [vmem:[#allocation3 + $0x58] sm:$0xff]
  %v5443 = vld [vmem:[#allocation3 + $0x60] sm:$0xff]
  %v5444 = vld [vmem:[#allocation3 + $0x68] sm:$0xff]
  %v5445 = vld [vmem:[#allocation3 + $0x70] sm:$0xff]
  %v5446 = vld [vmem:[#allocation3 + $0x78] sm:$0xff]
  %s5447 = scalar_lea.vmem %s4, 384
  %v5448 = vld [vmem:[%s5447] sm:$0xf]
  %v5449 = vld [vmem:[%s5447 + $0x4] sm:$0xf]
  %v5450 = vld [vmem:[%s5447 + $0x8] sm:$0xf]
  %v5451 = vld [vmem:[%s5447 + $0xc] sm:$0xf]
  %v5452 = vld [vmem:[%s5447 + $0x10] sm:$0xf]
  %v5453 = vld [vmem:[%s5447 + $0x14] sm:$0xf]
  %v5454 = vld [vmem:[%s5447 + $0x18] sm:$0xf]
  %v5455 = vld [vmem:[%s5447 + $0x1c] sm:$0xf]
  %v5456 = vld [vmem:[%s5447 + $0x20] sm:$0xf]
  %v5457 = vld [vmem:[%s5447 + $0x24] sm:$0xf]
  %v5458 = vld [vmem:[%s5447 + $0x28] sm:$0xf]
  %v5459 = vld [vmem:[%s5447 + $0x2c] sm:$0xf]
  %v5460 = vld [vmem:[%s5447 + $0x30] sm:$0xf]
  %v5461 = vld [vmem:[%s5447 + $0x34] sm:$0xf]
  %v5462 = vld [vmem:[%s5447 + $0x38] sm:$0xf]
  %v5463 = vld [vmem:[%s5447 + $0x3c] sm:$0xf]
  %v5464 = vld [vmem:[%s5447 + $0x40] sm:$0xf]
  %v5465 = vld [vmem:[%s5447 + $0x44] sm:$0xf]
  %v5466 = vld [vmem:[%s5447 + $0x48] sm:$0xf]
  %v5467 = vld [vmem:[%s5447 + $0x4c] sm:$0xf]
  %v5468 = vld [vmem:[%s5447 + $0x50] sm:$0xf]
  %v5469 = vld [vmem:[%s5447 + $0x54] sm:$0xf]
  %v5470 = vld [vmem:[%s5447 + $0x58] sm:$0xf]
  %v5471 = vld [vmem:[%s5447 + $0x5c] sm:$0xf]
  %v5472 = vld [vmem:[%s5447 + $0x60] sm:$0xf]
  %v5473 = vld [vmem:[%s5447 + $0x64] sm:$0xf]
  %v5474 = vld [vmem:[%s5447 + $0x68] sm:$0xf]
  %v5475 = vld [vmem:[%s5447 + $0x6c] sm:$0xf]
  %v5476 = vld [vmem:[%s5447 + $0x70] sm:$0xf]
  %v5477 = vld [vmem:[%s5447 + $0x74] sm:$0xf]
  %v5478 = vld [vmem:[%s5447 + $0x78] sm:$0xf]
  %v5479 = vld [vmem:[%s5447 + $0x7c] sm:$0xf]
  %v5512 = vunpack.c.l.b16 %v5448
  %v5513 = vunpack.c.l.b16 %v5449
  %v5514 = vunpack.c.l.b16 %v5450
  %v5515 = vunpack.c.l.b16 %v5451
  %v5516 = vunpack.c.l.b16 %v5452
  %v5517 = vunpack.c.l.b16 %v5453
  %v5518 = vunpack.c.l.b16 %v5454
  %v5519 = vunpack.c.l.b16 %v5455
  %v5520 = vunpack.c.l.b16 %v5456
  %v5521 = vunpack.c.l.b16 %v5457
  %v5522 = vunpack.c.l.b16 %v5458
  %v5523 = vunpack.c.l.b16 %v5459
  %v5524 = vunpack.c.l.b16 %v5460
  %v5525 = vunpack.c.l.b16 %v5461
  %v5526 = vunpack.c.l.b16 %v5462
  %v5527 = vunpack.c.l.b16 %v5463
  %v5528 = vunpack.c.l.b16 %v5464
  %v5529 = vunpack.c.l.b16 %v5465
  %v5530 = vunpack.c.l.b16 %v5466
  %v5531 = vunpack.c.l.b16 %v5467
  %v5532 = vunpack.c.l.b16 %v5468
  %v5533 = vunpack.c.l.b16 %v5469
  %v5534 = vunpack.c.l.b16 %v5470
  %v5535 = vunpack.c.l.b16 %v5471
  %v5536 = vunpack.c.l.b16 %v5472
  %v5537 = vunpack.c.l.b16 %v5473
  %v5538 = vunpack.c.l.b16 %v5474
  %v5539 = vunpack.c.l.b16 %v5475
  %v5540 = vunpack.c.l.b16 %v5476
  %v5541 = vunpack.c.l.b16 %v5477
  %v5542 = vunpack.c.l.b16 %v5478
  %v5543 = vunpack.c.l.b16 %v5479
  %v5544 = vpack.c.b16 %v5513, %v5512
  %v5545 = vpack.c.b16 %v5515, %v5514
  %v5546 = vpack.c.b16 %v5517, %v5516
  %v5547 = vpack.c.b16 %v5519, %v5518
  %v5548 = vpack.c.b16 %v5521, %v5520
  %v5549 = vpack.c.b16 %v5523, %v5522
  %v5550 = vpack.c.b16 %v5525, %v5524
  %v5551 = vpack.c.b16 %v5527, %v5526
  %v5552 = vpack.c.b16 %v5529, %v5528
  %v5553 = vpack.c.b16 %v5531, %v5530
  %v5554 = vpack.c.b16 %v5533, %v5532
  %v5555 = vpack.c.b16 %v5535, %v5534
  %v5556 = vpack.c.b16 %v5537, %v5536
  %v5557 = vpack.c.b16 %v5539, %v5538
  %v5558 = vpack.c.b16 %v5541, %v5540
  %v5559 = vpack.c.b16 %v5543, %v5542
  %5576 = vmatprep.subr.bf16.mxu0 0
  %5577 = vmatpush1.bf16.msra.mxu0 %v5544
  %5578 = vmatprep.subr.bf16.mxu0 0
  %5579 = vmatpush1.bf16.msra.mxu0 %v5545
  %5580 = vmatprep.subr.bf16.mxu0 0
  %5581 = vmatpush1.bf16.msra.mxu0 %v5546
  %5582 = vmatprep.subr.bf16.mxu0 0
  %5583 = vmatpush1.bf16.msra.mxu0 %v5547
  %5584 = vmatprep.subr.bf16.mxu0 0
  %5585 = vmatpush1.bf16.msra.mxu0 %v5548
  %5586 = vmatprep.subr.bf16.mxu0 0
  %5587 = vmatpush1.bf16.msra.mxu0 %v5549
  %5588 = vmatprep.subr.bf16.mxu0 0
  %5589 = vmatpush1.bf16.msra.mxu0 %v5550
  %5590 = vmatprep.subr.bf16.mxu0 0
  %5591 = vmatpush1.bf16.msra.mxu0 %v5551
  %5592 = vmatprep.subr.bf16.mxu0 0
  %5593 = vmatpush1.bf16.msra.mxu0 %v5552
  %5594 = vmatprep.subr.bf16.mxu0 0
  %5595 = vmatpush1.bf16.msra.mxu0 %v5553
  %5596 = vmatprep.subr.bf16.mxu0 0
  %5597 = vmatpush1.bf16.msra.mxu0 %v5554
  %5598 = vmatprep.subr.bf16.mxu0 0
  %5599 = vmatpush1.bf16.msra.mxu0 %v5555
  %5600 = vmatprep.subr.bf16.mxu0 0
  %5601 = vmatpush1.bf16.msra.mxu0 %v5556
  %5602 = vmatprep.subr.bf16.mxu0 0
  %5603 = vmatpush1.bf16.msra.mxu0 %v5557
  %5604 = vmatprep.subr.bf16.mxu0 0
  %5605 = vmatpush1.bf16.msra.mxu0 %v5558
  %5606 = vmatprep.subr.bf16.mxu0 0
  %5607 = vmatpush1.bf16.msra.mxu0 %v5559
  %5608 = vmatprep.mubr.bf16.mxu0 %v5415
  %5609 = vmatmul.mubr.bf16.gmra.mrb[0].mxu0 %v5383
  %v5610 = vpop.f32.mrb[0].mxu0
  %v5611 = vadd.f32 0.0, %v5610
  %v5612 = vpop.f32.mrb[0].mxu0
  %v5613 = vpop.f32.mrb[0].mxu0
  %v5614 = vadd.f32 0.0, %v5613
  %v5615 = vpop.f32.mrb[0].mxu0
  %5616 = vmatprep.mubr.bf16.mxu0 %v5416
  %5617 = vmatmul.mubr.bf16.gmra.mrb[0].mxu0 %v5384
  %v5618 = vpop.f32.mrb[0].mxu0
  %v5619 = vadd.f32 0.0, %v5618
  %v5620 = vpop.f32.mrb[0].mxu0
  %v5621 = vpop.f32.mrb[0].mxu0
  %v5622 = vadd.f32 0.0, %v5621
  %v5623 = vpop.f32.mrb[0].mxu0
  %5624 = vmatprep.mubr.bf16.mxu0 %v5417
  %5625 = vmatmul.mubr.bf16.gmra.mrb[0].mxu0 %v5385
  %v5626 = vpop.f32.mrb[0].mxu0
  %v5627 = vadd.f32 0.0, %v5626
  %v5628 = vpop.f32.mrb[0].mxu0
  %v5629 = vpop.f32.mrb[0].mxu0
  %v5630 = vadd.f32 0.0, %v5629
  %v5631 = vpop.f32.mrb[0].mxu0
  %5632 = vmatprep.mubr.bf16.mxu0 %v5418
  %5633 = vmatmul.mubr.bf16.gmra.mrb[0].mxu0 %v5386
  %v5634 = vpop.f32.mrb[0].mxu0
  %v5635 = vadd.f32 0.0, %v5634
  %v5636 = vpop.f32.mrb[0].mxu0
  %v5637 = vpop.f32.mrb[0].mxu0
  %v5638 = vadd.f32 0.0, %v5637
  %v5639 = vpop.f32.mrb[0].mxu0
  %5640 = vmatprep.mubr.bf16.mxu0 %v5419
  %5641 = vmatmul.mubr.bf16.gmra.mrb[0].mxu0 %v5387
  %v5642 = vpop.f32.mrb[0].mxu0
  %v5643 = vadd.f32 0.0, %v5642
  %v5644 = vpop.f32.mrb[0].mxu0
  %v5645 = vpop.f32.mrb[0].mxu0
  %v5646 = vadd.f32 0.0, %v5645
  %v5647 = vpop.f32.mrb[0].mxu0
  %5648 = vmatprep.mubr.bf16.mxu0 %v5420
  %5649 = vmatmul.mubr.bf16.gmra.mrb[0].mxu0 %v5388
  %v5650 = vpop.f32.mrb[0].mxu0
  %v5651 = vadd.f32 0.0, %v5650
  %v5652 = vpop.f32.mrb[0].mxu0
  %v5653 = vpop.f32.mrb[0].mxu0
  %v5654 = vadd.f32 0.0, %v5653
  %v5655 = vpop.f32.mrb[0].mxu0
  %5656 = vmatprep.mubr.bf16.mxu0 %v5421
  %5657 = vmatmul.mubr.bf16.gmra.mrb[0].mxu0 %v5389
  %v5658 = vpop.f32.mrb[0].mxu0
  %v5659 = vadd.f32 0.0, %v5658
  %v5660 = vpop.f32.mrb[0].mxu0
  %v5661 = vpop.f32.mrb[0].mxu0
  %v5662 = vadd.f32 0.0, %v5661
  %v5663 = vpop.f32.mrb[0].mxu0
  %5664 = vmatprep.mubr.bf16.mxu0 %v5422
  %5665 = vmatmul.mubr.bf16.gmra.mrb[0].mxu0 %v5390
  %v5666 = vpop.f32.mrb[0].mxu0
  %v5667 = vadd.f32 0.0, %v5666
  %v5668 = vpop.f32.mrb[0].mxu0
  %v5669 = vpop.f32.mrb[0].mxu0
  %v5670 = vadd.f32 0.0, %v5669
  %v5671 = vpop.f32.mrb[0].mxu0
  %5672 = vdwg.mxu0
  %v5673 = vadd.f32 %v5431, %v5611
  %v5674 = vadd.f32 %v5432, %v5614
  %v5675 = vadd.f32 %v5433, %v5619
  %v5676 = vadd.f32 %v5434, %v5622
  %v5677 = vadd.f32 %v5435, %v5627
  %v5678 = vadd.f32 %v5436, %v5630
  %v5679 = vadd.f32 %v5437, %v5635
  %v5680 = vadd.f32 %v5438, %v5638
  %v5681 = vadd.f32 %v5439, %v5643
  %v5682 = vadd.f32 %v5440, %v5646
  %v5683 = vadd.f32 %v5441, %v5651
  %v5684 = vadd.f32 %v5442, %v5654
  %v5685 = vadd.f32 %v5443, %v5659
  %v5686 = vadd.f32 %v5444, %v5662
  %v5687 = vadd.f32 %v5445, %v5667
  %v5688 = vadd.f32 %v5446, %v5670
  %5689 = vst [vmem:[#allocation3] sm:$0xff] %v5673
  %5690 = vst [vmem:[#allocation3 + $0x8] sm:$0xff] %v5674
  %5691 = vst [vmem:[#allocation3 + $0x10] sm:$0xff] %v5675
  %5692 = vst [vmem:[#allocation3 + $0x18] sm:$0xff] %v5676
  %5693 = vst [vmem:[#allocation3 + $0x20] sm:$0xff] %v5677
  %5694 = vst [vmem:[#allocation3 + $0x28] sm:$0xff] %v5678
  %5695 = vst [vmem:[#allocation3 + $0x30] sm:$0xff] %v5679
  %5696 = vst [vmem:[#allocation3 + $0x38] sm:$0xff] %v5680
  %5697 = vst [vmem:[#allocation3 + $0x40] sm:$0xff] %v5681
  %5698 = vst [vmem:[#allocation3 + $0x48] sm:$0xff] %v5682
  %5699 = vst [vmem:[#allocation3 + $0x50] sm:$0xff] %v5683
  %5700 = vst [vmem:[#allocation3 + $0x58] sm:$0xff] %v5684
  %5701 = vst [vmem:[#allocation3 + $0x60] sm:$0xff] %v5685
  %5702 = vst [vmem:[#allocation3 + $0x68] sm:$0xff] %v5686
  %5703 = vst [vmem:[#allocation3 + $0x70] sm:$0xff] %v5687
  %5704 = vst [vmem:[#allocation3 + $0x78] sm:$0xff] %v5688
  %v5705 = vld [vmem:[#allocation3] sm:$0xff]
  %v5706 = vld [vmem:[#allocation3 + $0x8] sm:$0xff]
  %v5707 = vld [vmem:[#allocation3 + $0x10] sm:$0xff]
  %v5708 = vld [vmem:[#allocation3 + $0x18] sm:$0xff]
  %v5709 = vld [vmem:[#allocation3 + $0x20] sm:$0xff]
  %v5710 = vld [vmem:[#allocation3 + $0x28] sm:$0xff]
  %v5711 = vld [vmem:[#allocation3 + $0x30] sm:$0xff]
  %v5712 = vld [vmem:[#allocation3 + $0x38] sm:$0xff]
  %v5713 = vld [vmem:[#allocation3 + $0x40] sm:$0xff]
  %v5714 = vld [vmem:[#allocation3 + $0x48] sm:$0xff]
  %v5715 = vld [vmem:[#allocation3 + $0x50] sm:$0xff]
  %v5716 = vld [vmem:[#allocation3 + $0x58] sm:$0xff]
  %v5717 = vld [vmem:[#allocation3 + $0x60] sm:$0xff]
  %v5718 = vld [vmem:[#allocation3 + $0x68] sm:$0xff]
  %v5719 = vld [vmem:[#allocation3 + $0x70] sm:$0xff]
  %v5720 = vld [vmem:[#allocation3 + $0x78] sm:$0xff]
  %v5721 = vld [vmem:[%s5094] sm:$0xe]
  %v5722 = vld [vmem:[%s5094 + $0x4] sm:$0x1]
  %v5723 = vld [vmem:[%s5094 + $0x8] sm:$0xe]
  %v5724 = vld [vmem:[%s5094 + $0xc] sm:$0x1]
  %v5725 = vld [vmem:[%s5094 + $0x10] sm:$0xe]
  %v5726 = vld [vmem:[%s5094 + $0x14] sm:$0x1]
  %v5727 = vld [vmem:[%s5094 + $0x18] sm:$0xe]
  %v5728 = vld [vmem:[%s5094 + $0x1c] sm:$0x1]
  %v5729 = vld [vmem:[%s5094 + $0x20] sm:$0xe]
  %v5730 = vld [vmem:[%s5094 + $0x24] sm:$0x1]
  %v5731 = vld [vmem:[%s5094 + $0x28] sm:$0xe]
  %v5732 = vld [vmem:[%s5094 + $0x2c] sm:$0x1]
  %v5733 = vld [vmem:[%s5094 + $0x30] sm:$0xe]
  %v5734 = vld [vmem:[%s5094 + $0x34] sm:$0x1]
  %v5735 = vld [vmem:[%s5094 + $0x38] sm:$0xe]
  %v5736 = vld [vmem:[%s5094 + $0x3c] sm:$0x1]
  %v5737 = vld [vmem:[%s5094 + $0x50] sm:$0xe]
  %v5738 = vld [vmem:[%s5094 + $0x54] sm:$0x1]
  %v5739 = vld [vmem:[%s5094 + $0x58] sm:$0xe]
  %v5740 = vld [vmem:[%s5094 + $0x5c] sm:$0x1]
  %v5741 = vld [vmem:[%s5094 + $0x60] sm:$0xe]
  %v5742 = vld [vmem:[%s5094 + $0x64] sm:$0x1]
  %v5743 = vld [vmem:[%s5094 + $0x68] sm:$0xe]
  %v5744 = vld [vmem:[%s5094 + $0x6c] sm:$0x1]
  %v5745 = vld [vmem:[%s5094 + $0x70] sm:$0xe]
  %v5746 = vld [vmem:[%s5094 + $0x74] sm:$0x1]
  %v5747 = vld [vmem:[%s5094 + $0x78] sm:$0xe]
  %v5748 = vld [vmem:[%s5094 + $0x7c] sm:$0x1]
  %v5749 = vld [vmem:[%s5094 + $0x80] sm:$0xe]
  %v5750 = vld [vmem:[%s5094 + $0x84] sm:$0x1]
  %v5751 = vld [vmem:[%s5094 + $0x88] sm:$0xe]
  %v5752 = vld [vmem:[%s5094 + $0x8c] sm:$0x1]
  %v5785 = vrot.slane %v5721, 5
  %v5786 = vrot.slane %v5785, 4
  %v5787 = vrot.slane %v5722, 5
  %v5788 = vsel %vm721, %v5786, %v5787
  %v5789 = vrot.slane %v5723, 5
  %v5790 = vrot.slane %v5789, 4
  %v5791 = vrot.slane %v5724, 5
  %v5792 = vsel %vm721, %v5790, %v5791
  %v5793 = vrot.slane %v5725, 5
  %v5794 = vrot.slane %v5793, 4
  %v5795 = vrot.slane %v5726, 5
  %v5796 = vsel %vm721, %v5794, %v5795
  %v5797 = vrot.slane %v5727, 5
  %v5798 = vrot.slane %v5797, 4
  %v5799 = vrot.slane %v5728, 5
  %v5800 = vsel %vm721, %v5798, %v5799
  %v5801 = vrot.slane %v5729, 5
  %v5802 = vrot.slane %v5801, 4
  %v5803 = vrot.slane %v5730, 5
  %v5804 = vsel %vm721, %v5802, %v5803
  %v5805 = vrot.slane %v5731, 5
  %v5806 = vrot.slane %v5805, 4
  %v5807 = vrot.slane %v5732, 5
  %v5808 = vsel %vm721, %v5806, %v5807
  %v5809 = vrot.slane %v5733, 5
  %v5810 = vrot.slane %v5809, 4
  %v5811 = vrot.slane %v5734, 5
  %v5812 = vsel %vm721, %v5810, %v5811
  %v5813 = vrot.slane %v5735, 5
  %v5814 = vrot.slane %v5813, 4
  %v5815 = vrot.slane %v5736, 5
  %v5816 = vsel %vm721, %v5814, %v5815
  %v5817 = vrot.slane %v5737, 5
  %v5818 = vrot.slane %v5817, 4
  %v5819 = vrot.slane %v5738, 5
  %v5820 = vsel %vm721, %v5818, %v5819
  %v5821 = vrot.slane %v5739, 5
  %v5822 = vrot.slane %v5821, 4
  %v5823 = vrot.slane %v5740, 5
  %v5824 = vsel %vm721, %v5822, %v5823
  %v5825 = vrot.slane %v5741, 5
  %v5826 = vrot.slane %v5825, 4
  %v5827 = vrot.slane %v5742, 5
  %v5828 = vsel %vm721, %v5826, %v5827
  %v5829 = vrot.slane %v5743, 5
  %v5830 = vrot.slane %v5829, 4
  %v5831 = vrot.slane %v5744, 5
  %v5832 = vsel %vm721, %v5830, %v5831
  %v5833 = vrot.slane %v5745, 5
  %v5834 = vrot.slane %v5833, 4
  %v5835 = vrot.slane %v5746, 5
  %v5836 = vsel %vm721, %v5834, %v5835
  %v5837 = vrot.slane %v5747, 5
  %v5838 = vrot.slane %v5837, 4
  %v5839 = vrot.slane %v5748, 5
  %v5840 = vsel %vm721, %v5838, %v5839
  %v5841 = vrot.slane %v5749, 5
  %v5842 = vrot.slane %v5841, 4
  %v5843 = vrot.slane %v5750, 5
  %v5844 = vsel %vm721, %v5842, %v5843
  %v5845 = vrot.slane %v5751, 5
  %v5846 = vrot.slane %v5845, 4
  %v5847 = vrot.slane %v5752, 5
  %v5848 = vsel %vm721, %v5846, %v5847
  %v5849 = vld [vmem:[%s5] sm:$0xf]
  %v5850 = vld [vmem:[%s5 + $0x4] sm:$0xf]
  %v5851 = vld [vmem:[%s5 + $0x8] sm:$0xf]
  %v5852 = vld [vmem:[%s5 + $0xc] sm:$0xf]
  %v5853 = vld [vmem:[%s5 + $0x10] sm:$0xf]
  %v5854 = vld [vmem:[%s5 + $0x14] sm:$0xf]
  %v5855 = vld [vmem:[%s5 + $0x18] sm:$0xf]
  %v5856 = vld [vmem:[%s5 + $0x1c] sm:$0xf]
  %v5857 = vld [vmem:[%s5 + $0x20] sm:$0xf]
  %v5858 = vld [vmem:[%s5 + $0x24] sm:$0xf]
  %v5859 = vld [vmem:[%s5 + $0x28] sm:$0xf]
  %v5860 = vld [vmem:[%s5 + $0x2c] sm:$0xf]
  %v5861 = vld [vmem:[%s5 + $0x30] sm:$0xf]
  %v5862 = vld [vmem:[%s5 + $0x34] sm:$0xf]
  %v5863 = vld [vmem:[%s5 + $0x38] sm:$0xf]
  %v5864 = vld [vmem:[%s5 + $0x3c] sm:$0xf]
  %v5865 = vunpack.c.l.b16 %v5788
  %v5866 = vunpack.c.l.b16 %v5792
  %v5867 = vunpack.c.l.b16 %v5796
  %v5868 = vunpack.c.l.b16 %v5800
  %v5869 = vunpack.c.l.b16 %v5804
  %v5870 = vunpack.c.l.b16 %v5808
  %v5871 = vunpack.c.l.b16 %v5812
  %v5872 = vunpack.c.l.b16 %v5816
  %v5873 = vunpack.c.l.b16 %v5820
  %v5874 = vunpack.c.l.b16 %v5824
  %v5875 = vunpack.c.l.b16 %v5828
  %v5876 = vunpack.c.l.b16 %v5832
  %v5877 = vunpack.c.l.b16 %v5836
  %v5878 = vunpack.c.l.b16 %v5840
  %v5879 = vunpack.c.l.b16 %v5844
  %v5880 = vunpack.c.l.b16 %v5848
  %v5881 = vpack.c.b16 %v5866, %v5865
  %v5882 = vpack.c.b16 %v5868, %v5867
  %v5883 = vpack.c.b16 %v5870, %v5869
  %v5884 = vpack.c.b16 %v5872, %v5871
  %v5885 = vpack.c.b16 %v5874, %v5873
  %v5886 = vpack.c.b16 %v5876, %v5875
  %v5887 = vpack.c.b16 %v5878, %v5877
  %v5888 = vpack.c.b16 %v5880, %v5879
  %v5913 = vunpack.c.l.b16 %v5849
  %v5914 = vunpack.c.l.b16 %v5850
  %v5915 = vunpack.c.l.b16 %v5851
  %v5916 = vunpack.c.l.b16 %v5852
  %v5917 = vunpack.c.l.b16 %v5853
  %v5918 = vunpack.c.l.b16 %v5854
  %v5919 = vunpack.c.l.b16 %v5855
  %v5920 = vunpack.c.l.b16 %v5856
  %v5921 = vunpack.c.l.b16 %v5857
  %v5922 = vunpack.c.l.b16 %v5858
  %v5923 = vunpack.c.l.b16 %v5859
  %v5924 = vunpack.c.l.b16 %v5860
  %v5925 = vunpack.c.l.b16 %v5861
  %v5926 = vunpack.c.l.b16 %v5862
  %v5927 = vunpack.c.l.b16 %v5863
  %v5928 = vunpack.c.l.b16 %v5864
  %v5929 = vpack.c.b16 %v5914, %v5913
  %v5930 = vpack.c.b16 %v5916, %v5915
  %v5931 = vpack.c.b16 %v5918, %v5917
  %v5932 = vpack.c.b16 %v5920, %v5919
  %v5933 = vpack.c.b16 %v5922, %v5921
  %v5934 = vpack.c.b16 %v5924, %v5923
  %v5935 = vpack.c.b16 %v5926, %v5925
  %v5936 = vpack.c.b16 %v5928, %v5927
  %5945 = vmatprep.subr.bf16.mxu0 0
  %5946 = vmatpush1.bf16.msra.mxu0 %v5929
  %5947 = vmatprep.subr.bf16.mxu0 0
  %5948 = vmatpush1.bf16.msra.mxu0 %v5930
  %5949 = vmatprep.subr.bf16.mxu0 0
  %5950 = vmatpush1.bf16.msra.mxu0 %v5931
  %5951 = vmatprep.subr.bf16.mxu0 0
  %5952 = vmatpush1.bf16.msra.mxu0 %v5932
  %5953 = vmatprep.subr.bf16.mxu0 0
  %5954 = vmatpush1.bf16.msra.mxu0 %v5933
  %5955 = vmatprep.subr.bf16.mxu0 0
  %5956 = vmatpush1.bf16.msra.mxu0 %v5934
  %5957 = vmatprep.subr.bf16.mxu0 0
  %5958 = vmatpush1.bf16.msra.mxu0 %v5935
  %5959 = vmatprep.subr.bf16.mxu0 0
  %5960 = vmatpush1.bf16.msra.mxu0 %v5936
  %5961 = vmatprep.subr.bf16.mxu0 0
  %5962 = vmatpush1.bf16.msra.mxu0 0
  %5963 = vmatprep.subr.bf16.mxu0 0
  %5964 = vmatpush1.bf16.msra.mxu0 0
  %5965 = vmatprep.subr.bf16.mxu0 0
  %5966 = vmatpush1.bf16.msra.mxu0 0
  %5967 = vmatprep.subr.bf16.mxu0 0
  %5968 = vmatpush1.bf16.msra.mxu0 0
  %5969 = vmatprep.subr.bf16.mxu0 0
  %5970 = vmatpush1.bf16.msra.mxu0 0
  %5971 = vmatprep.subr.bf16.mxu0 0
  %5972 = vmatpush1.bf16.msra.mxu0 0
  %5973 = vmatprep.subr.bf16.mxu0 0
  %5974 = vmatpush1.bf16.msra.mxu0 0
  %5975 = vmatprep.subr.bf16.mxu0 0
  %5976 = vmatpush1.bf16.msra.mxu0 0
  %5977 = vmatprep.mubr.bf16.mxu0 0
  %5978 = vmatmul.mubr.bf16.gmra.mrb[0].mxu0 %v5881
  %v5979 = vpop.f32.mrb[0].mxu0
  %v5980 = vadd.f32 0.0, %v5979
  %v5981 = vpop.f32.mrb[0].mxu0
  %v5982 = vpop.f32.mrb[0].mxu0
  %v5983 = vadd.f32 0.0, %v5982
  %v5984 = vpop.f32.mrb[0].mxu0
  %5985 = vmatprep.mubr.bf16.mxu0 0
  %5986 = vmatmul.mubr.bf16.gmra.mrb[0].mxu0 %v5882
  %v5987 = vpop.f32.mrb[0].mxu0
  %v5988 = vadd.f32 0.0, %v5987
  %v5989 = vpop.f32.mrb[0].mxu0
  %v5990 = vpop.f32.mrb[0].mxu0
  %v5991 = vadd.f32 0.0, %v5990
  %v5992 = vpop.f32.mrb[0].mxu0
  %5993 = vmatprep.mubr.bf16.mxu0 0
  %5994 = vmatmul.mubr.bf16.gmra.mrb[0].mxu0 %v5883
  %v5995 = vpop.f32.mrb[0].mxu0
  %v5996 = vadd.f32 0.0, %v5995
  %v5997 = vpop.f32.mrb[0].mxu0
  %v5998 = vpop.f32.mrb[0].mxu0
  %v5999 = vadd.f32 0.0, %v5998
  %v6000 = vpop.f32.mrb[0].mxu0
  %6001 = vmatprep.mubr.bf16.mxu0 0
  %6002 = vmatmul.mubr.bf16.gmra.mrb[0].mxu0 %v5884
  %v6003 = vpop.f32.mrb[0].mxu0
  %v6004 = vadd.f32 0.0, %v6003
  %v6005 = vpop.f32.mrb[0].mxu0
  %v6006 = vpop.f32.mrb[0].mxu0
  %v6007 = vadd.f32 0.0, %v6006
  %v6008 = vpop.f32.mrb[0].mxu0
  %6009 = vmatprep.mubr.bf16.mxu0 0
  %6010 = vmatmul.mubr.bf16.gmra.mrb[0].mxu0 %v5885
  %v6011 = vpop.f32.mrb[0].mxu0
  %v6012 = vadd.f32 0.0, %v6011
  %v6013 = vpop.f32.mrb[0].mxu0
  %v6014 = vpop.f32.mrb[0].mxu0
  %v6015 = vadd.f32 0.0, %v6014
  %v6016 = vpop.f32.mrb[0].mxu0
  %6017 = vmatprep.mubr.bf16.mxu0 0
  %6018 = vmatmul.mubr.bf16.gmra.mrb[0].mxu0 %v5886
  %v6019 = vpop.f32.mrb[0].mxu0
  %v6020 = vadd.f32 0.0, %v6019
  %v6021 = vpop.f32.mrb[0].mxu0
  %v6022 = vpop.f32.mrb[0].mxu0
  %v6023 = vadd.f32 0.0, %v6022
  %v6024 = vpop.f32.mrb[0].mxu0
  %6025 = vmatprep.mubr.bf16.mxu0 0
  %6026 = vmatmul.mubr.bf16.gmra.mrb[0].mxu0 %v5887
  %v6027 = vpop.f32.mrb[0].mxu0
  %v6028 = vadd.f32 0.0, %v6027
  %v6029 = vpop.f32.mrb[0].mxu0
  %v6030 = vpop.f32.mrb[0].mxu0
  %v6031 = vadd.f32 0.0, %v6030
  %v6032 = vpop.f32.mrb[0].mxu0
  %6033 = vmatprep.mubr.bf16.mxu0 0
  %6034 = vmatmul.mubr.bf16.gmra.mrb[0].mxu0 %v5888
  %v6035 = vpop.f32.mrb[0].mxu0
  %v6036 = vadd.f32 0.0, %v6035
  %v6037 = vpop.f32.mrb[0].mxu0
  %v6038 = vpop.f32.mrb[0].mxu0
  %v6039 = vadd.f32 0.0, %v6038
  %v6040 = vpop.f32.mrb[0].mxu0
  %6041 = vdwg.mxu0
  %v6042 = vadd.f32 %v5705, %v5980
  %v6043 = vadd.f32 %v5706, %v5983
  %v6044 = vadd.f32 %v5707, %v5988
  %v6045 = vadd.f32 %v5708, %v5991
  %v6046 = vadd.f32 %v5709, %v5996
  %v6047 = vadd.f32 %v5710, %v5999
  %v6048 = vadd.f32 %v5711, %v6004
  %v6049 = vadd.f32 %v5712, %v6007
  %v6050 = vadd.f32 %v5713, %v6012
  %v6051 = vadd.f32 %v5714, %v6015
  %v6052 = vadd.f32 %v5715, %v6020
  %v6053 = vadd.f32 %v5716, %v6023
  %v6054 = vadd.f32 %v5717, %v6028
  %v6055 = vadd.f32 %v5718, %v6031
  %v6056 = vadd.f32 %v5719, %v6036
  %v6057 = vadd.f32 %v5720, %v6039
  %6058 = vst [vmem:[#allocation3] sm:$0xff] %v6042
  %6059 = vst [vmem:[#allocation3 + $0x8] sm:$0xff] %v6043
  %6060 = vst [vmem:[#allocation3 + $0x10] sm:$0xff] %v6044
  %6061 = vst [vmem:[#allocation3 + $0x18] sm:$0xff] %v6045
  %6062 = vst [vmem:[#allocation3 + $0x20] sm:$0xff] %v6046
  %6063 = vst [vmem:[#allocation3 + $0x28] sm:$0xff] %v6047
  %6064 = vst [vmem:[#allocation3 + $0x30] sm:$0xff] %v6048
  %6065 = vst [vmem:[#allocation3 + $0x38] sm:$0xff] %v6049
  %6066 = vst [vmem:[#allocation3 + $0x40] sm:$0xff] %v6050
  %6067 = vst [vmem:[#allocation3 + $0x48] sm:$0xff] %v6051
  %6068 = vst [vmem:[#allocation3 + $0x50] sm:$0xff] %v6052
  %6069 = vst [vmem:[#allocation3 + $0x58] sm:$0xff] %v6053
  %6070 = vst [vmem:[#allocation3 + $0x60] sm:$0xff] %v6054
  %6071 = vst [vmem:[#allocation3 + $0x68] sm:$0xff] %v6055
  %6072 = vst [vmem:[#allocation3 + $0x70] sm:$0xff] %v6056
  %6073 = vst [vmem:[#allocation3 + $0x78] sm:$0xff] %v6057
  %v6074 = vld [vmem:[%s786] sm:$0xf]
  %v6075 = vld [vmem:[%s786 + $0x4] sm:$0x1]
  %v6076 = vld [vmem:[%s786 + $0x8] sm:$0xf]
  %v6077 = vld [vmem:[%s786 + $0xc] sm:$0x1]
  %v6078 = vld [vmem:[%s786 + $0x10] sm:$0xf]
  %v6079 = vld [vmem:[%s786 + $0x14] sm:$0x1]
  %v6080 = vld [vmem:[%s786 + $0x18] sm:$0xf]
  %v6081 = vld [vmem:[%s786 + $0x1c] sm:$0x1]
  %v6082 = vld [vmem:[%s786 + $0x20] sm:$0xf]
  %v6083 = vld [vmem:[%s786 + $0x24] sm:$0x1]
  %v6084 = vld [vmem:[%s786 + $0x28] sm:$0xf]
  %v6085 = vld [vmem:[%s786 + $0x2c] sm:$0x1]
  %v6086 = vld [vmem:[%s786 + $0x30] sm:$0xf]
  %v6087 = vld [vmem:[%s786 + $0x34] sm:$0x1]
  %v6088 = vld [vmem:[%s786 + $0x38] sm:$0xf]
  %v6089 = vld [vmem:[%s786 + $0x3c] sm:$0x1]
  %v6090 = vld [vmem:[%s786 + $0x50] sm:$0xf]
  %v6091 = vld [vmem:[%s786 + $0x54] sm:$0x1]
  %v6092 = vld [vmem:[%s786 + $0x58] sm:$0xf]
  %v6093 = vld [vmem:[%s786 + $0x5c] sm:$0x1]
  %v6094 = vld [vmem:[%s786 + $0x60] sm:$0xf]
  %v6095 = vld [vmem:[%s786 + $0x64] sm:$0x1]
  %v6096 = vld [vmem:[%s786 + $0x68] sm:$0xf]
  %v6097 = vld [vmem:[%s786 + $0x6c] sm:$0x1]
  %v6098 = vld [vmem:[%s786 + $0x70] sm:$0xf]
  %v6099 = vld [vmem:[%s786 + $0x74] sm:$0x1]
  %v6100 = vld [vmem:[%s786 + $0x78] sm:$0xf]
  %v6101 = vld [vmem:[%s786 + $0x7c] sm:$0x1]
  %v6102 = vld [vmem:[%s786 + $0x80] sm:$0xf]
  %v6103 = vld [vmem:[%s786 + $0x84] sm:$0x1]
  %v6104 = vld [vmem:[%s786 + $0x88] sm:$0xf]
  %v6105 = vld [vmem:[%s786 + $0x8c] sm:$0x1]
  %v6107 = vshrl.u32 %v6074, 16
  %v6109 = vrot.slane %v6107, 4
  %v6110 = vshll.u32 %v6074, 16
  %v6112 = vrot.slane %v6110, 5
  %v6113 = vor.u32 %v6109, %v6112
  %v6114 = vrot.slane %v6113, 4
  %v6116 = vshll.u32 %v6075, 16
  %v6118 = vrot.slane %v6116, 5
  %v6119 = vsel %vm77, %v6114, %v6118
  %v6121 = vshrl.u32 %v6076, 16
  %v6123 = vrot.slane %v6121, 4
  %v6124 = vshll.u32 %v6076, 16
  %v6126 = vrot.slane %v6124, 5
  %v6127 = vor.u32 %v6123, %v6126
  %v6128 = vrot.slane %v6127, 4
  %v6130 = vshll.u32 %v6077, 16
  %v6132 = vrot.slane %v6130, 5
  %v6133 = vsel %vm77, %v6128, %v6132
  %v6135 = vshrl.u32 %v6078, 16
  %v6137 = vrot.slane %v6135, 4
  %v6138 = vshll.u32 %v6078, 16
  %v6140 = vrot.slane %v6138, 5
  %v6141 = vor.u32 %v6137, %v6140
  %v6142 = vrot.slane %v6141, 4
  %v6144 = vshll.u32 %v6079, 16
  %v6146 = vrot.slane %v6144, 5
  %v6147 = vsel %vm77, %v6142, %v6146
  %v6149 = vshrl.u32 %v6080, 16
  %v6151 = vrot.slane %v6149, 4
  %v6152 = vshll.u32 %v6080, 16
  %v6154 = vrot.slane %v6152, 5
  %v6155 = vor.u32 %v6151, %v6154
  %v6156 = vrot.slane %v6155, 4
  %v6158 = vshll.u32 %v6081, 16
  %v6160 = vrot.slane %v6158, 5
  %v6161 = vsel %vm77, %v6156, %v6160
  %v6163 = vshrl.u32 %v6082, 16
  %v6165 = vrot.slane %v6163, 4
  %v6166 = vshll.u32 %v6082, 16
  %v6168 = vrot.slane %v6166, 5
  %v6169 = vor.u32 %v6165, %v6168
  %v6170 = vrot.slane %v6169, 4
  %v6172 = vshll.u32 %v6083, 16
  %v6174 = vrot.slane %v6172, 5
  %v6175 = vsel %vm77, %v6170, %v6174
  %v6177 = vshrl.u32 %v6084, 16
  %v6179 = vrot.slane %v6177, 4
  %v6180 = vshll.u32 %v6084, 16
  %v6182 = vrot.slane %v6180, 5
  %v6183 = vor.u32 %v6179, %v6182
  %v6184 = vrot.slane %v6183, 4
  %v6186 = vshll.u32 %v6085, 16
  %v6188 = vrot.slane %v6186, 5
  %v6189 = vsel %vm77, %v6184, %v6188
  %v6191 = vshrl.u32 %v6086, 16
  %v6193 = vrot.slane %v6191, 4
  %v6194 = vshll.u32 %v6086, 16
  %v6196 = vrot.slane %v6194, 5
  %v6197 = vor.u32 %v6193, %v6196
  %v6198 = vrot.slane %v6197, 4
  %v6200 = vshll.u32 %v6087, 16
  %v6202 = vrot.slane %v6200, 5
  %v6203 = vsel %vm77, %v6198, %v6202
  %v6205 = vshrl.u32 %v6088, 16
  %v6207 = vrot.slane %v6205, 4
  %v6208 = vshll.u32 %v6088, 16
  %v6210 = vrot.slane %v6208, 5
  %v6211 = vor.u32 %v6207, %v6210
  %v6212 = vrot.slane %v6211, 4
  %v6214 = vshll.u32 %v6089, 16
  %v6216 = vrot.slane %v6214, 5
  %v6217 = vsel %vm77, %v6212, %v6216
  %v6219 = vshrl.u32 %v6090, 16
  %v6221 = vrot.slane %v6219, 4
  %v6222 = vshll.u32 %v6090, 16
  %v6224 = vrot.slane %v6222, 5
  %v6225 = vor.u32 %v6221, %v6224
  %v6226 = vrot.slane %v6225, 4
  %v6228 = vshll.u32 %v6091, 16
  %v6230 = vrot.slane %v6228, 5
  %v6231 = vsel %vm77, %v6226, %v6230
  %v6233 = vshrl.u32 %v6092, 16
  %v6235 = vrot.slane %v6233, 4
  %v6236 = vshll.u32 %v6092, 16
  %v6238 = vrot.slane %v6236, 5
  %v6239 = vor.u32 %v6235, %v6238
  %v6240 = vrot.slane %v6239, 4
  %v6242 = vshll.u32 %v6093, 16
  %v6244 = vrot.slane %v6242, 5
  %v6245 = vsel %vm77, %v6240, %v6244
  %v6247 = vshrl.u32 %v6094, 16
  %v6249 = vrot.slane %v6247, 4
  %v6250 = vshll.u32 %v6094, 16
  %v6252 = vrot.slane %v6250, 5
  %v6253 = vor.u32 %v6249, %v6252
  %v6254 = vrot.slane %v6253, 4
  %v6256 = vshll.u32 %v6095, 16
  %v6258 = vrot.slane %v6256, 5
  %v6259 = vsel %vm77, %v6254, %v6258
  %v6261 = vshrl.u32 %v6096, 16
  %v6263 = vrot.slane %v6261, 4
  %v6264 = vshll.u32 %v6096, 16
  %v6266 = vrot.slane %v6264, 5
  %v6267 = vor.u32 %v6263, %v6266
  %v6268 = vrot.slane %v6267, 4
  %v6270 = vshll.u32 %v6097, 16
  %v6272 = vrot.slane %v6270, 5
  %v6273 = vsel %vm77, %v6268, %v6272
  %v6275 = vshrl.u32 %v6098, 16
  %v6277 = vrot.slane %v6275, 4
  %v6278 = vshll.u32 %v6098, 16
  %v6280 = vrot.slane %v6278, 5
  %v6281 = vor.u32 %v6277, %v6280
  %v6282 = vrot.slane %v6281, 4
  %v6284 = vshll.u32 %v6099, 16
  %v6286 = vrot.slane %v6284, 5
  %v6287 = vsel %vm77, %v6282, %v6286
  %v6289 = vshrl.u32 %v6100, 16
  %v6291 = vrot.slane %v6289, 4
  %v6292 = vshll.u32 %v6100, 16
  %v6294 = vrot.slane %v6292, 5
  %v6295 = vor.u32 %v6291, %v6294
  %v6296 = vrot.slane %v6295, 4
  %v6298 = vshll.u32 %v6101, 16
  %v6300 = vrot.slane %v6298, 5
  %v6301 = vsel %vm77, %v6296, %v6300
  %v6303 = vshrl.u32 %v6102, 16
  %v6305 = vrot.slane %v6303, 4
  %v6306 = vshll.u32 %v6102, 16
  %v6308 = vrot.slane %v6306, 5
  %v6309 = vor.u32 %v6305, %v6308
  %v6310 = vrot.slane %v6309, 4
  %v6312 = vshll.u32 %v6103, 16
  %v6314 = vrot.slane %v6312, 5
  %v6315 = vsel %vm77, %v6310, %v6314
  %v6317 = vshrl.u32 %v6104, 16
  %v6319 = vrot.slane %v6317, 4
  %v6320 = vshll.u32 %v6104, 16
  %v6322 = vrot.slane %v6320, 5
  %v6323 = vor.u32 %v6319, %v6322
  %v6324 = vrot.slane %v6323, 4
  %v6326 = vshll.u32 %v6105, 16
  %v6328 = vrot.slane %v6326, 5
  %v6329 = vsel %vm77, %v6324, %v6328
  %v6346 = vunpack.c.l.bf16 %v6119
  %v6347 = vunpack.c.l.bf16 %v6133
  %v6348 = vunpack.c.l.bf16 %v6147
  %v6349 = vunpack.c.l.bf16 %v6161
  %v6350 = vunpack.c.l.bf16 %v6175
  %v6351 = vunpack.c.l.bf16 %v6189
  %v6352 = vunpack.c.l.bf16 %v6203
  %v6353 = vunpack.c.l.bf16 %v6217
  %v6354 = vunpack.c.l.bf16 %v6231
  %v6355 = vunpack.c.l.bf16 %v6245
  %v6356 = vunpack.c.l.bf16 %v6259
  %v6357 = vunpack.c.l.bf16 %v6273
  %v6358 = vunpack.c.l.bf16 %v6287
  %v6359 = vunpack.c.l.bf16 %v6301
  %v6360 = vunpack.c.l.bf16 %v6315
  %v6361 = vunpack.c.l.bf16 %v6329
  %v6362 = vld [vmem:[#allocation3] sm:$0xff]
  %v6363 = vld [vmem:[#allocation3 + $0x8] sm:$0xff]
  %v6364 = vld [vmem:[#allocation3 + $0x10] sm:$0xff]
  %v6365 = vld [vmem:[#allocation3 + $0x18] sm:$0xff]
  %v6366 = vld [vmem:[#allocation3 + $0x20] sm:$0xff]
  %v6367 = vld [vmem:[#allocation3 + $0x28] sm:$0xff]
  %v6368 = vld [vmem:[#allocation3 + $0x30] sm:$0xff]
  %v6369 = vld [vmem:[#allocation3 + $0x38] sm:$0xff]
  %v6370 = vld [vmem:[#allocation3 + $0x40] sm:$0xff]
  %v6371 = vld [vmem:[#allocation3 + $0x48] sm:$0xff]
  %v6372 = vld [vmem:[#allocation3 + $0x50] sm:$0xff]
  %v6373 = vld [vmem:[#allocation3 + $0x58] sm:$0xff]
  %v6374 = vld [vmem:[#allocation3 + $0x60] sm:$0xff]
  %v6375 = vld [vmem:[#allocation3 + $0x68] sm:$0xff]
  %v6376 = vld [vmem:[#allocation3 + $0x70] sm:$0xff]
  %v6377 = vld [vmem:[#allocation3 + $0x78] sm:$0xff]
  %v6378 = vld [vmem:[%s6] sm:$0x1]
  %v6380 = vlaneseq
  %v6381 = vshrl.u32 %v6380, 7
  %v6382 = vsub.s32 0, %v6381
  %v6383 = vrot.slane %v6378, %v6382
  %v6385 = vadd.f32 %v6362, %v6383
  %v6386 = vadd.f32 %v6363, %v6383
  %v6387 = vadd.f32 %v6364, %v6383
  %v6388 = vadd.f32 %v6365, %v6383
  %v6389 = vadd.f32 %v6366, %v6383
  %v6390 = vadd.f32 %v6367, %v6383
  %v6391 = vadd.f32 %v6368, %v6383
  %v6392 = vadd.f32 %v6369, %v6383
  %v6393 = vadd.f32 %v6370, %v6383
  %v6394 = vadd.f32 %v6371, %v6383
  %v6395 = vadd.f32 %v6372, %v6383
  %v6396 = vadd.f32 %v6373, %v6383
  %v6397 = vadd.f32 %v6374, %v6383
  %v6398 = vadd.f32 %v6375, %v6383
  %v6399 = vadd.f32 %v6376, %v6383
  %v6400 = vadd.f32 %v6377, %v6383
  %v6401 = vadd.f32 %v6385, %v6346
  %v6402 = vadd.f32 %v6386, %v6347
  %v6403 = vadd.f32 %v6387, %v6348
  %v6404 = vadd.f32 %v6388, %v6349
  %v6405 = vadd.f32 %v6389, %v6350
  %v6406 = vadd.f32 %v6390, %v6351
  %v6407 = vadd.f32 %v6391, %v6352
  %v6408 = vadd.f32 %v6392, %v6353
  %v6409 = vadd.f32 %v6393, %v6354
  %v6410 = vadd.f32 %v6394, %v6355
  %v6411 = vadd.f32 %v6395, %v6356
  %v6412 = vadd.f32 %v6396, %v6357
  %v6413 = vadd.f32 %v6397, %v6358
  %v6414 = vadd.f32 %v6398, %v6359
  %v6415 = vadd.f32 %v6399, %v6360
  %v6416 = vadd.f32 %v6400, %v6361
  %v6417 = vmax.f32 %v6401, 0.0
  %v6418 = vmax.f32 %v6402, 0.0
  %v6419 = vmax.f32 %v6403, 0.0
  %v6420 = vmax.f32 %v6404, 0.0
  %v6421 = vmax.f32 %v6405, 0.0
  %v6422 = vmax.f32 %v6406, 0.0
  %v6423 = vmax.f32 %v6407, 0.0
  %v6424 = vmax.f32 %v6408, 0.0
  %v6425 = vmax.f32 %v6409, 0.0
  %v6426 = vmax.f32 %v6410, 0.0
  %v6427 = vmax.f32 %v6411, 0.0
  %v6428 = vmax.f32 %v6412, 0.0
  %v6429 = vmax.f32 %v6413, 0.0
  %v6430 = vmax.f32 %v6414, 0.0
  %v6431 = vmax.f32 %v6415, 0.0
  %v6432 = vmax.f32 %v6416, 0.0
  %6433 = vst [vmem:[%s7] sm:$0xf] 0
  %6434 = vst [vmem:[%s7 + $0x4] sm:$0x1] 0
  %6435 = vst [vmem:[%s7 + $0x8] sm:$0xf] 0
  %6436 = vst [vmem:[%s7 + $0xc] sm:$0x1] 0
  %6437 = vst [vmem:[%s7 + $0x10] sm:$0xf] 0
  %6438 = vst [vmem:[%s7 + $0x14] sm:$0x1] 0
  %6439 = vst [vmem:[%s7 + $0x18] sm:$0xf] 0
  %6440 = vst [vmem:[%s7 + $0x1c] sm:$0x1] 0
  %6441 = vst [vmem:[%s7 + $0x20] sm:$0xf] 0
  %6442 = vst [vmem:[%s7 + $0x24] sm:$0x1] 0
  %6443 = vst [vmem:[%s7 + $0x28] sm:$0xf] 0
  %6444 = vst [vmem:[%s7 + $0x2c] sm:$0x1] 0
  %6445 = vst [vmem:[%s7 + $0x30] sm:$0xf] 0
  %6446 = vst [vmem:[%s7 + $0x34] sm:$0x1] 0
  %6447 = vst [vmem:[%s7 + $0x38] sm:$0xf] 0
  %6448 = vst [vmem:[%s7 + $0x3c] sm:$0x1] 0
  %6449 = vst [vmem:[%s7 + $0x40] sm:$0xf] 0
  %6450 = vst [vmem:[%s7 + $0x44] sm:$0x1] 0
  %6451 = vst [vmem:[%s7 + $0x48] sm:$0xf] 0
  %6452 = vst [vmem:[%s7 + $0x4c] sm:$0x1] 0
  %6453 = vst [vmem:[%s7 + $0x50] sm:$0xf] 0
  %6454 = vst [vmem:[%s7 + $0x54] sm:$0x1] 0
  %6455 = vst [vmem:[%s7 + $0x58] sm:$0xf] 0
  %6456 = vst [vmem:[%s7 + $0x5c] sm:$0x1] 0
  %6457 = vst [vmem:[%s7 + $0x60] sm:$0xf] 0
  %6458 = vst [vmem:[%s7 + $0x64] sm:$0x1] 0
  %6459 = vst [vmem:[%s7 + $0x68] sm:$0xf] 0
  %6460 = vst [vmem:[%s7 + $0x6c] sm:$0x1] 0
  %6461 = vst [vmem:[%s7 + $0x70] sm:$0xf] 0
  %6462 = vst [vmem:[%s7 + $0x74] sm:$0x1] 0
  %6463 = vst [vmem:[%s7 + $0x78] sm:$0xf] 0
  %6464 = vst [vmem:[%s7 + $0x7c] sm:$0x1] 0
  %6465 = vst [vmem:[%s7 + $0x80] sm:$0xf] 0
  %6466 = vst [vmem:[%s7 + $0x84] sm:$0x1] 0
  %6467 = vst [vmem:[%s7 + $0x88] sm:$0xf] 0
  %6468 = vst [vmem:[%s7 + $0x8c] sm:$0x1] 0
  %6469 = vst [vmem:[%s7 + $0x90] sm:$0xf] 0
  %6470 = vst [vmem:[%s7 + $0x94] sm:$0x1] 0
  %6471 = vst [vmem:[%s7 + $0x98] sm:$0xf] 0
  %6472 = vst [vmem:[%s7 + $0x9c] sm:$0x1] 0
  %v6473 = vpack.c.bf16 %v6417, %v6417
  %v6474 = vpack.c.bf16 %v6418, %v6418
  %v6475 = vpack.c.bf16 %v6419, %v6419
  %v6476 = vpack.c.bf16 %v6420, %v6420
  %v6477 = vpack.c.bf16 %v6421, %v6421
  %v6478 = vpack.c.bf16 %v6422, %v6422
  %v6479 = vpack.c.bf16 %v6423, %v6423
  %v6480 = vpack.c.bf16 %v6424, %v6424
  %v6481 = vpack.c.bf16 %v6425, %v6425
  %v6482 = vpack.c.bf16 %v6426, %v6426
  %v6483 = vpack.c.bf16 %v6427, %v6427
  %v6484 = vpack.c.bf16 %v6428, %v6428
  %v6485 = vpack.c.bf16 %v6429, %v6429
  %v6486 = vpack.c.bf16 %v6430, %v6430
  %v6487 = vpack.c.bf16 %v6431, %v6431
  %v6488 = vpack.c.bf16 %v6432, %v6432
  %v6505 = vunpack.c.l.b16 %v6473
  %v6506 = vunpack.c.l.b16 %v6474
  %v6507 = vunpack.c.l.b16 %v6475
  %v6508 = vunpack.c.l.b16 %v6476
  %v6509 = vunpack.c.l.b16 %v6477
  %v6510 = vunpack.c.l.b16 %v6478
  %v6511 = vunpack.c.l.b16 %v6479
  %v6512 = vunpack.c.l.b16 %v6480
  %v6513 = vunpack.c.l.b16 %v6481
  %v6514 = vunpack.c.l.b16 %v6482
  %v6515 = vunpack.c.l.b16 %v6483
  %v6516 = vunpack.c.l.b16 %v6484
  %v6517 = vunpack.c.l.b16 %v6485
  %v6518 = vunpack.c.l.b16 %v6486
  %v6519 = vunpack.c.l.b16 %v6487
  %v6520 = vunpack.c.l.b16 %v6488
  %v6521 = vpack.c.b16 %v6505, %v6505
  %v6522 = vpack.c.b16 %v6506, %v6506
  %v6523 = vpack.c.b16 %v6507, %v6507
  %v6524 = vpack.c.b16 %v6508, %v6508
  %v6525 = vpack.c.b16 %v6509, %v6509
  %v6526 = vpack.c.b16 %v6510, %v6510
  %v6527 = vpack.c.b16 %v6511, %v6511
  %v6528 = vpack.c.b16 %v6512, %v6512
  %v6529 = vpack.c.b16 %v6513, %v6513
  %v6530 = vpack.c.b16 %v6514, %v6514
  %v6531 = vpack.c.b16 %v6515, %v6515
  %v6532 = vpack.c.b16 %v6516, %v6516
  %v6533 = vpack.c.b16 %v6517, %v6517
  %v6534 = vpack.c.b16 %v6518, %v6518
  %v6535 = vpack.c.b16 %v6519, %v6519
  %v6536 = vpack.c.b16 %v6520, %v6520
  %v6538 = vshrl.u32 %v6521, 16
  %v6540 = vrot.slane %v6538, 7
  %v6541 = vshll.u32 %v6521, 16
  %v6543 = vor.u32 %v6540, %v6541
  %v6544 = vrot.slane %v6540, 4
  %v6546 = vshrl.u32 %v6522, 16
  %v6548 = vrot.slane %v6546, 7
  %v6549 = vshll.u32 %v6522, 16
  %v6551 = vor.u32 %v6548, %v6549
  %v6552 = vrot.slane %v6548, 4
  %v6554 = vshrl.u32 %v6523, 16
  %v6556 = vrot.slane %v6554, 7
  %v6557 = vshll.u32 %v6523, 16
  %v6559 = vor.u32 %v6556, %v6557
  %v6560 = vrot.slane %v6556, 4
  %v6562 = vshrl.u32 %v6524, 16
  %v6564 = vrot.slane %v6562, 7
  %v6565 = vshll.u32 %v6524, 16
  %v6567 = vor.u32 %v6564, %v6565
  %v6568 = vrot.slane %v6564, 4
  %v6570 = vshrl.u32 %v6525, 16
  %v6572 = vrot.slane %v6570, 7
  %v6573 = vshll.u32 %v6525, 16
  %v6575 = vor.u32 %v6572, %v6573
  %v6576 = vrot.slane %v6572, 4
  %v6578 = vshrl.u32 %v6526, 16
  %v6580 = vrot.slane %v6578, 7
  %v6581 = vshll.u32 %v6526, 16
  %v6583 = vor.u32 %v6580, %v6581
  %v6584 = vrot.slane %v6580, 4
  %v6586 = vshrl.u32 %v6527, 16
  %v6588 = vrot.slane %v6586, 7
  %v6589 = vshll.u32 %v6527, 16
  %v6591 = vor.u32 %v6588, %v6589
  %v6592 = vrot.slane %v6588, 4
  %v6594 = vshrl.u32 %v6528, 16
  %v6596 = vrot.slane %v6594, 7
  %v6597 = vshll.u32 %v6528, 16
  %v6599 = vor.u32 %v6596, %v6597
  %v6600 = vrot.slane %v6596, 4
  %v6602 = vshrl.u32 %v6529, 16
  %v6604 = vrot.slane %v6602, 7
  %v6605 = vshll.u32 %v6529, 16
  %v6607 = vor.u32 %v6604, %v6605
  %v6608 = vrot.slane %v6604, 4
  %v6610 = vshrl.u32 %v6530, 16
  %v6612 = vrot.slane %v6610, 7
  %v6613 = vshll.u32 %v6530, 16
  %v6615 = vor.u32 %v6612, %v6613
  %v6616 = vrot.slane %v6612, 4
  %v6618 = vshrl.u32 %v6531, 16
  %v6620 = vrot.slane %v6618, 7
  %v6621 = vshll.u32 %v6531, 16
  %v6623 = vor.u32 %v6620, %v6621
  %v6624 = vrot.slane %v6620, 4
  %v6626 = vshrl.u32 %v6532, 16
  %v6628 = vrot.slane %v6626, 7
  %v6629 = vshll.u32 %v6532, 16
  %v6631 = vor.u32 %v6628, %v6629
  %v6632 = vrot.slane %v6628, 4
  %v6634 = vshrl.u32 %v6533, 16
  %v6636 = vrot.slane %v6634, 7
  %v6637 = vshll.u32 %v6533, 16
  %v6639 = vor.u32 %v6636, %v6637
  %v6640 = vrot.slane %v6636, 4
  %v6642 = vshrl.u32 %v6534, 16
  %v6644 = vrot.slane %v6642, 7
  %v6645 = vshll.u32 %v6534, 16
  %v6647 = vor.u32 %v6644, %v6645
  %v6648 = vrot.slane %v6644, 4
  %v6650 = vshrl.u32 %v6535, 16
  %v6652 = vrot.slane %v6650, 7
  %v6653 = vshll.u32 %v6535, 16
  %v6655 = vor.u32 %v6652, %v6653
  %v6656 = vrot.slane %v6652, 4
  %v6658 = vshrl.u32 %v6536, 16
  %v6660 = vrot.slane %v6658, 7
  %v6661 = vshll.u32 %v6536, 16
  %v6663 = vor.u32 %v6660, %v6661
  %v6664 = vrot.slane %v6660, 4
  %s6697 = scalar_lea.vmem %s7, 8
  %v6698 = vld [vmem:[%s6697] sm:$0xf]
  %v6699 = vsel %vm3165, %v6543, %v6698
  %6700 = vst [vmem:[%s6697] sm:$0xf] %v6699
  %v6701 = vld [vmem:[%s6697 + $0x4] sm:$0x1]
  %v6702 = vsel %vm3171, %v6544, %v6701
  %6703 = vst [vmem:[%s6697 + $0x4] sm:$0x1] %v6702
  %v6704 = vld [vmem:[%s6697 + $0x8] sm:$0xf]
  %v6705 = vsel %vm3165, %v6551, %v6704
  %6706 = vst [vmem:[%s6697 + $0x8] sm:$0xf] %v6705
  %v6707 = vld [vmem:[%s6697 + $0xc] sm:$0x1]
  %v6708 = vsel %vm3171, %v6552, %v6707
  %6709 = vst [vmem:[%s6697 + $0xc] sm:$0x1] %v6708
  %v6710 = vld [vmem:[%s6697 + $0x10] sm:$0xf]
  %v6711 = vsel %vm3165, %v6559, %v6710
  %6712 = vst [vmem:[%s6697 + $0x10] sm:$0xf] %v6711
  %v6713 = vld [vmem:[%s6697 + $0x14] sm:$0x1]
  %v6714 = vsel %vm3171, %v6560, %v6713
  %6715 = vst [vmem:[%s6697 + $0x14] sm:$0x1] %v6714
  %v6716 = vld [vmem:[%s6697 + $0x18] sm:$0xf]
  %v6717 = vsel %vm3165, %v6567, %v6716
  %6718 = vst [vmem:[%s6697 + $0x18] sm:$0xf] %v6717
  %v6719 = vld [vmem:[%s6697 + $0x1c] sm:$0x1]
  %v6720 = vsel %vm3171, %v6568, %v6719
  %6721 = vst [vmem:[%s6697 + $0x1c] sm:$0x1] %v6720
  %v6722 = vld [vmem:[%s6697 + $0x20] sm:$0xf]
  %v6723 = vsel %vm3165, %v6575, %v6722
  %6724 = vst [vmem:[%s6697 + $0x20] sm:$0xf] %v6723
  %v6725 = vld [vmem:[%s6697 + $0x24] sm:$0x1]
  %v6726 = vsel %vm3171, %v6576, %v6725
  %6727 = vst [vmem:[%s6697 + $0x24] sm:$0x1] %v6726
  %v6728 = vld [vmem:[%s6697 + $0x28] sm:$0xf]
  %v6729 = vsel %vm3165, %v6583, %v6728
  %6730 = vst [vmem:[%s6697 + $0x28] sm:$0xf] %v6729
  %v6731 = vld [vmem:[%s6697 + $0x2c] sm:$0x1]
  %v6732 = vsel %vm3171, %v6584, %v6731
  %6733 = vst [vmem:[%s6697 + $0x2c] sm:$0x1] %v6732
  %v6734 = vld [vmem:[%s6697 + $0x30] sm:$0xf]
  %v6735 = vsel %vm3165, %v6591, %v6734
  %6736 = vst [vmem:[%s6697 + $0x30] sm:$0xf] %v6735
  %v6737 = vld [vmem:[%s6697 + $0x34] sm:$0x1]
  %v6738 = vsel %vm3171, %v6592, %v6737
  %6739 = vst [vmem:[%s6697 + $0x34] sm:$0x1] %v6738
  %v6740 = vld [vmem:[%s6697 + $0x38] sm:$0xf]
  %v6741 = vsel %vm3165, %v6599, %v6740
  %6742 = vst [vmem:[%s6697 + $0x38] sm:$0xf] %v6741
  %v6743 = vld [vmem:[%s6697 + $0x3c] sm:$0x1]
  %v6744 = vsel %vm3171, %v6600, %v6743
  %6745 = vst [vmem:[%s6697 + $0x3c] sm:$0x1] %v6744
  %v6746 = vld [vmem:[%s6697 + $0x50] sm:$0xf]
  %v6747 = vsel %vm3165, %v6607, %v6746
  %6748 = vst [vmem:[%s6697 + $0x50] sm:$0xf] %v6747
  %v6749 = vld [vmem:[%s6697 + $0x54] sm:$0x1]
  %v6750 = vsel %vm3171, %v6608, %v6749
  %6751 = vst [vmem:[%s6697 + $0x54] sm:$0x1] %v6750
  %v6752 = vld [vmem:[%s6697 + $0x58] sm:$0xf]
  %v6753 = vsel %vm3165, %v6615, %v6752
  %6754 = vst [vmem:[%s6697 + $0x58] sm:$0xf] %v6753
  %v6755 = vld [vmem:[%s6697 + $0x5c] sm:$0x1]
  %v6756 = vsel %vm3171, %v6616, %v6755
  %6757 = vst [vmem:[%s6697 + $0x5c] sm:$0x1] %v6756
  %v6758 = vld [vmem:[%s6697 + $0x60] sm:$0xf]
  %v6759 = vsel %vm3165, %v6623, %v6758
  %6760 = vst [vmem:[%s6697 + $0x60] sm:$0xf] %v6759
  %v6761 = vld [vmem:[%s6697 + $0x64] sm:$0x1]
  %v6762 = vsel %vm3171, %v6624, %v6761
  %6763 = vst [vmem:[%s6697 + $0x64] sm:$0x1] %v6762
  %v6764 = vld [vmem:[%s6697 + $0x68] sm:$0xf]
  %v6765 = vsel %vm3165, %v6631, %v6764
  %6766 = vst [vmem:[%s6697 + $0x68] sm:$0xf] %v6765
  %v6767 = vld [vmem:[%s6697 + $0x6c] sm:$0x1]
  %v6768 = vsel %vm3171, %v6632, %v6767
  %6769 = vst [vmem:[%s6697 + $0x6c] sm:$0x1] %v6768
  %v6770 = vld [vmem:[%s6697 + $0x70] sm:$0xf]
  %v6771 = vsel %vm3165, %v6639, %v6770
  %6772 = vst [vmem:[%s6697 + $0x70] sm:$0xf] %v6771
  %v6773 = vld [vmem:[%s6697 + $0x74] sm:$0x1]
  %v6774 = vsel %vm3171, %v6640, %v6773
  %6775 = vst [vmem:[%s6697 + $0x74] sm:$0x1] %v6774
  %v6776 = vld [vmem:[%s6697 + $0x78] sm:$0xf]
  %v6777 = vsel %vm3165, %v6647, %v6776
  %6778 = vst [vmem:[%s6697 + $0x78] sm:$0xf] %v6777
  %v6779 = vld [vmem:[%s6697 + $0x7c] sm:$0x1]
  %v6780 = vsel %vm3171, %v6648, %v6779
  %6781 = vst [vmem:[%s6697 + $0x7c] sm:$0x1] %v6780
  %v6782 = vld [vmem:[%s6697 + $0x80] sm:$0xf]
  %v6783 = vsel %vm3165, %v6655, %v6782
  %6784 = vst [vmem:[%s6697 + $0x80] sm:$0xf] %v6783
  %v6785 = vld [vmem:[%s6697 + $0x84] sm:$0x1]
  %v6786 = vsel %vm3171, %v6656, %v6785
  %6787 = vst [vmem:[%s6697 + $0x84] sm:$0x1] %v6786
  %v6788 = vld [vmem:[%s6697 + $0x88] sm:$0xf]
  %v6789 = vsel %vm3165, %v6663, %v6788
  %6790 = vst [vmem:[%s6697 + $0x88] sm:$0xf] %v6789
  %v6791 = vld [vmem:[%s6697 + $0x8c] sm:$0x1]
  %v6792 = vsel %vm3171, %v6664, %v6791
  %6793 = vst [vmem:[%s6697 + $0x8c] sm:$0x1] %v6792
  // Predicated region
  $region30: #{resnet_forward.5} parent=0 // pred_check
    _
  $region31: #{resnet_forward.5} parent=0 // pred_check_branch
    %6795 = sbr.rel (0) target = $region33
  $region32: #{resnet_forward.5} parent=0 // pred_region
    _
  $region33: #{resnet_forward.5} parent=0 // pred_fallthru
    _
  // Predicated region
  $region34: #{resnet_forward.5} parent=0 // pred_check
    _
  $region35: #{resnet_forward.5} parent=0 // pred_check_branch
    %6797 = sbr.rel (0) target = $region37
  $region36: #{resnet_forward.5} parent=0 // pred_region
    _
  $region37: #{resnet_forward.5} parent=0 // pred_fallthru
    _

</llo_original>
